<compile_context>
chip_gen: v5e
topology: v5e:2x2
jax: 0.10.0
libtpu: 0.0.40
codegen_flags: <defaults>
</compile_context>

<pallas_src>
import math
import random
import functools

import jax
import jax.numpy as jnp
from jax import lax
from jax.experimental import pallas as pl
from jax.experimental.pallas import tpu as pltpu

MAP_H, MAP_W = 15, 10          # map_size
QA_SIZE = 7                    # qa_size
METE_SIZE = 4                  # chosen feature width for mete_val
CTX_SIZE = 3                   # chosen feature width for ctx_val
HIDDEN_SIZE = 32               # hidden_size
OUT_SIZE = 8                   # out_size


def generalID(x, y, map_w=MAP_W):
    # generalID is not shown in the reference file; assumed row-major grid id,
    # consistent with `x = id // map_size[1]; y = id % map_size[1]`.
    return x * map_w + y


# ----------------------- fused Pallas kernel -----------------------

def _contextual_kernel(sids_ref,                       # SMEM: masked station ids
                       qa_ref, mete_ref, ctx_ref,      # (N,7) (N,4) (N,3)
                       w1q_ref, w1m_ref, w1c_ref,      # first-layer weight slices
                       b1_ref, w2_ref, b2_ref,         # biases / head weights
                       loss_ref,                       # (1,1) output
                       *, cells_per_frame, inv_per_station):
    qa = qa_ref[...]                                   # original (pre-mask) values
    n, q = qa.shape

    # Row r of the flattened [T,B,H,W] layout has cell id r % (H*W).
    row_cell = lax.broadcasted_iota(jnp.int32, (n, q), 0) % cells_per_frame
    mask = row_cell == sids_ref[0]
    for i in range(1, sids_ref.shape[0]):              # S is static (tiny)
        mask = jnp.logical_or(mask, row_cell == sids_ref[i])

    # Mask the station cells for the model input (labels stay = original qa).
    qa_masked = jnp.where(mask, 0.0, qa)

    # approximate_model stand-in (linear + tanh), concat folded into 3 dots.
    h = (jnp.dot(qa_masked, w1q_ref[...], preferred_element_type=jnp.float32)
         + jnp.dot(mete_ref[...], w1m_ref[...], preferred_element_type=jnp.float32)
         + jnp.dot(ctx_ref[...], w1c_ref[...], preferred_element_type=jnp.float32))
    h = jnp.tanh(h + b1_ref[...])

    # ContextualInference.linear: hidden -> out_size
    out = jnp.dot(h, w2_ref[...], preferred_element_type=jnp.float32) + b2_ref[...]

    # Fused loss epilogue: sum over stations of per-station MSE(mean).
    d = out[:, :q] - qa
    sq = jnp.where(mask, d * d, 0.0)
    loss_ref[...] = jnp.sum(sq, keepdims=True) * inv_per_station


def _fused_contextual_call(sids, qa_flat, mete_flat, ctx_flat,
                           w1q, w1m, w1c, b1, w2, b2,
                           *, cells_per_frame, inv_per_station):
    n, q = qa_flat.shape
    m = mete_flat.shape[1]
    c = ctx_flat.shape[1]
    hidden = w2.shape[0]
    out = w2.shape[1]

    kernel = functools.partial(_contextual_kernel,
                               cells_per_frame=cells_per_frame,
                               inv_per_station=inv_per_station)

    # Single block: every BlockSpec covers the full array (satisfies the
    # (8,128) rule by "block == full dims"), one grid step, one DMA each.
    # TODO(synk): on v7x a grid=(2,) "parallel" row split would use both TCs,
    # but the kernel is launch-overhead bound at this size so it is omitted.
    return pl.pallas_call(
        kernel,
        out_shape=jax.ShapeDtypeStruct((1, 1), jnp.float32),
        grid_spec=pltpu.PrefetchScalarGridSpec(
            num_scalar_prefetch=1,
            grid=(1,),
            in_specs=[
                pl.BlockSpec((n, q), lambda i, s: (0, 0)),
                pl.BlockSpec((n, m), lambda i, s: (0, 0)),
                pl.BlockSpec((n, c), lambda i, s: (0, 0)),
                pl.BlockSpec((q, hidden), lambda i, s: (0, 0)),
                pl.BlockSpec((m, hidden), lambda i, s: (0, 0)),
                pl.BlockSpec((c, hidden), lambda i, s: (0, 0)),
                pl.BlockSpec((1, hidden), lambda i, s: (0, 0)),
                pl.BlockSpec((hidden, out), lambda i, s: (0, 0)),
                pl.BlockSpec((1, out), lambda i, s: (0, 0)),
            ],
            out_specs=pl.BlockSpec((1, 1), lambda i, s: (0, 0)),
        ),
        compiler_params=pltpu.CompilerParams(
            dimension_semantics=("arbitrary",)),
    )(sids, qa_flat, mete_flat, ctx_flat, w1q, w1m, w1c, b1, w2, b2)


# ----------------------- forward (thin glue) -----------------------

def contextual_inference_forward(qa_val, mete_val, ctx_val, params, station_ids,
                                 map_size=(MAP_H, MAP_W), mask_seed=0):
    T, B, H, W, Q = qa_val.shape
    N = T * B * H * W

    # random.sample(stations, ceil(5%)) in the reference is host-side Python
    # RNG; replaced by a seeded deterministic sample (same semantics).
    n_mask = math.ceil(len(station_ids) * 0.05)
    mask_stations = random.Random(mask_seed).sample(list(station_ids), n_mask)
    sids = jnp.asarray(mask_stations, dtype=jnp.int32)

    qa_flat = qa_val.reshape(N, Q).astype(jnp.float32)
    mete_flat = mete_val.reshape(N, mete_val.shape[-1]).astype(jnp.float32)
    ctx_flat = ctx_val.reshape(N, ctx_val.shape[-1]).astype(jnp.float32)

    mete_f = mete_flat.shape[1]
    w1 = params["w1"]                      # (Q + METE + CTX, hidden)
    w1q = w1[:Q]
    w1m = w1[Q:Q + mete_f]
    w1c = w1[Q + mete_f:]

    loss = _fused_contextual_call(
        sids, qa_flat, mete_flat, ctx_flat,
        w1q, w1m, w1c, params["b1"], params["w2"], params["b2"],
        cells_per_frame=H * W,
        inv_per_station=1.0 / float(T * B * Q))
    return loss[0, 0]


def init_params(key):
    k1, k2, k3, k4 = jax.random.split(key, 4)
    f = QA_SIZE + METE_SIZE + CTX_SIZE
    w1 = jax.random.normal(k1, (f, HIDDEN_SIZE), jnp.float32) / jnp.sqrt(f)
    b1 = jax.random.normal(k2, (1, HIDDEN_SIZE), jnp.float32) * 0.01
    w2 = (jax.random.normal(k3, (HIDDEN_SIZE, OUT_SIZE), jnp.float32)
          / jnp.sqrt(HIDDEN_SIZE))
    b2 = jax.random.normal(k4, (1, OUT_SIZE), jnp.float32) * 0.01
    return dict(w1=w1, b1=b1, w2=w2, b2=b2)


if __name__ == "__main__":
    key = jax.random.PRNGKey(0)
    kq, km, kc, kp = jax.random.split(key, 4)

    T, B = 4, 2   # time, batch (batch_first=False layout: [T, B, H, W, feat])
    qa_val = jax.random.normal(kq, (T, B, MAP_H, MAP_W, QA_SIZE), jnp.float32)
    mete_val = jax.random.normal(km, (T, B, MAP_H, MAP_W, METE_SIZE), jnp.float32)
    ctx_val = jax.random.normal(kc, (T, B, MAP_H, MAP_W, CTX_SIZE), jnp.float32)
    params = init_params(kp)

    # 40 deterministic, distinct stations on the 15x10 grid
    station_coords = [((7 * i + 3) % (MAP_H * MAP_W) // MAP_W,
                       (7 * i + 3) % (MAP_H * MAP_W) % MAP_W) for i in range(40)]
    station_ids = [generalID(x, y) for (x, y) in station_coords]

    loss = contextual_inference_forward(qa_val, mete_val, ctx_val,
                                        params, station_ids)
    jax.block_until_ready(loss)
    assert loss.shape == () and jnp.isfinite(loss)
    print("KERNEL_OK")
</pallas_src>

<mosaic_0001>
module attributes {stable_mosaic.version = 11 : i64} {
  func.func @_contextual_kernel(%arg0: i32, %arg1: memref<2xi32, #tpu.memory_space<smem>>, %arg2: memref<1200x7xf32, #tpu.memory_space<vmem>>, %arg3: memref<1200x4xf32, #tpu.memory_space<vmem>>, %arg4: memref<1200x3xf32, #tpu.memory_space<vmem>>, %arg5: memref<7x32xf32, #tpu.memory_space<vmem>>, %arg6: memref<4x32xf32, #tpu.memory_space<vmem>>, %arg7: memref<3x32xf32, #tpu.memory_space<vmem>>, %arg8: memref<1x32xf32, #tpu.memory_space<vmem>>, %arg9: memref<32x8xf32, #tpu.memory_space<vmem>>, %arg10: memref<1x8xf32, #tpu.memory_space<vmem>>, %arg11: memref<1x1xf32, #tpu.memory_space<vmem>>) attributes {dimension_semantics = [#tpu.dimension_semantics<arbitrary>], iteration_bounds = array<i64: 1>, scalar_prefetch = 1 : i64, scratch_operands = 0 : i64, tpu.core_type = #tpu.core_type<tc>, window_params = [{pipeline_mode = #tpu.pipeline_mode<synchronous>, transform_indices = @transform_0, window_bounds = array<i64: 1200, 7>}, {pipeline_mode = #tpu.pipeline_mode<synchronous>, transform_indices = @transform_1, window_bounds = array<i64: 1200, 4>}, {pipeline_mode = #tpu.pipeline_mode<synchronous>, transform_indices = @transform_2, window_bounds = array<i64: 1200, 3>}, {pipeline_mode = #tpu.pipeline_mode<synchronous>, transform_indices = @transform_3, window_bounds = array<i64: 7, 32>}, {pipeline_mode = #tpu.pipeline_mode<synchronous>, transform_indices = @transform_4, window_bounds = array<i64: 4, 32>}, {pipeline_mode = #tpu.pipeline_mode<synchronous>, transform_indices = @transform_5, window_bounds = array<i64: 3, 32>}, {pipeline_mode = #tpu.pipeline_mode<synchronous>, transform_indices = @transform_6, window_bounds = array<i64: 1, 32>}, {pipeline_mode = #tpu.pipeline_mode<synchronous>, transform_indices = @transform_7, window_bounds = array<i64: 32, 8>}, {pipeline_mode = #tpu.pipeline_mode<synchronous>, transform_indices = @transform_8, window_bounds = array<i64: 1, 8>}, {pipeline_mode = #tpu.pipeline_mode<synchronous>, transform_indices = @transform_9, window_bounds = array<i64: 1, 1>}]} {
    %c0 = arith.constant 0 : index
    %c0_0 = arith.constant 0 : index
    %0 = vector.load %arg2[%c0, %c0_0] : memref<1200x7xf32, #tpu.memory_space<vmem>>, vector<1200x7xf32>
    %1 = tpu.iota {dimensions = array<i32: 0>} : vector<1200x7xi32>
    %c150_i32 = arith.constant 150 : i32
    %c0_i32 = arith.constant 0 : i32
    %2 = arith.cmpi eq, %c150_i32, %c0_i32 : i32
    %c1_i32 = arith.constant 1 : i32
    %3 = arith.select %2, %c1_i32, %c150_i32 : i32
    %4 = vector.broadcast %3 : i32 to vector<1200x7xi32>
    %5 = arith.remsi %1, %4 : vector<1200x7xi32>
    %c0_i32_1 = arith.constant 0 : i32
    %6 = vector.broadcast %c0_i32_1 : i32 to vector<1200x7xi32>
    %7 = arith.cmpi ne, %5, %6 : vector<1200x7xi32>
    %c0_i32_2 = arith.constant 0 : i32
    %8 = vector.broadcast %c0_i32_2 : i32 to vector<1200x7xi32>
    %9 = arith.cmpi slt, %5, %8 : vector<1200x7xi32>
    %c0_i32_3 = arith.constant 0 : i32
    %10 = arith.cmpi slt, %3, %c0_i32_3 : i32
    %11 = vector.broadcast %10 : i1 to vector<1200x7xi1>
    %12 = vector.broadcast %11 : vector<1200x7xi1> to vector<1200x7xi1>
    %13 = arith.xori %9, %12 : vector<1200x7xi1>
    %14 = arith.andi %13, %7 : vector<1200x7xi1>
    %15 = vector.broadcast %3 : i32 to vector<1200x7xi32>
    %16 = arith.addi %5, %15 : vector<1200x7xi32>
    %17 = arith.select %14, %16, %5 : vector<1200x7xi1>, vector<1200x7xi32>
    %c0_4 = arith.constant 0 : index
    %18 = memref.load %arg1[%c0_4] : memref<2xi32, #tpu.memory_space<smem>>
    %19 = vector.broadcast %18 : i32 to vector<1200x7xi32>
    %20 = arith.cmpi eq, %17, %19 : vector<1200x7xi32>
    %c1 = arith.constant 1 : index
    %21 = memref.load %arg1[%c1] : memref<2xi32, #tpu.memory_space<smem>>
    %22 = vector.broadcast %21 : i32 to vector<1200x7xi32>
    %23 = arith.cmpi eq, %17, %22 : vector<1200x7xi32>
    %24 = arith.ori %20, %23 : vector<1200x7xi1>
    %cst = arith.constant 0.000000e+00 : f32
    %25 = vector.broadcast %cst : f32 to vector<1200x7xf32>
    %26 = arith.select %24, %25, %0 : vector<1200x7xi1>, vector<1200x7xf32>
    %c0_5 = arith.constant 0 : index
    %c0_6 = arith.constant 0 : index
    %27 = vector.load %arg5[%c0_5, %c0_6] : memref<7x32xf32, #tpu.memory_space<vmem>>, vector<7x32xf32>
    %cst_7 = arith.constant dense<0.000000e+00> : vector<1200x32xf32>
    %28 = tpu.matmul %26, %27, %cst_7 {dimension_numbers = #tpu.dot_dimension_numbers<[1], [0], [0], [1], [0, 0, 1, 1], [], []>} : vector<1200x7xf32>, vector<7x32xf32>, vector<1200x32xf32> -> vector<1200x32xf32>
    %c0_8 = arith.constant 0 : index
    %c0_9 = arith.constant 0 : index
    %29 = vector.load %arg3[%c0_8, %c0_9] : memref<1200x4xf32, #tpu.memory_space<vmem>>, vector<1200x4xf32>
    %c0_10 = arith.constant 0 : index
    %c0_11 = arith.constant 0 : index
    %30 = vector.load %arg6[%c0_10, %c0_11] : memref<4x32xf32, #tpu.memory_space<vmem>>, vector<4x32xf32>
    %cst_12 = arith.constant dense<0.000000e+00> : vector<1200x32xf32>
    %31 = tpu.matmul %29, %30, %cst_12 {dimension_numbers = #tpu.dot_dimension_numbers<[1], [0], [0], [1], [0, 0, 1, 1], [], []>} : vector<1200x4xf32>, vector<4x32xf32>, vector<1200x32xf32> -> vector<1200x32xf32>
    %32 = arith.addf %28, %31 : vector<1200x32xf32>
    %c0_13 = arith.constant 0 : index
    %c0_14 = arith.constant 0 : index
    %33 = vector.load %arg4[%c0_13, %c0_14] : memref<1200x3xf32, #tpu.memory_space<vmem>>, vector<1200x3xf32>
    %c0_15 = arith.constant 0 : index
    %c0_16 = arith.constant 0 : index
    %34 = vector.load %arg7[%c0_15, %c0_16] : memref<3x32xf32, #tpu.memory_space<vmem>>, vector<3x32xf32>
    %cst_17 = arith.constant dense<0.000000e+00> : vector<1200x32xf32>
    %35 = tpu.matmul %33, %34, %cst_17 {dimension_numbers = #tpu.dot_dimension_numbers<[1], [0], [0], [1], [0, 0, 1, 1], [], []>} : vector<1200x3xf32>, vector<3x32xf32>, vector<1200x32xf32> -> vector<1200x32xf32>
    %36 = arith.addf %32, %35 : vector<1200x32xf32>
    %c0_18 = arith.constant 0 : index
    %c0_19 = arith.constant 0 : index
    %37 = vector.load %arg8[%c0_18, %c0_19] : memref<1x32xf32, #tpu.memory_space<vmem>>, vector<1x32xf32>
    %38 = vector.broadcast %37 : vector<1x32xf32> to vector<1200x32xf32>
    %39 = arith.addf %36, %38 : vector<1200x32xf32>
    %40 = math.tanh %39 : vector<1200x32xf32>
    %c0_20 = arith.constant 0 : index
    %c0_21 = arith.constant 0 : index
    %41 = vector.load %arg9[%c0_20, %c0_21] : memref<32x8xf32, #tpu.memory_space<vmem>>, vector<32x8xf32>
    %cst_22 = arith.constant dense<0.000000e+00> : vector<1200x8xf32>
    %42 = tpu.matmul %40, %41, %cst_22 {dimension_numbers = #tpu.dot_dimension_numbers<[1], [0], [0], [1], [0, 0, 1, 1], [], []>} : vector<1200x32xf32>, vector<32x8xf32>, vector<1200x8xf32> -> vector<1200x8xf32>
    %c0_23 = arith.constant 0 : index
    %c0_24 = arith.constant 0 : index
    %43 = vector.load %arg10[%c0_23, %c0_24] : memref<1x8xf32, #tpu.memory_space<vmem>>, vector<1x8xf32>
    %44 = vector.broadcast %43 : vector<1x8xf32> to vector<1200x8xf32>
    %45 = arith.addf %42, %44 : vector<1200x8xf32>
    %46 = vector.extract_strided_slice %45 {offsets = [0, 0], sizes = [1200, 7], strides = [1, 1]} : vector<1200x8xf32> to vector<1200x7xf32>
    %47 = arith.subf %46, %0 : vector<1200x7xf32>
    %48 = arith.mulf %47, %47 : vector<1200x7xf32>
    %cst_25 = arith.constant 0.000000e+00 : f32
    %49 = vector.broadcast %cst_25 : f32 to vector<1200x7xf32>
    %50 = arith.select %24, %48, %49 : vector<1200x7xi1>, vector<1200x7xf32>
    %51 = vector.shape_cast %50 : vector<1200x7xf32> to vector<1x1200x7xf32>
    %cst_26 = arith.constant dense<0.000000e+00> : vector<1xf32>
    %52 = vector.multi_reduction <add>, %51, %cst_26 [1, 2] : vector<1x1200x7xf32> to vector<1xf32>
    %53 = vector.shape_cast %52 : vector<1xf32> to vector<1x1x1xf32>
    %54 = vector.extract %53[0, 0, 0] : f32 from vector<1x1x1xf32>
    %55 = vector.broadcast %54 : f32 to vector<1x1xf32>
    %cst_27 = arith.constant 0.0178571437 : f32
    %56 = vector.broadcast %cst_27 : f32 to vector<1x1xf32>
    %57 = arith.mulf %55, %56 : vector<1x1xf32>
    %c0_28 = arith.constant 0 : index
    %c0_29 = arith.constant 0 : index
    %58 = vector.load %arg11[%c0_28, %c0_29] : memref<1x1xf32, #tpu.memory_space<vmem>>, vector<1x1xf32>
    tpu.vector_store %arg11[%c0_28, %c0_29], %57 {strides = array<i32>} : memref<1x1xf32, #tpu.memory_space<vmem>>, vector<1x1xf32>,
    return
  }
  func.func @transform_0(%arg0: i32, %arg1: memref<2xi32, #tpu.memory_space<smem>>) -> (i32, i32) {
    %c0_i32 = arith.constant 0 : i32
    %c0_i32_0 = arith.constant 0 : i32
    %c0_i32_1 = arith.constant 0 : i32
    return %c0_i32, %c0_i32_0 : i32, i32
  }
  func.func @transform_1(%arg0: i32, %arg1: memref<2xi32, #tpu.memory_space<smem>>) -> (i32, i32) {
    %c0_i32 = arith.constant 0 : i32
    %c0_i32_0 = arith.constant 0 : i32
    %c0_i32_1 = arith.constant 0 : i32
    return %c0_i32, %c0_i32_0 : i32, i32
  }
  func.func @transform_2(%arg0: i32, %arg1: memref<2xi32, #tpu.memory_space<smem>>) -> (i32, i32) {
    %c0_i32 = arith.constant 0 : i32
    %c0_i32_0 = arith.constant 0 : i32
    %c0_i32_1 = arith.constant 0 : i32
    return %c0_i32, %c0_i32_0 : i32, i32
  }
  func.func @transform_3(%arg0: i32, %arg1: memref<2xi32, #tpu.memory_space<smem>>) -> (i32, i32) {
    %c0_i32 = arith.constant 0 : i32
    %c0_i32_0 = arith.constant 0 : i32
    %c0_i32_1 = arith.constant 0 : i32
    return %c0_i32, %c0_i32_0 : i32, i32
  }
  func.func @transform_4(%arg0: i32, %arg1: memref<2xi32, #tpu.memory_space<smem>>) -> (i32, i32) {
    %c0_i32 = arith.constant 0 : i32
    %c0_i32_0 = arith.constant 0 : i32
    %c0_i32_1 = arith.constant 0 : i32
    return %c0_i32, %c0_i32_0 : i32, i32
  }
  func.func @transform_5(%arg0: i32, %arg1: memref<2xi32, #tpu.memory_space<smem>>) -> (i32, i32) {
    %c0_i32 = arith.constant 0 : i32
    %c0_i32_0 = arith.constant 0 : i32
    %c0_i32_1 = arith.constant 0 : i32
    return %c0_i32, %c0_i32_0 : i32, i32
  }
  func.func @transform_6(%arg0: i32, %arg1: memref<2xi32, #tpu.memory_space<smem>>) -> (i32, i32) {
    %c0_i32 = arith.constant 0 : i32
    %c0_i32_0 = arith.constant 0 : i32
    %c0_i32_1 = arith.constant 0 : i32
    return %c0_i32, %c0_i32_0 : i32, i32
  }
  func.func @transform_7(%arg0: i32, %arg1: memref<2xi32, #tpu.memory_space<smem>>) -> (i32, i32) {
    %c0_i32 = arith.constant 0 : i32
    %c0_i32_0 = arith.constant 0 : i32
    %c0_i32_1 = arith.constant 0 : i32
    return %c0_i32, %c0_i32_0 : i32, i32
  }
  func.func @transform_8(%arg0: i32, %arg1: memref<2xi32, #tpu.memory_space<smem>>) -> (i32, i32) {
    %c0_i32 = arith.constant 0 : i32
    %c0_i32_0 = arith.constant 0 : i32
    %c0_i32_1 = arith.constant 0 : i32
    return %c0_i32, %c0_i32_0 : i32, i32
  }
  func.func @transform_9(%arg0: i32, %arg1: memref<2xi32, #tpu.memory_space<smem>>) -> (i32, i32) {
    %c0_i32 = arith.constant 0 : i32
    %c0_i32_0 = arith.constant 0 : i32
    %c0_i32_1 = arith.constant 0 : i32
    return %c0_i32, %c0_i32_0 : i32, i32
  }
}

</mosaic_0001>

<llo_original>
// kernel: tpu_custom_call.1
$region0: #{tpu_custom_call.1}
  #allocation0 [shape = 'u32[]', space=smem, size = 0x4, offset = 0x4, fixed_abs, tag = 'smem constant byte address 0x4 - core index']
  #allocation1 [shape = 'u32[72,128]{1,0:T(1,128)}', space=vmem, size = 0x9000, scoped, tag = 'internal scratch']
  #allocation2 [shape = 's32[1]{0}', space=sflag, size = 0x4, scoped, tag = 'scoped memory for tpu_custom_call.1']
  #allocation3 [shape = 'u8[512]{0}', space=smem, size = 0x200, scoped, tag = 'prefetched SMEM operand 0']
  %s0 = inlined_call_operand.vmem [shape: s32[2], index: 0, kind: input, shape index: {}]
  %s1 = inlined_call_operand.vmem [shape: f32[1200,7], index: 1, kind: input, shape index: {}]
  %s2 = inlined_call_operand.vmem [shape: f32[1200,4], index: 2, kind: input, shape index: {}]
  %s3 = inlined_call_operand.vmem [shape: f32[1200,3], index: 3, kind: input, shape index: {}]
  %s4 = inlined_call_operand.vmem [shape: f32[7,32], index: 4, kind: input, shape index: {}]
  %s5 = inlined_call_operand.vmem [shape: f32[4,32], index: 5, kind: input, shape index: {}]
  %s6 = inlined_call_operand.vmem [shape: f32[3,32], index: 6, kind: input, shape index: {}]
  %s7 = inlined_call_operand.vmem [shape: f32[1,32], index: 7, kind: input, shape index: {}]
  %s8 = inlined_call_operand.vmem [shape: f32[32,8], index: 8, kind: input, shape index: {}]
  %s9 = inlined_call_operand.vmem [shape: f32[1,8], index: 9, kind: input, shape index: {}]
  %s10 = inlined_call_operand.hbm [shape: f32[1,1], index: 10, kind: output, shape index: {}]
  %s11 = sld [smem:[#allocation0]]
  $region46: #{tpu_custom_call.1} parent=0
    _
  %s13 = ssub.s32 1, %s11
  %s14 = scalar_select 0, %s13, %s11
  %s16 = sshll.u32 %s0, 4
  %s17 = int_to_ptr.vmem [resolvable:$true] %s16
  %19 = dma.vmem_to_smem %s17, 16, [#allocation3], [#allocation2]
  %21 = dma.done [#allocation2], 16
  %22 = sfence
  $region1: #{tpu_custom_call.1} parent=0
    #allocation4 [shape = 'u8[512]{0}', space=vmem, size = 0x400, scoped, tag = 'output window, operand 0, single buffered']
    #allocation5 [shape = 's32[1]{0}', space=sflag, size = 0x4, scoped, tag = 'scoped memory for tpu_custom_call.1']
    %23 = vsyncpa [#allocation5], 0
    // Predicated region
    $region2: #{tpu_custom_call.1} parent=1 // pred_check
      _
    $region3: #{tpu_custom_call.1} parent=1 // pred_check_branch
      %25 = sbr.rel (0) target = $region5
    $region4: #{tpu_custom_call.1} parent=1 // pred_region
      _
    $region5: #{tpu_custom_call.1} parent=1 // pred_fallthru
      _
    // Predicated region
    $region6: #{tpu_custom_call.1} parent=1 // pred_check
      _
    $region7: #{tpu_custom_call.1} parent=1 // pred_check_branch
      %27 = sbr.rel (0) target = $region9
    $region8: #{tpu_custom_call.1} parent=1 // pred_region
      _
    $region9: #{tpu_custom_call.1} parent=1 // pred_fallthru
      _
    // Predicated region
    $region10: #{tpu_custom_call.1} parent=1 // pred_check
      _
    $region11: #{tpu_custom_call.1} parent=1 // pred_check_branch
      %29 = sbr.rel (0) target = $region13
    $region12: #{tpu_custom_call.1} parent=1 // pred_region
      _
    $region13: #{tpu_custom_call.1} parent=1 // pred_fallthru
      _
    // Predicated region
    $region14: #{tpu_custom_call.1} parent=1 // pred_check
      _
    $region15: #{tpu_custom_call.1} parent=1 // pred_check_branch
      %31 = sbr.rel (0) target = $region17
    $region16: #{tpu_custom_call.1} parent=1 // pred_region
      _
    $region17: #{tpu_custom_call.1} parent=1 // pred_fallthru
      _
    // Predicated region
    $region18: #{tpu_custom_call.1} parent=1 // pred_check
      _
    $region19: #{tpu_custom_call.1} parent=1 // pred_check_branch
      %33 = sbr.rel (0) target = $region21
    $region20: #{tpu_custom_call.1} parent=1 // pred_region
      _
    $region21: #{tpu_custom_call.1} parent=1 // pred_fallthru
      _
    // Predicated region
    $region22: #{tpu_custom_call.1} parent=1 // pred_check
      _
    $region23: #{tpu_custom_call.1} parent=1 // pred_check_branch
      %35 = sbr.rel (0) target = $region25
    $region24: #{tpu_custom_call.1} parent=1 // pred_region
      _
    $region25: #{tpu_custom_call.1} parent=1 // pred_fallthru
      _
    // Predicated region
    $region26: #{tpu_custom_call.1} parent=1 // pred_check
      _
    $region27: #{tpu_custom_call.1} parent=1 // pred_check_branch
      %37 = sbr.rel (0) target = $region29
    $region28: #{tpu_custom_call.1} parent=1 // pred_region
      _
    $region29: #{tpu_custom_call.1} parent=1 // pred_fallthru
      _
    // Predicated region
    $region30: #{tpu_custom_call.1} parent=1 // pred_check
      _
    $region31: #{tpu_custom_call.1} parent=1 // pred_check_branch
      %39 = sbr.rel (0) target = $region33
    $region32: #{tpu_custom_call.1} parent=1 // pred_region
      _
    $region33: #{tpu_custom_call.1} parent=1 // pred_fallthru
      _
    // Predicated region
    $region34: #{tpu_custom_call.1} parent=1 // pred_check
      _
    $region35: #{tpu_custom_call.1} parent=1 // pred_check_branch
      %41 = sbr.rel (0) target = $region37
    $region36: #{tpu_custom_call.1} parent=1 // pred_region
      _
    $region37: #{tpu_custom_call.1} parent=1 // pred_fallthru
      _
    %v42 = vld [vmem:[%s1] sm:$0xff]
    %v43 = vld [vmem:[%s1 + $0x8] sm:$0xff]
    %v44 = vld [vmem:[%s1 + $0x10] sm:$0xff]
    %v45 = vld [vmem:[%s1 + $0x18] sm:$0xff]
    %v46 = vld [vmem:[%s1 + $0x20] sm:$0xff]
    %v47 = vld [vmem:[%s1 + $0x28] sm:$0xff]
    %v48 = vld [vmem:[%s1 + $0x30] sm:$0xff]
    %v49 = vld [vmem:[%s1 + $0x38] sm:$0xff]
    %v50 = vld [vmem:[%s1 + $0x40] sm:$0xff]
    %v51 = vld [vmem:[%s1 + $0x48] sm:$0xff]
    %v52 = vld [vmem:[%s1 + $0x50] sm:$0xff]
    %v53 = vld [vmem:[%s1 + $0x58] sm:$0xff]
    %v54 = vld [vmem:[%s1 + $0x60] sm:$0xff]
    %v55 = vld [vmem:[%s1 + $0x68] sm:$0xff]
    %v56 = vld [vmem:[%s1 + $0x70] sm:$0xff]
    %v57 = vld [vmem:[%s1 + $0x78] sm:$0xff]
    %v58 = vld [vmem:[%s1 + $0x80] sm:$0xff]
    %v59 = vld [vmem:[%s1 + $0x88] sm:$0xff]
    %v60 = vld [vmem:[%s1 + $0x90] sm:$0xff]
    %v61 = vld [vmem:[%s1 + $0x98] sm:$0xff]
    %v62 = vld [vmem:[%s1 + $0xa0] sm:$0xff]
    %v63 = vld [vmem:[%s1 + $0xa8] sm:$0xff]
    %v64 = vld [vmem:[%s1 + $0xb0] sm:$0xff]
    %v65 = vld [vmem:[%s1 + $0xb8] sm:$0xff]
    %v66 = vld [vmem:[%s1 + $0xc0] sm:$0xff]
    %v67 = vld [vmem:[%s1 + $0xc8] sm:$0xff]
    %v68 = vld [vmem:[%s1 + $0xd0] sm:$0xff]
    %v69 = vld [vmem:[%s1 + $0xd8] sm:$0xff]
    %v70 = vld [vmem:[%s1 + $0xe0] sm:$0xff]
    %v71 = vld [vmem:[%s1 + $0xe8] sm:$0xff]
    %v72 = vld [vmem:[%s1 + $0xf0] sm:$0xff]
    %v73 = vld [vmem:[%s1 + $0xf8] sm:$0xff]
    %v74 = vld [vmem:[%s1 + $0x100] sm:$0xff]
    %v75 = vld [vmem:[%s1 + $0x108] sm:$0xff]
    %v76 = vld [vmem:[%s1 + $0x110] sm:$0xff]
    %v77 = vld [vmem:[%s1 + $0x118] sm:$0xff]
    %v78 = vld [vmem:[%s1 + $0x120] sm:$0xff]
    %v79 = vld [vmem:[%s1 + $0x128] sm:$0xff]
    %v80 = vld [vmem:[%s1 + $0x130] sm:$0xff]
    %v81 = vld [vmem:[%s1 + $0x138] sm:$0xff]
    %v82 = vld [vmem:[%s1 + $0x140] sm:$0xff]
    %v83 = vld [vmem:[%s1 + $0x148] sm:$0xff]
    %v84 = vld [vmem:[%s1 + $0x150] sm:$0xff]
    %v85 = vld [vmem:[%s1 + $0x158] sm:$0xff]
    %v86 = vld [vmem:[%s1 + $0x160] sm:$0xff]
    %v87 = vld [vmem:[%s1 + $0x168] sm:$0xff]
    %v88 = vld [vmem:[%s1 + $0x170] sm:$0xff]
    %v89 = vld [vmem:[%s1 + $0x178] sm:$0xff]
    %v90 = vld [vmem:[%s1 + $0x180] sm:$0xff]
    %v91 = vld [vmem:[%s1 + $0x188] sm:$0xff]
    %v92 = vld [vmem:[%s1 + $0x190] sm:$0xff]
    %v93 = vld [vmem:[%s1 + $0x198] sm:$0xff]
    %v94 = vld [vmem:[%s1 + $0x1a0] sm:$0xff]
    %v95 = vld [vmem:[%s1 + $0x1a8] sm:$0xff]
    %v96 = vld [vmem:[%s1 + $0x1b0] sm:$0xff]
    %v97 = vld [vmem:[%s1 + $0x1b8] sm:$0xff]
    %v98 = vld [vmem:[%s1 + $0x1c0] sm:$0xff]
    %v99 = vld [vmem:[%s1 + $0x1c8] sm:$0xff]
    %v100 = vld [vmem:[%s1 + $0x1d0] sm:$0xff]
    %v101 = vld [vmem:[%s1 + $0x1d8] sm:$0xff]
    %v102 = vld [vmem:[%s1 + $0x1e0] sm:$0xff]
    %v103 = vld [vmem:[%s1 + $0x1e8] sm:$0xff]
    %v104 = vld [vmem:[%s1 + $0x1f0] sm:$0xff]
    %v105 = vld [vmem:[%s1 + $0x1f8] sm:$0xff]
    %v106 = vld [vmem:[%s1 + $0x200] sm:$0xff]
    %v107 = vld [vmem:[%s1 + $0x208] sm:$0xff]
    %v108 = vld [vmem:[%s1 + $0x210] sm:$0xff]
    %v109 = vld [vmem:[%s1 + $0x218] sm:$0xff]
    %v110 = vld [vmem:[%s1 + $0x220] sm:$0xff]
    %v111 = vld [vmem:[%s1 + $0x228] sm:$0xff]
    %v112 = vld [vmem:[%s1 + $0x230] sm:$0xff]
    %v113 = vld [vmem:[%s1 + $0x238] sm:$0xff]
    %v114 = vld [vmem:[%s1 + $0x240] sm:$0xff]
    %v115 = vld [vmem:[%s1 + $0x248] sm:$0xff]
    %v116 = vld [vmem:[%s1 + $0x250] sm:$0xff]
    %v117 = vld [vmem:[%s1 + $0x258] sm:$0xff]
    %v118 = vld [vmem:[%s1 + $0x260] sm:$0xff]
    %v119 = vld [vmem:[%s1 + $0x268] sm:$0xff]
    %v120 = vld [vmem:[%s1 + $0x270] sm:$0xff]
    %v121 = vld [vmem:[%s1 + $0x278] sm:$0xff]
    %v122 = vld [vmem:[%s1 + $0x280] sm:$0xff]
    %v123 = vld [vmem:[%s1 + $0x288] sm:$0xff]
    %v124 = vld [vmem:[%s1 + $0x290] sm:$0xff]
    %v125 = vld [vmem:[%s1 + $0x298] sm:$0xff]
    %v126 = vld [vmem:[%s1 + $0x2a0] sm:$0xff]
    %v127 = vld [vmem:[%s1 + $0x2a8] sm:$0xff]
    %v128 = vld [vmem:[%s1 + $0x2b0] sm:$0xff]
    %v129 = vld [vmem:[%s1 + $0x2b8] sm:$0xff]
    %v130 = vld [vmem:[%s1 + $0x2c0] sm:$0xff]
    %v131 = vld [vmem:[%s1 + $0x2c8] sm:$0xff]
    %v132 = vld [vmem:[%s1 + $0x2d0] sm:$0xff]
    %v133 = vld [vmem:[%s1 + $0x2d8] sm:$0xff]
    %v134 = vld [vmem:[%s1 + $0x2e0] sm:$0xff]
    %v135 = vld [vmem:[%s1 + $0x2e8] sm:$0xff]
    %v136 = vld [vmem:[%s1 + $0x2f0] sm:$0xff]
    %v137 = vld [vmem:[%s1 + $0x2f8] sm:$0xff]
    %v138 = vld [vmem:[%s1 + $0x300] sm:$0xff]
    %v139 = vld [vmem:[%s1 + $0x308] sm:$0xff]
    %v140 = vld [vmem:[%s1 + $0x310] sm:$0xff]
    %v141 = vld [vmem:[%s1 + $0x318] sm:$0xff]
    %v142 = vld [vmem:[%s1 + $0x320] sm:$0xff]
    %v143 = vld [vmem:[%s1 + $0x328] sm:$0xff]
    %v144 = vld [vmem:[%s1 + $0x330] sm:$0xff]
    %v145 = vld [vmem:[%s1 + $0x338] sm:$0xff]
    %v146 = vld [vmem:[%s1 + $0x340] sm:$0xff]
    %v147 = vld [vmem:[%s1 + $0x348] sm:$0xff]
    %v148 = vld [vmem:[%s1 + $0x350] sm:$0xff]
    %v149 = vld [vmem:[%s1 + $0x358] sm:$0xff]
    %v150 = vld [vmem:[%s1 + $0x360] sm:$0xff]
    %v151 = vld [vmem:[%s1 + $0x368] sm:$0xff]
    %v152 = vld [vmem:[%s1 + $0x370] sm:$0xff]
    %v153 = vld [vmem:[%s1 + $0x378] sm:$0xff]
    %v154 = vld [vmem:[%s1 + $0x380] sm:$0xff]
    %v155 = vld [vmem:[%s1 + $0x388] sm:$0xff]
    %v156 = vld [vmem:[%s1 + $0x390] sm:$0xff]
    %v157 = vld [vmem:[%s1 + $0x398] sm:$0xff]
    %v158 = vld [vmem:[%s1 + $0x3a0] sm:$0xff]
    %v159 = vld [vmem:[%s1 + $0x3a8] sm:$0xff]
    %v160 = vld [vmem:[%s1 + $0x3b0] sm:$0xff]
    %v161 = vld [vmem:[%s1 + $0x3b8] sm:$0xff]
    %v162 = vld [vmem:[%s1 + $0x3c0] sm:$0xff]
    %v163 = vld [vmem:[%s1 + $0x3c8] sm:$0xff]
    %v164 = vld [vmem:[%s1 + $0x3d0] sm:$0xff]
    %v165 = vld [vmem:[%s1 + $0x3d8] sm:$0xff]
    %v166 = vld [vmem:[%s1 + $0x3e0] sm:$0xff]
    %v167 = vld [vmem:[%s1 + $0x3e8] sm:$0xff]
    %v168 = vld [vmem:[%s1 + $0x3f0] sm:$0xff]
    %v169 = vld [vmem:[%s1 + $0x3f8] sm:$0xff]
    %v170 = vld [vmem:[%s1 + $0x400] sm:$0xff]
    %v171 = vld [vmem:[%s1 + $0x408] sm:$0xff]
    %v172 = vld [vmem:[%s1 + $0x410] sm:$0xff]
    %v173 = vld [vmem:[%s1 + $0x418] sm:$0xff]
    %v174 = vld [vmem:[%s1 + $0x420] sm:$0xff]
    %v175 = vld [vmem:[%s1 + $0x428] sm:$0xff]
    %v176 = vld [vmem:[%s1 + $0x430] sm:$0xff]
    %v177 = vld [vmem:[%s1 + $0x438] sm:$0xff]
    %v178 = vld [vmem:[%s1 + $0x440] sm:$0xff]
    %v179 = vld [vmem:[%s1 + $0x448] sm:$0xff]
    %v180 = vld [vmem:[%s1 + $0x450] sm:$0xff]
    %v181 = vld [vmem:[%s1 + $0x458] sm:$0xff]
    %v182 = vld [vmem:[%s1 + $0x460] sm:$0xff]
    %v183 = vld [vmem:[%s1 + $0x468] sm:$0xff]
    %v184 = vld [vmem:[%s1 + $0x470] sm:$0xff]
    %v185 = vld [vmem:[%s1 + $0x478] sm:$0xff]
    %v186 = vld [vmem:[%s1 + $0x480] sm:$0xff]
    %v187 = vld [vmem:[%s1 + $0x488] sm:$0xff]
    %v188 = vld [vmem:[%s1 + $0x490] sm:$0xff]
    %v189 = vld [vmem:[%s1 + $0x498] sm:$0xff]
    %v190 = vld [vmem:[%s1 + $0x4a0] sm:$0xff]
    %v191 = vld [vmem:[%s1 + $0x4a8] sm:$0xff]
    %v192 = vlaneseq
    %v193 = vshrl.u32 %v192, 7
    %v194 = vadd.s32 %v193, 8
    %v195 = vadd.s32 %v193, 16
    %v196 = vadd.s32 %v193, 24
    %v197 = vadd.s32 %v193, 32
    %v198 = vadd.s32 %v193, 40
    %v199 = vadd.s32 %v193, 48
    %v200 = vadd.s32 %v193, 56
    %v201 = vadd.s32 %v193, 64
    %v202 = vadd.s32 %v193, 72
    %v203 = vadd.s32 %v193, 80
    %v204 = vadd.s32 %v193, 88
    %v205 = vadd.s32 %v193, 96
    %v206 = vadd.s32 %v193, 104
    %v207 = vadd.s32 %v193, 112
    %v208 = vadd.s32 %v193, 120
    %v209 = vadd.s32 %v193, 128
    %v210 = vadd.s32 %v193, 136
    %v211 = vadd.s32 %v193, 144
    %v212 = vadd.s32 %v193, 152
    %v213 = vadd.s32 %v193, 160
    %v214 = vadd.s32 %v193, 168
    %v215 = vadd.s32 %v193, 176
    %v216 = vadd.s32 %v193, 184
    %v217 = vadd.s32 %v193, 192
    %v218 = vadd.s32 %v193, 200
    %v219 = vadd.s32 %v193, 208
    %v220 = vadd.s32 %v193, 216
    %v221 = vadd.s32 %v193, 224
    %v222 = vadd.s32 %v193, 232
    %v223 = vadd.s32 %v193, 240
    %v224 = vadd.s32 %v193, 248
    %v225 = vadd.s32 %v193, 256
    %v226 = vadd.s32 %v193, 264
    %v227 = vadd.s32 %v193, 272
    %v228 = vadd.s32 %v193, 280
    %v229 = vadd.s32 %v193, 288
    %v230 = vadd.s32 %v193, 296
    %v231 = vadd.s32 %v193, 304
    %v232 = vadd.s32 %v193, 312
    %v233 = vadd.s32 %v193, 320
    %v234 = vadd.s32 %v193, 328
    %v235 = vadd.s32 %v193, 336
    %v236 = vadd.s32 %v193, 344
    %v237 = vadd.s32 %v193, 352
    %v238 = vadd.s32 %v193, 360
    %v239 = vadd.s32 %v193, 368
    %v240 = vadd.s32 %v193, 376
    %v241 = vadd.s32 %v193, 384
    %v242 = vadd.s32 %v193, 392
    %v243 = vadd.s32 %v193, 400
    %v244 = vadd.s32 %v193, 408
    %v245 = vadd.s32 %v193, 416
    %v246 = vadd.s32 %v193, 424
    %v247 = vadd.s32 %v193, 432
    %v248 = vadd.s32 %v193, 440
    %v249 = vadd.s32 %v193, 448
    %v250 = vadd.s32 %v193, 456
    %v251 = vadd.s32 %v193, 464
    %v252 = vadd.s32 %v193, 472
    %v253 = vadd.s32 %v193, 480
    %v254 = vadd.s32 %v193, 488
    %v255 = vadd.s32 %v193, 496
    %v256 = vadd.s32 %v193, 504
    %v257 = vadd.s32 %v193, 512
    %v258 = vadd.s32 %v193, 520
    %v259 = vadd.s32 %v193, 528
    %v260 = vadd.s32 %v193, 536
    %v261 = vadd.s32 %v193, 544
    %v262 = vadd.s32 %v193, 552
    %v263 = vadd.s32 %v193, 560
    %v264 = vadd.s32 %v193, 568
    %v265 = vadd.s32 %v193, 576
    %v266 = vadd.s32 %v193, 584
    %v267 = vadd.s32 %v193, 592
    %v268 = vadd.s32 %v193, 600
    %v269 = vadd.s32 %v193, 608
    %v270 = vadd.s32 %v193, 616
    %v271 = vadd.s32 %v193, 624
    %v272 = vadd.s32 %v193, 632
    %v273 = vadd.s32 %v193, 640
    %v274 = vadd.s32 %v193, 648
    %v275 = vadd.s32 %v193, 656
    %v276 = vadd.s32 %v193, 664
    %v277 = vadd.s32 %v193, 672
    %v278 = vadd.s32 %v193, 680
    %v279 = vadd.s32 %v193, 688
    %v280 = vadd.s32 %v193, 696
    %v281 = vadd.s32 %v193, 704
    %v282 = vadd.s32 %v193, 712
    %v283 = vadd.s32 %v193, 720
    %v284 = vadd.s32 %v193, 728
    %v285 = vadd.s32 %v193, 736
    %v286 = vadd.s32 %v193, 744
    %v287 = vadd.s32 %v193, 752
    %v288 = vadd.s32 %v193, 760
    %v289 = vadd.s32 %v193, 768
    %v290 = vadd.s32 %v193, 776
    %v291 = vadd.s32 %v193, 784
    %v292 = vadd.s32 %v193, 792
    %v293 = vadd.s32 %v193, 800
    %v294 = vadd.s32 %v193, 808
    %v295 = vadd.s32 %v193, 816
    %v296 = vadd.s32 %v193, 824
    %v297 = vadd.s32 %v193, 832
    %v298 = vadd.s32 %v193, 840
    %v299 = vadd.s32 %v193, 848
    %v300 = vadd.s32 %v193, 856
    %v301 = vadd.s32 %v193, 864
    %v302 = vadd.s32 %v193, 872
    %v303 = vadd.s32 %v193, 880
    %v304 = vadd.s32 %v193, 888
    %v305 = vadd.s32 %v193, 896
    %v306 = vadd.s32 %v193, 904
    %v307 = vadd.s32 %v193, 912
    %v308 = vadd.s32 %v193, 920
    %v309 = vadd.s32 %v193, 928
    %v310 = vadd.s32 %v193, 936
    %v311 = vadd.s32 %v193, 944
    %v312 = vadd.s32 %v193, 952
    %v313 = vadd.s32 %v193, 960
    %v314 = vadd.s32 %v193, 968
    %v315 = vadd.s32 %v193, 976
    %v316 = vadd.s32 %v193, 984
    %v317 = vadd.s32 %v193, 992
    %v318 = vadd.s32 %v193, 1000
    %v319 = vadd.s32 %v193, 1008
    %v320 = vadd.s32 %v193, 1016
    %v321 = vadd.s32 %v193, 1024
    %v322 = vadd.s32 %v193, 1032
    %v323 = vadd.s32 %v193, 1040
    %v324 = vadd.s32 %v193, 1048
    %v325 = vadd.s32 %v193, 1056
    %v326 = vadd.s32 %v193, 1064
    %v327 = vadd.s32 %v193, 1072
    %v328 = vadd.s32 %v193, 1080
    %v329 = vadd.s32 %v193, 1088
    %v330 = vadd.s32 %v193, 1096
    %v331 = vadd.s32 %v193, 1104
    %v332 = vadd.s32 %v193, 1112
    %v333 = vadd.s32 %v193, 1120
    %v334 = vadd.s32 %v193, 1128
    %v335 = vadd.s32 %v193, 1136
    %v336 = vadd.s32 %v193, 1144
    %v337 = vadd.s32 %v193, 1152
    %v338 = vadd.s32 %v193, 1160
    %v339 = vadd.s32 %v193, 1168
    %v340 = vadd.s32 %v193, 1176
    %v341 = vadd.s32 %v193, 1184
    %v342 = vadd.s32 %v193, 1192
    %vm343 = vcmp.lt.s32.totalorder %v193, 0
    %v344 = vsub.s32 0, %v193
    %v345 = vsel %vm343, %v344, %v193
    %v346 = vand.u32 %v345, 65535
    %v347 = vshrl.u32 %v345, 16
    %v349 = vmul.u32 %v346, 3496
    %v350 = vmul.u32 %v346, 55924
    %v351 = vmul.u32 %v347, 3496
    %v352 = vmul.u32 %v347, 55924
    %v353 = vshll.u32 %v350, 16
    %v354 = vshrl.u32 %v350, 16
    %v355 = vshll.u32 %v351, 16
    %v356 = vshrl.u32 %v351, 16
    %vm357 = vc.u32 %v349, %v353
    %v358 = vsel %vm357, 1, 0
    %v359 = vadd.s32 %v349, %v353
    %v360 = vadd.s32 %v352, %v358
    %vm361 = vc.u32 %v359, %v355
    %v362 = vsel %vm361, 1, 0
    %v363 = vadd.s32 %v359, %v355
    %v364 = vadd.s32 %v360, %v362
    %v365 = vadd.s32 %v364, %v354
    %v366 = vadd.s32 %v365, %v356
    %v367 = vshrl.u32 %v366, 7
    %v368 = vmul.u32 %v367, 150
    %v369 = vsub.s32 %v345, %v368
    %v370 = vsub.s32 0, %v369
    %v371 = vsel %vm343, %v370, %v369
    %vm372 = vcmp.lt.s32.totalorder %v194, 0
    %v373 = vsub.s32 0, %v194
    %v374 = vsel %vm372, %v373, %v194
    %v375 = vand.u32 %v374, 65535
    %v376 = vshrl.u32 %v374, 16
    %v378 = vmul.u32 %v375, 3496
    %v379 = vmul.u32 %v375, 55924
    %v380 = vmul.u32 %v376, 3496
    %v381 = vmul.u32 %v376, 55924
    %v382 = vshll.u32 %v379, 16
    %v383 = vshrl.u32 %v379, 16
    %v384 = vshll.u32 %v380, 16
    %v385 = vshrl.u32 %v380, 16
    %vm386 = vc.u32 %v378, %v382
    %v387 = vsel %vm386, 1, 0
    %v388 = vadd.s32 %v378, %v382
    %v389 = vadd.s32 %v381, %v387
    %vm390 = vc.u32 %v388, %v384
    %v391 = vsel %vm390, 1, 0
    %v392 = vadd.s32 %v388, %v384
    %v393 = vadd.s32 %v389, %v391
    %v394 = vadd.s32 %v393, %v383
    %v395 = vadd.s32 %v394, %v385
    %v396 = vshrl.u32 %v395, 7
    %v397 = vmul.u32 %v396, 150
    %v398 = vsub.s32 %v374, %v397
    %v399 = vsub.s32 0, %v398
    %v400 = vsel %vm372, %v399, %v398
    %vm401 = vcmp.lt.s32.totalorder %v195, 0
    %v402 = vsub.s32 0, %v195
    %v403 = vsel %vm401, %v402, %v195
    %v404 = vand.u32 %v403, 65535
    %v405 = vshrl.u32 %v403, 16
    %v407 = vmul.u32 %v404, 3496
    %v408 = vmul.u32 %v404, 55924
    %v409 = vmul.u32 %v405, 3496
    %v410 = vmul.u32 %v405, 55924
    %v411 = vshll.u32 %v408, 16
    %v412 = vshrl.u32 %v408, 16
    %v413 = vshll.u32 %v409, 16
    %v414 = vshrl.u32 %v409, 16
    %vm415 = vc.u32 %v407, %v411
    %v416 = vsel %vm415, 1, 0
    %v417 = vadd.s32 %v407, %v411
    %v418 = vadd.s32 %v410, %v416
    %vm419 = vc.u32 %v417, %v413
    %v420 = vsel %vm419, 1, 0
    %v421 = vadd.s32 %v417, %v413
    %v422 = vadd.s32 %v418, %v420
    %v423 = vadd.s32 %v422, %v412
    %v424 = vadd.s32 %v423, %v414
    %v425 = vshrl.u32 %v424, 7
    %v426 = vmul.u32 %v425, 150
    %v427 = vsub.s32 %v403, %v426
    %v428 = vsub.s32 0, %v427
    %v429 = vsel %vm401, %v428, %v427
    %vm430 = vcmp.lt.s32.totalorder %v196, 0
    %v431 = vsub.s32 0, %v196
    %v432 = vsel %vm430, %v431, %v196
    %v433 = vand.u32 %v432, 65535
    %v434 = vshrl.u32 %v432, 16
    %v436 = vmul.u32 %v433, 3496
    %v437 = vmul.u32 %v433, 55924
    %v438 = vmul.u32 %v434, 3496
    %v439 = vmul.u32 %v434, 55924
    %v440 = vshll.u32 %v437, 16
    %v441 = vshrl.u32 %v437, 16
    %v442 = vshll.u32 %v438, 16
    %v443 = vshrl.u32 %v438, 16
    %vm444 = vc.u32 %v436, %v440
    %v445 = vsel %vm444, 1, 0
    %v446 = vadd.s32 %v436, %v440
    %v447 = vadd.s32 %v439, %v445
    %vm448 = vc.u32 %v446, %v442
    %v449 = vsel %vm448, 1, 0
    %v450 = vadd.s32 %v446, %v442
    %v451 = vadd.s32 %v447, %v449
    %v452 = vadd.s32 %v451, %v441
    %v453 = vadd.s32 %v452, %v443
    %v454 = vshrl.u32 %v453, 7
    %v455 = vmul.u32 %v454, 150
    %v456 = vsub.s32 %v432, %v455
    %v457 = vsub.s32 0, %v456
    %v458 = vsel %vm430, %v457, %v456
    %vm459 = vcmp.lt.s32.totalorder %v197, 0
    %v460 = vsub.s32 0, %v197
    %v461 = vsel %vm459, %v460, %v197
    %v462 = vand.u32 %v461, 65535
    %v463 = vshrl.u32 %v461, 16
    %v465 = vmul.u32 %v462, 3496
    %v466 = vmul.u32 %v462, 55924
    %v467 = vmul.u32 %v463, 3496
    %v468 = vmul.u32 %v463, 55924
    %v469 = vshll.u32 %v466, 16
    %v470 = vshrl.u32 %v466, 16
    %v471 = vshll.u32 %v467, 16
    %v472 = vshrl.u32 %v467, 16
    %vm473 = vc.u32 %v465, %v469
    %v474 = vsel %vm473, 1, 0
    %v475 = vadd.s32 %v465, %v469
    %v476 = vadd.s32 %v468, %v474
    %vm477 = vc.u32 %v475, %v471
    %v478 = vsel %vm477, 1, 0
    %v479 = vadd.s32 %v475, %v471
    %v480 = vadd.s32 %v476, %v478
    %v481 = vadd.s32 %v480, %v470
    %v482 = vadd.s32 %v481, %v472
    %v483 = vshrl.u32 %v482, 7
    %v484 = vmul.u32 %v483, 150
    %v485 = vsub.s32 %v461, %v484
    %v486 = vsub.s32 0, %v485
    %v487 = vsel %vm459, %v486, %v485
    %vm488 = vcmp.lt.s32.totalorder %v198, 0
    %v489 = vsub.s32 0, %v198
    %v490 = vsel %vm488, %v489, %v198
    %v491 = vand.u32 %v490, 65535
    %v492 = vshrl.u32 %v490, 16
    %v494 = vmul.u32 %v491, 3496
    %v495 = vmul.u32 %v491, 55924
    %v496 = vmul.u32 %v492, 3496
    %v497 = vmul.u32 %v492, 55924
    %v498 = vshll.u32 %v495, 16
    %v499 = vshrl.u32 %v495, 16
    %v500 = vshll.u32 %v496, 16
    %v501 = vshrl.u32 %v496, 16
    %vm502 = vc.u32 %v494, %v498
    %v503 = vsel %vm502, 1, 0
    %v504 = vadd.s32 %v494, %v498
    %v505 = vadd.s32 %v497, %v503
    %vm506 = vc.u32 %v504, %v500
    %v507 = vsel %vm506, 1, 0
    %v508 = vadd.s32 %v504, %v500
    %v509 = vadd.s32 %v505, %v507
    %v510 = vadd.s32 %v509, %v499
    %v511 = vadd.s32 %v510, %v501
    %v512 = vshrl.u32 %v511, 7
    %v513 = vmul.u32 %v512, 150
    %v514 = vsub.s32 %v490, %v513
    %v515 = vsub.s32 0, %v514
    %v516 = vsel %vm488, %v515, %v514
    %vm517 = vcmp.lt.s32.totalorder %v199, 0
    %v518 = vsub.s32 0, %v199
    %v519 = vsel %vm517, %v518, %v199
    %v520 = vand.u32 %v519, 65535
    %v521 = vshrl.u32 %v519, 16
    %v523 = vmul.u32 %v520, 3496
    %v524 = vmul.u32 %v520, 55924
    %v525 = vmul.u32 %v521, 3496
    %v526 = vmul.u32 %v521, 55924
    %v527 = vshll.u32 %v524, 16
    %v528 = vshrl.u32 %v524, 16
    %v529 = vshll.u32 %v525, 16
    %v530 = vshrl.u32 %v525, 16
    %vm531 = vc.u32 %v523, %v527
    %v532 = vsel %vm531, 1, 0
    %v533 = vadd.s32 %v523, %v527
    %v534 = vadd.s32 %v526, %v532
    %vm535 = vc.u32 %v533, %v529
    %v536 = vsel %vm535, 1, 0
    %v537 = vadd.s32 %v533, %v529
    %v538 = vadd.s32 %v534, %v536
    %v539 = vadd.s32 %v538, %v528
    %v540 = vadd.s32 %v539, %v530
    %v541 = vshrl.u32 %v540, 7
    %v542 = vmul.u32 %v541, 150
    %v543 = vsub.s32 %v519, %v542
    %v544 = vsub.s32 0, %v543
    %v545 = vsel %vm517, %v544, %v543
    %vm546 = vcmp.lt.s32.totalorder %v200, 0
    %v547 = vsub.s32 0, %v200
    %v548 = vsel %vm546, %v547, %v200
    %v549 = vand.u32 %v548, 65535
    %v550 = vshrl.u32 %v548, 16
    %v552 = vmul.u32 %v549, 3496
    %v553 = vmul.u32 %v549, 55924
    %v554 = vmul.u32 %v550, 3496
    %v555 = vmul.u32 %v550, 55924
    %v556 = vshll.u32 %v553, 16
    %v557 = vshrl.u32 %v553, 16
    %v558 = vshll.u32 %v554, 16
    %v559 = vshrl.u32 %v554, 16
    %vm560 = vc.u32 %v552, %v556
    %v561 = vsel %vm560, 1, 0
    %v562 = vadd.s32 %v552, %v556
    %v563 = vadd.s32 %v555, %v561
    %vm564 = vc.u32 %v562, %v558
    %v565 = vsel %vm564, 1, 0
    %v566 = vadd.s32 %v562, %v558
    %v567 = vadd.s32 %v563, %v565
    %v568 = vadd.s32 %v567, %v557
    %v569 = vadd.s32 %v568, %v559
    %v570 = vshrl.u32 %v569, 7
    %v571 = vmul.u32 %v570, 150
    %v572 = vsub.s32 %v548, %v571
    %v573 = vsub.s32 0, %v572
    %v574 = vsel %vm546, %v573, %v572
    %vm575 = vcmp.lt.s32.totalorder %v201, 0
    %v576 = vsub.s32 0, %v201
    %v577 = vsel %vm575, %v576, %v201
    %v578 = vand.u32 %v577, 65535
    %v579 = vshrl.u32 %v577, 16
    %v581 = vmul.u32 %v578, 3496
    %v582 = vmul.u32 %v578, 55924
    %v583 = vmul.u32 %v579, 3496
    %v584 = vmul.u32 %v579, 55924
    %v585 = vshll.u32 %v582, 16
    %v586 = vshrl.u32 %v582, 16
    %v587 = vshll.u32 %v583, 16
    %v588 = vshrl.u32 %v583, 16
    %vm589 = vc.u32 %v581, %v585
    %v590 = vsel %vm589, 1, 0
    %v591 = vadd.s32 %v581, %v585
    %v592 = vadd.s32 %v584, %v590
    %vm593 = vc.u32 %v591, %v587
    %v594 = vsel %vm593, 1, 0
    %v595 = vadd.s32 %v591, %v587
    %v596 = vadd.s32 %v592, %v594
    %v597 = vadd.s32 %v596, %v586
    %v598 = vadd.s32 %v597, %v588
    %v599 = vshrl.u32 %v598, 7
    %v600 = vmul.u32 %v599, 150
    %v601 = vsub.s32 %v577, %v600
    %v602 = vsub.s32 0, %v601
    %v603 = vsel %vm575, %v602, %v601
    %vm604 = vcmp.lt.s32.totalorder %v202, 0
    %v605 = vsub.s32 0, %v202
    %v606 = vsel %vm604, %v605, %v202
    %v607 = vand.u32 %v606, 65535
    %v608 = vshrl.u32 %v606, 16
    %v610 = vmul.u32 %v607, 3496
    %v611 = vmul.u32 %v607, 55924
    %v612 = vmul.u32 %v608, 3496
    %v613 = vmul.u32 %v608, 55924
    %v614 = vshll.u32 %v611, 16
    %v615 = vshrl.u32 %v611, 16
    %v616 = vshll.u32 %v612, 16
    %v617 = vshrl.u32 %v612, 16
    %vm618 = vc.u32 %v610, %v614
    %v619 = vsel %vm618, 1, 0
    %v620 = vadd.s32 %v610, %v614
    %v621 = vadd.s32 %v613, %v619
    %vm622 = vc.u32 %v620, %v616
    %v623 = vsel %vm622, 1, 0
    %v624 = vadd.s32 %v620, %v616
    %v625 = vadd.s32 %v621, %v623
    %v626 = vadd.s32 %v625, %v615
    %v627 = vadd.s32 %v626, %v617
    %v628 = vshrl.u32 %v627, 7
    %v629 = vmul.u32 %v628, 150
    %v630 = vsub.s32 %v606, %v629
    %v631 = vsub.s32 0, %v630
    %v632 = vsel %vm604, %v631, %v630
    %vm633 = vcmp.lt.s32.totalorder %v203, 0
    %v634 = vsub.s32 0, %v203
    %v635 = vsel %vm633, %v634, %v203
    %v636 = vand.u32 %v635, 65535
    %v637 = vshrl.u32 %v635, 16
    %v639 = vmul.u32 %v636, 3496
    %v640 = vmul.u32 %v636, 55924
    %v641 = vmul.u32 %v637, 3496
    %v642 = vmul.u32 %v637, 55924
    %v643 = vshll.u32 %v640, 16
    %v644 = vshrl.u32 %v640, 16
    %v645 = vshll.u32 %v641, 16
    %v646 = vshrl.u32 %v641, 16
    %vm647 = vc.u32 %v639, %v643
    %v648 = vsel %vm647, 1, 0
    %v649 = vadd.s32 %v639, %v643
    %v650 = vadd.s32 %v642, %v648
    %vm651 = vc.u32 %v649, %v645
    %v652 = vsel %vm651, 1, 0
    %v653 = vadd.s32 %v649, %v645
    %v654 = vadd.s32 %v650, %v652
    %v655 = vadd.s32 %v654, %v644
    %v656 = vadd.s32 %v655, %v646
    %v657 = vshrl.u32 %v656, 7
    %v658 = vmul.u32 %v657, 150
    %v659 = vsub.s32 %v635, %v658
    %v660 = vsub.s32 0, %v659
    %v661 = vsel %vm633, %v660, %v659
    %vm662 = vcmp.lt.s32.totalorder %v204, 0
    %v663 = vsub.s32 0, %v204
    %v664 = vsel %vm662, %v663, %v204
    %v665 = vand.u32 %v664, 65535
    %v666 = vshrl.u32 %v664, 16
    %v668 = vmul.u32 %v665, 3496
    %v669 = vmul.u32 %v665, 55924
    %v670 = vmul.u32 %v666, 3496
    %v671 = vmul.u32 %v666, 55924
    %v672 = vshll.u32 %v669, 16
    %v673 = vshrl.u32 %v669, 16
    %v674 = vshll.u32 %v670, 16
    %v675 = vshrl.u32 %v670, 16
    %vm676 = vc.u32 %v668, %v672
    %v677 = vsel %vm676, 1, 0
    %v678 = vadd.s32 %v668, %v672
    %v679 = vadd.s32 %v671, %v677
    %vm680 = vc.u32 %v678, %v674
    %v681 = vsel %vm680, 1, 0
    %v682 = vadd.s32 %v678, %v674
    %v683 = vadd.s32 %v679, %v681
    %v684 = vadd.s32 %v683, %v673
    %v685 = vadd.s32 %v684, %v675
    %v686 = vshrl.u32 %v685, 7
    %v687 = vmul.u32 %v686, 150
    %v688 = vsub.s32 %v664, %v687
    %v689 = vsub.s32 0, %v688
    %v690 = vsel %vm662, %v689, %v688
    %vm691 = vcmp.lt.s32.totalorder %v205, 0
    %v692 = vsub.s32 0, %v205
    %v693 = vsel %vm691, %v692, %v205
    %v694 = vand.u32 %v693, 65535
    %v695 = vshrl.u32 %v693, 16
    %v697 = vmul.u32 %v694, 3496
    %v698 = vmul.u32 %v694, 55924
    %v699 = vmul.u32 %v695, 3496
    %v700 = vmul.u32 %v695, 55924
    %v701 = vshll.u32 %v698, 16
    %v702 = vshrl.u32 %v698, 16
    %v703 = vshll.u32 %v699, 16
    %v704 = vshrl.u32 %v699, 16
    %vm705 = vc.u32 %v697, %v701
    %v706 = vsel %vm705, 1, 0
    %v707 = vadd.s32 %v697, %v701
    %v708 = vadd.s32 %v700, %v706
    %vm709 = vc.u32 %v707, %v703
    %v710 = vsel %vm709, 1, 0
    %v711 = vadd.s32 %v707, %v703
    %v712 = vadd.s32 %v708, %v710
    %v713 = vadd.s32 %v712, %v702
    %v714 = vadd.s32 %v713, %v704
    %v715 = vshrl.u32 %v714, 7
    %v716 = vmul.u32 %v715, 150
    %v717 = vsub.s32 %v693, %v716
    %v718 = vsub.s32 0, %v717
    %v719 = vsel %vm691, %v718, %v717
    %vm720 = vcmp.lt.s32.totalorder %v206, 0
    %v721 = vsub.s32 0, %v206
    %v722 = vsel %vm720, %v721, %v206
    %v723 = vand.u32 %v722, 65535
    %v724 = vshrl.u32 %v722, 16
    %v726 = vmul.u32 %v723, 3496
    %v727 = vmul.u32 %v723, 55924
    %v728 = vmul.u32 %v724, 3496
    %v729 = vmul.u32 %v724, 55924
    %v730 = vshll.u32 %v727, 16
    %v731 = vshrl.u32 %v727, 16
    %v732 = vshll.u32 %v728, 16
    %v733 = vshrl.u32 %v728, 16
    %vm734 = vc.u32 %v726, %v730
    %v735 = vsel %vm734, 1, 0
    %v736 = vadd.s32 %v726, %v730
    %v737 = vadd.s32 %v729, %v735
    %vm738 = vc.u32 %v736, %v732
    %v739 = vsel %vm738, 1, 0
    %v740 = vadd.s32 %v736, %v732
    %v741 = vadd.s32 %v737, %v739
    %v742 = vadd.s32 %v741, %v731
    %v743 = vadd.s32 %v742, %v733
    %v744 = vshrl.u32 %v743, 7
    %v745 = vmul.u32 %v744, 150
    %v746 = vsub.s32 %v722, %v745
    %v747 = vsub.s32 0, %v746
    %v748 = vsel %vm720, %v747, %v746
    %vm749 = vcmp.lt.s32.totalorder %v207, 0
    %v750 = vsub.s32 0, %v207
    %v751 = vsel %vm749, %v750, %v207
    %v752 = vand.u32 %v751, 65535
    %v753 = vshrl.u32 %v751, 16
    %v755 = vmul.u32 %v752, 3496
    %v756 = vmul.u32 %v752, 55924
    %v757 = vmul.u32 %v753, 3496
    %v758 = vmul.u32 %v753, 55924
    %v759 = vshll.u32 %v756, 16
    %v760 = vshrl.u32 %v756, 16
    %v761 = vshll.u32 %v757, 16
    %v762 = vshrl.u32 %v757, 16
    %vm763 = vc.u32 %v755, %v759
    %v764 = vsel %vm763, 1, 0
    %v765 = vadd.s32 %v755, %v759
    %v766 = vadd.s32 %v758, %v764
    %vm767 = vc.u32 %v765, %v761
    %v768 = vsel %vm767, 1, 0
    %v769 = vadd.s32 %v765, %v761
    %v770 = vadd.s32 %v766, %v768
    %v771 = vadd.s32 %v770, %v760
    %v772 = vadd.s32 %v771, %v762
    %v773 = vshrl.u32 %v772, 7
    %v774 = vmul.u32 %v773, 150
    %v775 = vsub.s32 %v751, %v774
    %v776 = vsub.s32 0, %v775
    %v777 = vsel %vm749, %v776, %v775
    %vm778 = vcmp.lt.s32.totalorder %v208, 0
    %v779 = vsub.s32 0, %v208
    %v780 = vsel %vm778, %v779, %v208
    %v781 = vand.u32 %v780, 65535
    %v782 = vshrl.u32 %v780, 16
    %v784 = vmul.u32 %v781, 3496
    %v785 = vmul.u32 %v781, 55924
    %v786 = vmul.u32 %v782, 3496
    %v787 = vmul.u32 %v782, 55924
    %v788 = vshll.u32 %v785, 16
    %v789 = vshrl.u32 %v785, 16
    %v790 = vshll.u32 %v786, 16
    %v791 = vshrl.u32 %v786, 16
    %vm792 = vc.u32 %v784, %v788
    %v793 = vsel %vm792, 1, 0
    %v794 = vadd.s32 %v784, %v788
    %v795 = vadd.s32 %v787, %v793
    %vm796 = vc.u32 %v794, %v790
    %v797 = vsel %vm796, 1, 0
    %v798 = vadd.s32 %v794, %v790
    %v799 = vadd.s32 %v795, %v797
    %v800 = vadd.s32 %v799, %v789
    %v801 = vadd.s32 %v800, %v791
    %v802 = vshrl.u32 %v801, 7
    %v803 = vmul.u32 %v802, 150
    %v804 = vsub.s32 %v780, %v803
    %v805 = vsub.s32 0, %v804
    %v806 = vsel %vm778, %v805, %v804
    %vm807 = vcmp.lt.s32.totalorder %v209, 0
    %v808 = vsub.s32 0, %v209
    %v809 = vsel %vm807, %v808, %v209
    %v810 = vand.u32 %v809, 65535
    %v811 = vshrl.u32 %v809, 16
    %v813 = vmul.u32 %v810, 3496
    %v814 = vmul.u32 %v810, 55924
    %v815 = vmul.u32 %v811, 3496
    %v816 = vmul.u32 %v811, 55924
    %v817 = vshll.u32 %v814, 16
    %v818 = vshrl.u32 %v814, 16
    %v819 = vshll.u32 %v815, 16
    %v820 = vshrl.u32 %v815, 16
    %vm821 = vc.u32 %v813, %v817
    %v822 = vsel %vm821, 1, 0
    %v823 = vadd.s32 %v813, %v817
    %v824 = vadd.s32 %v816, %v822
    %vm825 = vc.u32 %v823, %v819
    %v826 = vsel %vm825, 1, 0
    %v827 = vadd.s32 %v823, %v819
    %v828 = vadd.s32 %v824, %v826
    %v829 = vadd.s32 %v828, %v818
    %v830 = vadd.s32 %v829, %v820
    %v831 = vshrl.u32 %v830, 7
    %v832 = vmul.u32 %v831, 150
    %v833 = vsub.s32 %v809, %v832
    %v834 = vsub.s32 0, %v833
    %v835 = vsel %vm807, %v834, %v833
    %vm836 = vcmp.lt.s32.totalorder %v210, 0
    %v837 = vsub.s32 0, %v210
    %v838 = vsel %vm836, %v837, %v210
    %v839 = vand.u32 %v838, 65535
    %v840 = vshrl.u32 %v838, 16
    %v842 = vmul.u32 %v839, 3496
    %v843 = vmul.u32 %v839, 55924
    %v844 = vmul.u32 %v840, 3496
    %v845 = vmul.u32 %v840, 55924
    %v846 = vshll.u32 %v843, 16
    %v847 = vshrl.u32 %v843, 16
    %v848 = vshll.u32 %v844, 16
    %v849 = vshrl.u32 %v844, 16
    %vm850 = vc.u32 %v842, %v846
    %v851 = vsel %vm850, 1, 0
    %v852 = vadd.s32 %v842, %v846
    %v853 = vadd.s32 %v845, %v851
    %vm854 = vc.u32 %v852, %v848
    %v855 = vsel %vm854, 1, 0
    %v856 = vadd.s32 %v852, %v848
    %v857 = vadd.s32 %v853, %v855
    %v858 = vadd.s32 %v857, %v847
    %v859 = vadd.s32 %v858, %v849
    %v860 = vshrl.u32 %v859, 7
    %v861 = vmul.u32 %v860, 150
    %v862 = vsub.s32 %v838, %v861
    %v863 = vsub.s32 0, %v862
    %v864 = vsel %vm836, %v863, %v862
    %vm865 = vcmp.lt.s32.totalorder %v211, 0
    %v866 = vsub.s32 0, %v211
    %v867 = vsel %vm865, %v866, %v211
    %v868 = vand.u32 %v867, 65535
    %v869 = vshrl.u32 %v867, 16
    %v871 = vmul.u32 %v868, 3496
    %v872 = vmul.u32 %v868, 55924
    %v873 = vmul.u32 %v869, 3496
    %v874 = vmul.u32 %v869, 55924
    %v875 = vshll.u32 %v872, 16
    %v876 = vshrl.u32 %v872, 16
    %v877 = vshll.u32 %v873, 16
    %v878 = vshrl.u32 %v873, 16
    %vm879 = vc.u32 %v871, %v875
    %v880 = vsel %vm879, 1, 0
    %v881 = vadd.s32 %v871, %v875
    %v882 = vadd.s32 %v874, %v880
    %vm883 = vc.u32 %v881, %v877
    %v884 = vsel %vm883, 1, 0
    %v885 = vadd.s32 %v881, %v877
    %v886 = vadd.s32 %v882, %v884
    %v887 = vadd.s32 %v886, %v876
    %v888 = vadd.s32 %v887, %v878
    %v889 = vshrl.u32 %v888, 7
    %v890 = vmul.u32 %v889, 150
    %v891 = vsub.s32 %v867, %v890
    %v892 = vsub.s32 0, %v891
    %v893 = vsel %vm865, %v892, %v891
    %vm894 = vcmp.lt.s32.totalorder %v212, 0
    %v895 = vsub.s32 0, %v212
    %v896 = vsel %vm894, %v895, %v212
    %v897 = vand.u32 %v896, 65535
    %v898 = vshrl.u32 %v896, 16
    %v900 = vmul.u32 %v897, 3496
    %v901 = vmul.u32 %v897, 55924
    %v902 = vmul.u32 %v898, 3496
    %v903 = vmul.u32 %v898, 55924
    %v904 = vshll.u32 %v901, 16
    %v905 = vshrl.u32 %v901, 16
    %v906 = vshll.u32 %v902, 16
    %v907 = vshrl.u32 %v902, 16
    %vm908 = vc.u32 %v900, %v904
    %v909 = vsel %vm908, 1, 0
    %v910 = vadd.s32 %v900, %v904
    %v911 = vadd.s32 %v903, %v909
    %vm912 = vc.u32 %v910, %v906
    %v913 = vsel %vm912, 1, 0
    %v914 = vadd.s32 %v910, %v906
    %v915 = vadd.s32 %v911, %v913
    %v916 = vadd.s32 %v915, %v905
    %v917 = vadd.s32 %v916, %v907
    %v918 = vshrl.u32 %v917, 7
    %v919 = vmul.u32 %v918, 150
    %v920 = vsub.s32 %v896, %v919
    %v921 = vsub.s32 0, %v920
    %v922 = vsel %vm894, %v921, %v920
    %vm923 = vcmp.lt.s32.totalorder %v213, 0
    %v924 = vsub.s32 0, %v213
    %v925 = vsel %vm923, %v924, %v213
    %v926 = vand.u32 %v925, 65535
    %v927 = vshrl.u32 %v925, 16
    %v929 = vmul.u32 %v926, 3496
    %v930 = vmul.u32 %v926, 55924
    %v931 = vmul.u32 %v927, 3496
    %v932 = vmul.u32 %v927, 55924
    %v933 = vshll.u32 %v930, 16
    %v934 = vshrl.u32 %v930, 16
    %v935 = vshll.u32 %v931, 16
    %v936 = vshrl.u32 %v931, 16
    %vm937 = vc.u32 %v929, %v933
    %v938 = vsel %vm937, 1, 0
    %v939 = vadd.s32 %v929, %v933
    %v940 = vadd.s32 %v932, %v938
    %vm941 = vc.u32 %v939, %v935
    %v942 = vsel %vm941, 1, 0
    %v943 = vadd.s32 %v939, %v935
    %v944 = vadd.s32 %v940, %v942
    %v945 = vadd.s32 %v944, %v934
    %v946 = vadd.s32 %v945, %v936
    %v947 = vshrl.u32 %v946, 7
    %v948 = vmul.u32 %v947, 150
    %v949 = vsub.s32 %v925, %v948
    %v950 = vsub.s32 0, %v949
    %v951 = vsel %vm923, %v950, %v949
    %vm952 = vcmp.lt.s32.totalorder %v214, 0
    %v953 = vsub.s32 0, %v214
    %v954 = vsel %vm952, %v953, %v214
    %v955 = vand.u32 %v954, 65535
    %v956 = vshrl.u32 %v954, 16
    %v958 = vmul.u32 %v955, 3496
    %v959 = vmul.u32 %v955, 55924
    %v960 = vmul.u32 %v956, 3496
    %v961 = vmul.u32 %v956, 55924
    %v962 = vshll.u32 %v959, 16
    %v963 = vshrl.u32 %v959, 16
    %v964 = vshll.u32 %v960, 16
    %v965 = vshrl.u32 %v960, 16
    %vm966 = vc.u32 %v958, %v962
    %v967 = vsel %vm966, 1, 0
    %v968 = vadd.s32 %v958, %v962
    %v969 = vadd.s32 %v961, %v967
    %vm970 = vc.u32 %v968, %v964
    %v971 = vsel %vm970, 1, 0
    %v972 = vadd.s32 %v968, %v964
    %v973 = vadd.s32 %v969, %v971
    %v974 = vadd.s32 %v973, %v963
    %v975 = vadd.s32 %v974, %v965
    %v976 = vshrl.u32 %v975, 7
    %v977 = vmul.u32 %v976, 150
    %v978 = vsub.s32 %v954, %v977
    %v979 = vsub.s32 0, %v978
    %v980 = vsel %vm952, %v979, %v978
    %vm981 = vcmp.lt.s32.totalorder %v215, 0
    %v982 = vsub.s32 0, %v215
    %v983 = vsel %vm981, %v982, %v215
    %v984 = vand.u32 %v983, 65535
    %v985 = vshrl.u32 %v983, 16
    %v987 = vmul.u32 %v984, 3496
    %v988 = vmul.u32 %v984, 55924
    %v989 = vmul.u32 %v985, 3496
    %v990 = vmul.u32 %v985, 55924
    %v991 = vshll.u32 %v988, 16
    %v992 = vshrl.u32 %v988, 16
    %v993 = vshll.u32 %v989, 16
    %v994 = vshrl.u32 %v989, 16
    %vm995 = vc.u32 %v987, %v991
    %v996 = vsel %vm995, 1, 0
    %v997 = vadd.s32 %v987, %v991
    %v998 = vadd.s32 %v990, %v996
    %vm999 = vc.u32 %v997, %v993
    %v1000 = vsel %vm999, 1, 0
    %v1001 = vadd.s32 %v997, %v993
    %v1002 = vadd.s32 %v998, %v1000
    %v1003 = vadd.s32 %v1002, %v992
    %v1004 = vadd.s32 %v1003, %v994
    %v1005 = vshrl.u32 %v1004, 7
    %v1006 = vmul.u32 %v1005, 150
    %v1007 = vsub.s32 %v983, %v1006
    %v1008 = vsub.s32 0, %v1007
    %v1009 = vsel %vm981, %v1008, %v1007
    %vm1010 = vcmp.lt.s32.totalorder %v216, 0
    %v1011 = vsub.s32 0, %v216
    %v1012 = vsel %vm1010, %v1011, %v216
    %v1013 = vand.u32 %v1012, 65535
    %v1014 = vshrl.u32 %v1012, 16
    %v1016 = vmul.u32 %v1013, 3496
    %v1017 = vmul.u32 %v1013, 55924
    %v1018 = vmul.u32 %v1014, 3496
    %v1019 = vmul.u32 %v1014, 55924
    %v1020 = vshll.u32 %v1017, 16
    %v1021 = vshrl.u32 %v1017, 16
    %v1022 = vshll.u32 %v1018, 16
    %v1023 = vshrl.u32 %v1018, 16
    %vm1024 = vc.u32 %v1016, %v1020
    %v1025 = vsel %vm1024, 1, 0
    %v1026 = vadd.s32 %v1016, %v1020
    %v1027 = vadd.s32 %v1019, %v1025
    %vm1028 = vc.u32 %v1026, %v1022
    %v1029 = vsel %vm1028, 1, 0
    %v1030 = vadd.s32 %v1026, %v1022
    %v1031 = vadd.s32 %v1027, %v1029
    %v1032 = vadd.s32 %v1031, %v1021
    %v1033 = vadd.s32 %v1032, %v1023
    %v1034 = vshrl.u32 %v1033, 7
    %v1035 = vmul.u32 %v1034, 150
    %v1036 = vsub.s32 %v1012, %v1035
    %v1037 = vsub.s32 0, %v1036
    %v1038 = vsel %vm1010, %v1037, %v1036
    %vm1039 = vcmp.lt.s32.totalorder %v217, 0
    %v1040 = vsub.s32 0, %v217
    %v1041 = vsel %vm1039, %v1040, %v217
    %v1042 = vand.u32 %v1041, 65535
    %v1043 = vshrl.u32 %v1041, 16
    %v1045 = vmul.u32 %v1042, 3496
    %v1046 = vmul.u32 %v1042, 55924
    %v1047 = vmul.u32 %v1043, 3496
    %v1048 = vmul.u32 %v1043, 55924
    %v1049 = vshll.u32 %v1046, 16
    %v1050 = vshrl.u32 %v1046, 16
    %v1051 = vshll.u32 %v1047, 16
    %v1052 = vshrl.u32 %v1047, 16
    %vm1053 = vc.u32 %v1045, %v1049
    %v1054 = vsel %vm1053, 1, 0
    %v1055 = vadd.s32 %v1045, %v1049
    %v1056 = vadd.s32 %v1048, %v1054
    %vm1057 = vc.u32 %v1055, %v1051
    %v1058 = vsel %vm1057, 1, 0
    %v1059 = vadd.s32 %v1055, %v1051
    %v1060 = vadd.s32 %v1056, %v1058
    %v1061 = vadd.s32 %v1060, %v1050
    %v1062 = vadd.s32 %v1061, %v1052
    %v1063 = vshrl.u32 %v1062, 7
    %v1064 = vmul.u32 %v1063, 150
    %v1065 = vsub.s32 %v1041, %v1064
    %v1066 = vsub.s32 0, %v1065
    %v1067 = vsel %vm1039, %v1066, %v1065
    %vm1068 = vcmp.lt.s32.totalorder %v218, 0
    %v1069 = vsub.s32 0, %v218
    %v1070 = vsel %vm1068, %v1069, %v218
    %v1071 = vand.u32 %v1070, 65535
    %v1072 = vshrl.u32 %v1070, 16
    %v1074 = vmul.u32 %v1071, 3496
    %v1075 = vmul.u32 %v1071, 55924
    %v1076 = vmul.u32 %v1072, 3496
    %v1077 = vmul.u32 %v1072, 55924
    %v1078 = vshll.u32 %v1075, 16
    %v1079 = vshrl.u32 %v1075, 16
    %v1080 = vshll.u32 %v1076, 16
    %v1081 = vshrl.u32 %v1076, 16
    %vm1082 = vc.u32 %v1074, %v1078
    %v1083 = vsel %vm1082, 1, 0
    %v1084 = vadd.s32 %v1074, %v1078
    %v1085 = vadd.s32 %v1077, %v1083
    %vm1086 = vc.u32 %v1084, %v1080
    %v1087 = vsel %vm1086, 1, 0
    %v1088 = vadd.s32 %v1084, %v1080
    %v1089 = vadd.s32 %v1085, %v1087
    %v1090 = vadd.s32 %v1089, %v1079
    %v1091 = vadd.s32 %v1090, %v1081
    %v1092 = vshrl.u32 %v1091, 7
    %v1093 = vmul.u32 %v1092, 150
    %v1094 = vsub.s32 %v1070, %v1093
    %v1095 = vsub.s32 0, %v1094
    %v1096 = vsel %vm1068, %v1095, %v1094
    %vm1097 = vcmp.lt.s32.totalorder %v219, 0
    %v1098 = vsub.s32 0, %v219
    %v1099 = vsel %vm1097, %v1098, %v219
    %v1100 = vand.u32 %v1099, 65535
    %v1101 = vshrl.u32 %v1099, 16
    %v1103 = vmul.u32 %v1100, 3496
    %v1104 = vmul.u32 %v1100, 55924
    %v1105 = vmul.u32 %v1101, 3496
    %v1106 = vmul.u32 %v1101, 55924
    %v1107 = vshll.u32 %v1104, 16
    %v1108 = vshrl.u32 %v1104, 16
    %v1109 = vshll.u32 %v1105, 16
    %v1110 = vshrl.u32 %v1105, 16
    %vm1111 = vc.u32 %v1103, %v1107
    %v1112 = vsel %vm1111, 1, 0
    %v1113 = vadd.s32 %v1103, %v1107
    %v1114 = vadd.s32 %v1106, %v1112
    %vm1115 = vc.u32 %v1113, %v1109
    %v1116 = vsel %vm1115, 1, 0
    %v1117 = vadd.s32 %v1113, %v1109
    %v1118 = vadd.s32 %v1114, %v1116
    %v1119 = vadd.s32 %v1118, %v1108
    %v1120 = vadd.s32 %v1119, %v1110
    %v1121 = vshrl.u32 %v1120, 7
    %v1122 = vmul.u32 %v1121, 150
    %v1123 = vsub.s32 %v1099, %v1122
    %v1124 = vsub.s32 0, %v1123
    %v1125 = vsel %vm1097, %v1124, %v1123
    %vm1126 = vcmp.lt.s32.totalorder %v220, 0
    %v1127 = vsub.s32 0, %v220
    %v1128 = vsel %vm1126, %v1127, %v220
    %v1129 = vand.u32 %v1128, 65535
    %v1130 = vshrl.u32 %v1128, 16
    %v1132 = vmul.u32 %v1129, 3496
    %v1133 = vmul.u32 %v1129, 55924
    %v1134 = vmul.u32 %v1130, 3496
    %v1135 = vmul.u32 %v1130, 55924
    %v1136 = vshll.u32 %v1133, 16
    %v1137 = vshrl.u32 %v1133, 16
    %v1138 = vshll.u32 %v1134, 16
    %v1139 = vshrl.u32 %v1134, 16
    %vm1140 = vc.u32 %v1132, %v1136
    %v1141 = vsel %vm1140, 1, 0
    %v1142 = vadd.s32 %v1132, %v1136
    %v1143 = vadd.s32 %v1135, %v1141
    %vm1144 = vc.u32 %v1142, %v1138
    %v1145 = vsel %vm1144, 1, 0
    %v1146 = vadd.s32 %v1142, %v1138
    %v1147 = vadd.s32 %v1143, %v1145
    %v1148 = vadd.s32 %v1147, %v1137
    %v1149 = vadd.s32 %v1148, %v1139
    %v1150 = vshrl.u32 %v1149, 7
    %v1151 = vmul.u32 %v1150, 150
    %v1152 = vsub.s32 %v1128, %v1151
    %v1153 = vsub.s32 0, %v1152
    %v1154 = vsel %vm1126, %v1153, %v1152
    %vm1155 = vcmp.lt.s32.totalorder %v221, 0
    %v1156 = vsub.s32 0, %v221
    %v1157 = vsel %vm1155, %v1156, %v221
    %v1158 = vand.u32 %v1157, 65535
    %v1159 = vshrl.u32 %v1157, 16
    %v1161 = vmul.u32 %v1158, 3496
    %v1162 = vmul.u32 %v1158, 55924
    %v1163 = vmul.u32 %v1159, 3496
    %v1164 = vmul.u32 %v1159, 55924
    %v1165 = vshll.u32 %v1162, 16
    %v1166 = vshrl.u32 %v1162, 16
    %v1167 = vshll.u32 %v1163, 16
    %v1168 = vshrl.u32 %v1163, 16
    %vm1169 = vc.u32 %v1161, %v1165
    %v1170 = vsel %vm1169, 1, 0
    %v1171 = vadd.s32 %v1161, %v1165
    %v1172 = vadd.s32 %v1164, %v1170
    %vm1173 = vc.u32 %v1171, %v1167
    %v1174 = vsel %vm1173, 1, 0
    %v1175 = vadd.s32 %v1171, %v1167
    %v1176 = vadd.s32 %v1172, %v1174
    %v1177 = vadd.s32 %v1176, %v1166
    %v1178 = vadd.s32 %v1177, %v1168
    %v1179 = vshrl.u32 %v1178, 7
    %v1180 = vmul.u32 %v1179, 150
    %v1181 = vsub.s32 %v1157, %v1180
    %v1182 = vsub.s32 0, %v1181
    %v1183 = vsel %vm1155, %v1182, %v1181
    %vm1184 = vcmp.lt.s32.totalorder %v222, 0
    %v1185 = vsub.s32 0, %v222
    %v1186 = vsel %vm1184, %v1185, %v222
    %v1187 = vand.u32 %v1186, 65535
    %v1188 = vshrl.u32 %v1186, 16
    %v1190 = vmul.u32 %v1187, 3496
    %v1191 = vmul.u32 %v1187, 55924
    %v1192 = vmul.u32 %v1188, 3496
    %v1193 = vmul.u32 %v1188, 55924
    %v1194 = vshll.u32 %v1191, 16
    %v1195 = vshrl.u32 %v1191, 16
    %v1196 = vshll.u32 %v1192, 16
    %v1197 = vshrl.u32 %v1192, 16
    %vm1198 = vc.u32 %v1190, %v1194
    %v1199 = vsel %vm1198, 1, 0
    %v1200 = vadd.s32 %v1190, %v1194
    %v1201 = vadd.s32 %v1193, %v1199
    %vm1202 = vc.u32 %v1200, %v1196
    %v1203 = vsel %vm1202, 1, 0
    %v1204 = vadd.s32 %v1200, %v1196
    %v1205 = vadd.s32 %v1201, %v1203
    %v1206 = vadd.s32 %v1205, %v1195
    %v1207 = vadd.s32 %v1206, %v1197
    %v1208 = vshrl.u32 %v1207, 7
    %v1209 = vmul.u32 %v1208, 150
    %v1210 = vsub.s32 %v1186, %v1209
    %v1211 = vsub.s32 0, %v1210
    %v1212 = vsel %vm1184, %v1211, %v1210
    %vm1213 = vcmp.lt.s32.totalorder %v223, 0
    %v1214 = vsub.s32 0, %v223
    %v1215 = vsel %vm1213, %v1214, %v223
    %v1216 = vand.u32 %v1215, 65535
    %v1217 = vshrl.u32 %v1215, 16
    %v1219 = vmul.u32 %v1216, 3496
    %v1220 = vmul.u32 %v1216, 55924
    %v1221 = vmul.u32 %v1217, 3496
    %v1222 = vmul.u32 %v1217, 55924
    %v1223 = vshll.u32 %v1220, 16
    %v1224 = vshrl.u32 %v1220, 16
    %v1225 = vshll.u32 %v1221, 16
    %v1226 = vshrl.u32 %v1221, 16
    %vm1227 = vc.u32 %v1219, %v1223
    %v1228 = vsel %vm1227, 1, 0
    %v1229 = vadd.s32 %v1219, %v1223
    %v1230 = vadd.s32 %v1222, %v1228
    %vm1231 = vc.u32 %v1229, %v1225
    %v1232 = vsel %vm1231, 1, 0
    %v1233 = vadd.s32 %v1229, %v1225
    %v1234 = vadd.s32 %v1230, %v1232
    %v1235 = vadd.s32 %v1234, %v1224
    %v1236 = vadd.s32 %v1235, %v1226
    %v1237 = vshrl.u32 %v1236, 7
    %v1238 = vmul.u32 %v1237, 150
    %v1239 = vsub.s32 %v1215, %v1238
    %v1240 = vsub.s32 0, %v1239
    %v1241 = vsel %vm1213, %v1240, %v1239
    %vm1242 = vcmp.lt.s32.totalorder %v224, 0
    %v1243 = vsub.s32 0, %v224
    %v1244 = vsel %vm1242, %v1243, %v224
    %v1245 = vand.u32 %v1244, 65535
    %v1246 = vshrl.u32 %v1244, 16
    %v1248 = vmul.u32 %v1245, 3496
    %v1249 = vmul.u32 %v1245, 55924
    %v1250 = vmul.u32 %v1246, 3496
    %v1251 = vmul.u32 %v1246, 55924
    %v1252 = vshll.u32 %v1249, 16
    %v1253 = vshrl.u32 %v1249, 16
    %v1254 = vshll.u32 %v1250, 16
    %v1255 = vshrl.u32 %v1250, 16
    %vm1256 = vc.u32 %v1248, %v1252
    %v1257 = vsel %vm1256, 1, 0
    %v1258 = vadd.s32 %v1248, %v1252
    %v1259 = vadd.s32 %v1251, %v1257
    %vm1260 = vc.u32 %v1258, %v1254
    %v1261 = vsel %vm1260, 1, 0
    %v1262 = vadd.s32 %v1258, %v1254
    %v1263 = vadd.s32 %v1259, %v1261
    %v1264 = vadd.s32 %v1263, %v1253
    %v1265 = vadd.s32 %v1264, %v1255
    %v1266 = vshrl.u32 %v1265, 7
    %v1267 = vmul.u32 %v1266, 150
    %v1268 = vsub.s32 %v1244, %v1267
    %v1269 = vsub.s32 0, %v1268
    %v1270 = vsel %vm1242, %v1269, %v1268
    %vm1271 = vcmp.lt.s32.totalorder %v225, 0
    %v1272 = vsub.s32 0, %v225
    %v1273 = vsel %vm1271, %v1272, %v225
    %v1274 = vand.u32 %v1273, 65535
    %v1275 = vshrl.u32 %v1273, 16
    %v1277 = vmul.u32 %v1274, 3496
    %v1278 = vmul.u32 %v1274, 55924
    %v1279 = vmul.u32 %v1275, 3496
    %v1280 = vmul.u32 %v1275, 55924
    %v1281 = vshll.u32 %v1278, 16
    %v1282 = vshrl.u32 %v1278, 16
    %v1283 = vshll.u32 %v1279, 16
    %v1284 = vshrl.u32 %v1279, 16
    %vm1285 = vc.u32 %v1277, %v1281
    %v1286 = vsel %vm1285, 1, 0
    %v1287 = vadd.s32 %v1277, %v1281
    %v1288 = vadd.s32 %v1280, %v1286
    %vm1289 = vc.u32 %v1287, %v1283
    %v1290 = vsel %vm1289, 1, 0
    %v1291 = vadd.s32 %v1287, %v1283
    %v1292 = vadd.s32 %v1288, %v1290
    %v1293 = vadd.s32 %v1292, %v1282
    %v1294 = vadd.s32 %v1293, %v1284
    %v1295 = vshrl.u32 %v1294, 7
    %v1296 = vmul.u32 %v1295, 150
    %v1297 = vsub.s32 %v1273, %v1296
    %v1298 = vsub.s32 0, %v1297
    %v1299 = vsel %vm1271, %v1298, %v1297
    %vm1300 = vcmp.lt.s32.totalorder %v226, 0
    %v1301 = vsub.s32 0, %v226
    %v1302 = vsel %vm1300, %v1301, %v226
    %v1303 = vand.u32 %v1302, 65535
    %v1304 = vshrl.u32 %v1302, 16
    %v1306 = vmul.u32 %v1303, 3496
    %v1307 = vmul.u32 %v1303, 55924
    %v1308 = vmul.u32 %v1304, 3496
    %v1309 = vmul.u32 %v1304, 55924
    %v1310 = vshll.u32 %v1307, 16
    %v1311 = vshrl.u32 %v1307, 16
    %v1312 = vshll.u32 %v1308, 16
    %v1313 = vshrl.u32 %v1308, 16
    %vm1314 = vc.u32 %v1306, %v1310
    %v1315 = vsel %vm1314, 1, 0
    %v1316 = vadd.s32 %v1306, %v1310
    %v1317 = vadd.s32 %v1309, %v1315
    %vm1318 = vc.u32 %v1316, %v1312
    %v1319 = vsel %vm1318, 1, 0
    %v1320 = vadd.s32 %v1316, %v1312
    %v1321 = vadd.s32 %v1317, %v1319
    %v1322 = vadd.s32 %v1321, %v1311
    %v1323 = vadd.s32 %v1322, %v1313
    %v1324 = vshrl.u32 %v1323, 7
    %v1325 = vmul.u32 %v1324, 150
    %v1326 = vsub.s32 %v1302, %v1325
    %v1327 = vsub.s32 0, %v1326
    %v1328 = vsel %vm1300, %v1327, %v1326
    %vm1329 = vcmp.lt.s32.totalorder %v227, 0
    %v1330 = vsub.s32 0, %v227
    %v1331 = vsel %vm1329, %v1330, %v227
    %v1332 = vand.u32 %v1331, 65535
    %v1333 = vshrl.u32 %v1331, 16
    %v1335 = vmul.u32 %v1332, 3496
    %v1336 = vmul.u32 %v1332, 55924
    %v1337 = vmul.u32 %v1333, 3496
    %v1338 = vmul.u32 %v1333, 55924
    %v1339 = vshll.u32 %v1336, 16
    %v1340 = vshrl.u32 %v1336, 16
    %v1341 = vshll.u32 %v1337, 16
    %v1342 = vshrl.u32 %v1337, 16
    %vm1343 = vc.u32 %v1335, %v1339
    %v1344 = vsel %vm1343, 1, 0
    %v1345 = vadd.s32 %v1335, %v1339
    %v1346 = vadd.s32 %v1338, %v1344
    %vm1347 = vc.u32 %v1345, %v1341
    %v1348 = vsel %vm1347, 1, 0
    %v1349 = vadd.s32 %v1345, %v1341
    %v1350 = vadd.s32 %v1346, %v1348
    %v1351 = vadd.s32 %v1350, %v1340
    %v1352 = vadd.s32 %v1351, %v1342
    %v1353 = vshrl.u32 %v1352, 7
    %v1354 = vmul.u32 %v1353, 150
    %v1355 = vsub.s32 %v1331, %v1354
    %v1356 = vsub.s32 0, %v1355
    %v1357 = vsel %vm1329, %v1356, %v1355
    %vm1358 = vcmp.lt.s32.totalorder %v228, 0
    %v1359 = vsub.s32 0, %v228
    %v1360 = vsel %vm1358, %v1359, %v228
    %v1361 = vand.u32 %v1360, 65535
    %v1362 = vshrl.u32 %v1360, 16
    %v1364 = vmul.u32 %v1361, 3496
    %v1365 = vmul.u32 %v1361, 55924
    %v1366 = vmul.u32 %v1362, 3496
    %v1367 = vmul.u32 %v1362, 55924
    %v1368 = vshll.u32 %v1365, 16
    %v1369 = vshrl.u32 %v1365, 16
    %v1370 = vshll.u32 %v1366, 16
    %v1371 = vshrl.u32 %v1366, 16
    %vm1372 = vc.u32 %v1364, %v1368
    %v1373 = vsel %vm1372, 1, 0
    %v1374 = vadd.s32 %v1364, %v1368
    %v1375 = vadd.s32 %v1367, %v1373
    %vm1376 = vc.u32 %v1374, %v1370
    %v1377 = vsel %vm1376, 1, 0
    %v1378 = vadd.s32 %v1374, %v1370
    %v1379 = vadd.s32 %v1375, %v1377
    %v1380 = vadd.s32 %v1379, %v1369
    %v1381 = vadd.s32 %v1380, %v1371
    %v1382 = vshrl.u32 %v1381, 7
    %v1383 = vmul.u32 %v1382, 150
    %v1384 = vsub.s32 %v1360, %v1383
    %v1385 = vsub.s32 0, %v1384
    %v1386 = vsel %vm1358, %v1385, %v1384
    %vm1387 = vcmp.lt.s32.totalorder %v229, 0
    %v1388 = vsub.s32 0, %v229
    %v1389 = vsel %vm1387, %v1388, %v229
    %v1390 = vand.u32 %v1389, 65535
    %v1391 = vshrl.u32 %v1389, 16
    %v1393 = vmul.u32 %v1390, 3496
    %v1394 = vmul.u32 %v1390, 55924
    %v1395 = vmul.u32 %v1391, 3496
    %v1396 = vmul.u32 %v1391, 55924
    %v1397 = vshll.u32 %v1394, 16
    %v1398 = vshrl.u32 %v1394, 16
    %v1399 = vshll.u32 %v1395, 16
    %v1400 = vshrl.u32 %v1395, 16
    %vm1401 = vc.u32 %v1393, %v1397
    %v1402 = vsel %vm1401, 1, 0
    %v1403 = vadd.s32 %v1393, %v1397
    %v1404 = vadd.s32 %v1396, %v1402
    %vm1405 = vc.u32 %v1403, %v1399
    %v1406 = vsel %vm1405, 1, 0
    %v1407 = vadd.s32 %v1403, %v1399
    %v1408 = vadd.s32 %v1404, %v1406
    %v1409 = vadd.s32 %v1408, %v1398
    %v1410 = vadd.s32 %v1409, %v1400
    %v1411 = vshrl.u32 %v1410, 7
    %v1412 = vmul.u32 %v1411, 150
    %v1413 = vsub.s32 %v1389, %v1412
    %v1414 = vsub.s32 0, %v1413
    %v1415 = vsel %vm1387, %v1414, %v1413
    %vm1416 = vcmp.lt.s32.totalorder %v230, 0
    %v1417 = vsub.s32 0, %v230
    %v1418 = vsel %vm1416, %v1417, %v230
    %v1419 = vand.u32 %v1418, 65535
    %v1420 = vshrl.u32 %v1418, 16
    %v1422 = vmul.u32 %v1419, 3496
    %v1423 = vmul.u32 %v1419, 55924
    %v1424 = vmul.u32 %v1420, 3496
    %v1425 = vmul.u32 %v1420, 55924
    %v1426 = vshll.u32 %v1423, 16
    %v1427 = vshrl.u32 %v1423, 16
    %v1428 = vshll.u32 %v1424, 16
    %v1429 = vshrl.u32 %v1424, 16
    %vm1430 = vc.u32 %v1422, %v1426
    %v1431 = vsel %vm1430, 1, 0
    %v1432 = vadd.s32 %v1422, %v1426
    %v1433 = vadd.s32 %v1425, %v1431
    %vm1434 = vc.u32 %v1432, %v1428
    %v1435 = vsel %vm1434, 1, 0
    %v1436 = vadd.s32 %v1432, %v1428
    %v1437 = vadd.s32 %v1433, %v1435
    %v1438 = vadd.s32 %v1437, %v1427
    %v1439 = vadd.s32 %v1438, %v1429
    %v1440 = vshrl.u32 %v1439, 7
    %v1441 = vmul.u32 %v1440, 150
    %v1442 = vsub.s32 %v1418, %v1441
    %v1443 = vsub.s32 0, %v1442
    %v1444 = vsel %vm1416, %v1443, %v1442
    %vm1445 = vcmp.lt.s32.totalorder %v231, 0
    %v1446 = vsub.s32 0, %v231
    %v1447 = vsel %vm1445, %v1446, %v231
    %v1448 = vand.u32 %v1447, 65535
    %v1449 = vshrl.u32 %v1447, 16
    %v1451 = vmul.u32 %v1448, 3496
    %v1452 = vmul.u32 %v1448, 55924
    %v1453 = vmul.u32 %v1449, 3496
    %v1454 = vmul.u32 %v1449, 55924
    %v1455 = vshll.u32 %v1452, 16
    %v1456 = vshrl.u32 %v1452, 16
    %v1457 = vshll.u32 %v1453, 16
    %v1458 = vshrl.u32 %v1453, 16
    %vm1459 = vc.u32 %v1451, %v1455
    %v1460 = vsel %vm1459, 1, 0
    %v1461 = vadd.s32 %v1451, %v1455
    %v1462 = vadd.s32 %v1454, %v1460
    %vm1463 = vc.u32 %v1461, %v1457
    %v1464 = vsel %vm1463, 1, 0
    %v1465 = vadd.s32 %v1461, %v1457
    %v1466 = vadd.s32 %v1462, %v1464
    %v1467 = vadd.s32 %v1466, %v1456
    %v1468 = vadd.s32 %v1467, %v1458
    %v1469 = vshrl.u32 %v1468, 7
    %v1470 = vmul.u32 %v1469, 150
    %v1471 = vsub.s32 %v1447, %v1470
    %v1472 = vsub.s32 0, %v1471
    %v1473 = vsel %vm1445, %v1472, %v1471
    %vm1474 = vcmp.lt.s32.totalorder %v232, 0
    %v1475 = vsub.s32 0, %v232
    %v1476 = vsel %vm1474, %v1475, %v232
    %v1477 = vand.u32 %v1476, 65535
    %v1478 = vshrl.u32 %v1476, 16
    %v1480 = vmul.u32 %v1477, 3496
    %v1481 = vmul.u32 %v1477, 55924
    %v1482 = vmul.u32 %v1478, 3496
    %v1483 = vmul.u32 %v1478, 55924
    %v1484 = vshll.u32 %v1481, 16
    %v1485 = vshrl.u32 %v1481, 16
    %v1486 = vshll.u32 %v1482, 16
    %v1487 = vshrl.u32 %v1482, 16
    %vm1488 = vc.u32 %v1480, %v1484
    %v1489 = vsel %vm1488, 1, 0
    %v1490 = vadd.s32 %v1480, %v1484
    %v1491 = vadd.s32 %v1483, %v1489
    %vm1492 = vc.u32 %v1490, %v1486
    %v1493 = vsel %vm1492, 1, 0
    %v1494 = vadd.s32 %v1490, %v1486
    %v1495 = vadd.s32 %v1491, %v1493
    %v1496 = vadd.s32 %v1495, %v1485
    %v1497 = vadd.s32 %v1496, %v1487
    %v1498 = vshrl.u32 %v1497, 7
    %v1499 = vmul.u32 %v1498, 150
    %v1500 = vsub.s32 %v1476, %v1499
    %v1501 = vsub.s32 0, %v1500
    %v1502 = vsel %vm1474, %v1501, %v1500
    %vm1503 = vcmp.lt.s32.totalorder %v233, 0
    %v1504 = vsub.s32 0, %v233
    %v1505 = vsel %vm1503, %v1504, %v233
    %v1506 = vand.u32 %v1505, 65535
    %v1507 = vshrl.u32 %v1505, 16
    %v1509 = vmul.u32 %v1506, 3496
    %v1510 = vmul.u32 %v1506, 55924
    %v1511 = vmul.u32 %v1507, 3496
    %v1512 = vmul.u32 %v1507, 55924
    %v1513 = vshll.u32 %v1510, 16
    %v1514 = vshrl.u32 %v1510, 16
    %v1515 = vshll.u32 %v1511, 16
    %v1516 = vshrl.u32 %v1511, 16
    %vm1517 = vc.u32 %v1509, %v1513
    %v1518 = vsel %vm1517, 1, 0
    %v1519 = vadd.s32 %v1509, %v1513
    %v1520 = vadd.s32 %v1512, %v1518
    %vm1521 = vc.u32 %v1519, %v1515
    %v1522 = vsel %vm1521, 1, 0
    %v1523 = vadd.s32 %v1519, %v1515
    %v1524 = vadd.s32 %v1520, %v1522
    %v1525 = vadd.s32 %v1524, %v1514
    %v1526 = vadd.s32 %v1525, %v1516
    %v1527 = vshrl.u32 %v1526, 7
    %v1528 = vmul.u32 %v1527, 150
    %v1529 = vsub.s32 %v1505, %v1528
    %v1530 = vsub.s32 0, %v1529
    %v1531 = vsel %vm1503, %v1530, %v1529
    %vm1532 = vcmp.lt.s32.totalorder %v234, 0
    %v1533 = vsub.s32 0, %v234
    %v1534 = vsel %vm1532, %v1533, %v234
    %v1535 = vand.u32 %v1534, 65535
    %v1536 = vshrl.u32 %v1534, 16
    %v1538 = vmul.u32 %v1535, 3496
    %v1539 = vmul.u32 %v1535, 55924
    %v1540 = vmul.u32 %v1536, 3496
    %v1541 = vmul.u32 %v1536, 55924
    %v1542 = vshll.u32 %v1539, 16
    %v1543 = vshrl.u32 %v1539, 16
    %v1544 = vshll.u32 %v1540, 16
    %v1545 = vshrl.u32 %v1540, 16
    %vm1546 = vc.u32 %v1538, %v1542
    %v1547 = vsel %vm1546, 1, 0
    %v1548 = vadd.s32 %v1538, %v1542
    %v1549 = vadd.s32 %v1541, %v1547
    %vm1550 = vc.u32 %v1548, %v1544
    %v1551 = vsel %vm1550, 1, 0
    %v1552 = vadd.s32 %v1548, %v1544
    %v1553 = vadd.s32 %v1549, %v1551
    %v1554 = vadd.s32 %v1553, %v1543
    %v1555 = vadd.s32 %v1554, %v1545
    %v1556 = vshrl.u32 %v1555, 7
    %v1557 = vmul.u32 %v1556, 150
    %v1558 = vsub.s32 %v1534, %v1557
    %v1559 = vsub.s32 0, %v1558
    %v1560 = vsel %vm1532, %v1559, %v1558
    %vm1561 = vcmp.lt.s32.totalorder %v235, 0
    %v1562 = vsub.s32 0, %v235
    %v1563 = vsel %vm1561, %v1562, %v235
    %v1564 = vand.u32 %v1563, 65535
    %v1565 = vshrl.u32 %v1563, 16
    %v1567 = vmul.u32 %v1564, 3496
    %v1568 = vmul.u32 %v1564, 55924
    %v1569 = vmul.u32 %v1565, 3496
    %v1570 = vmul.u32 %v1565, 55924
    %v1571 = vshll.u32 %v1568, 16
    %v1572 = vshrl.u32 %v1568, 16
    %v1573 = vshll.u32 %v1569, 16
    %v1574 = vshrl.u32 %v1569, 16
    %vm1575 = vc.u32 %v1567, %v1571
    %v1576 = vsel %vm1575, 1, 0
    %v1577 = vadd.s32 %v1567, %v1571
    %v1578 = vadd.s32 %v1570, %v1576
    %vm1579 = vc.u32 %v1577, %v1573
    %v1580 = vsel %vm1579, 1, 0
    %v1581 = vadd.s32 %v1577, %v1573
    %v1582 = vadd.s32 %v1578, %v1580
    %v1583 = vadd.s32 %v1582, %v1572
    %v1584 = vadd.s32 %v1583, %v1574
    %v1585 = vshrl.u32 %v1584, 7
    %v1586 = vmul.u32 %v1585, 150
    %v1587 = vsub.s32 %v1563, %v1586
    %v1588 = vsub.s32 0, %v1587
    %v1589 = vsel %vm1561, %v1588, %v1587
    %vm1590 = vcmp.lt.s32.totalorder %v236, 0
    %v1591 = vsub.s32 0, %v236
    %v1592 = vsel %vm1590, %v1591, %v236
    %v1593 = vand.u32 %v1592, 65535
    %v1594 = vshrl.u32 %v1592, 16
    %v1596 = vmul.u32 %v1593, 3496
    %v1597 = vmul.u32 %v1593, 55924
    %v1598 = vmul.u32 %v1594, 3496
    %v1599 = vmul.u32 %v1594, 55924
    %v1600 = vshll.u32 %v1597, 16
    %v1601 = vshrl.u32 %v1597, 16
    %v1602 = vshll.u32 %v1598, 16
    %v1603 = vshrl.u32 %v1598, 16
    %vm1604 = vc.u32 %v1596, %v1600
    %v1605 = vsel %vm1604, 1, 0
    %v1606 = vadd.s32 %v1596, %v1600
    %v1607 = vadd.s32 %v1599, %v1605
    %vm1608 = vc.u32 %v1606, %v1602
    %v1609 = vsel %vm1608, 1, 0
    %v1610 = vadd.s32 %v1606, %v1602
    %v1611 = vadd.s32 %v1607, %v1609
    %v1612 = vadd.s32 %v1611, %v1601
    %v1613 = vadd.s32 %v1612, %v1603
    %v1614 = vshrl.u32 %v1613, 7
    %v1615 = vmul.u32 %v1614, 150
    %v1616 = vsub.s32 %v1592, %v1615
    %v1617 = vsub.s32 0, %v1616
    %v1618 = vsel %vm1590, %v1617, %v1616
    %vm1619 = vcmp.lt.s32.totalorder %v237, 0
    %v1620 = vsub.s32 0, %v237
    %v1621 = vsel %vm1619, %v1620, %v237
    %v1622 = vand.u32 %v1621, 65535
    %v1623 = vshrl.u32 %v1621, 16
    %v1625 = vmul.u32 %v1622, 3496
    %v1626 = vmul.u32 %v1622, 55924
    %v1627 = vmul.u32 %v1623, 3496
    %v1628 = vmul.u32 %v1623, 55924
    %v1629 = vshll.u32 %v1626, 16
    %v1630 = vshrl.u32 %v1626, 16
    %v1631 = vshll.u32 %v1627, 16
    %v1632 = vshrl.u32 %v1627, 16
    %vm1633 = vc.u32 %v1625, %v1629
    %v1634 = vsel %vm1633, 1, 0
    %v1635 = vadd.s32 %v1625, %v1629
    %v1636 = vadd.s32 %v1628, %v1634
    %vm1637 = vc.u32 %v1635, %v1631
    %v1638 = vsel %vm1637, 1, 0
    %v1639 = vadd.s32 %v1635, %v1631
    %v1640 = vadd.s32 %v1636, %v1638
    %v1641 = vadd.s32 %v1640, %v1630
    %v1642 = vadd.s32 %v1641, %v1632
    %v1643 = vshrl.u32 %v1642, 7
    %v1644 = vmul.u32 %v1643, 150
    %v1645 = vsub.s32 %v1621, %v1644
    %v1646 = vsub.s32 0, %v1645
    %v1647 = vsel %vm1619, %v1646, %v1645
    %vm1648 = vcmp.lt.s32.totalorder %v238, 0
    %v1649 = vsub.s32 0, %v238
    %v1650 = vsel %vm1648, %v1649, %v238
    %v1651 = vand.u32 %v1650, 65535
    %v1652 = vshrl.u32 %v1650, 16
    %v1654 = vmul.u32 %v1651, 3496
    %v1655 = vmul.u32 %v1651, 55924
    %v1656 = vmul.u32 %v1652, 3496
    %v1657 = vmul.u32 %v1652, 55924
    %v1658 = vshll.u32 %v1655, 16
    %v1659 = vshrl.u32 %v1655, 16
    %v1660 = vshll.u32 %v1656, 16
    %v1661 = vshrl.u32 %v1656, 16
    %vm1662 = vc.u32 %v1654, %v1658
    %v1663 = vsel %vm1662, 1, 0
    %v1664 = vadd.s32 %v1654, %v1658
    %v1665 = vadd.s32 %v1657, %v1663
    %vm1666 = vc.u32 %v1664, %v1660
    %v1667 = vsel %vm1666, 1, 0
    %v1668 = vadd.s32 %v1664, %v1660
    %v1669 = vadd.s32 %v1665, %v1667
    %v1670 = vadd.s32 %v1669, %v1659
    %v1671 = vadd.s32 %v1670, %v1661
    %v1672 = vshrl.u32 %v1671, 7
    %v1673 = vmul.u32 %v1672, 150
    %v1674 = vsub.s32 %v1650, %v1673
    %v1675 = vsub.s32 0, %v1674
    %v1676 = vsel %vm1648, %v1675, %v1674
    %vm1677 = vcmp.lt.s32.totalorder %v239, 0
    %v1678 = vsub.s32 0, %v239
    %v1679 = vsel %vm1677, %v1678, %v239
    %v1680 = vand.u32 %v1679, 65535
    %v1681 = vshrl.u32 %v1679, 16
    %v1683 = vmul.u32 %v1680, 3496
    %v1684 = vmul.u32 %v1680, 55924
    %v1685 = vmul.u32 %v1681, 3496
    %v1686 = vmul.u32 %v1681, 55924
    %v1687 = vshll.u32 %v1684, 16
    %v1688 = vshrl.u32 %v1684, 16
    %v1689 = vshll.u32 %v1685, 16
    %v1690 = vshrl.u32 %v1685, 16
    %vm1691 = vc.u32 %v1683, %v1687
    %v1692 = vsel %vm1691, 1, 0
    %v1693 = vadd.s32 %v1683, %v1687
    %v1694 = vadd.s32 %v1686, %v1692
    %vm1695 = vc.u32 %v1693, %v1689
    %v1696 = vsel %vm1695, 1, 0
    %v1697 = vadd.s32 %v1693, %v1689
    %v1698 = vadd.s32 %v1694, %v1696
    %v1699 = vadd.s32 %v1698, %v1688
    %v1700 = vadd.s32 %v1699, %v1690
    %v1701 = vshrl.u32 %v1700, 7
    %v1702 = vmul.u32 %v1701, 150
    %v1703 = vsub.s32 %v1679, %v1702
    %v1704 = vsub.s32 0, %v1703
    %v1705 = vsel %vm1677, %v1704, %v1703
    %vm1706 = vcmp.lt.s32.totalorder %v240, 0
    %v1707 = vsub.s32 0, %v240
    %v1708 = vsel %vm1706, %v1707, %v240
    %v1709 = vand.u32 %v1708, 65535
    %v1710 = vshrl.u32 %v1708, 16
    %v1712 = vmul.u32 %v1709, 3496
    %v1713 = vmul.u32 %v1709, 55924
    %v1714 = vmul.u32 %v1710, 3496
    %v1715 = vmul.u32 %v1710, 55924
    %v1716 = vshll.u32 %v1713, 16
    %v1717 = vshrl.u32 %v1713, 16
    %v1718 = vshll.u32 %v1714, 16
    %v1719 = vshrl.u32 %v1714, 16
    %vm1720 = vc.u32 %v1712, %v1716
    %v1721 = vsel %vm1720, 1, 0
    %v1722 = vadd.s32 %v1712, %v1716
    %v1723 = vadd.s32 %v1715, %v1721
    %vm1724 = vc.u32 %v1722, %v1718
    %v1725 = vsel %vm1724, 1, 0
    %v1726 = vadd.s32 %v1722, %v1718
    %v1727 = vadd.s32 %v1723, %v1725
    %v1728 = vadd.s32 %v1727, %v1717
    %v1729 = vadd.s32 %v1728, %v1719
    %v1730 = vshrl.u32 %v1729, 7
    %v1731 = vmul.u32 %v1730, 150
    %v1732 = vsub.s32 %v1708, %v1731
    %v1733 = vsub.s32 0, %v1732
    %v1734 = vsel %vm1706, %v1733, %v1732
    %vm1735 = vcmp.lt.s32.totalorder %v241, 0
    %v1736 = vsub.s32 0, %v241
    %v1737 = vsel %vm1735, %v1736, %v241
    %v1738 = vand.u32 %v1737, 65535
    %v1739 = vshrl.u32 %v1737, 16
    %v1741 = vmul.u32 %v1738, 3496
    %v1742 = vmul.u32 %v1738, 55924
    %v1743 = vmul.u32 %v1739, 3496
    %v1744 = vmul.u32 %v1739, 55924
    %v1745 = vshll.u32 %v1742, 16
    %v1746 = vshrl.u32 %v1742, 16
    %v1747 = vshll.u32 %v1743, 16
    %v1748 = vshrl.u32 %v1743, 16
    %vm1749 = vc.u32 %v1741, %v1745
    %v1750 = vsel %vm1749, 1, 0
    %v1751 = vadd.s32 %v1741, %v1745
    %v1752 = vadd.s32 %v1744, %v1750
    %vm1753 = vc.u32 %v1751, %v1747
    %v1754 = vsel %vm1753, 1, 0
    %v1755 = vadd.s32 %v1751, %v1747
    %v1756 = vadd.s32 %v1752, %v1754
    %v1757 = vadd.s32 %v1756, %v1746
    %v1758 = vadd.s32 %v1757, %v1748
    %v1759 = vshrl.u32 %v1758, 7
    %v1760 = vmul.u32 %v1759, 150
    %v1761 = vsub.s32 %v1737, %v1760
    %v1762 = vsub.s32 0, %v1761
    %v1763 = vsel %vm1735, %v1762, %v1761
    %vm1764 = vcmp.lt.s32.totalorder %v242, 0
    %v1765 = vsub.s32 0, %v242
    %v1766 = vsel %vm1764, %v1765, %v242
    %v1767 = vand.u32 %v1766, 65535
    %v1768 = vshrl.u32 %v1766, 16
    %v1770 = vmul.u32 %v1767, 3496
    %v1771 = vmul.u32 %v1767, 55924
    %v1772 = vmul.u32 %v1768, 3496
    %v1773 = vmul.u32 %v1768, 55924
    %v1774 = vshll.u32 %v1771, 16
    %v1775 = vshrl.u32 %v1771, 16
    %v1776 = vshll.u32 %v1772, 16
    %v1777 = vshrl.u32 %v1772, 16
    %vm1778 = vc.u32 %v1770, %v1774
    %v1779 = vsel %vm1778, 1, 0
    %v1780 = vadd.s32 %v1770, %v1774
    %v1781 = vadd.s32 %v1773, %v1779
    %vm1782 = vc.u32 %v1780, %v1776
    %v1783 = vsel %vm1782, 1, 0
    %v1784 = vadd.s32 %v1780, %v1776
    %v1785 = vadd.s32 %v1781, %v1783
    %v1786 = vadd.s32 %v1785, %v1775
    %v1787 = vadd.s32 %v1786, %v1777
    %v1788 = vshrl.u32 %v1787, 7
    %v1789 = vmul.u32 %v1788, 150
    %v1790 = vsub.s32 %v1766, %v1789
    %v1791 = vsub.s32 0, %v1790
    %v1792 = vsel %vm1764, %v1791, %v1790
    %vm1793 = vcmp.lt.s32.totalorder %v243, 0
    %v1794 = vsub.s32 0, %v243
    %v1795 = vsel %vm1793, %v1794, %v243
    %v1796 = vand.u32 %v1795, 65535
    %v1797 = vshrl.u32 %v1795, 16
    %v1799 = vmul.u32 %v1796, 3496
    %v1800 = vmul.u32 %v1796, 55924
    %v1801 = vmul.u32 %v1797, 3496
    %v1802 = vmul.u32 %v1797, 55924
    %v1803 = vshll.u32 %v1800, 16
    %v1804 = vshrl.u32 %v1800, 16
    %v1805 = vshll.u32 %v1801, 16
    %v1806 = vshrl.u32 %v1801, 16
    %vm1807 = vc.u32 %v1799, %v1803
    %v1808 = vsel %vm1807, 1, 0
    %v1809 = vadd.s32 %v1799, %v1803
    %v1810 = vadd.s32 %v1802, %v1808
    %vm1811 = vc.u32 %v1809, %v1805
    %v1812 = vsel %vm1811, 1, 0
    %v1813 = vadd.s32 %v1809, %v1805
    %v1814 = vadd.s32 %v1810, %v1812
    %v1815 = vadd.s32 %v1814, %v1804
    %v1816 = vadd.s32 %v1815, %v1806
    %v1817 = vshrl.u32 %v1816, 7
    %v1818 = vmul.u32 %v1817, 150
    %v1819 = vsub.s32 %v1795, %v1818
    %v1820 = vsub.s32 0, %v1819
    %v1821 = vsel %vm1793, %v1820, %v1819
    %vm1822 = vcmp.lt.s32.totalorder %v244, 0
    %v1823 = vsub.s32 0, %v244
    %v1824 = vsel %vm1822, %v1823, %v244
    %v1825 = vand.u32 %v1824, 65535
    %v1826 = vshrl.u32 %v1824, 16
    %v1828 = vmul.u32 %v1825, 3496
    %v1829 = vmul.u32 %v1825, 55924
    %v1830 = vmul.u32 %v1826, 3496
    %v1831 = vmul.u32 %v1826, 55924
    %v1832 = vshll.u32 %v1829, 16
    %v1833 = vshrl.u32 %v1829, 16
    %v1834 = vshll.u32 %v1830, 16
    %v1835 = vshrl.u32 %v1830, 16
    %vm1836 = vc.u32 %v1828, %v1832
    %v1837 = vsel %vm1836, 1, 0
    %v1838 = vadd.s32 %v1828, %v1832
    %v1839 = vadd.s32 %v1831, %v1837
    %vm1840 = vc.u32 %v1838, %v1834
    %v1841 = vsel %vm1840, 1, 0
    %v1842 = vadd.s32 %v1838, %v1834
    %v1843 = vadd.s32 %v1839, %v1841
    %v1844 = vadd.s32 %v1843, %v1833
    %v1845 = vadd.s32 %v1844, %v1835
    %v1846 = vshrl.u32 %v1845, 7
    %v1847 = vmul.u32 %v1846, 150
    %v1848 = vsub.s32 %v1824, %v1847
    %v1849 = vsub.s32 0, %v1848
    %v1850 = vsel %vm1822, %v1849, %v1848
    %vm1851 = vcmp.lt.s32.totalorder %v245, 0
    %v1852 = vsub.s32 0, %v245
    %v1853 = vsel %vm1851, %v1852, %v245
    %v1854 = vand.u32 %v1853, 65535
    %v1855 = vshrl.u32 %v1853, 16
    %v1857 = vmul.u32 %v1854, 3496
    %v1858 = vmul.u32 %v1854, 55924
    %v1859 = vmul.u32 %v1855, 3496
    %v1860 = vmul.u32 %v1855, 55924
    %v1861 = vshll.u32 %v1858, 16
    %v1862 = vshrl.u32 %v1858, 16
    %v1863 = vshll.u32 %v1859, 16
    %v1864 = vshrl.u32 %v1859, 16
    %vm1865 = vc.u32 %v1857, %v1861
    %v1866 = vsel %vm1865, 1, 0
    %v1867 = vadd.s32 %v1857, %v1861
    %v1868 = vadd.s32 %v1860, %v1866
    %vm1869 = vc.u32 %v1867, %v1863
    %v1870 = vsel %vm1869, 1, 0
    %v1871 = vadd.s32 %v1867, %v1863
    %v1872 = vadd.s32 %v1868, %v1870
    %v1873 = vadd.s32 %v1872, %v1862
    %v1874 = vadd.s32 %v1873, %v1864
    %v1875 = vshrl.u32 %v1874, 7
    %v1876 = vmul.u32 %v1875, 150
    %v1877 = vsub.s32 %v1853, %v1876
    %v1878 = vsub.s32 0, %v1877
    %v1879 = vsel %vm1851, %v1878, %v1877
    %vm1880 = vcmp.lt.s32.totalorder %v246, 0
    %v1881 = vsub.s32 0, %v246
    %v1882 = vsel %vm1880, %v1881, %v246
    %v1883 = vand.u32 %v1882, 65535
    %v1884 = vshrl.u32 %v1882, 16
    %v1886 = vmul.u32 %v1883, 3496
    %v1887 = vmul.u32 %v1883, 55924
    %v1888 = vmul.u32 %v1884, 3496
    %v1889 = vmul.u32 %v1884, 55924
    %v1890 = vshll.u32 %v1887, 16
    %v1891 = vshrl.u32 %v1887, 16
    %v1892 = vshll.u32 %v1888, 16
    %v1893 = vshrl.u32 %v1888, 16
    %vm1894 = vc.u32 %v1886, %v1890
    %v1895 = vsel %vm1894, 1, 0
    %v1896 = vadd.s32 %v1886, %v1890
    %v1897 = vadd.s32 %v1889, %v1895
    %vm1898 = vc.u32 %v1896, %v1892
    %v1899 = vsel %vm1898, 1, 0
    %v1900 = vadd.s32 %v1896, %v1892
    %v1901 = vadd.s32 %v1897, %v1899
    %v1902 = vadd.s32 %v1901, %v1891
    %v1903 = vadd.s32 %v1902, %v1893
    %v1904 = vshrl.u32 %v1903, 7
    %v1905 = vmul.u32 %v1904, 150
    %v1906 = vsub.s32 %v1882, %v1905
    %v1907 = vsub.s32 0, %v1906
    %v1908 = vsel %vm1880, %v1907, %v1906
    %vm1909 = vcmp.lt.s32.totalorder %v247, 0
    %v1910 = vsub.s32 0, %v247
    %v1911 = vsel %vm1909, %v1910, %v247
    %v1912 = vand.u32 %v1911, 65535
    %v1913 = vshrl.u32 %v1911, 16
    %v1915 = vmul.u32 %v1912, 3496
    %v1916 = vmul.u32 %v1912, 55924
    %v1917 = vmul.u32 %v1913, 3496
    %v1918 = vmul.u32 %v1913, 55924
    %v1919 = vshll.u32 %v1916, 16
    %v1920 = vshrl.u32 %v1916, 16
    %v1921 = vshll.u32 %v1917, 16
    %v1922 = vshrl.u32 %v1917, 16
    %vm1923 = vc.u32 %v1915, %v1919
    %v1924 = vsel %vm1923, 1, 0
    %v1925 = vadd.s32 %v1915, %v1919
    %v1926 = vadd.s32 %v1918, %v1924
    %vm1927 = vc.u32 %v1925, %v1921
    %v1928 = vsel %vm1927, 1, 0
    %v1929 = vadd.s32 %v1925, %v1921
    %v1930 = vadd.s32 %v1926, %v1928
    %v1931 = vadd.s32 %v1930, %v1920
    %v1932 = vadd.s32 %v1931, %v1922
    %v1933 = vshrl.u32 %v1932, 7
    %v1934 = vmul.u32 %v1933, 150
    %v1935 = vsub.s32 %v1911, %v1934
    %v1936 = vsub.s32 0, %v1935
    %v1937 = vsel %vm1909, %v1936, %v1935
    %vm1938 = vcmp.lt.s32.totalorder %v248, 0
    %v1939 = vsub.s32 0, %v248
    %v1940 = vsel %vm1938, %v1939, %v248
    %v1941 = vand.u32 %v1940, 65535
    %v1942 = vshrl.u32 %v1940, 16
    %v1944 = vmul.u32 %v1941, 3496
    %v1945 = vmul.u32 %v1941, 55924
    %v1946 = vmul.u32 %v1942, 3496
    %v1947 = vmul.u32 %v1942, 55924
    %v1948 = vshll.u32 %v1945, 16
    %v1949 = vshrl.u32 %v1945, 16
    %v1950 = vshll.u32 %v1946, 16
    %v1951 = vshrl.u32 %v1946, 16
    %vm1952 = vc.u32 %v1944, %v1948
    %v1953 = vsel %vm1952, 1, 0
    %v1954 = vadd.s32 %v1944, %v1948
    %v1955 = vadd.s32 %v1947, %v1953
    %vm1956 = vc.u32 %v1954, %v1950
    %v1957 = vsel %vm1956, 1, 0
    %v1958 = vadd.s32 %v1954, %v1950
    %v1959 = vadd.s32 %v1955, %v1957
    %v1960 = vadd.s32 %v1959, %v1949
    %v1961 = vadd.s32 %v1960, %v1951
    %v1962 = vshrl.u32 %v1961, 7
    %v1963 = vmul.u32 %v1962, 150
    %v1964 = vsub.s32 %v1940, %v1963
    %v1965 = vsub.s32 0, %v1964
    %v1966 = vsel %vm1938, %v1965, %v1964
    %vm1967 = vcmp.lt.s32.totalorder %v249, 0
    %v1968 = vsub.s32 0, %v249
    %v1969 = vsel %vm1967, %v1968, %v249
    %v1970 = vand.u32 %v1969, 65535
    %v1971 = vshrl.u32 %v1969, 16
    %v1973 = vmul.u32 %v1970, 3496
    %v1974 = vmul.u32 %v1970, 55924
    %v1975 = vmul.u32 %v1971, 3496
    %v1976 = vmul.u32 %v1971, 55924
    %v1977 = vshll.u32 %v1974, 16
    %v1978 = vshrl.u32 %v1974, 16
    %v1979 = vshll.u32 %v1975, 16
    %v1980 = vshrl.u32 %v1975, 16
    %vm1981 = vc.u32 %v1973, %v1977
    %v1982 = vsel %vm1981, 1, 0
    %v1983 = vadd.s32 %v1973, %v1977
    %v1984 = vadd.s32 %v1976, %v1982
    %vm1985 = vc.u32 %v1983, %v1979
    %v1986 = vsel %vm1985, 1, 0
    %v1987 = vadd.s32 %v1983, %v1979
    %v1988 = vadd.s32 %v1984, %v1986
    %v1989 = vadd.s32 %v1988, %v1978
    %v1990 = vadd.s32 %v1989, %v1980
    %v1991 = vshrl.u32 %v1990, 7
    %v1992 = vmul.u32 %v1991, 150
    %v1993 = vsub.s32 %v1969, %v1992
    %v1994 = vsub.s32 0, %v1993
    %v1995 = vsel %vm1967, %v1994, %v1993
    %vm1996 = vcmp.lt.s32.totalorder %v250, 0
    %v1997 = vsub.s32 0, %v250
    %v1998 = vsel %vm1996, %v1997, %v250
    %v1999 = vand.u32 %v1998, 65535
    %v2000 = vshrl.u32 %v1998, 16
    %v2002 = vmul.u32 %v1999, 3496
    %v2003 = vmul.u32 %v1999, 55924
    %v2004 = vmul.u32 %v2000, 3496
    %v2005 = vmul.u32 %v2000, 55924
    %v2006 = vshll.u32 %v2003, 16
    %v2007 = vshrl.u32 %v2003, 16
    %v2008 = vshll.u32 %v2004, 16
    %v2009 = vshrl.u32 %v2004, 16
    %vm2010 = vc.u32 %v2002, %v2006
    %v2011 = vsel %vm2010, 1, 0
    %v2012 = vadd.s32 %v2002, %v2006
    %v2013 = vadd.s32 %v2005, %v2011
    %vm2014 = vc.u32 %v2012, %v2008
    %v2015 = vsel %vm2014, 1, 0
    %v2016 = vadd.s32 %v2012, %v2008
    %v2017 = vadd.s32 %v2013, %v2015
    %v2018 = vadd.s32 %v2017, %v2007
    %v2019 = vadd.s32 %v2018, %v2009
    %v2020 = vshrl.u32 %v2019, 7
    %v2021 = vmul.u32 %v2020, 150
    %v2022 = vsub.s32 %v1998, %v2021
    %v2023 = vsub.s32 0, %v2022
    %v2024 = vsel %vm1996, %v2023, %v2022
    %vm2025 = vcmp.lt.s32.totalorder %v251, 0
    %v2026 = vsub.s32 0, %v251
    %v2027 = vsel %vm2025, %v2026, %v251
    %v2028 = vand.u32 %v2027, 65535
    %v2029 = vshrl.u32 %v2027, 16
    %v2031 = vmul.u32 %v2028, 3496
    %v2032 = vmul.u32 %v2028, 55924
    %v2033 = vmul.u32 %v2029, 3496
    %v2034 = vmul.u32 %v2029, 55924
    %v2035 = vshll.u32 %v2032, 16
    %v2036 = vshrl.u32 %v2032, 16
    %v2037 = vshll.u32 %v2033, 16
    %v2038 = vshrl.u32 %v2033, 16
    %vm2039 = vc.u32 %v2031, %v2035
    %v2040 = vsel %vm2039, 1, 0
    %v2041 = vadd.s32 %v2031, %v2035
    %v2042 = vadd.s32 %v2034, %v2040
    %vm2043 = vc.u32 %v2041, %v2037
    %v2044 = vsel %vm2043, 1, 0
    %v2045 = vadd.s32 %v2041, %v2037
    %v2046 = vadd.s32 %v2042, %v2044
    %v2047 = vadd.s32 %v2046, %v2036
    %v2048 = vadd.s32 %v2047, %v2038
    %v2049 = vshrl.u32 %v2048, 7
    %v2050 = vmul.u32 %v2049, 150
    %v2051 = vsub.s32 %v2027, %v2050
    %v2052 = vsub.s32 0, %v2051
    %v2053 = vsel %vm2025, %v2052, %v2051
    %vm2054 = vcmp.lt.s32.totalorder %v252, 0
    %v2055 = vsub.s32 0, %v252
    %v2056 = vsel %vm2054, %v2055, %v252
    %v2057 = vand.u32 %v2056, 65535
    %v2058 = vshrl.u32 %v2056, 16
    %v2060 = vmul.u32 %v2057, 3496
    %v2061 = vmul.u32 %v2057, 55924
    %v2062 = vmul.u32 %v2058, 3496
    %v2063 = vmul.u32 %v2058, 55924
    %v2064 = vshll.u32 %v2061, 16
    %v2065 = vshrl.u32 %v2061, 16
    %v2066 = vshll.u32 %v2062, 16
    %v2067 = vshrl.u32 %v2062, 16
    %vm2068 = vc.u32 %v2060, %v2064
    %v2069 = vsel %vm2068, 1, 0
    %v2070 = vadd.s32 %v2060, %v2064
    %v2071 = vadd.s32 %v2063, %v2069
    %vm2072 = vc.u32 %v2070, %v2066
    %v2073 = vsel %vm2072, 1, 0
    %v2074 = vadd.s32 %v2070, %v2066
    %v2075 = vadd.s32 %v2071, %v2073
    %v2076 = vadd.s32 %v2075, %v2065
    %v2077 = vadd.s32 %v2076, %v2067
    %v2078 = vshrl.u32 %v2077, 7
    %v2079 = vmul.u32 %v2078, 150
    %v2080 = vsub.s32 %v2056, %v2079
    %v2081 = vsub.s32 0, %v2080
    %v2082 = vsel %vm2054, %v2081, %v2080
    %vm2083 = vcmp.lt.s32.totalorder %v253, 0
    %v2084 = vsub.s32 0, %v253
    %v2085 = vsel %vm2083, %v2084, %v253
    %v2086 = vand.u32 %v2085, 65535
    %v2087 = vshrl.u32 %v2085, 16
    %v2089 = vmul.u32 %v2086, 3496
    %v2090 = vmul.u32 %v2086, 55924
    %v2091 = vmul.u32 %v2087, 3496
    %v2092 = vmul.u32 %v2087, 55924
    %v2093 = vshll.u32 %v2090, 16
    %v2094 = vshrl.u32 %v2090, 16
    %v2095 = vshll.u32 %v2091, 16
    %v2096 = vshrl.u32 %v2091, 16
    %vm2097 = vc.u32 %v2089, %v2093
    %v2098 = vsel %vm2097, 1, 0
    %v2099 = vadd.s32 %v2089, %v2093
    %v2100 = vadd.s32 %v2092, %v2098
    %vm2101 = vc.u32 %v2099, %v2095
    %v2102 = vsel %vm2101, 1, 0
    %v2103 = vadd.s32 %v2099, %v2095
    %v2104 = vadd.s32 %v2100, %v2102
    %v2105 = vadd.s32 %v2104, %v2094
    %v2106 = vadd.s32 %v2105, %v2096
    %v2107 = vshrl.u32 %v2106, 7
    %v2108 = vmul.u32 %v2107, 150
    %v2109 = vsub.s32 %v2085, %v2108
    %v2110 = vsub.s32 0, %v2109
    %v2111 = vsel %vm2083, %v2110, %v2109
    %vm2112 = vcmp.lt.s32.totalorder %v254, 0
    %v2113 = vsub.s32 0, %v254
    %v2114 = vsel %vm2112, %v2113, %v254
    %v2115 = vand.u32 %v2114, 65535
    %v2116 = vshrl.u32 %v2114, 16
    %v2118 = vmul.u32 %v2115, 3496
    %v2119 = vmul.u32 %v2115, 55924
    %v2120 = vmul.u32 %v2116, 3496
    %v2121 = vmul.u32 %v2116, 55924
    %v2122 = vshll.u32 %v2119, 16
    %v2123 = vshrl.u32 %v2119, 16
    %v2124 = vshll.u32 %v2120, 16
    %v2125 = vshrl.u32 %v2120, 16
    %vm2126 = vc.u32 %v2118, %v2122
    %v2127 = vsel %vm2126, 1, 0
    %v2128 = vadd.s32 %v2118, %v2122
    %v2129 = vadd.s32 %v2121, %v2127
    %vm2130 = vc.u32 %v2128, %v2124
    %v2131 = vsel %vm2130, 1, 0
    %v2132 = vadd.s32 %v2128, %v2124
    %v2133 = vadd.s32 %v2129, %v2131
    %v2134 = vadd.s32 %v2133, %v2123
    %v2135 = vadd.s32 %v2134, %v2125
    %v2136 = vshrl.u32 %v2135, 7
    %v2137 = vmul.u32 %v2136, 150
    %v2138 = vsub.s32 %v2114, %v2137
    %v2139 = vsub.s32 0, %v2138
    %v2140 = vsel %vm2112, %v2139, %v2138
    %vm2141 = vcmp.lt.s32.totalorder %v255, 0
    %v2142 = vsub.s32 0, %v255
    %v2143 = vsel %vm2141, %v2142, %v255
    %v2144 = vand.u32 %v2143, 65535
    %v2145 = vshrl.u32 %v2143, 16
    %v2147 = vmul.u32 %v2144, 3496
    %v2148 = vmul.u32 %v2144, 55924
    %v2149 = vmul.u32 %v2145, 3496
    %v2150 = vmul.u32 %v2145, 55924
    %v2151 = vshll.u32 %v2148, 16
    %v2152 = vshrl.u32 %v2148, 16
    %v2153 = vshll.u32 %v2149, 16
    %v2154 = vshrl.u32 %v2149, 16
    %vm2155 = vc.u32 %v2147, %v2151
    %v2156 = vsel %vm2155, 1, 0
    %v2157 = vadd.s32 %v2147, %v2151
    %v2158 = vadd.s32 %v2150, %v2156
    %vm2159 = vc.u32 %v2157, %v2153
    %v2160 = vsel %vm2159, 1, 0
    %v2161 = vadd.s32 %v2157, %v2153
    %v2162 = vadd.s32 %v2158, %v2160
    %v2163 = vadd.s32 %v2162, %v2152
    %v2164 = vadd.s32 %v2163, %v2154
    %v2165 = vshrl.u32 %v2164, 7
    %v2166 = vmul.u32 %v2165, 150
    %v2167 = vsub.s32 %v2143, %v2166
    %v2168 = vsub.s32 0, %v2167
    %v2169 = vsel %vm2141, %v2168, %v2167
    %vm2170 = vcmp.lt.s32.totalorder %v256, 0
    %v2171 = vsub.s32 0, %v256
    %v2172 = vsel %vm2170, %v2171, %v256
    %v2173 = vand.u32 %v2172, 65535
    %v2174 = vshrl.u32 %v2172, 16
    %v2176 = vmul.u32 %v2173, 3496
    %v2177 = vmul.u32 %v2173, 55924
    %v2178 = vmul.u32 %v2174, 3496
    %v2179 = vmul.u32 %v2174, 55924
    %v2180 = vshll.u32 %v2177, 16
    %v2181 = vshrl.u32 %v2177, 16
    %v2182 = vshll.u32 %v2178, 16
    %v2183 = vshrl.u32 %v2178, 16
    %vm2184 = vc.u32 %v2176, %v2180
    %v2185 = vsel %vm2184, 1, 0
    %v2186 = vadd.s32 %v2176, %v2180
    %v2187 = vadd.s32 %v2179, %v2185
    %vm2188 = vc.u32 %v2186, %v2182
    %v2189 = vsel %vm2188, 1, 0
    %v2190 = vadd.s32 %v2186, %v2182
    %v2191 = vadd.s32 %v2187, %v2189
    %v2192 = vadd.s32 %v2191, %v2181
    %v2193 = vadd.s32 %v2192, %v2183
    %v2194 = vshrl.u32 %v2193, 7
    %v2195 = vmul.u32 %v2194, 150
    %v2196 = vsub.s32 %v2172, %v2195
    %v2197 = vsub.s32 0, %v2196
    %v2198 = vsel %vm2170, %v2197, %v2196
    %vm2199 = vcmp.lt.s32.totalorder %v257, 0
    %v2200 = vsub.s32 0, %v257
    %v2201 = vsel %vm2199, %v2200, %v257
    %v2202 = vand.u32 %v2201, 65535
    %v2203 = vshrl.u32 %v2201, 16
    %v2205 = vmul.u32 %v2202, 3496
    %v2206 = vmul.u32 %v2202, 55924
    %v2207 = vmul.u32 %v2203, 3496
    %v2208 = vmul.u32 %v2203, 55924
    %v2209 = vshll.u32 %v2206, 16
    %v2210 = vshrl.u32 %v2206, 16
    %v2211 = vshll.u32 %v2207, 16
    %v2212 = vshrl.u32 %v2207, 16
    %vm2213 = vc.u32 %v2205, %v2209
    %v2214 = vsel %vm2213, 1, 0
    %v2215 = vadd.s32 %v2205, %v2209
    %v2216 = vadd.s32 %v2208, %v2214
    %vm2217 = vc.u32 %v2215, %v2211
    %v2218 = vsel %vm2217, 1, 0
    %v2219 = vadd.s32 %v2215, %v2211
    %v2220 = vadd.s32 %v2216, %v2218
    %v2221 = vadd.s32 %v2220, %v2210
    %v2222 = vadd.s32 %v2221, %v2212
    %v2223 = vshrl.u32 %v2222, 7
    %v2224 = vmul.u32 %v2223, 150
    %v2225 = vsub.s32 %v2201, %v2224
    %v2226 = vsub.s32 0, %v2225
    %v2227 = vsel %vm2199, %v2226, %v2225
    %vm2228 = vcmp.lt.s32.totalorder %v258, 0
    %v2229 = vsub.s32 0, %v258
    %v2230 = vsel %vm2228, %v2229, %v258
    %v2231 = vand.u32 %v2230, 65535
    %v2232 = vshrl.u32 %v2230, 16
    %v2234 = vmul.u32 %v2231, 3496
    %v2235 = vmul.u32 %v2231, 55924
    %v2236 = vmul.u32 %v2232, 3496
    %v2237 = vmul.u32 %v2232, 55924
    %v2238 = vshll.u32 %v2235, 16
    %v2239 = vshrl.u32 %v2235, 16
    %v2240 = vshll.u32 %v2236, 16
    %v2241 = vshrl.u32 %v2236, 16
    %vm2242 = vc.u32 %v2234, %v2238
    %v2243 = vsel %vm2242, 1, 0
    %v2244 = vadd.s32 %v2234, %v2238
    %v2245 = vadd.s32 %v2237, %v2243
    %vm2246 = vc.u32 %v2244, %v2240
    %v2247 = vsel %vm2246, 1, 0
    %v2248 = vadd.s32 %v2244, %v2240
    %v2249 = vadd.s32 %v2245, %v2247
    %v2250 = vadd.s32 %v2249, %v2239
    %v2251 = vadd.s32 %v2250, %v2241
    %v2252 = vshrl.u32 %v2251, 7
    %v2253 = vmul.u32 %v2252, 150
    %v2254 = vsub.s32 %v2230, %v2253
    %v2255 = vsub.s32 0, %v2254
    %v2256 = vsel %vm2228, %v2255, %v2254
    %vm2257 = vcmp.lt.s32.totalorder %v259, 0
    %v2258 = vsub.s32 0, %v259
    %v2259 = vsel %vm2257, %v2258, %v259
    %v2260 = vand.u32 %v2259, 65535
    %v2261 = vshrl.u32 %v2259, 16
    %v2263 = vmul.u32 %v2260, 3496
    %v2264 = vmul.u32 %v2260, 55924
    %v2265 = vmul.u32 %v2261, 3496
    %v2266 = vmul.u32 %v2261, 55924
    %v2267 = vshll.u32 %v2264, 16
    %v2268 = vshrl.u32 %v2264, 16
    %v2269 = vshll.u32 %v2265, 16
    %v2270 = vshrl.u32 %v2265, 16
    %vm2271 = vc.u32 %v2263, %v2267
    %v2272 = vsel %vm2271, 1, 0
    %v2273 = vadd.s32 %v2263, %v2267
    %v2274 = vadd.s32 %v2266, %v2272
    %vm2275 = vc.u32 %v2273, %v2269
    %v2276 = vsel %vm2275, 1, 0
    %v2277 = vadd.s32 %v2273, %v2269
    %v2278 = vadd.s32 %v2274, %v2276
    %v2279 = vadd.s32 %v2278, %v2268
    %v2280 = vadd.s32 %v2279, %v2270
    %v2281 = vshrl.u32 %v2280, 7
    %v2282 = vmul.u32 %v2281, 150
    %v2283 = vsub.s32 %v2259, %v2282
    %v2284 = vsub.s32 0, %v2283
    %v2285 = vsel %vm2257, %v2284, %v2283
    %vm2286 = vcmp.lt.s32.totalorder %v260, 0
    %v2287 = vsub.s32 0, %v260
    %v2288 = vsel %vm2286, %v2287, %v260
    %v2289 = vand.u32 %v2288, 65535
    %v2290 = vshrl.u32 %v2288, 16
    %v2292 = vmul.u32 %v2289, 3496
    %v2293 = vmul.u32 %v2289, 55924
    %v2294 = vmul.u32 %v2290, 3496
    %v2295 = vmul.u32 %v2290, 55924
    %v2296 = vshll.u32 %v2293, 16
    %v2297 = vshrl.u32 %v2293, 16
    %v2298 = vshll.u32 %v2294, 16
    %v2299 = vshrl.u32 %v2294, 16
    %vm2300 = vc.u32 %v2292, %v2296
    %v2301 = vsel %vm2300, 1, 0
    %v2302 = vadd.s32 %v2292, %v2296
    %v2303 = vadd.s32 %v2295, %v2301
    %vm2304 = vc.u32 %v2302, %v2298
    %v2305 = vsel %vm2304, 1, 0
    %v2306 = vadd.s32 %v2302, %v2298
    %v2307 = vadd.s32 %v2303, %v2305
    %v2308 = vadd.s32 %v2307, %v2297
    %v2309 = vadd.s32 %v2308, %v2299
    %v2310 = vshrl.u32 %v2309, 7
    %v2311 = vmul.u32 %v2310, 150
    %v2312 = vsub.s32 %v2288, %v2311
    %v2313 = vsub.s32 0, %v2312
    %v2314 = vsel %vm2286, %v2313, %v2312
    %vm2315 = vcmp.lt.s32.totalorder %v261, 0
    %v2316 = vsub.s32 0, %v261
    %v2317 = vsel %vm2315, %v2316, %v261
    %v2318 = vand.u32 %v2317, 65535
    %v2319 = vshrl.u32 %v2317, 16
    %v2321 = vmul.u32 %v2318, 3496
    %v2322 = vmul.u32 %v2318, 55924
    %v2323 = vmul.u32 %v2319, 3496
    %v2324 = vmul.u32 %v2319, 55924
    %v2325 = vshll.u32 %v2322, 16
    %v2326 = vshrl.u32 %v2322, 16
    %v2327 = vshll.u32 %v2323, 16
    %v2328 = vshrl.u32 %v2323, 16
    %vm2329 = vc.u32 %v2321, %v2325
    %v2330 = vsel %vm2329, 1, 0
    %v2331 = vadd.s32 %v2321, %v2325
    %v2332 = vadd.s32 %v2324, %v2330
    %vm2333 = vc.u32 %v2331, %v2327
    %v2334 = vsel %vm2333, 1, 0
    %v2335 = vadd.s32 %v2331, %v2327
    %v2336 = vadd.s32 %v2332, %v2334
    %v2337 = vadd.s32 %v2336, %v2326
    %v2338 = vadd.s32 %v2337, %v2328
    %v2339 = vshrl.u32 %v2338, 7
    %v2340 = vmul.u32 %v2339, 150
    %v2341 = vsub.s32 %v2317, %v2340
    %v2342 = vsub.s32 0, %v2341
    %v2343 = vsel %vm2315, %v2342, %v2341
    %vm2344 = vcmp.lt.s32.totalorder %v262, 0
    %v2345 = vsub.s32 0, %v262
    %v2346 = vsel %vm2344, %v2345, %v262
    %v2347 = vand.u32 %v2346, 65535
    %v2348 = vshrl.u32 %v2346, 16
    %v2350 = vmul.u32 %v2347, 3496
    %v2351 = vmul.u32 %v2347, 55924
    %v2352 = vmul.u32 %v2348, 3496
    %v2353 = vmul.u32 %v2348, 55924
    %v2354 = vshll.u32 %v2351, 16
    %v2355 = vshrl.u32 %v2351, 16
    %v2356 = vshll.u32 %v2352, 16
    %v2357 = vshrl.u32 %v2352, 16
    %vm2358 = vc.u32 %v2350, %v2354
    %v2359 = vsel %vm2358, 1, 0
    %v2360 = vadd.s32 %v2350, %v2354
    %v2361 = vadd.s32 %v2353, %v2359
    %vm2362 = vc.u32 %v2360, %v2356
    %v2363 = vsel %vm2362, 1, 0
    %v2364 = vadd.s32 %v2360, %v2356
    %v2365 = vadd.s32 %v2361, %v2363
    %v2366 = vadd.s32 %v2365, %v2355
    %v2367 = vadd.s32 %v2366, %v2357
    %v2368 = vshrl.u32 %v2367, 7
    %v2369 = vmul.u32 %v2368, 150
    %v2370 = vsub.s32 %v2346, %v2369
    %v2371 = vsub.s32 0, %v2370
    %v2372 = vsel %vm2344, %v2371, %v2370
    %vm2373 = vcmp.lt.s32.totalorder %v263, 0
    %v2374 = vsub.s32 0, %v263
    %v2375 = vsel %vm2373, %v2374, %v263
    %v2376 = vand.u32 %v2375, 65535
    %v2377 = vshrl.u32 %v2375, 16
    %v2379 = vmul.u32 %v2376, 3496
    %v2380 = vmul.u32 %v2376, 55924
    %v2381 = vmul.u32 %v2377, 3496
    %v2382 = vmul.u32 %v2377, 55924
    %v2383 = vshll.u32 %v2380, 16
    %v2384 = vshrl.u32 %v2380, 16
    %v2385 = vshll.u32 %v2381, 16
    %v2386 = vshrl.u32 %v2381, 16
    %vm2387 = vc.u32 %v2379, %v2383
    %v2388 = vsel %vm2387, 1, 0
    %v2389 = vadd.s32 %v2379, %v2383
    %v2390 = vadd.s32 %v2382, %v2388
    %vm2391 = vc.u32 %v2389, %v2385
    %v2392 = vsel %vm2391, 1, 0
    %v2393 = vadd.s32 %v2389, %v2385
    %v2394 = vadd.s32 %v2390, %v2392
    %v2395 = vadd.s32 %v2394, %v2384
    %v2396 = vadd.s32 %v2395, %v2386
    %v2397 = vshrl.u32 %v2396, 7
    %v2398 = vmul.u32 %v2397, 150
    %v2399 = vsub.s32 %v2375, %v2398
    %v2400 = vsub.s32 0, %v2399
    %v2401 = vsel %vm2373, %v2400, %v2399
    %vm2402 = vcmp.lt.s32.totalorder %v264, 0
    %v2403 = vsub.s32 0, %v264
    %v2404 = vsel %vm2402, %v2403, %v264
    %v2405 = vand.u32 %v2404, 65535
    %v2406 = vshrl.u32 %v2404, 16
    %v2408 = vmul.u32 %v2405, 3496
    %v2409 = vmul.u32 %v2405, 55924
    %v2410 = vmul.u32 %v2406, 3496
    %v2411 = vmul.u32 %v2406, 55924
    %v2412 = vshll.u32 %v2409, 16
    %v2413 = vshrl.u32 %v2409, 16
    %v2414 = vshll.u32 %v2410, 16
    %v2415 = vshrl.u32 %v2410, 16
    %vm2416 = vc.u32 %v2408, %v2412
    %v2417 = vsel %vm2416, 1, 0
    %v2418 = vadd.s32 %v2408, %v2412
    %v2419 = vadd.s32 %v2411, %v2417
    %vm2420 = vc.u32 %v2418, %v2414
    %v2421 = vsel %vm2420, 1, 0
    %v2422 = vadd.s32 %v2418, %v2414
    %v2423 = vadd.s32 %v2419, %v2421
    %v2424 = vadd.s32 %v2423, %v2413
    %v2425 = vadd.s32 %v2424, %v2415
    %v2426 = vshrl.u32 %v2425, 7
    %v2427 = vmul.u32 %v2426, 150
    %v2428 = vsub.s32 %v2404, %v2427
    %v2429 = vsub.s32 0, %v2428
    %v2430 = vsel %vm2402, %v2429, %v2428
    %vm2431 = vcmp.lt.s32.totalorder %v265, 0
    %v2432 = vsub.s32 0, %v265
    %v2433 = vsel %vm2431, %v2432, %v265
    %v2434 = vand.u32 %v2433, 65535
    %v2435 = vshrl.u32 %v2433, 16
    %v2437 = vmul.u32 %v2434, 3496
    %v2438 = vmul.u32 %v2434, 55924
    %v2439 = vmul.u32 %v2435, 3496
    %v2440 = vmul.u32 %v2435, 55924
    %v2441 = vshll.u32 %v2438, 16
    %v2442 = vshrl.u32 %v2438, 16
    %v2443 = vshll.u32 %v2439, 16
    %v2444 = vshrl.u32 %v2439, 16
    %vm2445 = vc.u32 %v2437, %v2441
    %v2446 = vsel %vm2445, 1, 0
    %v2447 = vadd.s32 %v2437, %v2441
    %v2448 = vadd.s32 %v2440, %v2446
    %vm2449 = vc.u32 %v2447, %v2443
    %v2450 = vsel %vm2449, 1, 0
    %v2451 = vadd.s32 %v2447, %v2443
    %v2452 = vadd.s32 %v2448, %v2450
    %v2453 = vadd.s32 %v2452, %v2442
    %v2454 = vadd.s32 %v2453, %v2444
    %v2455 = vshrl.u32 %v2454, 7
    %v2456 = vmul.u32 %v2455, 150
    %v2457 = vsub.s32 %v2433, %v2456
    %v2458 = vsub.s32 0, %v2457
    %v2459 = vsel %vm2431, %v2458, %v2457
    %vm2460 = vcmp.lt.s32.totalorder %v266, 0
    %v2461 = vsub.s32 0, %v266
    %v2462 = vsel %vm2460, %v2461, %v266
    %v2463 = vand.u32 %v2462, 65535
    %v2464 = vshrl.u32 %v2462, 16
    %v2466 = vmul.u32 %v2463, 3496
    %v2467 = vmul.u32 %v2463, 55924
    %v2468 = vmul.u32 %v2464, 3496
    %v2469 = vmul.u32 %v2464, 55924
    %v2470 = vshll.u32 %v2467, 16
    %v2471 = vshrl.u32 %v2467, 16
    %v2472 = vshll.u32 %v2468, 16
    %v2473 = vshrl.u32 %v2468, 16
    %vm2474 = vc.u32 %v2466, %v2470
    %v2475 = vsel %vm2474, 1, 0
    %v2476 = vadd.s32 %v2466, %v2470
    %v2477 = vadd.s32 %v2469, %v2475
    %vm2478 = vc.u32 %v2476, %v2472
    %v2479 = vsel %vm2478, 1, 0
    %v2480 = vadd.s32 %v2476, %v2472
    %v2481 = vadd.s32 %v2477, %v2479
    %v2482 = vadd.s32 %v2481, %v2471
    %v2483 = vadd.s32 %v2482, %v2473
    %v2484 = vshrl.u32 %v2483, 7
    %v2485 = vmul.u32 %v2484, 150
    %v2486 = vsub.s32 %v2462, %v2485
    %v2487 = vsub.s32 0, %v2486
    %v2488 = vsel %vm2460, %v2487, %v2486
    %vm2489 = vcmp.lt.s32.totalorder %v267, 0
    %v2490 = vsub.s32 0, %v267
    %v2491 = vsel %vm2489, %v2490, %v267
    %v2492 = vand.u32 %v2491, 65535
    %v2493 = vshrl.u32 %v2491, 16
    %v2495 = vmul.u32 %v2492, 3496
    %v2496 = vmul.u32 %v2492, 55924
    %v2497 = vmul.u32 %v2493, 3496
    %v2498 = vmul.u32 %v2493, 55924
    %v2499 = vshll.u32 %v2496, 16
    %v2500 = vshrl.u32 %v2496, 16
    %v2501 = vshll.u32 %v2497, 16
    %v2502 = vshrl.u32 %v2497, 16
    %vm2503 = vc.u32 %v2495, %v2499
    %v2504 = vsel %vm2503, 1, 0
    %v2505 = vadd.s32 %v2495, %v2499
    %v2506 = vadd.s32 %v2498, %v2504
    %vm2507 = vc.u32 %v2505, %v2501
    %v2508 = vsel %vm2507, 1, 0
    %v2509 = vadd.s32 %v2505, %v2501
    %v2510 = vadd.s32 %v2506, %v2508
    %v2511 = vadd.s32 %v2510, %v2500
    %v2512 = vadd.s32 %v2511, %v2502
    %v2513 = vshrl.u32 %v2512, 7
    %v2514 = vmul.u32 %v2513, 150
    %v2515 = vsub.s32 %v2491, %v2514
    %v2516 = vsub.s32 0, %v2515
    %v2517 = vsel %vm2489, %v2516, %v2515
    %vm2518 = vcmp.lt.s32.totalorder %v268, 0
    %v2519 = vsub.s32 0, %v268
    %v2520 = vsel %vm2518, %v2519, %v268
    %v2521 = vand.u32 %v2520, 65535
    %v2522 = vshrl.u32 %v2520, 16
    %v2524 = vmul.u32 %v2521, 3496
    %v2525 = vmul.u32 %v2521, 55924
    %v2526 = vmul.u32 %v2522, 3496
    %v2527 = vmul.u32 %v2522, 55924
    %v2528 = vshll.u32 %v2525, 16
    %v2529 = vshrl.u32 %v2525, 16
    %v2530 = vshll.u32 %v2526, 16
    %v2531 = vshrl.u32 %v2526, 16
    %vm2532 = vc.u32 %v2524, %v2528
    %v2533 = vsel %vm2532, 1, 0
    %v2534 = vadd.s32 %v2524, %v2528
    %v2535 = vadd.s32 %v2527, %v2533
    %vm2536 = vc.u32 %v2534, %v2530
    %v2537 = vsel %vm2536, 1, 0
    %v2538 = vadd.s32 %v2534, %v2530
    %v2539 = vadd.s32 %v2535, %v2537
    %v2540 = vadd.s32 %v2539, %v2529
    %v2541 = vadd.s32 %v2540, %v2531
    %v2542 = vshrl.u32 %v2541, 7
    %v2543 = vmul.u32 %v2542, 150
    %v2544 = vsub.s32 %v2520, %v2543
    %v2545 = vsub.s32 0, %v2544
    %v2546 = vsel %vm2518, %v2545, %v2544
    %vm2547 = vcmp.lt.s32.totalorder %v269, 0
    %v2548 = vsub.s32 0, %v269
    %v2549 = vsel %vm2547, %v2548, %v269
    %v2550 = vand.u32 %v2549, 65535
    %v2551 = vshrl.u32 %v2549, 16
    %v2553 = vmul.u32 %v2550, 3496
    %v2554 = vmul.u32 %v2550, 55924
    %v2555 = vmul.u32 %v2551, 3496
    %v2556 = vmul.u32 %v2551, 55924
    %v2557 = vshll.u32 %v2554, 16
    %v2558 = vshrl.u32 %v2554, 16
    %v2559 = vshll.u32 %v2555, 16
    %v2560 = vshrl.u32 %v2555, 16
    %vm2561 = vc.u32 %v2553, %v2557
    %v2562 = vsel %vm2561, 1, 0
    %v2563 = vadd.s32 %v2553, %v2557
    %v2564 = vadd.s32 %v2556, %v2562
    %vm2565 = vc.u32 %v2563, %v2559
    %v2566 = vsel %vm2565, 1, 0
    %v2567 = vadd.s32 %v2563, %v2559
    %v2568 = vadd.s32 %v2564, %v2566
    %v2569 = vadd.s32 %v2568, %v2558
    %v2570 = vadd.s32 %v2569, %v2560
    %v2571 = vshrl.u32 %v2570, 7
    %v2572 = vmul.u32 %v2571, 150
    %v2573 = vsub.s32 %v2549, %v2572
    %v2574 = vsub.s32 0, %v2573
    %v2575 = vsel %vm2547, %v2574, %v2573
    %vm2576 = vcmp.lt.s32.totalorder %v270, 0
    %v2577 = vsub.s32 0, %v270
    %v2578 = vsel %vm2576, %v2577, %v270
    %v2579 = vand.u32 %v2578, 65535
    %v2580 = vshrl.u32 %v2578, 16
    %v2582 = vmul.u32 %v2579, 3496
    %v2583 = vmul.u32 %v2579, 55924
    %v2584 = vmul.u32 %v2580, 3496
    %v2585 = vmul.u32 %v2580, 55924
    %v2586 = vshll.u32 %v2583, 16
    %v2587 = vshrl.u32 %v2583, 16
    %v2588 = vshll.u32 %v2584, 16
    %v2589 = vshrl.u32 %v2584, 16
    %vm2590 = vc.u32 %v2582, %v2586
    %v2591 = vsel %vm2590, 1, 0
    %v2592 = vadd.s32 %v2582, %v2586
    %v2593 = vadd.s32 %v2585, %v2591
    %vm2594 = vc.u32 %v2592, %v2588
    %v2595 = vsel %vm2594, 1, 0
    %v2596 = vadd.s32 %v2592, %v2588
    %v2597 = vadd.s32 %v2593, %v2595
    %v2598 = vadd.s32 %v2597, %v2587
    %v2599 = vadd.s32 %v2598, %v2589
    %v2600 = vshrl.u32 %v2599, 7
    %v2601 = vmul.u32 %v2600, 150
    %v2602 = vsub.s32 %v2578, %v2601
    %v2603 = vsub.s32 0, %v2602
    %v2604 = vsel %vm2576, %v2603, %v2602
    %vm2605 = vcmp.lt.s32.totalorder %v271, 0
    %v2606 = vsub.s32 0, %v271
    %v2607 = vsel %vm2605, %v2606, %v271
    %v2608 = vand.u32 %v2607, 65535
    %v2609 = vshrl.u32 %v2607, 16
    %v2611 = vmul.u32 %v2608, 3496
    %v2612 = vmul.u32 %v2608, 55924
    %v2613 = vmul.u32 %v2609, 3496
    %v2614 = vmul.u32 %v2609, 55924
    %v2615 = vshll.u32 %v2612, 16
    %v2616 = vshrl.u32 %v2612, 16
    %v2617 = vshll.u32 %v2613, 16
    %v2618 = vshrl.u32 %v2613, 16
    %vm2619 = vc.u32 %v2611, %v2615
    %v2620 = vsel %vm2619, 1, 0
    %v2621 = vadd.s32 %v2611, %v2615
    %v2622 = vadd.s32 %v2614, %v2620
    %vm2623 = vc.u32 %v2621, %v2617
    %v2624 = vsel %vm2623, 1, 0
    %v2625 = vadd.s32 %v2621, %v2617
    %v2626 = vadd.s32 %v2622, %v2624
    %v2627 = vadd.s32 %v2626, %v2616
    %v2628 = vadd.s32 %v2627, %v2618
    %v2629 = vshrl.u32 %v2628, 7
    %v2630 = vmul.u32 %v2629, 150
    %v2631 = vsub.s32 %v2607, %v2630
    %v2632 = vsub.s32 0, %v2631
    %v2633 = vsel %vm2605, %v2632, %v2631
    %vm2634 = vcmp.lt.s32.totalorder %v272, 0
    %v2635 = vsub.s32 0, %v272
    %v2636 = vsel %vm2634, %v2635, %v272
    %v2637 = vand.u32 %v2636, 65535
    %v2638 = vshrl.u32 %v2636, 16
    %v2640 = vmul.u32 %v2637, 3496
    %v2641 = vmul.u32 %v2637, 55924
    %v2642 = vmul.u32 %v2638, 3496
    %v2643 = vmul.u32 %v2638, 55924
    %v2644 = vshll.u32 %v2641, 16
    %v2645 = vshrl.u32 %v2641, 16
    %v2646 = vshll.u32 %v2642, 16
    %v2647 = vshrl.u32 %v2642, 16
    %vm2648 = vc.u32 %v2640, %v2644
    %v2649 = vsel %vm2648, 1, 0
    %v2650 = vadd.s32 %v2640, %v2644
    %v2651 = vadd.s32 %v2643, %v2649
    %vm2652 = vc.u32 %v2650, %v2646
    %v2653 = vsel %vm2652, 1, 0
    %v2654 = vadd.s32 %v2650, %v2646
    %v2655 = vadd.s32 %v2651, %v2653
    %v2656 = vadd.s32 %v2655, %v2645
    %v2657 = vadd.s32 %v2656, %v2647
    %v2658 = vshrl.u32 %v2657, 7
    %v2659 = vmul.u32 %v2658, 150
    %v2660 = vsub.s32 %v2636, %v2659
    %v2661 = vsub.s32 0, %v2660
    %v2662 = vsel %vm2634, %v2661, %v2660
    %vm2663 = vcmp.lt.s32.totalorder %v273, 0
    %v2664 = vsub.s32 0, %v273
    %v2665 = vsel %vm2663, %v2664, %v273
    %v2666 = vand.u32 %v2665, 65535
    %v2667 = vshrl.u32 %v2665, 16
    %v2669 = vmul.u32 %v2666, 3496
    %v2670 = vmul.u32 %v2666, 55924
    %v2671 = vmul.u32 %v2667, 3496
    %v2672 = vmul.u32 %v2667, 55924
    %v2673 = vshll.u32 %v2670, 16
    %v2674 = vshrl.u32 %v2670, 16
    %v2675 = vshll.u32 %v2671, 16
    %v2676 = vshrl.u32 %v2671, 16
    %vm2677 = vc.u32 %v2669, %v2673
    %v2678 = vsel %vm2677, 1, 0
    %v2679 = vadd.s32 %v2669, %v2673
    %v2680 = vadd.s32 %v2672, %v2678
    %vm2681 = vc.u32 %v2679, %v2675
    %v2682 = vsel %vm2681, 1, 0
    %v2683 = vadd.s32 %v2679, %v2675
    %v2684 = vadd.s32 %v2680, %v2682
    %v2685 = vadd.s32 %v2684, %v2674
    %v2686 = vadd.s32 %v2685, %v2676
    %v2687 = vshrl.u32 %v2686, 7
    %v2688 = vmul.u32 %v2687, 150
    %v2689 = vsub.s32 %v2665, %v2688
    %v2690 = vsub.s32 0, %v2689
    %v2691 = vsel %vm2663, %v2690, %v2689
    %vm2692 = vcmp.lt.s32.totalorder %v274, 0
    %v2693 = vsub.s32 0, %v274
    %v2694 = vsel %vm2692, %v2693, %v274
    %v2695 = vand.u32 %v2694, 65535
    %v2696 = vshrl.u32 %v2694, 16
    %v2698 = vmul.u32 %v2695, 3496
    %v2699 = vmul.u32 %v2695, 55924
    %v2700 = vmul.u32 %v2696, 3496
    %v2701 = vmul.u32 %v2696, 55924
    %v2702 = vshll.u32 %v2699, 16
    %v2703 = vshrl.u32 %v2699, 16
    %v2704 = vshll.u32 %v2700, 16
    %v2705 = vshrl.u32 %v2700, 16
    %vm2706 = vc.u32 %v2698, %v2702
    %v2707 = vsel %vm2706, 1, 0
    %v2708 = vadd.s32 %v2698, %v2702
    %v2709 = vadd.s32 %v2701, %v2707
    %vm2710 = vc.u32 %v2708, %v2704
    %v2711 = vsel %vm2710, 1, 0
    %v2712 = vadd.s32 %v2708, %v2704
    %v2713 = vadd.s32 %v2709, %v2711
    %v2714 = vadd.s32 %v2713, %v2703
    %v2715 = vadd.s32 %v2714, %v2705
    %v2716 = vshrl.u32 %v2715, 7
    %v2717 = vmul.u32 %v2716, 150
    %v2718 = vsub.s32 %v2694, %v2717
    %v2719 = vsub.s32 0, %v2718
    %v2720 = vsel %vm2692, %v2719, %v2718
    %vm2721 = vcmp.lt.s32.totalorder %v275, 0
    %v2722 = vsub.s32 0, %v275
    %v2723 = vsel %vm2721, %v2722, %v275
    %v2724 = vand.u32 %v2723, 65535
    %v2725 = vshrl.u32 %v2723, 16
    %v2727 = vmul.u32 %v2724, 3496
    %v2728 = vmul.u32 %v2724, 55924
    %v2729 = vmul.u32 %v2725, 3496
    %v2730 = vmul.u32 %v2725, 55924
    %v2731 = vshll.u32 %v2728, 16
    %v2732 = vshrl.u32 %v2728, 16
    %v2733 = vshll.u32 %v2729, 16
    %v2734 = vshrl.u32 %v2729, 16
    %vm2735 = vc.u32 %v2727, %v2731
    %v2736 = vsel %vm2735, 1, 0
    %v2737 = vadd.s32 %v2727, %v2731
    %v2738 = vadd.s32 %v2730, %v2736
    %vm2739 = vc.u32 %v2737, %v2733
    %v2740 = vsel %vm2739, 1, 0
    %v2741 = vadd.s32 %v2737, %v2733
    %v2742 = vadd.s32 %v2738, %v2740
    %v2743 = vadd.s32 %v2742, %v2732
    %v2744 = vadd.s32 %v2743, %v2734
    %v2745 = vshrl.u32 %v2744, 7
    %v2746 = vmul.u32 %v2745, 150
    %v2747 = vsub.s32 %v2723, %v2746
    %v2748 = vsub.s32 0, %v2747
    %v2749 = vsel %vm2721, %v2748, %v2747
    %vm2750 = vcmp.lt.s32.totalorder %v276, 0
    %v2751 = vsub.s32 0, %v276
    %v2752 = vsel %vm2750, %v2751, %v276
    %v2753 = vand.u32 %v2752, 65535
    %v2754 = vshrl.u32 %v2752, 16
    %v2756 = vmul.u32 %v2753, 3496
    %v2757 = vmul.u32 %v2753, 55924
    %v2758 = vmul.u32 %v2754, 3496
    %v2759 = vmul.u32 %v2754, 55924
    %v2760 = vshll.u32 %v2757, 16
    %v2761 = vshrl.u32 %v2757, 16
    %v2762 = vshll.u32 %v2758, 16
    %v2763 = vshrl.u32 %v2758, 16
    %vm2764 = vc.u32 %v2756, %v2760
    %v2765 = vsel %vm2764, 1, 0
    %v2766 = vadd.s32 %v2756, %v2760
    %v2767 = vadd.s32 %v2759, %v2765
    %vm2768 = vc.u32 %v2766, %v2762
    %v2769 = vsel %vm2768, 1, 0
    %v2770 = vadd.s32 %v2766, %v2762
    %v2771 = vadd.s32 %v2767, %v2769
    %v2772 = vadd.s32 %v2771, %v2761
    %v2773 = vadd.s32 %v2772, %v2763
    %v2774 = vshrl.u32 %v2773, 7
    %v2775 = vmul.u32 %v2774, 150
    %v2776 = vsub.s32 %v2752, %v2775
    %v2777 = vsub.s32 0, %v2776
    %v2778 = vsel %vm2750, %v2777, %v2776
    %vm2779 = vcmp.lt.s32.totalorder %v277, 0
    %v2780 = vsub.s32 0, %v277
    %v2781 = vsel %vm2779, %v2780, %v277
    %v2782 = vand.u32 %v2781, 65535
    %v2783 = vshrl.u32 %v2781, 16
    %v2785 = vmul.u32 %v2782, 3496
    %v2786 = vmul.u32 %v2782, 55924
    %v2787 = vmul.u32 %v2783, 3496
    %v2788 = vmul.u32 %v2783, 55924
    %v2789 = vshll.u32 %v2786, 16
    %v2790 = vshrl.u32 %v2786, 16
    %v2791 = vshll.u32 %v2787, 16
    %v2792 = vshrl.u32 %v2787, 16
    %vm2793 = vc.u32 %v2785, %v2789
    %v2794 = vsel %vm2793, 1, 0
    %v2795 = vadd.s32 %v2785, %v2789
    %v2796 = vadd.s32 %v2788, %v2794
    %vm2797 = vc.u32 %v2795, %v2791
    %v2798 = vsel %vm2797, 1, 0
    %v2799 = vadd.s32 %v2795, %v2791
    %v2800 = vadd.s32 %v2796, %v2798
    %v2801 = vadd.s32 %v2800, %v2790
    %v2802 = vadd.s32 %v2801, %v2792
    %v2803 = vshrl.u32 %v2802, 7
    %v2804 = vmul.u32 %v2803, 150
    %v2805 = vsub.s32 %v2781, %v2804
    %v2806 = vsub.s32 0, %v2805
    %v2807 = vsel %vm2779, %v2806, %v2805
    %vm2808 = vcmp.lt.s32.totalorder %v278, 0
    %v2809 = vsub.s32 0, %v278
    %v2810 = vsel %vm2808, %v2809, %v278
    %v2811 = vand.u32 %v2810, 65535
    %v2812 = vshrl.u32 %v2810, 16
    %v2814 = vmul.u32 %v2811, 3496
    %v2815 = vmul.u32 %v2811, 55924
    %v2816 = vmul.u32 %v2812, 3496
    %v2817 = vmul.u32 %v2812, 55924
    %v2818 = vshll.u32 %v2815, 16
    %v2819 = vshrl.u32 %v2815, 16
    %v2820 = vshll.u32 %v2816, 16
    %v2821 = vshrl.u32 %v2816, 16
    %vm2822 = vc.u32 %v2814, %v2818
    %v2823 = vsel %vm2822, 1, 0
    %v2824 = vadd.s32 %v2814, %v2818
    %v2825 = vadd.s32 %v2817, %v2823
    %vm2826 = vc.u32 %v2824, %v2820
    %v2827 = vsel %vm2826, 1, 0
    %v2828 = vadd.s32 %v2824, %v2820
    %v2829 = vadd.s32 %v2825, %v2827
    %v2830 = vadd.s32 %v2829, %v2819
    %v2831 = vadd.s32 %v2830, %v2821
    %v2832 = vshrl.u32 %v2831, 7
    %v2833 = vmul.u32 %v2832, 150
    %v2834 = vsub.s32 %v2810, %v2833
    %v2835 = vsub.s32 0, %v2834
    %v2836 = vsel %vm2808, %v2835, %v2834
    %vm2837 = vcmp.lt.s32.totalorder %v279, 0
    %v2838 = vsub.s32 0, %v279
    %v2839 = vsel %vm2837, %v2838, %v279
    %v2840 = vand.u32 %v2839, 65535
    %v2841 = vshrl.u32 %v2839, 16
    %v2843 = vmul.u32 %v2840, 3496
    %v2844 = vmul.u32 %v2840, 55924
    %v2845 = vmul.u32 %v2841, 3496
    %v2846 = vmul.u32 %v2841, 55924
    %v2847 = vshll.u32 %v2844, 16
    %v2848 = vshrl.u32 %v2844, 16
    %v2849 = vshll.u32 %v2845, 16
    %v2850 = vshrl.u32 %v2845, 16
    %vm2851 = vc.u32 %v2843, %v2847
    %v2852 = vsel %vm2851, 1, 0
    %v2853 = vadd.s32 %v2843, %v2847
    %v2854 = vadd.s32 %v2846, %v2852
    %vm2855 = vc.u32 %v2853, %v2849
    %v2856 = vsel %vm2855, 1, 0
    %v2857 = vadd.s32 %v2853, %v2849
    %v2858 = vadd.s32 %v2854, %v2856
    %v2859 = vadd.s32 %v2858, %v2848
    %v2860 = vadd.s32 %v2859, %v2850
    %v2861 = vshrl.u32 %v2860, 7
    %v2862 = vmul.u32 %v2861, 150
    %v2863 = vsub.s32 %v2839, %v2862
    %v2864 = vsub.s32 0, %v2863
    %v2865 = vsel %vm2837, %v2864, %v2863
    %vm2866 = vcmp.lt.s32.totalorder %v280, 0
    %v2867 = vsub.s32 0, %v280
    %v2868 = vsel %vm2866, %v2867, %v280
    %v2869 = vand.u32 %v2868, 65535
    %v2870 = vshrl.u32 %v2868, 16
    %v2872 = vmul.u32 %v2869, 3496
    %v2873 = vmul.u32 %v2869, 55924
    %v2874 = vmul.u32 %v2870, 3496
    %v2875 = vmul.u32 %v2870, 55924
    %v2876 = vshll.u32 %v2873, 16
    %v2877 = vshrl.u32 %v2873, 16
    %v2878 = vshll.u32 %v2874, 16
    %v2879 = vshrl.u32 %v2874, 16
    %vm2880 = vc.u32 %v2872, %v2876
    %v2881 = vsel %vm2880, 1, 0
    %v2882 = vadd.s32 %v2872, %v2876
    %v2883 = vadd.s32 %v2875, %v2881
    %vm2884 = vc.u32 %v2882, %v2878
    %v2885 = vsel %vm2884, 1, 0
    %v2886 = vadd.s32 %v2882, %v2878
    %v2887 = vadd.s32 %v2883, %v2885
    %v2888 = vadd.s32 %v2887, %v2877
    %v2889 = vadd.s32 %v2888, %v2879
    %v2890 = vshrl.u32 %v2889, 7
    %v2891 = vmul.u32 %v2890, 150
    %v2892 = vsub.s32 %v2868, %v2891
    %v2893 = vsub.s32 0, %v2892
    %v2894 = vsel %vm2866, %v2893, %v2892
    %vm2895 = vcmp.lt.s32.totalorder %v281, 0
    %v2896 = vsub.s32 0, %v281
    %v2897 = vsel %vm2895, %v2896, %v281
    %v2898 = vand.u32 %v2897, 65535
    %v2899 = vshrl.u32 %v2897, 16
    %v2901 = vmul.u32 %v2898, 3496
    %v2902 = vmul.u32 %v2898, 55924
    %v2903 = vmul.u32 %v2899, 3496
    %v2904 = vmul.u32 %v2899, 55924
    %v2905 = vshll.u32 %v2902, 16
    %v2906 = vshrl.u32 %v2902, 16
    %v2907 = vshll.u32 %v2903, 16
    %v2908 = vshrl.u32 %v2903, 16
    %vm2909 = vc.u32 %v2901, %v2905
    %v2910 = vsel %vm2909, 1, 0
    %v2911 = vadd.s32 %v2901, %v2905
    %v2912 = vadd.s32 %v2904, %v2910
    %vm2913 = vc.u32 %v2911, %v2907
    %v2914 = vsel %vm2913, 1, 0
    %v2915 = vadd.s32 %v2911, %v2907
    %v2916 = vadd.s32 %v2912, %v2914
    %v2917 = vadd.s32 %v2916, %v2906
    %v2918 = vadd.s32 %v2917, %v2908
    %v2919 = vshrl.u32 %v2918, 7
    %v2920 = vmul.u32 %v2919, 150
    %v2921 = vsub.s32 %v2897, %v2920
    %v2922 = vsub.s32 0, %v2921
    %v2923 = vsel %vm2895, %v2922, %v2921
    %vm2924 = vcmp.lt.s32.totalorder %v282, 0
    %v2925 = vsub.s32 0, %v282
    %v2926 = vsel %vm2924, %v2925, %v282
    %v2927 = vand.u32 %v2926, 65535
    %v2928 = vshrl.u32 %v2926, 16
    %v2930 = vmul.u32 %v2927, 3496
    %v2931 = vmul.u32 %v2927, 55924
    %v2932 = vmul.u32 %v2928, 3496
    %v2933 = vmul.u32 %v2928, 55924
    %v2934 = vshll.u32 %v2931, 16
    %v2935 = vshrl.u32 %v2931, 16
    %v2936 = vshll.u32 %v2932, 16
    %v2937 = vshrl.u32 %v2932, 16
    %vm2938 = vc.u32 %v2930, %v2934
    %v2939 = vsel %vm2938, 1, 0
    %v2940 = vadd.s32 %v2930, %v2934
    %v2941 = vadd.s32 %v2933, %v2939
    %vm2942 = vc.u32 %v2940, %v2936
    %v2943 = vsel %vm2942, 1, 0
    %v2944 = vadd.s32 %v2940, %v2936
    %v2945 = vadd.s32 %v2941, %v2943
    %v2946 = vadd.s32 %v2945, %v2935
    %v2947 = vadd.s32 %v2946, %v2937
    %v2948 = vshrl.u32 %v2947, 7
    %v2949 = vmul.u32 %v2948, 150
    %v2950 = vsub.s32 %v2926, %v2949
    %v2951 = vsub.s32 0, %v2950
    %v2952 = vsel %vm2924, %v2951, %v2950
    %vm2953 = vcmp.lt.s32.totalorder %v283, 0
    %v2954 = vsub.s32 0, %v283
    %v2955 = vsel %vm2953, %v2954, %v283
    %v2956 = vand.u32 %v2955, 65535
    %v2957 = vshrl.u32 %v2955, 16
    %v2959 = vmul.u32 %v2956, 3496
    %v2960 = vmul.u32 %v2956, 55924
    %v2961 = vmul.u32 %v2957, 3496
    %v2962 = vmul.u32 %v2957, 55924
    %v2963 = vshll.u32 %v2960, 16
    %v2964 = vshrl.u32 %v2960, 16
    %v2965 = vshll.u32 %v2961, 16
    %v2966 = vshrl.u32 %v2961, 16
    %vm2967 = vc.u32 %v2959, %v2963
    %v2968 = vsel %vm2967, 1, 0
    %v2969 = vadd.s32 %v2959, %v2963
    %v2970 = vadd.s32 %v2962, %v2968
    %vm2971 = vc.u32 %v2969, %v2965
    %v2972 = vsel %vm2971, 1, 0
    %v2973 = vadd.s32 %v2969, %v2965
    %v2974 = vadd.s32 %v2970, %v2972
    %v2975 = vadd.s32 %v2974, %v2964
    %v2976 = vadd.s32 %v2975, %v2966
    %v2977 = vshrl.u32 %v2976, 7
    %v2978 = vmul.u32 %v2977, 150
    %v2979 = vsub.s32 %v2955, %v2978
    %v2980 = vsub.s32 0, %v2979
    %v2981 = vsel %vm2953, %v2980, %v2979
    %vm2982 = vcmp.lt.s32.totalorder %v284, 0
    %v2983 = vsub.s32 0, %v284
    %v2984 = vsel %vm2982, %v2983, %v284
    %v2985 = vand.u32 %v2984, 65535
    %v2986 = vshrl.u32 %v2984, 16
    %v2988 = vmul.u32 %v2985, 3496
    %v2989 = vmul.u32 %v2985, 55924
    %v2990 = vmul.u32 %v2986, 3496
    %v2991 = vmul.u32 %v2986, 55924
    %v2992 = vshll.u32 %v2989, 16
    %v2993 = vshrl.u32 %v2989, 16
    %v2994 = vshll.u32 %v2990, 16
    %v2995 = vshrl.u32 %v2990, 16
    %vm2996 = vc.u32 %v2988, %v2992
    %v2997 = vsel %vm2996, 1, 0
    %v2998 = vadd.s32 %v2988, %v2992
    %v2999 = vadd.s32 %v2991, %v2997
    %vm3000 = vc.u32 %v2998, %v2994
    %v3001 = vsel %vm3000, 1, 0
    %v3002 = vadd.s32 %v2998, %v2994
    %v3003 = vadd.s32 %v2999, %v3001
    %v3004 = vadd.s32 %v3003, %v2993
    %v3005 = vadd.s32 %v3004, %v2995
    %v3006 = vshrl.u32 %v3005, 7
    %v3007 = vmul.u32 %v3006, 150
    %v3008 = vsub.s32 %v2984, %v3007
    %v3009 = vsub.s32 0, %v3008
    %v3010 = vsel %vm2982, %v3009, %v3008
    %vm3011 = vcmp.lt.s32.totalorder %v285, 0
    %v3012 = vsub.s32 0, %v285
    %v3013 = vsel %vm3011, %v3012, %v285
    %v3014 = vand.u32 %v3013, 65535
    %v3015 = vshrl.u32 %v3013, 16
    %v3017 = vmul.u32 %v3014, 3496
    %v3018 = vmul.u32 %v3014, 55924
    %v3019 = vmul.u32 %v3015, 3496
    %v3020 = vmul.u32 %v3015, 55924
    %v3021 = vshll.u32 %v3018, 16
    %v3022 = vshrl.u32 %v3018, 16
    %v3023 = vshll.u32 %v3019, 16
    %v3024 = vshrl.u32 %v3019, 16
    %vm3025 = vc.u32 %v3017, %v3021
    %v3026 = vsel %vm3025, 1, 0
    %v3027 = vadd.s32 %v3017, %v3021
    %v3028 = vadd.s32 %v3020, %v3026
    %vm3029 = vc.u32 %v3027, %v3023
    %v3030 = vsel %vm3029, 1, 0
    %v3031 = vadd.s32 %v3027, %v3023
    %v3032 = vadd.s32 %v3028, %v3030
    %v3033 = vadd.s32 %v3032, %v3022
    %v3034 = vadd.s32 %v3033, %v3024
    %v3035 = vshrl.u32 %v3034, 7
    %v3036 = vmul.u32 %v3035, 150
    %v3037 = vsub.s32 %v3013, %v3036
    %v3038 = vsub.s32 0, %v3037
    %v3039 = vsel %vm3011, %v3038, %v3037
    %vm3040 = vcmp.lt.s32.totalorder %v286, 0
    %v3041 = vsub.s32 0, %v286
    %v3042 = vsel %vm3040, %v3041, %v286
    %v3043 = vand.u32 %v3042, 65535
    %v3044 = vshrl.u32 %v3042, 16
    %v3046 = vmul.u32 %v3043, 3496
    %v3047 = vmul.u32 %v3043, 55924
    %v3048 = vmul.u32 %v3044, 3496
    %v3049 = vmul.u32 %v3044, 55924
    %v3050 = vshll.u32 %v3047, 16
    %v3051 = vshrl.u32 %v3047, 16
    %v3052 = vshll.u32 %v3048, 16
    %v3053 = vshrl.u32 %v3048, 16
    %vm3054 = vc.u32 %v3046, %v3050
    %v3055 = vsel %vm3054, 1, 0
    %v3056 = vadd.s32 %v3046, %v3050
    %v3057 = vadd.s32 %v3049, %v3055
    %vm3058 = vc.u32 %v3056, %v3052
    %v3059 = vsel %vm3058, 1, 0
    %v3060 = vadd.s32 %v3056, %v3052
    %v3061 = vadd.s32 %v3057, %v3059
    %v3062 = vadd.s32 %v3061, %v3051
    %v3063 = vadd.s32 %v3062, %v3053
    %v3064 = vshrl.u32 %v3063, 7
    %v3065 = vmul.u32 %v3064, 150
    %v3066 = vsub.s32 %v3042, %v3065
    %v3067 = vsub.s32 0, %v3066
    %v3068 = vsel %vm3040, %v3067, %v3066
    %vm3069 = vcmp.lt.s32.totalorder %v287, 0
    %v3070 = vsub.s32 0, %v287
    %v3071 = vsel %vm3069, %v3070, %v287
    %v3072 = vand.u32 %v3071, 65535
    %v3073 = vshrl.u32 %v3071, 16
    %v3075 = vmul.u32 %v3072, 3496
    %v3076 = vmul.u32 %v3072, 55924
    %v3077 = vmul.u32 %v3073, 3496
    %v3078 = vmul.u32 %v3073, 55924
    %v3079 = vshll.u32 %v3076, 16
    %v3080 = vshrl.u32 %v3076, 16
    %v3081 = vshll.u32 %v3077, 16
    %v3082 = vshrl.u32 %v3077, 16
    %vm3083 = vc.u32 %v3075, %v3079
    %v3084 = vsel %vm3083, 1, 0
    %v3085 = vadd.s32 %v3075, %v3079
    %v3086 = vadd.s32 %v3078, %v3084
    %vm3087 = vc.u32 %v3085, %v3081
    %v3088 = vsel %vm3087, 1, 0
    %v3089 = vadd.s32 %v3085, %v3081
    %v3090 = vadd.s32 %v3086, %v3088
    %v3091 = vadd.s32 %v3090, %v3080
    %v3092 = vadd.s32 %v3091, %v3082
    %v3093 = vshrl.u32 %v3092, 7
    %v3094 = vmul.u32 %v3093, 150
    %v3095 = vsub.s32 %v3071, %v3094
    %v3096 = vsub.s32 0, %v3095
    %v3097 = vsel %vm3069, %v3096, %v3095
    %vm3098 = vcmp.lt.s32.totalorder %v288, 0
    %v3099 = vsub.s32 0, %v288
    %v3100 = vsel %vm3098, %v3099, %v288
    %v3101 = vand.u32 %v3100, 65535
    %v3102 = vshrl.u32 %v3100, 16
    %v3104 = vmul.u32 %v3101, 3496
    %v3105 = vmul.u32 %v3101, 55924
    %v3106 = vmul.u32 %v3102, 3496
    %v3107 = vmul.u32 %v3102, 55924
    %v3108 = vshll.u32 %v3105, 16
    %v3109 = vshrl.u32 %v3105, 16
    %v3110 = vshll.u32 %v3106, 16
    %v3111 = vshrl.u32 %v3106, 16
    %vm3112 = vc.u32 %v3104, %v3108
    %v3113 = vsel %vm3112, 1, 0
    %v3114 = vadd.s32 %v3104, %v3108
    %v3115 = vadd.s32 %v3107, %v3113
    %vm3116 = vc.u32 %v3114, %v3110
    %v3117 = vsel %vm3116, 1, 0
    %v3118 = vadd.s32 %v3114, %v3110
    %v3119 = vadd.s32 %v3115, %v3117
    %v3120 = vadd.s32 %v3119, %v3109
    %v3121 = vadd.s32 %v3120, %v3111
    %v3122 = vshrl.u32 %v3121, 7
    %v3123 = vmul.u32 %v3122, 150
    %v3124 = vsub.s32 %v3100, %v3123
    %v3125 = vsub.s32 0, %v3124
    %v3126 = vsel %vm3098, %v3125, %v3124
    %vm3127 = vcmp.lt.s32.totalorder %v289, 0
    %v3128 = vsub.s32 0, %v289
    %v3129 = vsel %vm3127, %v3128, %v289
    %v3130 = vand.u32 %v3129, 65535
    %v3131 = vshrl.u32 %v3129, 16
    %v3133 = vmul.u32 %v3130, 3496
    %v3134 = vmul.u32 %v3130, 55924
    %v3135 = vmul.u32 %v3131, 3496
    %v3136 = vmul.u32 %v3131, 55924
    %v3137 = vshll.u32 %v3134, 16
    %v3138 = vshrl.u32 %v3134, 16
    %v3139 = vshll.u32 %v3135, 16
    %v3140 = vshrl.u32 %v3135, 16
    %vm3141 = vc.u32 %v3133, %v3137
    %v3142 = vsel %vm3141, 1, 0
    %v3143 = vadd.s32 %v3133, %v3137
    %v3144 = vadd.s32 %v3136, %v3142
    %vm3145 = vc.u32 %v3143, %v3139
    %v3146 = vsel %vm3145, 1, 0
    %v3147 = vadd.s32 %v3143, %v3139
    %v3148 = vadd.s32 %v3144, %v3146
    %v3149 = vadd.s32 %v3148, %v3138
    %v3150 = vadd.s32 %v3149, %v3140
    %v3151 = vshrl.u32 %v3150, 7
    %v3152 = vmul.u32 %v3151, 150
    %v3153 = vsub.s32 %v3129, %v3152
    %v3154 = vsub.s32 0, %v3153
    %v3155 = vsel %vm3127, %v3154, %v3153
    %vm3156 = vcmp.lt.s32.totalorder %v290, 0
    %v3157 = vsub.s32 0, %v290
    %v3158 = vsel %vm3156, %v3157, %v290
    %v3159 = vand.u32 %v3158, 65535
    %v3160 = vshrl.u32 %v3158, 16
    %v3162 = vmul.u32 %v3159, 3496
    %v3163 = vmul.u32 %v3159, 55924
    %v3164 = vmul.u32 %v3160, 3496
    %v3165 = vmul.u32 %v3160, 55924
    %v3166 = vshll.u32 %v3163, 16
    %v3167 = vshrl.u32 %v3163, 16
    %v3168 = vshll.u32 %v3164, 16
    %v3169 = vshrl.u32 %v3164, 16
    %vm3170 = vc.u32 %v3162, %v3166
    %v3171 = vsel %vm3170, 1, 0
    %v3172 = vadd.s32 %v3162, %v3166
    %v3173 = vadd.s32 %v3165, %v3171
    %vm3174 = vc.u32 %v3172, %v3168
    %v3175 = vsel %vm3174, 1, 0
    %v3176 = vadd.s32 %v3172, %v3168
    %v3177 = vadd.s32 %v3173, %v3175
    %v3178 = vadd.s32 %v3177, %v3167
    %v3179 = vadd.s32 %v3178, %v3169
    %v3180 = vshrl.u32 %v3179, 7
    %v3181 = vmul.u32 %v3180, 150
    %v3182 = vsub.s32 %v3158, %v3181
    %v3183 = vsub.s32 0, %v3182
    %v3184 = vsel %vm3156, %v3183, %v3182
    %vm3185 = vcmp.lt.s32.totalorder %v291, 0
    %v3186 = vsub.s32 0, %v291
    %v3187 = vsel %vm3185, %v3186, %v291
    %v3188 = vand.u32 %v3187, 65535
    %v3189 = vshrl.u32 %v3187, 16
    %v3191 = vmul.u32 %v3188, 3496
    %v3192 = vmul.u32 %v3188, 55924
    %v3193 = vmul.u32 %v3189, 3496
    %v3194 = vmul.u32 %v3189, 55924
    %v3195 = vshll.u32 %v3192, 16
    %v3196 = vshrl.u32 %v3192, 16
    %v3197 = vshll.u32 %v3193, 16
    %v3198 = vshrl.u32 %v3193, 16
    %vm3199 = vc.u32 %v3191, %v3195
    %v3200 = vsel %vm3199, 1, 0
    %v3201 = vadd.s32 %v3191, %v3195
    %v3202 = vadd.s32 %v3194, %v3200
    %vm3203 = vc.u32 %v3201, %v3197
    %v3204 = vsel %vm3203, 1, 0
    %v3205 = vadd.s32 %v3201, %v3197
    %v3206 = vadd.s32 %v3202, %v3204
    %v3207 = vadd.s32 %v3206, %v3196
    %v3208 = vadd.s32 %v3207, %v3198
    %v3209 = vshrl.u32 %v3208, 7
    %v3210 = vmul.u32 %v3209, 150
    %v3211 = vsub.s32 %v3187, %v3210
    %v3212 = vsub.s32 0, %v3211
    %v3213 = vsel %vm3185, %v3212, %v3211
    %vm3214 = vcmp.lt.s32.totalorder %v292, 0
    %v3215 = vsub.s32 0, %v292
    %v3216 = vsel %vm3214, %v3215, %v292
    %v3217 = vand.u32 %v3216, 65535
    %v3218 = vshrl.u32 %v3216, 16
    %v3220 = vmul.u32 %v3217, 3496
    %v3221 = vmul.u32 %v3217, 55924
    %v3222 = vmul.u32 %v3218, 3496
    %v3223 = vmul.u32 %v3218, 55924
    %v3224 = vshll.u32 %v3221, 16
    %v3225 = vshrl.u32 %v3221, 16
    %v3226 = vshll.u32 %v3222, 16
    %v3227 = vshrl.u32 %v3222, 16
    %vm3228 = vc.u32 %v3220, %v3224
    %v3229 = vsel %vm3228, 1, 0
    %v3230 = vadd.s32 %v3220, %v3224
    %v3231 = vadd.s32 %v3223, %v3229
    %vm3232 = vc.u32 %v3230, %v3226
    %v3233 = vsel %vm3232, 1, 0
    %v3234 = vadd.s32 %v3230, %v3226
    %v3235 = vadd.s32 %v3231, %v3233
    %v3236 = vadd.s32 %v3235, %v3225
    %v3237 = vadd.s32 %v3236, %v3227
    %v3238 = vshrl.u32 %v3237, 7
    %v3239 = vmul.u32 %v3238, 150
    %v3240 = vsub.s32 %v3216, %v3239
    %v3241 = vsub.s32 0, %v3240
    %v3242 = vsel %vm3214, %v3241, %v3240
    %vm3243 = vcmp.lt.s32.totalorder %v293, 0
    %v3244 = vsub.s32 0, %v293
    %v3245 = vsel %vm3243, %v3244, %v293
    %v3246 = vand.u32 %v3245, 65535
    %v3247 = vshrl.u32 %v3245, 16
    %v3249 = vmul.u32 %v3246, 3496
    %v3250 = vmul.u32 %v3246, 55924
    %v3251 = vmul.u32 %v3247, 3496
    %v3252 = vmul.u32 %v3247, 55924
    %v3253 = vshll.u32 %v3250, 16
    %v3254 = vshrl.u32 %v3250, 16
    %v3255 = vshll.u32 %v3251, 16
    %v3256 = vshrl.u32 %v3251, 16
    %vm3257 = vc.u32 %v3249, %v3253
    %v3258 = vsel %vm3257, 1, 0
    %v3259 = vadd.s32 %v3249, %v3253
    %v3260 = vadd.s32 %v3252, %v3258
    %vm3261 = vc.u32 %v3259, %v3255
    %v3262 = vsel %vm3261, 1, 0
    %v3263 = vadd.s32 %v3259, %v3255
    %v3264 = vadd.s32 %v3260, %v3262
    %v3265 = vadd.s32 %v3264, %v3254
    %v3266 = vadd.s32 %v3265, %v3256
    %v3267 = vshrl.u32 %v3266, 7
    %v3268 = vmul.u32 %v3267, 150
    %v3269 = vsub.s32 %v3245, %v3268
    %v3270 = vsub.s32 0, %v3269
    %v3271 = vsel %vm3243, %v3270, %v3269
    %vm3272 = vcmp.lt.s32.totalorder %v294, 0
    %v3273 = vsub.s32 0, %v294
    %v3274 = vsel %vm3272, %v3273, %v294
    %v3275 = vand.u32 %v3274, 65535
    %v3276 = vshrl.u32 %v3274, 16
    %v3278 = vmul.u32 %v3275, 3496
    %v3279 = vmul.u32 %v3275, 55924
    %v3280 = vmul.u32 %v3276, 3496
    %v3281 = vmul.u32 %v3276, 55924
    %v3282 = vshll.u32 %v3279, 16
    %v3283 = vshrl.u32 %v3279, 16
    %v3284 = vshll.u32 %v3280, 16
    %v3285 = vshrl.u32 %v3280, 16
    %vm3286 = vc.u32 %v3278, %v3282
    %v3287 = vsel %vm3286, 1, 0
    %v3288 = vadd.s32 %v3278, %v3282
    %v3289 = vadd.s32 %v3281, %v3287
    %vm3290 = vc.u32 %v3288, %v3284
    %v3291 = vsel %vm3290, 1, 0
    %v3292 = vadd.s32 %v3288, %v3284
    %v3293 = vadd.s32 %v3289, %v3291
    %v3294 = vadd.s32 %v3293, %v3283
    %v3295 = vadd.s32 %v3294, %v3285
    %v3296 = vshrl.u32 %v3295, 7
    %v3297 = vmul.u32 %v3296, 150
    %v3298 = vsub.s32 %v3274, %v3297
    %v3299 = vsub.s32 0, %v3298
    %v3300 = vsel %vm3272, %v3299, %v3298
    %vm3301 = vcmp.lt.s32.totalorder %v295, 0
    %v3302 = vsub.s32 0, %v295
    %v3303 = vsel %vm3301, %v3302, %v295
    %v3304 = vand.u32 %v3303, 65535
    %v3305 = vshrl.u32 %v3303, 16
    %v3307 = vmul.u32 %v3304, 3496
    %v3308 = vmul.u32 %v3304, 55924
    %v3309 = vmul.u32 %v3305, 3496
    %v3310 = vmul.u32 %v3305, 55924
    %v3311 = vshll.u32 %v3308, 16
    %v3312 = vshrl.u32 %v3308, 16
    %v3313 = vshll.u32 %v3309, 16
    %v3314 = vshrl.u32 %v3309, 16
    %vm3315 = vc.u32 %v3307, %v3311
    %v3316 = vsel %vm3315, 1, 0
    %v3317 = vadd.s32 %v3307, %v3311
    %v3318 = vadd.s32 %v3310, %v3316
    %vm3319 = vc.u32 %v3317, %v3313
    %v3320 = vsel %vm3319, 1, 0
    %v3321 = vadd.s32 %v3317, %v3313
    %v3322 = vadd.s32 %v3318, %v3320
    %v3323 = vadd.s32 %v3322, %v3312
    %v3324 = vadd.s32 %v3323, %v3314
    %v3325 = vshrl.u32 %v3324, 7
    %v3326 = vmul.u32 %v3325, 150
    %v3327 = vsub.s32 %v3303, %v3326
    %v3328 = vsub.s32 0, %v3327
    %v3329 = vsel %vm3301, %v3328, %v3327
    %vm3330 = vcmp.lt.s32.totalorder %v296, 0
    %v3331 = vsub.s32 0, %v296
    %v3332 = vsel %vm3330, %v3331, %v296
    %v3333 = vand.u32 %v3332, 65535
    %v3334 = vshrl.u32 %v3332, 16
    %v3336 = vmul.u32 %v3333, 3496
    %v3337 = vmul.u32 %v3333, 55924
    %v3338 = vmul.u32 %v3334, 3496
    %v3339 = vmul.u32 %v3334, 55924
    %v3340 = vshll.u32 %v3337, 16
    %v3341 = vshrl.u32 %v3337, 16
    %v3342 = vshll.u32 %v3338, 16
    %v3343 = vshrl.u32 %v3338, 16
    %vm3344 = vc.u32 %v3336, %v3340
    %v3345 = vsel %vm3344, 1, 0
    %v3346 = vadd.s32 %v3336, %v3340
    %v3347 = vadd.s32 %v3339, %v3345
    %vm3348 = vc.u32 %v3346, %v3342
    %v3349 = vsel %vm3348, 1, 0
    %v3350 = vadd.s32 %v3346, %v3342
    %v3351 = vadd.s32 %v3347, %v3349
    %v3352 = vadd.s32 %v3351, %v3341
    %v3353 = vadd.s32 %v3352, %v3343
    %v3354 = vshrl.u32 %v3353, 7
    %v3355 = vmul.u32 %v3354, 150
    %v3356 = vsub.s32 %v3332, %v3355
    %v3357 = vsub.s32 0, %v3356
    %v3358 = vsel %vm3330, %v3357, %v3356
    %vm3359 = vcmp.lt.s32.totalorder %v297, 0
    %v3360 = vsub.s32 0, %v297
    %v3361 = vsel %vm3359, %v3360, %v297
    %v3362 = vand.u32 %v3361, 65535
    %v3363 = vshrl.u32 %v3361, 16
    %v3365 = vmul.u32 %v3362, 3496
    %v3366 = vmul.u32 %v3362, 55924
    %v3367 = vmul.u32 %v3363, 3496
    %v3368 = vmul.u32 %v3363, 55924
    %v3369 = vshll.u32 %v3366, 16
    %v3370 = vshrl.u32 %v3366, 16
    %v3371 = vshll.u32 %v3367, 16
    %v3372 = vshrl.u32 %v3367, 16
    %vm3373 = vc.u32 %v3365, %v3369
    %v3374 = vsel %vm3373, 1, 0
    %v3375 = vadd.s32 %v3365, %v3369
    %v3376 = vadd.s32 %v3368, %v3374
    %vm3377 = vc.u32 %v3375, %v3371
    %v3378 = vsel %vm3377, 1, 0
    %v3379 = vadd.s32 %v3375, %v3371
    %v3380 = vadd.s32 %v3376, %v3378
    %v3381 = vadd.s32 %v3380, %v3370
    %v3382 = vadd.s32 %v3381, %v3372
    %v3383 = vshrl.u32 %v3382, 7
    %v3384 = vmul.u32 %v3383, 150
    %v3385 = vsub.s32 %v3361, %v3384
    %v3386 = vsub.s32 0, %v3385
    %v3387 = vsel %vm3359, %v3386, %v3385
    %vm3388 = vcmp.lt.s32.totalorder %v298, 0
    %v3389 = vsub.s32 0, %v298
    %v3390 = vsel %vm3388, %v3389, %v298
    %v3391 = vand.u32 %v3390, 65535
    %v3392 = vshrl.u32 %v3390, 16
    %v3394 = vmul.u32 %v3391, 3496
    %v3395 = vmul.u32 %v3391, 55924
    %v3396 = vmul.u32 %v3392, 3496
    %v3397 = vmul.u32 %v3392, 55924
    %v3398 = vshll.u32 %v3395, 16
    %v3399 = vshrl.u32 %v3395, 16
    %v3400 = vshll.u32 %v3396, 16
    %v3401 = vshrl.u32 %v3396, 16
    %vm3402 = vc.u32 %v3394, %v3398
    %v3403 = vsel %vm3402, 1, 0
    %v3404 = vadd.s32 %v3394, %v3398
    %v3405 = vadd.s32 %v3397, %v3403
    %vm3406 = vc.u32 %v3404, %v3400
    %v3407 = vsel %vm3406, 1, 0
    %v3408 = vadd.s32 %v3404, %v3400
    %v3409 = vadd.s32 %v3405, %v3407
    %v3410 = vadd.s32 %v3409, %v3399
    %v3411 = vadd.s32 %v3410, %v3401
    %v3412 = vshrl.u32 %v3411, 7
    %v3413 = vmul.u32 %v3412, 150
    %v3414 = vsub.s32 %v3390, %v3413
    %v3415 = vsub.s32 0, %v3414
    %v3416 = vsel %vm3388, %v3415, %v3414
    %vm3417 = vcmp.lt.s32.totalorder %v299, 0
    %v3418 = vsub.s32 0, %v299
    %v3419 = vsel %vm3417, %v3418, %v299
    %v3420 = vand.u32 %v3419, 65535
    %v3421 = vshrl.u32 %v3419, 16
    %v3423 = vmul.u32 %v3420, 3496
    %v3424 = vmul.u32 %v3420, 55924
    %v3425 = vmul.u32 %v3421, 3496
    %v3426 = vmul.u32 %v3421, 55924
    %v3427 = vshll.u32 %v3424, 16
    %v3428 = vshrl.u32 %v3424, 16
    %v3429 = vshll.u32 %v3425, 16
    %v3430 = vshrl.u32 %v3425, 16
    %vm3431 = vc.u32 %v3423, %v3427
    %v3432 = vsel %vm3431, 1, 0
    %v3433 = vadd.s32 %v3423, %v3427
    %v3434 = vadd.s32 %v3426, %v3432
    %vm3435 = vc.u32 %v3433, %v3429
    %v3436 = vsel %vm3435, 1, 0
    %v3437 = vadd.s32 %v3433, %v3429
    %v3438 = vadd.s32 %v3434, %v3436
    %v3439 = vadd.s32 %v3438, %v3428
    %v3440 = vadd.s32 %v3439, %v3430
    %v3441 = vshrl.u32 %v3440, 7
    %v3442 = vmul.u32 %v3441, 150
    %v3443 = vsub.s32 %v3419, %v3442
    %v3444 = vsub.s32 0, %v3443
    %v3445 = vsel %vm3417, %v3444, %v3443
    %vm3446 = vcmp.lt.s32.totalorder %v300, 0
    %v3447 = vsub.s32 0, %v300
    %v3448 = vsel %vm3446, %v3447, %v300
    %v3449 = vand.u32 %v3448, 65535
    %v3450 = vshrl.u32 %v3448, 16
    %v3452 = vmul.u32 %v3449, 3496
    %v3453 = vmul.u32 %v3449, 55924
    %v3454 = vmul.u32 %v3450, 3496
    %v3455 = vmul.u32 %v3450, 55924
    %v3456 = vshll.u32 %v3453, 16
    %v3457 = vshrl.u32 %v3453, 16
    %v3458 = vshll.u32 %v3454, 16
    %v3459 = vshrl.u32 %v3454, 16
    %vm3460 = vc.u32 %v3452, %v3456
    %v3461 = vsel %vm3460, 1, 0
    %v3462 = vadd.s32 %v3452, %v3456
    %v3463 = vadd.s32 %v3455, %v3461
    %vm3464 = vc.u32 %v3462, %v3458
    %v3465 = vsel %vm3464, 1, 0
    %v3466 = vadd.s32 %v3462, %v3458
    %v3467 = vadd.s32 %v3463, %v3465
    %v3468 = vadd.s32 %v3467, %v3457
    %v3469 = vadd.s32 %v3468, %v3459
    %v3470 = vshrl.u32 %v3469, 7
    %v3471 = vmul.u32 %v3470, 150
    %v3472 = vsub.s32 %v3448, %v3471
    %v3473 = vsub.s32 0, %v3472
    %v3474 = vsel %vm3446, %v3473, %v3472
    %vm3475 = vcmp.lt.s32.totalorder %v301, 0
    %v3476 = vsub.s32 0, %v301
    %v3477 = vsel %vm3475, %v3476, %v301
    %v3478 = vand.u32 %v3477, 65535
    %v3479 = vshrl.u32 %v3477, 16
    %v3481 = vmul.u32 %v3478, 3496
    %v3482 = vmul.u32 %v3478, 55924
    %v3483 = vmul.u32 %v3479, 3496
    %v3484 = vmul.u32 %v3479, 55924
    %v3485 = vshll.u32 %v3482, 16
    %v3486 = vshrl.u32 %v3482, 16
    %v3487 = vshll.u32 %v3483, 16
    %v3488 = vshrl.u32 %v3483, 16
    %vm3489 = vc.u32 %v3481, %v3485
    %v3490 = vsel %vm3489, 1, 0
    %v3491 = vadd.s32 %v3481, %v3485
    %v3492 = vadd.s32 %v3484, %v3490
    %vm3493 = vc.u32 %v3491, %v3487
    %v3494 = vsel %vm3493, 1, 0
    %v3495 = vadd.s32 %v3491, %v3487
    %v3496 = vadd.s32 %v3492, %v3494
    %v3497 = vadd.s32 %v3496, %v3486
    %v3498 = vadd.s32 %v3497, %v3488
    %v3499 = vshrl.u32 %v3498, 7
    %v3500 = vmul.u32 %v3499, 150
    %v3501 = vsub.s32 %v3477, %v3500
    %v3502 = vsub.s32 0, %v3501
    %v3503 = vsel %vm3475, %v3502, %v3501
    %vm3504 = vcmp.lt.s32.totalorder %v302, 0
    %v3505 = vsub.s32 0, %v302
    %v3506 = vsel %vm3504, %v3505, %v302
    %v3507 = vand.u32 %v3506, 65535
    %v3508 = vshrl.u32 %v3506, 16
    %v3510 = vmul.u32 %v3507, 3496
    %v3511 = vmul.u32 %v3507, 55924
    %v3512 = vmul.u32 %v3508, 3496
    %v3513 = vmul.u32 %v3508, 55924
    %v3514 = vshll.u32 %v3511, 16
    %v3515 = vshrl.u32 %v3511, 16
    %v3516 = vshll.u32 %v3512, 16
    %v3517 = vshrl.u32 %v3512, 16
    %vm3518 = vc.u32 %v3510, %v3514
    %v3519 = vsel %vm3518, 1, 0
    %v3520 = vadd.s32 %v3510, %v3514
    %v3521 = vadd.s32 %v3513, %v3519
    %vm3522 = vc.u32 %v3520, %v3516
    %v3523 = vsel %vm3522, 1, 0
    %v3524 = vadd.s32 %v3520, %v3516
    %v3525 = vadd.s32 %v3521, %v3523
    %v3526 = vadd.s32 %v3525, %v3515
    %v3527 = vadd.s32 %v3526, %v3517
    %v3528 = vshrl.u32 %v3527, 7
    %v3529 = vmul.u32 %v3528, 150
    %v3530 = vsub.s32 %v3506, %v3529
    %v3531 = vsub.s32 0, %v3530
    %v3532 = vsel %vm3504, %v3531, %v3530
    %vm3533 = vcmp.lt.s32.totalorder %v303, 0
    %v3534 = vsub.s32 0, %v303
    %v3535 = vsel %vm3533, %v3534, %v303
    %v3536 = vand.u32 %v3535, 65535
    %v3537 = vshrl.u32 %v3535, 16
    %v3539 = vmul.u32 %v3536, 3496
    %v3540 = vmul.u32 %v3536, 55924
    %v3541 = vmul.u32 %v3537, 3496
    %v3542 = vmul.u32 %v3537, 55924
    %v3543 = vshll.u32 %v3540, 16
    %v3544 = vshrl.u32 %v3540, 16
    %v3545 = vshll.u32 %v3541, 16
    %v3546 = vshrl.u32 %v3541, 16
    %vm3547 = vc.u32 %v3539, %v3543
    %v3548 = vsel %vm3547, 1, 0
    %v3549 = vadd.s32 %v3539, %v3543
    %v3550 = vadd.s32 %v3542, %v3548
    %vm3551 = vc.u32 %v3549, %v3545
    %v3552 = vsel %vm3551, 1, 0
    %v3553 = vadd.s32 %v3549, %v3545
    %v3554 = vadd.s32 %v3550, %v3552
    %v3555 = vadd.s32 %v3554, %v3544
    %v3556 = vadd.s32 %v3555, %v3546
    %v3557 = vshrl.u32 %v3556, 7
    %v3558 = vmul.u32 %v3557, 150
    %v3559 = vsub.s32 %v3535, %v3558
    %v3560 = vsub.s32 0, %v3559
    %v3561 = vsel %vm3533, %v3560, %v3559
    %vm3562 = vcmp.lt.s32.totalorder %v304, 0
    %v3563 = vsub.s32 0, %v304
    %v3564 = vsel %vm3562, %v3563, %v304
    %v3565 = vand.u32 %v3564, 65535
    %v3566 = vshrl.u32 %v3564, 16
    %v3568 = vmul.u32 %v3565, 3496
    %v3569 = vmul.u32 %v3565, 55924
    %v3570 = vmul.u32 %v3566, 3496
    %v3571 = vmul.u32 %v3566, 55924
    %v3572 = vshll.u32 %v3569, 16
    %v3573 = vshrl.u32 %v3569, 16
    %v3574 = vshll.u32 %v3570, 16
    %v3575 = vshrl.u32 %v3570, 16
    %vm3576 = vc.u32 %v3568, %v3572
    %v3577 = vsel %vm3576, 1, 0
    %v3578 = vadd.s32 %v3568, %v3572
    %v3579 = vadd.s32 %v3571, %v3577
    %vm3580 = vc.u32 %v3578, %v3574
    %v3581 = vsel %vm3580, 1, 0
    %v3582 = vadd.s32 %v3578, %v3574
    %v3583 = vadd.s32 %v3579, %v3581
    %v3584 = vadd.s32 %v3583, %v3573
    %v3585 = vadd.s32 %v3584, %v3575
    %v3586 = vshrl.u32 %v3585, 7
    %v3587 = vmul.u32 %v3586, 150
    %v3588 = vsub.s32 %v3564, %v3587
    %v3589 = vsub.s32 0, %v3588
    %v3590 = vsel %vm3562, %v3589, %v3588
    %vm3591 = vcmp.lt.s32.totalorder %v305, 0
    %v3592 = vsub.s32 0, %v305
    %v3593 = vsel %vm3591, %v3592, %v305
    %v3594 = vand.u32 %v3593, 65535
    %v3595 = vshrl.u32 %v3593, 16
    %v3597 = vmul.u32 %v3594, 3496
    %v3598 = vmul.u32 %v3594, 55924
    %v3599 = vmul.u32 %v3595, 3496
    %v3600 = vmul.u32 %v3595, 55924
    %v3601 = vshll.u32 %v3598, 16
    %v3602 = vshrl.u32 %v3598, 16
    %v3603 = vshll.u32 %v3599, 16
    %v3604 = vshrl.u32 %v3599, 16
    %vm3605 = vc.u32 %v3597, %v3601
    %v3606 = vsel %vm3605, 1, 0
    %v3607 = vadd.s32 %v3597, %v3601
    %v3608 = vadd.s32 %v3600, %v3606
    %vm3609 = vc.u32 %v3607, %v3603
    %v3610 = vsel %vm3609, 1, 0
    %v3611 = vadd.s32 %v3607, %v3603
    %v3612 = vadd.s32 %v3608, %v3610
    %v3613 = vadd.s32 %v3612, %v3602
    %v3614 = vadd.s32 %v3613, %v3604
    %v3615 = vshrl.u32 %v3614, 7
    %v3616 = vmul.u32 %v3615, 150
    %v3617 = vsub.s32 %v3593, %v3616
    %v3618 = vsub.s32 0, %v3617
    %v3619 = vsel %vm3591, %v3618, %v3617
    %vm3620 = vcmp.lt.s32.totalorder %v306, 0
    %v3621 = vsub.s32 0, %v306
    %v3622 = vsel %vm3620, %v3621, %v306
    %v3623 = vand.u32 %v3622, 65535
    %v3624 = vshrl.u32 %v3622, 16
    %v3626 = vmul.u32 %v3623, 3496
    %v3627 = vmul.u32 %v3623, 55924
    %v3628 = vmul.u32 %v3624, 3496
    %v3629 = vmul.u32 %v3624, 55924
    %v3630 = vshll.u32 %v3627, 16
    %v3631 = vshrl.u32 %v3627, 16
    %v3632 = vshll.u32 %v3628, 16
    %v3633 = vshrl.u32 %v3628, 16
    %vm3634 = vc.u32 %v3626, %v3630
    %v3635 = vsel %vm3634, 1, 0
    %v3636 = vadd.s32 %v3626, %v3630
    %v3637 = vadd.s32 %v3629, %v3635
    %vm3638 = vc.u32 %v3636, %v3632
    %v3639 = vsel %vm3638, 1, 0
    %v3640 = vadd.s32 %v3636, %v3632
    %v3641 = vadd.s32 %v3637, %v3639
    %v3642 = vadd.s32 %v3641, %v3631
    %v3643 = vadd.s32 %v3642, %v3633
    %v3644 = vshrl.u32 %v3643, 7
    %v3645 = vmul.u32 %v3644, 150
    %v3646 = vsub.s32 %v3622, %v3645
    %v3647 = vsub.s32 0, %v3646
    %v3648 = vsel %vm3620, %v3647, %v3646
    %vm3649 = vcmp.lt.s32.totalorder %v307, 0
    %v3650 = vsub.s32 0, %v307
    %v3651 = vsel %vm3649, %v3650, %v307
    %v3652 = vand.u32 %v3651, 65535
    %v3653 = vshrl.u32 %v3651, 16
    %v3655 = vmul.u32 %v3652, 3496
    %v3656 = vmul.u32 %v3652, 55924
    %v3657 = vmul.u32 %v3653, 3496
    %v3658 = vmul.u32 %v3653, 55924
    %v3659 = vshll.u32 %v3656, 16
    %v3660 = vshrl.u32 %v3656, 16
    %v3661 = vshll.u32 %v3657, 16
    %v3662 = vshrl.u32 %v3657, 16
    %vm3663 = vc.u32 %v3655, %v3659
    %v3664 = vsel %vm3663, 1, 0
    %v3665 = vadd.s32 %v3655, %v3659
    %v3666 = vadd.s32 %v3658, %v3664
    %vm3667 = vc.u32 %v3665, %v3661
    %v3668 = vsel %vm3667, 1, 0
    %v3669 = vadd.s32 %v3665, %v3661
    %v3670 = vadd.s32 %v3666, %v3668
    %v3671 = vadd.s32 %v3670, %v3660
    %v3672 = vadd.s32 %v3671, %v3662
    %v3673 = vshrl.u32 %v3672, 7
    %v3674 = vmul.u32 %v3673, 150
    %v3675 = vsub.s32 %v3651, %v3674
    %v3676 = vsub.s32 0, %v3675
    %v3677 = vsel %vm3649, %v3676, %v3675
    %vm3678 = vcmp.lt.s32.totalorder %v308, 0
    %v3679 = vsub.s32 0, %v308
    %v3680 = vsel %vm3678, %v3679, %v308
    %v3681 = vand.u32 %v3680, 65535
    %v3682 = vshrl.u32 %v3680, 16
    %v3684 = vmul.u32 %v3681, 3496
    %v3685 = vmul.u32 %v3681, 55924
    %v3686 = vmul.u32 %v3682, 3496
    %v3687 = vmul.u32 %v3682, 55924
    %v3688 = vshll.u32 %v3685, 16
    %v3689 = vshrl.u32 %v3685, 16
    %v3690 = vshll.u32 %v3686, 16
    %v3691 = vshrl.u32 %v3686, 16
    %vm3692 = vc.u32 %v3684, %v3688
    %v3693 = vsel %vm3692, 1, 0
    %v3694 = vadd.s32 %v3684, %v3688
    %v3695 = vadd.s32 %v3687, %v3693
    %vm3696 = vc.u32 %v3694, %v3690
    %v3697 = vsel %vm3696, 1, 0
    %v3698 = vadd.s32 %v3694, %v3690
    %v3699 = vadd.s32 %v3695, %v3697
    %v3700 = vadd.s32 %v3699, %v3689
    %v3701 = vadd.s32 %v3700, %v3691
    %v3702 = vshrl.u32 %v3701, 7
    %v3703 = vmul.u32 %v3702, 150
    %v3704 = vsub.s32 %v3680, %v3703
    %v3705 = vsub.s32 0, %v3704
    %v3706 = vsel %vm3678, %v3705, %v3704
    %vm3707 = vcmp.lt.s32.totalorder %v309, 0
    %v3708 = vsub.s32 0, %v309
    %v3709 = vsel %vm3707, %v3708, %v309
    %v3710 = vand.u32 %v3709, 65535
    %v3711 = vshrl.u32 %v3709, 16
    %v3713 = vmul.u32 %v3710, 3496
    %v3714 = vmul.u32 %v3710, 55924
    %v3715 = vmul.u32 %v3711, 3496
    %v3716 = vmul.u32 %v3711, 55924
    %v3717 = vshll.u32 %v3714, 16
    %v3718 = vshrl.u32 %v3714, 16
    %v3719 = vshll.u32 %v3715, 16
    %v3720 = vshrl.u32 %v3715, 16
    %vm3721 = vc.u32 %v3713, %v3717
    %v3722 = vsel %vm3721, 1, 0
    %v3723 = vadd.s32 %v3713, %v3717
    %v3724 = vadd.s32 %v3716, %v3722
    %vm3725 = vc.u32 %v3723, %v3719
    %v3726 = vsel %vm3725, 1, 0
    %v3727 = vadd.s32 %v3723, %v3719
    %v3728 = vadd.s32 %v3724, %v3726
    %v3729 = vadd.s32 %v3728, %v3718
    %v3730 = vadd.s32 %v3729, %v3720
    %v3731 = vshrl.u32 %v3730, 7
    %v3732 = vmul.u32 %v3731, 150
    %v3733 = vsub.s32 %v3709, %v3732
    %v3734 = vsub.s32 0, %v3733
    %v3735 = vsel %vm3707, %v3734, %v3733
    %vm3736 = vcmp.lt.s32.totalorder %v310, 0
    %v3737 = vsub.s32 0, %v310
    %v3738 = vsel %vm3736, %v3737, %v310
    %v3739 = vand.u32 %v3738, 65535
    %v3740 = vshrl.u32 %v3738, 16
    %v3742 = vmul.u32 %v3739, 3496
    %v3743 = vmul.u32 %v3739, 55924
    %v3744 = vmul.u32 %v3740, 3496
    %v3745 = vmul.u32 %v3740, 55924
    %v3746 = vshll.u32 %v3743, 16
    %v3747 = vshrl.u32 %v3743, 16
    %v3748 = vshll.u32 %v3744, 16
    %v3749 = vshrl.u32 %v3744, 16
    %vm3750 = vc.u32 %v3742, %v3746
    %v3751 = vsel %vm3750, 1, 0
    %v3752 = vadd.s32 %v3742, %v3746
    %v3753 = vadd.s32 %v3745, %v3751
    %vm3754 = vc.u32 %v3752, %v3748
    %v3755 = vsel %vm3754, 1, 0
    %v3756 = vadd.s32 %v3752, %v3748
    %v3757 = vadd.s32 %v3753, %v3755
    %v3758 = vadd.s32 %v3757, %v3747
    %v3759 = vadd.s32 %v3758, %v3749
    %v3760 = vshrl.u32 %v3759, 7
    %v3761 = vmul.u32 %v3760, 150
    %v3762 = vsub.s32 %v3738, %v3761
    %v3763 = vsub.s32 0, %v3762
    %v3764 = vsel %vm3736, %v3763, %v3762
    %vm3765 = vcmp.lt.s32.totalorder %v311, 0
    %v3766 = vsub.s32 0, %v311
    %v3767 = vsel %vm3765, %v3766, %v311
    %v3768 = vand.u32 %v3767, 65535
    %v3769 = vshrl.u32 %v3767, 16
    %v3771 = vmul.u32 %v3768, 3496
    %v3772 = vmul.u32 %v3768, 55924
    %v3773 = vmul.u32 %v3769, 3496
    %v3774 = vmul.u32 %v3769, 55924
    %v3775 = vshll.u32 %v3772, 16
    %v3776 = vshrl.u32 %v3772, 16
    %v3777 = vshll.u32 %v3773, 16
    %v3778 = vshrl.u32 %v3773, 16
    %vm3779 = vc.u32 %v3771, %v3775
    %v3780 = vsel %vm3779, 1, 0
    %v3781 = vadd.s32 %v3771, %v3775
    %v3782 = vadd.s32 %v3774, %v3780
    %vm3783 = vc.u32 %v3781, %v3777
    %v3784 = vsel %vm3783, 1, 0
    %v3785 = vadd.s32 %v3781, %v3777
    %v3786 = vadd.s32 %v3782, %v3784
    %v3787 = vadd.s32 %v3786, %v3776
    %v3788 = vadd.s32 %v3787, %v3778
    %v3789 = vshrl.u32 %v3788, 7
    %v3790 = vmul.u32 %v3789, 150
    %v3791 = vsub.s32 %v3767, %v3790
    %v3792 = vsub.s32 0, %v3791
    %v3793 = vsel %vm3765, %v3792, %v3791
    %vm3794 = vcmp.lt.s32.totalorder %v312, 0
    %v3795 = vsub.s32 0, %v312
    %v3796 = vsel %vm3794, %v3795, %v312
    %v3797 = vand.u32 %v3796, 65535
    %v3798 = vshrl.u32 %v3796, 16
    %v3800 = vmul.u32 %v3797, 3496
    %v3801 = vmul.u32 %v3797, 55924
    %v3802 = vmul.u32 %v3798, 3496
    %v3803 = vmul.u32 %v3798, 55924
    %v3804 = vshll.u32 %v3801, 16
    %v3805 = vshrl.u32 %v3801, 16
    %v3806 = vshll.u32 %v3802, 16
    %v3807 = vshrl.u32 %v3802, 16
    %vm3808 = vc.u32 %v3800, %v3804
    %v3809 = vsel %vm3808, 1, 0
    %v3810 = vadd.s32 %v3800, %v3804
    %v3811 = vadd.s32 %v3803, %v3809
    %vm3812 = vc.u32 %v3810, %v3806
    %v3813 = vsel %vm3812, 1, 0
    %v3814 = vadd.s32 %v3810, %v3806
    %v3815 = vadd.s32 %v3811, %v3813
    %v3816 = vadd.s32 %v3815, %v3805
    %v3817 = vadd.s32 %v3816, %v3807
    %v3818 = vshrl.u32 %v3817, 7
    %v3819 = vmul.u32 %v3818, 150
    %v3820 = vsub.s32 %v3796, %v3819
    %v3821 = vsub.s32 0, %v3820
    %v3822 = vsel %vm3794, %v3821, %v3820
    %vm3823 = vcmp.lt.s32.totalorder %v313, 0
    %v3824 = vsub.s32 0, %v313
    %v3825 = vsel %vm3823, %v3824, %v313
    %v3826 = vand.u32 %v3825, 65535
    %v3827 = vshrl.u32 %v3825, 16
    %v3829 = vmul.u32 %v3826, 3496
    %v3830 = vmul.u32 %v3826, 55924
    %v3831 = vmul.u32 %v3827, 3496
    %v3832 = vmul.u32 %v3827, 55924
    %v3833 = vshll.u32 %v3830, 16
    %v3834 = vshrl.u32 %v3830, 16
    %v3835 = vshll.u32 %v3831, 16
    %v3836 = vshrl.u32 %v3831, 16
    %vm3837 = vc.u32 %v3829, %v3833
    %v3838 = vsel %vm3837, 1, 0
    %v3839 = vadd.s32 %v3829, %v3833
    %v3840 = vadd.s32 %v3832, %v3838
    %vm3841 = vc.u32 %v3839, %v3835
    %v3842 = vsel %vm3841, 1, 0
    %v3843 = vadd.s32 %v3839, %v3835
    %v3844 = vadd.s32 %v3840, %v3842
    %v3845 = vadd.s32 %v3844, %v3834
    %v3846 = vadd.s32 %v3845, %v3836
    %v3847 = vshrl.u32 %v3846, 7
    %v3848 = vmul.u32 %v3847, 150
    %v3849 = vsub.s32 %v3825, %v3848
    %v3850 = vsub.s32 0, %v3849
    %v3851 = vsel %vm3823, %v3850, %v3849
    %vm3852 = vcmp.lt.s32.totalorder %v314, 0
    %v3853 = vsub.s32 0, %v314
    %v3854 = vsel %vm3852, %v3853, %v314
    %v3855 = vand.u32 %v3854, 65535
    %v3856 = vshrl.u32 %v3854, 16
    %v3858 = vmul.u32 %v3855, 3496
    %v3859 = vmul.u32 %v3855, 55924
    %v3860 = vmul.u32 %v3856, 3496
    %v3861 = vmul.u32 %v3856, 55924
    %v3862 = vshll.u32 %v3859, 16
    %v3863 = vshrl.u32 %v3859, 16
    %v3864 = vshll.u32 %v3860, 16
    %v3865 = vshrl.u32 %v3860, 16
    %vm3866 = vc.u32 %v3858, %v3862
    %v3867 = vsel %vm3866, 1, 0
    %v3868 = vadd.s32 %v3858, %v3862
    %v3869 = vadd.s32 %v3861, %v3867
    %vm3870 = vc.u32 %v3868, %v3864
    %v3871 = vsel %vm3870, 1, 0
    %v3872 = vadd.s32 %v3868, %v3864
    %v3873 = vadd.s32 %v3869, %v3871
    %v3874 = vadd.s32 %v3873, %v3863
    %v3875 = vadd.s32 %v3874, %v3865
    %v3876 = vshrl.u32 %v3875, 7
    %v3877 = vmul.u32 %v3876, 150
    %v3878 = vsub.s32 %v3854, %v3877
    %v3879 = vsub.s32 0, %v3878
    %v3880 = vsel %vm3852, %v3879, %v3878
    %vm3881 = vcmp.lt.s32.totalorder %v315, 0
    %v3882 = vsub.s32 0, %v315
    %v3883 = vsel %vm3881, %v3882, %v315
    %v3884 = vand.u32 %v3883, 65535
    %v3885 = vshrl.u32 %v3883, 16
    %v3887 = vmul.u32 %v3884, 3496
    %v3888 = vmul.u32 %v3884, 55924
    %v3889 = vmul.u32 %v3885, 3496
    %v3890 = vmul.u32 %v3885, 55924
    %v3891 = vshll.u32 %v3888, 16
    %v3892 = vshrl.u32 %v3888, 16
    %v3893 = vshll.u32 %v3889, 16
    %v3894 = vshrl.u32 %v3889, 16
    %vm3895 = vc.u32 %v3887, %v3891
    %v3896 = vsel %vm3895, 1, 0
    %v3897 = vadd.s32 %v3887, %v3891
    %v3898 = vadd.s32 %v3890, %v3896
    %vm3899 = vc.u32 %v3897, %v3893
    %v3900 = vsel %vm3899, 1, 0
    %v3901 = vadd.s32 %v3897, %v3893
    %v3902 = vadd.s32 %v3898, %v3900
    %v3903 = vadd.s32 %v3902, %v3892
    %v3904 = vadd.s32 %v3903, %v3894
    %v3905 = vshrl.u32 %v3904, 7
    %v3906 = vmul.u32 %v3905, 150
    %v3907 = vsub.s32 %v3883, %v3906
    %v3908 = vsub.s32 0, %v3907
    %v3909 = vsel %vm3881, %v3908, %v3907
    %vm3910 = vcmp.lt.s32.totalorder %v316, 0
    %v3911 = vsub.s32 0, %v316
    %v3912 = vsel %vm3910, %v3911, %v316
    %v3913 = vand.u32 %v3912, 65535
    %v3914 = vshrl.u32 %v3912, 16
    %v3916 = vmul.u32 %v3913, 3496
    %v3917 = vmul.u32 %v3913, 55924
    %v3918 = vmul.u32 %v3914, 3496
    %v3919 = vmul.u32 %v3914, 55924
    %v3920 = vshll.u32 %v3917, 16
    %v3921 = vshrl.u32 %v3917, 16
    %v3922 = vshll.u32 %v3918, 16
    %v3923 = vshrl.u32 %v3918, 16
    %vm3924 = vc.u32 %v3916, %v3920
    %v3925 = vsel %vm3924, 1, 0
    %v3926 = vadd.s32 %v3916, %v3920
    %v3927 = vadd.s32 %v3919, %v3925
    %vm3928 = vc.u32 %v3926, %v3922
    %v3929 = vsel %vm3928, 1, 0
    %v3930 = vadd.s32 %v3926, %v3922
    %v3931 = vadd.s32 %v3927, %v3929
    %v3932 = vadd.s32 %v3931, %v3921
    %v3933 = vadd.s32 %v3932, %v3923
    %v3934 = vshrl.u32 %v3933, 7
    %v3935 = vmul.u32 %v3934, 150
    %v3936 = vsub.s32 %v3912, %v3935
    %v3937 = vsub.s32 0, %v3936
    %v3938 = vsel %vm3910, %v3937, %v3936
    %vm3939 = vcmp.lt.s32.totalorder %v317, 0
    %v3940 = vsub.s32 0, %v317
    %v3941 = vsel %vm3939, %v3940, %v317
    %v3942 = vand.u32 %v3941, 65535
    %v3943 = vshrl.u32 %v3941, 16
    %v3945 = vmul.u32 %v3942, 3496
    %v3946 = vmul.u32 %v3942, 55924
    %v3947 = vmul.u32 %v3943, 3496
    %v3948 = vmul.u32 %v3943, 55924
    %v3949 = vshll.u32 %v3946, 16
    %v3950 = vshrl.u32 %v3946, 16
    %v3951 = vshll.u32 %v3947, 16
    %v3952 = vshrl.u32 %v3947, 16
    %vm3953 = vc.u32 %v3945, %v3949
    %v3954 = vsel %vm3953, 1, 0
    %v3955 = vadd.s32 %v3945, %v3949
    %v3956 = vadd.s32 %v3948, %v3954
    %vm3957 = vc.u32 %v3955, %v3951
    %v3958 = vsel %vm3957, 1, 0
    %v3959 = vadd.s32 %v3955, %v3951
    %v3960 = vadd.s32 %v3956, %v3958
    %v3961 = vadd.s32 %v3960, %v3950
    %v3962 = vadd.s32 %v3961, %v3952
    %v3963 = vshrl.u32 %v3962, 7
    %v3964 = vmul.u32 %v3963, 150
    %v3965 = vsub.s32 %v3941, %v3964
    %v3966 = vsub.s32 0, %v3965
    %v3967 = vsel %vm3939, %v3966, %v3965
    %vm3968 = vcmp.lt.s32.totalorder %v318, 0
    %v3969 = vsub.s32 0, %v318
    %v3970 = vsel %vm3968, %v3969, %v318
    %v3971 = vand.u32 %v3970, 65535
    %v3972 = vshrl.u32 %v3970, 16
    %v3974 = vmul.u32 %v3971, 3496
    %v3975 = vmul.u32 %v3971, 55924
    %v3976 = vmul.u32 %v3972, 3496
    %v3977 = vmul.u32 %v3972, 55924
    %v3978 = vshll.u32 %v3975, 16
    %v3979 = vshrl.u32 %v3975, 16
    %v3980 = vshll.u32 %v3976, 16
    %v3981 = vshrl.u32 %v3976, 16
    %vm3982 = vc.u32 %v3974, %v3978
    %v3983 = vsel %vm3982, 1, 0
    %v3984 = vadd.s32 %v3974, %v3978
    %v3985 = vadd.s32 %v3977, %v3983
    %vm3986 = vc.u32 %v3984, %v3980
    %v3987 = vsel %vm3986, 1, 0
    %v3988 = vadd.s32 %v3984, %v3980
    %v3989 = vadd.s32 %v3985, %v3987
    %v3990 = vadd.s32 %v3989, %v3979
    %v3991 = vadd.s32 %v3990, %v3981
    %v3992 = vshrl.u32 %v3991, 7
    %v3993 = vmul.u32 %v3992, 150
    %v3994 = vsub.s32 %v3970, %v3993
    %v3995 = vsub.s32 0, %v3994
    %v3996 = vsel %vm3968, %v3995, %v3994
    %vm3997 = vcmp.lt.s32.totalorder %v319, 0
    %v3998 = vsub.s32 0, %v319
    %v3999 = vsel %vm3997, %v3998, %v319
    %v4000 = vand.u32 %v3999, 65535
    %v4001 = vshrl.u32 %v3999, 16
    %v4003 = vmul.u32 %v4000, 3496
    %v4004 = vmul.u32 %v4000, 55924
    %v4005 = vmul.u32 %v4001, 3496
    %v4006 = vmul.u32 %v4001, 55924
    %v4007 = vshll.u32 %v4004, 16
    %v4008 = vshrl.u32 %v4004, 16
    %v4009 = vshll.u32 %v4005, 16
    %v4010 = vshrl.u32 %v4005, 16
    %vm4011 = vc.u32 %v4003, %v4007
    %v4012 = vsel %vm4011, 1, 0
    %v4013 = vadd.s32 %v4003, %v4007
    %v4014 = vadd.s32 %v4006, %v4012
    %vm4015 = vc.u32 %v4013, %v4009
    %v4016 = vsel %vm4015, 1, 0
    %v4017 = vadd.s32 %v4013, %v4009
    %v4018 = vadd.s32 %v4014, %v4016
    %v4019 = vadd.s32 %v4018, %v4008
    %v4020 = vadd.s32 %v4019, %v4010
    %v4021 = vshrl.u32 %v4020, 7
    %v4022 = vmul.u32 %v4021, 150
    %v4023 = vsub.s32 %v3999, %v4022
    %v4024 = vsub.s32 0, %v4023
    %v4025 = vsel %vm3997, %v4024, %v4023
    %vm4026 = vcmp.lt.s32.totalorder %v320, 0
    %v4027 = vsub.s32 0, %v320
    %v4028 = vsel %vm4026, %v4027, %v320
    %v4029 = vand.u32 %v4028, 65535
    %v4030 = vshrl.u32 %v4028, 16
    %v4032 = vmul.u32 %v4029, 3496
    %v4033 = vmul.u32 %v4029, 55924
    %v4034 = vmul.u32 %v4030, 3496
    %v4035 = vmul.u32 %v4030, 55924
    %v4036 = vshll.u32 %v4033, 16
    %v4037 = vshrl.u32 %v4033, 16
    %v4038 = vshll.u32 %v4034, 16
    %v4039 = vshrl.u32 %v4034, 16
    %vm4040 = vc.u32 %v4032, %v4036
    %v4041 = vsel %vm4040, 1, 0
    %v4042 = vadd.s32 %v4032, %v4036
    %v4043 = vadd.s32 %v4035, %v4041
    %vm4044 = vc.u32 %v4042, %v4038
    %v4045 = vsel %vm4044, 1, 0
    %v4046 = vadd.s32 %v4042, %v4038
    %v4047 = vadd.s32 %v4043, %v4045
    %v4048 = vadd.s32 %v4047, %v4037
    %v4049 = vadd.s32 %v4048, %v4039
    %v4050 = vshrl.u32 %v4049, 7
    %v4051 = vmul.u32 %v4050, 150
    %v4052 = vsub.s32 %v4028, %v4051
    %v4053 = vsub.s32 0, %v4052
    %v4054 = vsel %vm4026, %v4053, %v4052
    %vm4055 = vcmp.lt.s32.totalorder %v321, 0
    %v4056 = vsub.s32 0, %v321
    %v4057 = vsel %vm4055, %v4056, %v321
    %v4058 = vand.u32 %v4057, 65535
    %v4059 = vshrl.u32 %v4057, 16
    %v4061 = vmul.u32 %v4058, 3496
    %v4062 = vmul.u32 %v4058, 55924
    %v4063 = vmul.u32 %v4059, 3496
    %v4064 = vmul.u32 %v4059, 55924
    %v4065 = vshll.u32 %v4062, 16
    %v4066 = vshrl.u32 %v4062, 16
    %v4067 = vshll.u32 %v4063, 16
    %v4068 = vshrl.u32 %v4063, 16
    %vm4069 = vc.u32 %v4061, %v4065
    %v4070 = vsel %vm4069, 1, 0
    %v4071 = vadd.s32 %v4061, %v4065
    %v4072 = vadd.s32 %v4064, %v4070
    %vm4073 = vc.u32 %v4071, %v4067
    %v4074 = vsel %vm4073, 1, 0
    %v4075 = vadd.s32 %v4071, %v4067
    %v4076 = vadd.s32 %v4072, %v4074
    %v4077 = vadd.s32 %v4076, %v4066
    %v4078 = vadd.s32 %v4077, %v4068
    %v4079 = vshrl.u32 %v4078, 7
    %v4080 = vmul.u32 %v4079, 150
    %v4081 = vsub.s32 %v4057, %v4080
    %v4082 = vsub.s32 0, %v4081
    %v4083 = vsel %vm4055, %v4082, %v4081
    %vm4084 = vcmp.lt.s32.totalorder %v322, 0
    %v4085 = vsub.s32 0, %v322
    %v4086 = vsel %vm4084, %v4085, %v322
    %v4087 = vand.u32 %v4086, 65535
    %v4088 = vshrl.u32 %v4086, 16
    %v4090 = vmul.u32 %v4087, 3496
    %v4091 = vmul.u32 %v4087, 55924
    %v4092 = vmul.u32 %v4088, 3496
    %v4093 = vmul.u32 %v4088, 55924
    %v4094 = vshll.u32 %v4091, 16
    %v4095 = vshrl.u32 %v4091, 16
    %v4096 = vshll.u32 %v4092, 16
    %v4097 = vshrl.u32 %v4092, 16
    %vm4098 = vc.u32 %v4090, %v4094
    %v4099 = vsel %vm4098, 1, 0
    %v4100 = vadd.s32 %v4090, %v4094
    %v4101 = vadd.s32 %v4093, %v4099
    %vm4102 = vc.u32 %v4100, %v4096
    %v4103 = vsel %vm4102, 1, 0
    %v4104 = vadd.s32 %v4100, %v4096
    %v4105 = vadd.s32 %v4101, %v4103
    %v4106 = vadd.s32 %v4105, %v4095
    %v4107 = vadd.s32 %v4106, %v4097
    %v4108 = vshrl.u32 %v4107, 7
    %v4109 = vmul.u32 %v4108, 150
    %v4110 = vsub.s32 %v4086, %v4109
    %v4111 = vsub.s32 0, %v4110
    %v4112 = vsel %vm4084, %v4111, %v4110
    %vm4113 = vcmp.lt.s32.totalorder %v323, 0
    %v4114 = vsub.s32 0, %v323
    %v4115 = vsel %vm4113, %v4114, %v323
    %v4116 = vand.u32 %v4115, 65535
    %v4117 = vshrl.u32 %v4115, 16
    %v4119 = vmul.u32 %v4116, 3496
    %v4120 = vmul.u32 %v4116, 55924
    %v4121 = vmul.u32 %v4117, 3496
    %v4122 = vmul.u32 %v4117, 55924
    %v4123 = vshll.u32 %v4120, 16
    %v4124 = vshrl.u32 %v4120, 16
    %v4125 = vshll.u32 %v4121, 16
    %v4126 = vshrl.u32 %v4121, 16
    %vm4127 = vc.u32 %v4119, %v4123
    %v4128 = vsel %vm4127, 1, 0
    %v4129 = vadd.s32 %v4119, %v4123
    %v4130 = vadd.s32 %v4122, %v4128
    %vm4131 = vc.u32 %v4129, %v4125
    %v4132 = vsel %vm4131, 1, 0
    %v4133 = vadd.s32 %v4129, %v4125
    %v4134 = vadd.s32 %v4130, %v4132
    %v4135 = vadd.s32 %v4134, %v4124
    %v4136 = vadd.s32 %v4135, %v4126
    %v4137 = vshrl.u32 %v4136, 7
    %v4138 = vmul.u32 %v4137, 150
    %v4139 = vsub.s32 %v4115, %v4138
    %v4140 = vsub.s32 0, %v4139
    %v4141 = vsel %vm4113, %v4140, %v4139
    %vm4142 = vcmp.lt.s32.totalorder %v324, 0
    %v4143 = vsub.s32 0, %v324
    %v4144 = vsel %vm4142, %v4143, %v324
    %v4145 = vand.u32 %v4144, 65535
    %v4146 = vshrl.u32 %v4144, 16
    %v4148 = vmul.u32 %v4145, 3496
    %v4149 = vmul.u32 %v4145, 55924
    %v4150 = vmul.u32 %v4146, 3496
    %v4151 = vmul.u32 %v4146, 55924
    %v4152 = vshll.u32 %v4149, 16
    %v4153 = vshrl.u32 %v4149, 16
    %v4154 = vshll.u32 %v4150, 16
    %v4155 = vshrl.u32 %v4150, 16
    %vm4156 = vc.u32 %v4148, %v4152
    %v4157 = vsel %vm4156, 1, 0
    %v4158 = vadd.s32 %v4148, %v4152
    %v4159 = vadd.s32 %v4151, %v4157
    %vm4160 = vc.u32 %v4158, %v4154
    %v4161 = vsel %vm4160, 1, 0
    %v4162 = vadd.s32 %v4158, %v4154
    %v4163 = vadd.s32 %v4159, %v4161
    %v4164 = vadd.s32 %v4163, %v4153
    %v4165 = vadd.s32 %v4164, %v4155
    %v4166 = vshrl.u32 %v4165, 7
    %v4167 = vmul.u32 %v4166, 150
    %v4168 = vsub.s32 %v4144, %v4167
    %v4169 = vsub.s32 0, %v4168
    %v4170 = vsel %vm4142, %v4169, %v4168
    %vm4171 = vcmp.lt.s32.totalorder %v325, 0
    %v4172 = vsub.s32 0, %v325
    %v4173 = vsel %vm4171, %v4172, %v325
    %v4174 = vand.u32 %v4173, 65535
    %v4175 = vshrl.u32 %v4173, 16
    %v4177 = vmul.u32 %v4174, 3496
    %v4178 = vmul.u32 %v4174, 55924
    %v4179 = vmul.u32 %v4175, 3496
    %v4180 = vmul.u32 %v4175, 55924
    %v4181 = vshll.u32 %v4178, 16
    %v4182 = vshrl.u32 %v4178, 16
    %v4183 = vshll.u32 %v4179, 16
    %v4184 = vshrl.u32 %v4179, 16
    %vm4185 = vc.u32 %v4177, %v4181
    %v4186 = vsel %vm4185, 1, 0
    %v4187 = vadd.s32 %v4177, %v4181
    %v4188 = vadd.s32 %v4180, %v4186
    %vm4189 = vc.u32 %v4187, %v4183
    %v4190 = vsel %vm4189, 1, 0
    %v4191 = vadd.s32 %v4187, %v4183
    %v4192 = vadd.s32 %v4188, %v4190
    %v4193 = vadd.s32 %v4192, %v4182
    %v4194 = vadd.s32 %v4193, %v4184
    %v4195 = vshrl.u32 %v4194, 7
    %v4196 = vmul.u32 %v4195, 150
    %v4197 = vsub.s32 %v4173, %v4196
    %v4198 = vsub.s32 0, %v4197
    %v4199 = vsel %vm4171, %v4198, %v4197
    %vm4200 = vcmp.lt.s32.totalorder %v326, 0
    %v4201 = vsub.s32 0, %v326
    %v4202 = vsel %vm4200, %v4201, %v326
    %v4203 = vand.u32 %v4202, 65535
    %v4204 = vshrl.u32 %v4202, 16
    %v4206 = vmul.u32 %v4203, 3496
    %v4207 = vmul.u32 %v4203, 55924
    %v4208 = vmul.u32 %v4204, 3496
    %v4209 = vmul.u32 %v4204, 55924
    %v4210 = vshll.u32 %v4207, 16
    %v4211 = vshrl.u32 %v4207, 16
    %v4212 = vshll.u32 %v4208, 16
    %v4213 = vshrl.u32 %v4208, 16
    %vm4214 = vc.u32 %v4206, %v4210
    %v4215 = vsel %vm4214, 1, 0
    %v4216 = vadd.s32 %v4206, %v4210
    %v4217 = vadd.s32 %v4209, %v4215
    %vm4218 = vc.u32 %v4216, %v4212
    %v4219 = vsel %vm4218, 1, 0
    %v4220 = vadd.s32 %v4216, %v4212
    %v4221 = vadd.s32 %v4217, %v4219
    %v4222 = vadd.s32 %v4221, %v4211
    %v4223 = vadd.s32 %v4222, %v4213
    %v4224 = vshrl.u32 %v4223, 7
    %v4225 = vmul.u32 %v4224, 150
    %v4226 = vsub.s32 %v4202, %v4225
    %v4227 = vsub.s32 0, %v4226
    %v4228 = vsel %vm4200, %v4227, %v4226
    %vm4229 = vcmp.lt.s32.totalorder %v327, 0
    %v4230 = vsub.s32 0, %v327
    %v4231 = vsel %vm4229, %v4230, %v327
    %v4232 = vand.u32 %v4231, 65535
    %v4233 = vshrl.u32 %v4231, 16
    %v4235 = vmul.u32 %v4232, 3496
    %v4236 = vmul.u32 %v4232, 55924
    %v4237 = vmul.u32 %v4233, 3496
    %v4238 = vmul.u32 %v4233, 55924
    %v4239 = vshll.u32 %v4236, 16
    %v4240 = vshrl.u32 %v4236, 16
    %v4241 = vshll.u32 %v4237, 16
    %v4242 = vshrl.u32 %v4237, 16
    %vm4243 = vc.u32 %v4235, %v4239
    %v4244 = vsel %vm4243, 1, 0
    %v4245 = vadd.s32 %v4235, %v4239
    %v4246 = vadd.s32 %v4238, %v4244
    %vm4247 = vc.u32 %v4245, %v4241
    %v4248 = vsel %vm4247, 1, 0
    %v4249 = vadd.s32 %v4245, %v4241
    %v4250 = vadd.s32 %v4246, %v4248
    %v4251 = vadd.s32 %v4250, %v4240
    %v4252 = vadd.s32 %v4251, %v4242
    %v4253 = vshrl.u32 %v4252, 7
    %v4254 = vmul.u32 %v4253, 150
    %v4255 = vsub.s32 %v4231, %v4254
    %v4256 = vsub.s32 0, %v4255
    %v4257 = vsel %vm4229, %v4256, %v4255
    %vm4258 = vcmp.lt.s32.totalorder %v328, 0
    %v4259 = vsub.s32 0, %v328
    %v4260 = vsel %vm4258, %v4259, %v328
    %v4261 = vand.u32 %v4260, 65535
    %v4262 = vshrl.u32 %v4260, 16
    %v4264 = vmul.u32 %v4261, 3496
    %v4265 = vmul.u32 %v4261, 55924
    %v4266 = vmul.u32 %v4262, 3496
    %v4267 = vmul.u32 %v4262, 55924
    %v4268 = vshll.u32 %v4265, 16
    %v4269 = vshrl.u32 %v4265, 16
    %v4270 = vshll.u32 %v4266, 16
    %v4271 = vshrl.u32 %v4266, 16
    %vm4272 = vc.u32 %v4264, %v4268
    %v4273 = vsel %vm4272, 1, 0
    %v4274 = vadd.s32 %v4264, %v4268
    %v4275 = vadd.s32 %v4267, %v4273
    %vm4276 = vc.u32 %v4274, %v4270
    %v4277 = vsel %vm4276, 1, 0
    %v4278 = vadd.s32 %v4274, %v4270
    %v4279 = vadd.s32 %v4275, %v4277
    %v4280 = vadd.s32 %v4279, %v4269
    %v4281 = vadd.s32 %v4280, %v4271
    %v4282 = vshrl.u32 %v4281, 7
    %v4283 = vmul.u32 %v4282, 150
    %v4284 = vsub.s32 %v4260, %v4283
    %v4285 = vsub.s32 0, %v4284
    %v4286 = vsel %vm4258, %v4285, %v4284
    %vm4287 = vcmp.lt.s32.totalorder %v329, 0
    %v4288 = vsub.s32 0, %v329
    %v4289 = vsel %vm4287, %v4288, %v329
    %v4290 = vand.u32 %v4289, 65535
    %v4291 = vshrl.u32 %v4289, 16
    %v4293 = vmul.u32 %v4290, 3496
    %v4294 = vmul.u32 %v4290, 55924
    %v4295 = vmul.u32 %v4291, 3496
    %v4296 = vmul.u32 %v4291, 55924
    %v4297 = vshll.u32 %v4294, 16
    %v4298 = vshrl.u32 %v4294, 16
    %v4299 = vshll.u32 %v4295, 16
    %v4300 = vshrl.u32 %v4295, 16
    %vm4301 = vc.u32 %v4293, %v4297
    %v4302 = vsel %vm4301, 1, 0
    %v4303 = vadd.s32 %v4293, %v4297
    %v4304 = vadd.s32 %v4296, %v4302
    %vm4305 = vc.u32 %v4303, %v4299
    %v4306 = vsel %vm4305, 1, 0
    %v4307 = vadd.s32 %v4303, %v4299
    %v4308 = vadd.s32 %v4304, %v4306
    %v4309 = vadd.s32 %v4308, %v4298
    %v4310 = vadd.s32 %v4309, %v4300
    %v4311 = vshrl.u32 %v4310, 7
    %v4312 = vmul.u32 %v4311, 150
    %v4313 = vsub.s32 %v4289, %v4312
    %v4314 = vsub.s32 0, %v4313
    %v4315 = vsel %vm4287, %v4314, %v4313
    %vm4316 = vcmp.lt.s32.totalorder %v330, 0
    %v4317 = vsub.s32 0, %v330
    %v4318 = vsel %vm4316, %v4317, %v330
    %v4319 = vand.u32 %v4318, 65535
    %v4320 = vshrl.u32 %v4318, 16
    %v4322 = vmul.u32 %v4319, 3496
    %v4323 = vmul.u32 %v4319, 55924
    %v4324 = vmul.u32 %v4320, 3496
    %v4325 = vmul.u32 %v4320, 55924
    %v4326 = vshll.u32 %v4323, 16
    %v4327 = vshrl.u32 %v4323, 16
    %v4328 = vshll.u32 %v4324, 16
    %v4329 = vshrl.u32 %v4324, 16
    %vm4330 = vc.u32 %v4322, %v4326
    %v4331 = vsel %vm4330, 1, 0
    %v4332 = vadd.s32 %v4322, %v4326
    %v4333 = vadd.s32 %v4325, %v4331
    %vm4334 = vc.u32 %v4332, %v4328
    %v4335 = vsel %vm4334, 1, 0
    %v4336 = vadd.s32 %v4332, %v4328
    %v4337 = vadd.s32 %v4333, %v4335
    %v4338 = vadd.s32 %v4337, %v4327
    %v4339 = vadd.s32 %v4338, %v4329
    %v4340 = vshrl.u32 %v4339, 7
    %v4341 = vmul.u32 %v4340, 150
    %v4342 = vsub.s32 %v4318, %v4341
    %v4343 = vsub.s32 0, %v4342
    %v4344 = vsel %vm4316, %v4343, %v4342
    %vm4345 = vcmp.lt.s32.totalorder %v331, 0
    %v4346 = vsub.s32 0, %v331
    %v4347 = vsel %vm4345, %v4346, %v331
    %v4348 = vand.u32 %v4347, 65535
    %v4349 = vshrl.u32 %v4347, 16
    %v4351 = vmul.u32 %v4348, 3496
    %v4352 = vmul.u32 %v4348, 55924
    %v4353 = vmul.u32 %v4349, 3496
    %v4354 = vmul.u32 %v4349, 55924
    %v4355 = vshll.u32 %v4352, 16
    %v4356 = vshrl.u32 %v4352, 16
    %v4357 = vshll.u32 %v4353, 16
    %v4358 = vshrl.u32 %v4353, 16
    %vm4359 = vc.u32 %v4351, %v4355
    %v4360 = vsel %vm4359, 1, 0
    %v4361 = vadd.s32 %v4351, %v4355
    %v4362 = vadd.s32 %v4354, %v4360
    %vm4363 = vc.u32 %v4361, %v4357
    %v4364 = vsel %vm4363, 1, 0
    %v4365 = vadd.s32 %v4361, %v4357
    %v4366 = vadd.s32 %v4362, %v4364
    %v4367 = vadd.s32 %v4366, %v4356
    %v4368 = vadd.s32 %v4367, %v4358
    %v4369 = vshrl.u32 %v4368, 7
    %v4370 = vmul.u32 %v4369, 150
    %v4371 = vsub.s32 %v4347, %v4370
    %v4372 = vsub.s32 0, %v4371
    %v4373 = vsel %vm4345, %v4372, %v4371
    %vm4374 = vcmp.lt.s32.totalorder %v332, 0
    %v4375 = vsub.s32 0, %v332
    %v4376 = vsel %vm4374, %v4375, %v332
    %v4377 = vand.u32 %v4376, 65535
    %v4378 = vshrl.u32 %v4376, 16
    %v4380 = vmul.u32 %v4377, 3496
    %v4381 = vmul.u32 %v4377, 55924
    %v4382 = vmul.u32 %v4378, 3496
    %v4383 = vmul.u32 %v4378, 55924
    %v4384 = vshll.u32 %v4381, 16
    %v4385 = vshrl.u32 %v4381, 16
    %v4386 = vshll.u32 %v4382, 16
    %v4387 = vshrl.u32 %v4382, 16
    %vm4388 = vc.u32 %v4380, %v4384
    %v4389 = vsel %vm4388, 1, 0
    %v4390 = vadd.s32 %v4380, %v4384
    %v4391 = vadd.s32 %v4383, %v4389
    %vm4392 = vc.u32 %v4390, %v4386
    %v4393 = vsel %vm4392, 1, 0
    %v4394 = vadd.s32 %v4390, %v4386
    %v4395 = vadd.s32 %v4391, %v4393
    %v4396 = vadd.s32 %v4395, %v4385
    %v4397 = vadd.s32 %v4396, %v4387
    %v4398 = vshrl.u32 %v4397, 7
    %v4399 = vmul.u32 %v4398, 150
    %v4400 = vsub.s32 %v4376, %v4399
    %v4401 = vsub.s32 0, %v4400
    %v4402 = vsel %vm4374, %v4401, %v4400
    %vm4403 = vcmp.lt.s32.totalorder %v333, 0
    %v4404 = vsub.s32 0, %v333
    %v4405 = vsel %vm4403, %v4404, %v333
    %v4406 = vand.u32 %v4405, 65535
    %v4407 = vshrl.u32 %v4405, 16
    %v4409 = vmul.u32 %v4406, 3496
    %v4410 = vmul.u32 %v4406, 55924
    %v4411 = vmul.u32 %v4407, 3496
    %v4412 = vmul.u32 %v4407, 55924
    %v4413 = vshll.u32 %v4410, 16
    %v4414 = vshrl.u32 %v4410, 16
    %v4415 = vshll.u32 %v4411, 16
    %v4416 = vshrl.u32 %v4411, 16
    %vm4417 = vc.u32 %v4409, %v4413
    %v4418 = vsel %vm4417, 1, 0
    %v4419 = vadd.s32 %v4409, %v4413
    %v4420 = vadd.s32 %v4412, %v4418
    %vm4421 = vc.u32 %v4419, %v4415
    %v4422 = vsel %vm4421, 1, 0
    %v4423 = vadd.s32 %v4419, %v4415
    %v4424 = vadd.s32 %v4420, %v4422
    %v4425 = vadd.s32 %v4424, %v4414
    %v4426 = vadd.s32 %v4425, %v4416
    %v4427 = vshrl.u32 %v4426, 7
    %v4428 = vmul.u32 %v4427, 150
    %v4429 = vsub.s32 %v4405, %v4428
    %v4430 = vsub.s32 0, %v4429
    %v4431 = vsel %vm4403, %v4430, %v4429
    %vm4432 = vcmp.lt.s32.totalorder %v334, 0
    %v4433 = vsub.s32 0, %v334
    %v4434 = vsel %vm4432, %v4433, %v334
    %v4435 = vand.u32 %v4434, 65535
    %v4436 = vshrl.u32 %v4434, 16
    %v4438 = vmul.u32 %v4435, 3496
    %v4439 = vmul.u32 %v4435, 55924
    %v4440 = vmul.u32 %v4436, 3496
    %v4441 = vmul.u32 %v4436, 55924
    %v4442 = vshll.u32 %v4439, 16
    %v4443 = vshrl.u32 %v4439, 16
    %v4444 = vshll.u32 %v4440, 16
    %v4445 = vshrl.u32 %v4440, 16
    %vm4446 = vc.u32 %v4438, %v4442
    %v4447 = vsel %vm4446, 1, 0
    %v4448 = vadd.s32 %v4438, %v4442
    %v4449 = vadd.s32 %v4441, %v4447
    %vm4450 = vc.u32 %v4448, %v4444
    %v4451 = vsel %vm4450, 1, 0
    %v4452 = vadd.s32 %v4448, %v4444
    %v4453 = vadd.s32 %v4449, %v4451
    %v4454 = vadd.s32 %v4453, %v4443
    %v4455 = vadd.s32 %v4454, %v4445
    %v4456 = vshrl.u32 %v4455, 7
    %v4457 = vmul.u32 %v4456, 150
    %v4458 = vsub.s32 %v4434, %v4457
    %v4459 = vsub.s32 0, %v4458
    %v4460 = vsel %vm4432, %v4459, %v4458
    %vm4461 = vcmp.lt.s32.totalorder %v335, 0
    %v4462 = vsub.s32 0, %v335
    %v4463 = vsel %vm4461, %v4462, %v335
    %v4464 = vand.u32 %v4463, 65535
    %v4465 = vshrl.u32 %v4463, 16
    %v4467 = vmul.u32 %v4464, 3496
    %v4468 = vmul.u32 %v4464, 55924
    %v4469 = vmul.u32 %v4465, 3496
    %v4470 = vmul.u32 %v4465, 55924
    %v4471 = vshll.u32 %v4468, 16
    %v4472 = vshrl.u32 %v4468, 16
    %v4473 = vshll.u32 %v4469, 16
    %v4474 = vshrl.u32 %v4469, 16
    %vm4475 = vc.u32 %v4467, %v4471
    %v4476 = vsel %vm4475, 1, 0
    %v4477 = vadd.s32 %v4467, %v4471
    %v4478 = vadd.s32 %v4470, %v4476
    %vm4479 = vc.u32 %v4477, %v4473
    %v4480 = vsel %vm4479, 1, 0
    %v4481 = vadd.s32 %v4477, %v4473
    %v4482 = vadd.s32 %v4478, %v4480
    %v4483 = vadd.s32 %v4482, %v4472
    %v4484 = vadd.s32 %v4483, %v4474
    %v4485 = vshrl.u32 %v4484, 7
    %v4486 = vmul.u32 %v4485, 150
    %v4487 = vsub.s32 %v4463, %v4486
    %v4488 = vsub.s32 0, %v4487
    %v4489 = vsel %vm4461, %v4488, %v4487
    %vm4490 = vcmp.lt.s32.totalorder %v336, 0
    %v4491 = vsub.s32 0, %v336
    %v4492 = vsel %vm4490, %v4491, %v336
    %v4493 = vand.u32 %v4492, 65535
    %v4494 = vshrl.u32 %v4492, 16
    %v4496 = vmul.u32 %v4493, 3496
    %v4497 = vmul.u32 %v4493, 55924
    %v4498 = vmul.u32 %v4494, 3496
    %v4499 = vmul.u32 %v4494, 55924
    %v4500 = vshll.u32 %v4497, 16
    %v4501 = vshrl.u32 %v4497, 16
    %v4502 = vshll.u32 %v4498, 16
    %v4503 = vshrl.u32 %v4498, 16
    %vm4504 = vc.u32 %v4496, %v4500
    %v4505 = vsel %vm4504, 1, 0
    %v4506 = vadd.s32 %v4496, %v4500
    %v4507 = vadd.s32 %v4499, %v4505
    %vm4508 = vc.u32 %v4506, %v4502
    %v4509 = vsel %vm4508, 1, 0
    %v4510 = vadd.s32 %v4506, %v4502
    %v4511 = vadd.s32 %v4507, %v4509
    %v4512 = vadd.s32 %v4511, %v4501
    %v4513 = vadd.s32 %v4512, %v4503
    %v4514 = vshrl.u32 %v4513, 7
    %v4515 = vmul.u32 %v4514, 150
    %v4516 = vsub.s32 %v4492, %v4515
    %v4517 = vsub.s32 0, %v4516
    %v4518 = vsel %vm4490, %v4517, %v4516
    %vm4519 = vcmp.lt.s32.totalorder %v337, 0
    %v4520 = vsub.s32 0, %v337
    %v4521 = vsel %vm4519, %v4520, %v337
    %v4522 = vand.u32 %v4521, 65535
    %v4523 = vshrl.u32 %v4521, 16
    %v4525 = vmul.u32 %v4522, 3496
    %v4526 = vmul.u32 %v4522, 55924
    %v4527 = vmul.u32 %v4523, 3496
    %v4528 = vmul.u32 %v4523, 55924
    %v4529 = vshll.u32 %v4526, 16
    %v4530 = vshrl.u32 %v4526, 16
    %v4531 = vshll.u32 %v4527, 16
    %v4532 = vshrl.u32 %v4527, 16
    %vm4533 = vc.u32 %v4525, %v4529
    %v4534 = vsel %vm4533, 1, 0
    %v4535 = vadd.s32 %v4525, %v4529
    %v4536 = vadd.s32 %v4528, %v4534
    %vm4537 = vc.u32 %v4535, %v4531
    %v4538 = vsel %vm4537, 1, 0
    %v4539 = vadd.s32 %v4535, %v4531
    %v4540 = vadd.s32 %v4536, %v4538
    %v4541 = vadd.s32 %v4540, %v4530
    %v4542 = vadd.s32 %v4541, %v4532
    %v4543 = vshrl.u32 %v4542, 7
    %v4544 = vmul.u32 %v4543, 150
    %v4545 = vsub.s32 %v4521, %v4544
    %v4546 = vsub.s32 0, %v4545
    %v4547 = vsel %vm4519, %v4546, %v4545
    %vm4548 = vcmp.lt.s32.totalorder %v338, 0
    %v4549 = vsub.s32 0, %v338
    %v4550 = vsel %vm4548, %v4549, %v338
    %v4551 = vand.u32 %v4550, 65535
    %v4552 = vshrl.u32 %v4550, 16
    %v4554 = vmul.u32 %v4551, 3496
    %v4555 = vmul.u32 %v4551, 55924
    %v4556 = vmul.u32 %v4552, 3496
    %v4557 = vmul.u32 %v4552, 55924
    %v4558 = vshll.u32 %v4555, 16
    %v4559 = vshrl.u32 %v4555, 16
    %v4560 = vshll.u32 %v4556, 16
    %v4561 = vshrl.u32 %v4556, 16
    %vm4562 = vc.u32 %v4554, %v4558
    %v4563 = vsel %vm4562, 1, 0
    %v4564 = vadd.s32 %v4554, %v4558
    %v4565 = vadd.s32 %v4557, %v4563
    %vm4566 = vc.u32 %v4564, %v4560
    %v4567 = vsel %vm4566, 1, 0
    %v4568 = vadd.s32 %v4564, %v4560
    %v4569 = vadd.s32 %v4565, %v4567
    %v4570 = vadd.s32 %v4569, %v4559
    %v4571 = vadd.s32 %v4570, %v4561
    %v4572 = vshrl.u32 %v4571, 7
    %v4573 = vmul.u32 %v4572, 150
    %v4574 = vsub.s32 %v4550, %v4573
    %v4575 = vsub.s32 0, %v4574
    %v4576 = vsel %vm4548, %v4575, %v4574
    %vm4577 = vcmp.lt.s32.totalorder %v339, 0
    %v4578 = vsub.s32 0, %v339
    %v4579 = vsel %vm4577, %v4578, %v339
    %v4580 = vand.u32 %v4579, 65535
    %v4581 = vshrl.u32 %v4579, 16
    %v4583 = vmul.u32 %v4580, 3496
    %v4584 = vmul.u32 %v4580, 55924
    %v4585 = vmul.u32 %v4581, 3496
    %v4586 = vmul.u32 %v4581, 55924
    %v4587 = vshll.u32 %v4584, 16
    %v4588 = vshrl.u32 %v4584, 16
    %v4589 = vshll.u32 %v4585, 16
    %v4590 = vshrl.u32 %v4585, 16
    %vm4591 = vc.u32 %v4583, %v4587
    %v4592 = vsel %vm4591, 1, 0
    %v4593 = vadd.s32 %v4583, %v4587
    %v4594 = vadd.s32 %v4586, %v4592
    %vm4595 = vc.u32 %v4593, %v4589
    %v4596 = vsel %vm4595, 1, 0
    %v4597 = vadd.s32 %v4593, %v4589
    %v4598 = vadd.s32 %v4594, %v4596
    %v4599 = vadd.s32 %v4598, %v4588
    %v4600 = vadd.s32 %v4599, %v4590
    %v4601 = vshrl.u32 %v4600, 7
    %v4602 = vmul.u32 %v4601, 150
    %v4603 = vsub.s32 %v4579, %v4602
    %v4604 = vsub.s32 0, %v4603
    %v4605 = vsel %vm4577, %v4604, %v4603
    %vm4606 = vcmp.lt.s32.totalorder %v340, 0
    %v4607 = vsub.s32 0, %v340
    %v4608 = vsel %vm4606, %v4607, %v340
    %v4609 = vand.u32 %v4608, 65535
    %v4610 = vshrl.u32 %v4608, 16
    %v4612 = vmul.u32 %v4609, 3496
    %v4613 = vmul.u32 %v4609, 55924
    %v4614 = vmul.u32 %v4610, 3496
    %v4615 = vmul.u32 %v4610, 55924
    %v4616 = vshll.u32 %v4613, 16
    %v4617 = vshrl.u32 %v4613, 16
    %v4618 = vshll.u32 %v4614, 16
    %v4619 = vshrl.u32 %v4614, 16
    %vm4620 = vc.u32 %v4612, %v4616
    %v4621 = vsel %vm4620, 1, 0
    %v4622 = vadd.s32 %v4612, %v4616
    %v4623 = vadd.s32 %v4615, %v4621
    %vm4624 = vc.u32 %v4622, %v4618
    %v4625 = vsel %vm4624, 1, 0
    %v4626 = vadd.s32 %v4622, %v4618
    %v4627 = vadd.s32 %v4623, %v4625
    %v4628 = vadd.s32 %v4627, %v4617
    %v4629 = vadd.s32 %v4628, %v4619
    %v4630 = vshrl.u32 %v4629, 7
    %v4631 = vmul.u32 %v4630, 150
    %v4632 = vsub.s32 %v4608, %v4631
    %v4633 = vsub.s32 0, %v4632
    %v4634 = vsel %vm4606, %v4633, %v4632
    %vm4635 = vcmp.lt.s32.totalorder %v341, 0
    %v4636 = vsub.s32 0, %v341
    %v4637 = vsel %vm4635, %v4636, %v341
    %v4638 = vand.u32 %v4637, 65535
    %v4639 = vshrl.u32 %v4637, 16
    %v4641 = vmul.u32 %v4638, 3496
    %v4642 = vmul.u32 %v4638, 55924
    %v4643 = vmul.u32 %v4639, 3496
    %v4644 = vmul.u32 %v4639, 55924
    %v4645 = vshll.u32 %v4642, 16
    %v4646 = vshrl.u32 %v4642, 16
    %v4647 = vshll.u32 %v4643, 16
    %v4648 = vshrl.u32 %v4643, 16
    %vm4649 = vc.u32 %v4641, %v4645
    %v4650 = vsel %vm4649, 1, 0
    %v4651 = vadd.s32 %v4641, %v4645
    %v4652 = vadd.s32 %v4644, %v4650
    %vm4653 = vc.u32 %v4651, %v4647
    %v4654 = vsel %vm4653, 1, 0
    %v4655 = vadd.s32 %v4651, %v4647
    %v4656 = vadd.s32 %v4652, %v4654
    %v4657 = vadd.s32 %v4656, %v4646
    %v4658 = vadd.s32 %v4657, %v4648
    %v4659 = vshrl.u32 %v4658, 7
    %v4660 = vmul.u32 %v4659, 150
    %v4661 = vsub.s32 %v4637, %v4660
    %v4662 = vsub.s32 0, %v4661
    %v4663 = vsel %vm4635, %v4662, %v4661
    %vm4664 = vcmp.lt.s32.totalorder %v342, 0
    %v4665 = vsub.s32 0, %v342
    %v4666 = vsel %vm4664, %v4665, %v342
    %v4667 = vand.u32 %v4666, 65535
    %v4668 = vshrl.u32 %v4666, 16
    %v4670 = vmul.u32 %v4667, 3496
    %v4671 = vmul.u32 %v4667, 55924
    %v4672 = vmul.u32 %v4668, 3496
    %v4673 = vmul.u32 %v4668, 55924
    %v4674 = vshll.u32 %v4671, 16
    %v4675 = vshrl.u32 %v4671, 16
    %v4676 = vshll.u32 %v4672, 16
    %v4677 = vshrl.u32 %v4672, 16
    %vm4678 = vc.u32 %v4670, %v4674
    %v4679 = vsel %vm4678, 1, 0
    %v4680 = vadd.s32 %v4670, %v4674
    %v4681 = vadd.s32 %v4673, %v4679
    %vm4682 = vc.u32 %v4680, %v4676
    %v4683 = vsel %vm4682, 1, 0
    %v4684 = vadd.s32 %v4680, %v4676
    %v4685 = vadd.s32 %v4681, %v4683
    %v4686 = vadd.s32 %v4685, %v4675
    %v4687 = vadd.s32 %v4686, %v4677
    %v4688 = vshrl.u32 %v4687, 7
    %v4689 = vmul.u32 %v4688, 150
    %v4690 = vsub.s32 %v4666, %v4689
    %v4691 = vsub.s32 0, %v4690
    %v4692 = vsel %vm4664, %v4691, %v4690
    %vm4693 = vcmp.ne.s32.totalorder %v371, 0
    %vm4694 = vcmp.ne.s32.totalorder %v400, 0
    %vm4695 = vcmp.ne.s32.totalorder %v429, 0
    %vm4696 = vcmp.ne.s32.totalorder %v458, 0
    %vm4697 = vcmp.ne.s32.totalorder %v487, 0
    %vm4698 = vcmp.ne.s32.totalorder %v516, 0
    %vm4699 = vcmp.ne.s32.totalorder %v545, 0
    %vm4700 = vcmp.ne.s32.totalorder %v574, 0
    %vm4701 = vcmp.ne.s32.totalorder %v603, 0
    %vm4702 = vcmp.ne.s32.totalorder %v632, 0
    %vm4703 = vcmp.ne.s32.totalorder %v661, 0
    %vm4704 = vcmp.ne.s32.totalorder %v690, 0
    %vm4705 = vcmp.ne.s32.totalorder %v719, 0
    %vm4706 = vcmp.ne.s32.totalorder %v748, 0
    %vm4707 = vcmp.ne.s32.totalorder %v777, 0
    %vm4708 = vcmp.ne.s32.totalorder %v806, 0
    %vm4709 = vcmp.ne.s32.totalorder %v835, 0
    %vm4710 = vcmp.ne.s32.totalorder %v864, 0
    %vm4711 = vcmp.ne.s32.totalorder %v893, 0
    %vm4712 = vcmp.ne.s32.totalorder %v922, 0
    %vm4713 = vcmp.ne.s32.totalorder %v951, 0
    %vm4714 = vcmp.ne.s32.totalorder %v980, 0
    %vm4715 = vcmp.ne.s32.totalorder %v1009, 0
    %vm4716 = vcmp.ne.s32.totalorder %v1038, 0
    %vm4717 = vcmp.ne.s32.totalorder %v1067, 0
    %vm4718 = vcmp.ne.s32.totalorder %v1096, 0
    %vm4719 = vcmp.ne.s32.totalorder %v1125, 0
    %vm4720 = vcmp.ne.s32.totalorder %v1154, 0
    %vm4721 = vcmp.ne.s32.totalorder %v1183, 0
    %vm4722 = vcmp.ne.s32.totalorder %v1212, 0
    %vm4723 = vcmp.ne.s32.totalorder %v1241, 0
    %vm4724 = vcmp.ne.s32.totalorder %v1270, 0
    %vm4725 = vcmp.ne.s32.totalorder %v1299, 0
    %vm4726 = vcmp.ne.s32.totalorder %v1328, 0
    %vm4727 = vcmp.ne.s32.totalorder %v1357, 0
    %vm4728 = vcmp.ne.s32.totalorder %v1386, 0
    %vm4729 = vcmp.ne.s32.totalorder %v1415, 0
    %vm4730 = vcmp.ne.s32.totalorder %v1444, 0
    %vm4731 = vcmp.ne.s32.totalorder %v1473, 0
    %vm4732 = vcmp.ne.s32.totalorder %v1502, 0
    %vm4733 = vcmp.ne.s32.totalorder %v1531, 0
    %vm4734 = vcmp.ne.s32.totalorder %v1560, 0
    %vm4735 = vcmp.ne.s32.totalorder %v1589, 0
    %vm4736 = vcmp.ne.s32.totalorder %v1618, 0
    %vm4737 = vcmp.ne.s32.totalorder %v1647, 0
    %vm4738 = vcmp.ne.s32.totalorder %v1676, 0
    %vm4739 = vcmp.ne.s32.totalorder %v1705, 0
    %vm4740 = vcmp.ne.s32.totalorder %v1734, 0
    %vm4741 = vcmp.ne.s32.totalorder %v1763, 0
    %vm4742 = vcmp.ne.s32.totalorder %v1792, 0
    %vm4743 = vcmp.ne.s32.totalorder %v1821, 0
    %vm4744 = vcmp.ne.s32.totalorder %v1850, 0
    %vm4745 = vcmp.ne.s32.totalorder %v1879, 0
    %vm4746 = vcmp.ne.s32.totalorder %v1908, 0
    %vm4747 = vcmp.ne.s32.totalorder %v1937, 0
    %vm4748 = vcmp.ne.s32.totalorder %v1966, 0
    %vm4749 = vcmp.ne.s32.totalorder %v1995, 0
    %vm4750 = vcmp.ne.s32.totalorder %v2024, 0
    %vm4751 = vcmp.ne.s32.totalorder %v2053, 0
    %vm4752 = vcmp.ne.s32.totalorder %v2082, 0
    %vm4753 = vcmp.ne.s32.totalorder %v2111, 0
    %vm4754 = vcmp.ne.s32.totalorder %v2140, 0
    %vm4755 = vcmp.ne.s32.totalorder %v2169, 0
    %vm4756 = vcmp.ne.s32.totalorder %v2198, 0
    %vm4757 = vcmp.ne.s32.totalorder %v2227, 0
    %vm4758 = vcmp.ne.s32.totalorder %v2256, 0
    %vm4759 = vcmp.ne.s32.totalorder %v2285, 0
    %vm4760 = vcmp.ne.s32.totalorder %v2314, 0
    %vm4761 = vcmp.ne.s32.totalorder %v2343, 0
    %vm4762 = vcmp.ne.s32.totalorder %v2372, 0
    %vm4763 = vcmp.ne.s32.totalorder %v2401, 0
    %vm4764 = vcmp.ne.s32.totalorder %v2430, 0
    %vm4765 = vcmp.ne.s32.totalorder %v2459, 0
    %vm4766 = vcmp.ne.s32.totalorder %v2488, 0
    %vm4767 = vcmp.ne.s32.totalorder %v2517, 0
    %vm4768 = vcmp.ne.s32.totalorder %v2546, 0
    %vm4769 = vcmp.ne.s32.totalorder %v2575, 0
    %vm4770 = vcmp.ne.s32.totalorder %v2604, 0
    %vm4771 = vcmp.ne.s32.totalorder %v2633, 0
    %vm4772 = vcmp.ne.s32.totalorder %v2662, 0
    %vm4773 = vcmp.ne.s32.totalorder %v2691, 0
    %vm4774 = vcmp.ne.s32.totalorder %v2720, 0
    %vm4775 = vcmp.ne.s32.totalorder %v2749, 0
    %vm4776 = vcmp.ne.s32.totalorder %v2778, 0
    %vm4777 = vcmp.ne.s32.totalorder %v2807, 0
    %vm4778 = vcmp.ne.s32.totalorder %v2836, 0
    %vm4779 = vcmp.ne.s32.totalorder %v2865, 0
    %vm4780 = vcmp.ne.s32.totalorder %v2894, 0
    %vm4781 = vcmp.ne.s32.totalorder %v2923, 0
    %vm4782 = vcmp.ne.s32.totalorder %v2952, 0
    %vm4783 = vcmp.ne.s32.totalorder %v2981, 0
    %vm4784 = vcmp.ne.s32.totalorder %v3010, 0
    %vm4785 = vcmp.ne.s32.totalorder %v3039, 0
    %vm4786 = vcmp.ne.s32.totalorder %v3068, 0
    %vm4787 = vcmp.ne.s32.totalorder %v3097, 0
    %vm4788 = vcmp.ne.s32.totalorder %v3126, 0
    %vm4789 = vcmp.ne.s32.totalorder %v3155, 0
    %vm4790 = vcmp.ne.s32.totalorder %v3184, 0
    %vm4791 = vcmp.ne.s32.totalorder %v3213, 0
    %vm4792 = vcmp.ne.s32.totalorder %v3242, 0
    %vm4793 = vcmp.ne.s32.totalorder %v3271, 0
    %vm4794 = vcmp.ne.s32.totalorder %v3300, 0
    %vm4795 = vcmp.ne.s32.totalorder %v3329, 0
    %vm4796 = vcmp.ne.s32.totalorder %v3358, 0
    %vm4797 = vcmp.ne.s32.totalorder %v3387, 0
    %vm4798 = vcmp.ne.s32.totalorder %v3416, 0
    %vm4799 = vcmp.ne.s32.totalorder %v3445, 0
    %vm4800 = vcmp.ne.s32.totalorder %v3474, 0
    %vm4801 = vcmp.ne.s32.totalorder %v3503, 0
    %vm4802 = vcmp.ne.s32.totalorder %v3532, 0
    %vm4803 = vcmp.ne.s32.totalorder %v3561, 0
    %vm4804 = vcmp.ne.s32.totalorder %v3590, 0
    %vm4805 = vcmp.ne.s32.totalorder %v3619, 0
    %vm4806 = vcmp.ne.s32.totalorder %v3648, 0
    %vm4807 = vcmp.ne.s32.totalorder %v3677, 0
    %vm4808 = vcmp.ne.s32.totalorder %v3706, 0
    %vm4809 = vcmp.ne.s32.totalorder %v3735, 0
    %vm4810 = vcmp.ne.s32.totalorder %v3764, 0
    %vm4811 = vcmp.ne.s32.totalorder %v3793, 0
    %vm4812 = vcmp.ne.s32.totalorder %v3822, 0
    %vm4813 = vcmp.ne.s32.totalorder %v3851, 0
    %vm4814 = vcmp.ne.s32.totalorder %v3880, 0
    %vm4815 = vcmp.ne.s32.totalorder %v3909, 0
    %vm4816 = vcmp.ne.s32.totalorder %v3938, 0
    %vm4817 = vcmp.ne.s32.totalorder %v3967, 0
    %vm4818 = vcmp.ne.s32.totalorder %v3996, 0
    %vm4819 = vcmp.ne.s32.totalorder %v4025, 0
    %vm4820 = vcmp.ne.s32.totalorder %v4054, 0
    %vm4821 = vcmp.ne.s32.totalorder %v4083, 0
    %vm4822 = vcmp.ne.s32.totalorder %v4112, 0
    %vm4823 = vcmp.ne.s32.totalorder %v4141, 0
    %vm4824 = vcmp.ne.s32.totalorder %v4170, 0
    %vm4825 = vcmp.ne.s32.totalorder %v4199, 0
    %vm4826 = vcmp.ne.s32.totalorder %v4228, 0
    %vm4827 = vcmp.ne.s32.totalorder %v4257, 0
    %vm4828 = vcmp.ne.s32.totalorder %v4286, 0
    %vm4829 = vcmp.ne.s32.totalorder %v4315, 0
    %vm4830 = vcmp.ne.s32.totalorder %v4344, 0
    %vm4831 = vcmp.ne.s32.totalorder %v4373, 0
    %vm4832 = vcmp.ne.s32.totalorder %v4402, 0
    %vm4833 = vcmp.ne.s32.totalorder %v4431, 0
    %vm4834 = vcmp.ne.s32.totalorder %v4460, 0
    %vm4835 = vcmp.ne.s32.totalorder %v4489, 0
    %vm4836 = vcmp.ne.s32.totalorder %v4518, 0
    %vm4837 = vcmp.ne.s32.totalorder %v4547, 0
    %vm4838 = vcmp.ne.s32.totalorder %v4576, 0
    %vm4839 = vcmp.ne.s32.totalorder %v4605, 0
    %vm4840 = vcmp.ne.s32.totalorder %v4634, 0
    %vm4841 = vcmp.ne.s32.totalorder %v4663, 0
    %vm4842 = vcmp.ne.s32.totalorder %v4692, 0
    %vm4843 = vcmp.lt.s32.totalorder %v371, 0
    %vm4844 = vcmp.lt.s32.totalorder %v400, 0
    %vm4845 = vcmp.lt.s32.totalorder %v429, 0
    %vm4846 = vcmp.lt.s32.totalorder %v458, 0
    %vm4847 = vcmp.lt.s32.totalorder %v487, 0
    %vm4848 = vcmp.lt.s32.totalorder %v516, 0
    %vm4849 = vcmp.lt.s32.totalorder %v545, 0
    %vm4850 = vcmp.lt.s32.totalorder %v574, 0
    %vm4851 = vcmp.lt.s32.totalorder %v603, 0
    %vm4852 = vcmp.lt.s32.totalorder %v632, 0
    %vm4853 = vcmp.lt.s32.totalorder %v661, 0
    %vm4854 = vcmp.lt.s32.totalorder %v690, 0
    %vm4855 = vcmp.lt.s32.totalorder %v719, 0
    %vm4856 = vcmp.lt.s32.totalorder %v748, 0
    %vm4857 = vcmp.lt.s32.totalorder %v777, 0
    %vm4858 = vcmp.lt.s32.totalorder %v806, 0
    %vm4859 = vcmp.lt.s32.totalorder %v835, 0
    %vm4860 = vcmp.lt.s32.totalorder %v864, 0
    %vm4861 = vcmp.lt.s32.totalorder %v893, 0
    %vm4862 = vcmp.lt.s32.totalorder %v922, 0
    %vm4863 = vcmp.lt.s32.totalorder %v951, 0
    %vm4864 = vcmp.lt.s32.totalorder %v980, 0
    %vm4865 = vcmp.lt.s32.totalorder %v1009, 0
    %vm4866 = vcmp.lt.s32.totalorder %v1038, 0
    %vm4867 = vcmp.lt.s32.totalorder %v1067, 0
    %vm4868 = vcmp.lt.s32.totalorder %v1096, 0
    %vm4869 = vcmp.lt.s32.totalorder %v1125, 0
    %vm4870 = vcmp.lt.s32.totalorder %v1154, 0
    %vm4871 = vcmp.lt.s32.totalorder %v1183, 0
    %vm4872 = vcmp.lt.s32.totalorder %v1212, 0
    %vm4873 = vcmp.lt.s32.totalorder %v1241, 0
    %vm4874 = vcmp.lt.s32.totalorder %v1270, 0
    %vm4875 = vcmp.lt.s32.totalorder %v1299, 0
    %vm4876 = vcmp.lt.s32.totalorder %v1328, 0
    %vm4877 = vcmp.lt.s32.totalorder %v1357, 0
    %vm4878 = vcmp.lt.s32.totalorder %v1386, 0
    %vm4879 = vcmp.lt.s32.totalorder %v1415, 0
    %vm4880 = vcmp.lt.s32.totalorder %v1444, 0
    %vm4881 = vcmp.lt.s32.totalorder %v1473, 0
    %vm4882 = vcmp.lt.s32.totalorder %v1502, 0
    %vm4883 = vcmp.lt.s32.totalorder %v1531, 0
    %vm4884 = vcmp.lt.s32.totalorder %v1560, 0
    %vm4885 = vcmp.lt.s32.totalorder %v1589, 0
    %vm4886 = vcmp.lt.s32.totalorder %v1618, 0
    %vm4887 = vcmp.lt.s32.totalorder %v1647, 0
    %vm4888 = vcmp.lt.s32.totalorder %v1676, 0
    %vm4889 = vcmp.lt.s32.totalorder %v1705, 0
    %vm4890 = vcmp.lt.s32.totalorder %v1734, 0
    %vm4891 = vcmp.lt.s32.totalorder %v1763, 0
    %vm4892 = vcmp.lt.s32.totalorder %v1792, 0
    %vm4893 = vcmp.lt.s32.totalorder %v1821, 0
    %vm4894 = vcmp.lt.s32.totalorder %v1850, 0
    %vm4895 = vcmp.lt.s32.totalorder %v1879, 0
    %vm4896 = vcmp.lt.s32.totalorder %v1908, 0
    %vm4897 = vcmp.lt.s32.totalorder %v1937, 0
    %vm4898 = vcmp.lt.s32.totalorder %v1966, 0
    %vm4899 = vcmp.lt.s32.totalorder %v1995, 0
    %vm4900 = vcmp.lt.s32.totalorder %v2024, 0
    %vm4901 = vcmp.lt.s32.totalorder %v2053, 0
    %vm4902 = vcmp.lt.s32.totalorder %v2082, 0
    %vm4903 = vcmp.lt.s32.totalorder %v2111, 0
    %vm4904 = vcmp.lt.s32.totalorder %v2140, 0
    %vm4905 = vcmp.lt.s32.totalorder %v2169, 0
    %vm4906 = vcmp.lt.s32.totalorder %v2198, 0
    %vm4907 = vcmp.lt.s32.totalorder %v2227, 0
    %vm4908 = vcmp.lt.s32.totalorder %v2256, 0
    %vm4909 = vcmp.lt.s32.totalorder %v2285, 0
    %vm4910 = vcmp.lt.s32.totalorder %v2314, 0
    %vm4911 = vcmp.lt.s32.totalorder %v2343, 0
    %vm4912 = vcmp.lt.s32.totalorder %v2372, 0
    %vm4913 = vcmp.lt.s32.totalorder %v2401, 0
    %vm4914 = vcmp.lt.s32.totalorder %v2430, 0
    %vm4915 = vcmp.lt.s32.totalorder %v2459, 0
    %vm4916 = vcmp.lt.s32.totalorder %v2488, 0
    %vm4917 = vcmp.lt.s32.totalorder %v2517, 0
    %vm4918 = vcmp.lt.s32.totalorder %v2546, 0
    %vm4919 = vcmp.lt.s32.totalorder %v2575, 0
    %vm4920 = vcmp.lt.s32.totalorder %v2604, 0
    %vm4921 = vcmp.lt.s32.totalorder %v2633, 0
    %vm4922 = vcmp.lt.s32.totalorder %v2662, 0
    %vm4923 = vcmp.lt.s32.totalorder %v2691, 0
    %vm4924 = vcmp.lt.s32.totalorder %v2720, 0
    %vm4925 = vcmp.lt.s32.totalorder %v2749, 0
    %vm4926 = vcmp.lt.s32.totalorder %v2778, 0
    %vm4927 = vcmp.lt.s32.totalorder %v2807, 0
    %vm4928 = vcmp.lt.s32.totalorder %v2836, 0
    %vm4929 = vcmp.lt.s32.totalorder %v2865, 0
    %vm4930 = vcmp.lt.s32.totalorder %v2894, 0
    %vm4931 = vcmp.lt.s32.totalorder %v2923, 0
    %vm4932 = vcmp.lt.s32.totalorder %v2952, 0
    %vm4933 = vcmp.lt.s32.totalorder %v2981, 0
    %vm4934 = vcmp.lt.s32.totalorder %v3010, 0
    %vm4935 = vcmp.lt.s32.totalorder %v3039, 0
    %vm4936 = vcmp.lt.s32.totalorder %v3068, 0
    %vm4937 = vcmp.lt.s32.totalorder %v3097, 0
    %vm4938 = vcmp.lt.s32.totalorder %v3126, 0
    %vm4939 = vcmp.lt.s32.totalorder %v3155, 0
    %vm4940 = vcmp.lt.s32.totalorder %v3184, 0
    %vm4941 = vcmp.lt.s32.totalorder %v3213, 0
    %vm4942 = vcmp.lt.s32.totalorder %v3242, 0
    %vm4943 = vcmp.lt.s32.totalorder %v3271, 0
    %vm4944 = vcmp.lt.s32.totalorder %v3300, 0
    %vm4945 = vcmp.lt.s32.totalorder %v3329, 0
    %vm4946 = vcmp.lt.s32.totalorder %v3358, 0
    %vm4947 = vcmp.lt.s32.totalorder %v3387, 0
    %vm4948 = vcmp.lt.s32.totalorder %v3416, 0
    %vm4949 = vcmp.lt.s32.totalorder %v3445, 0
    %vm4950 = vcmp.lt.s32.totalorder %v3474, 0
    %vm4951 = vcmp.lt.s32.totalorder %v3503, 0
    %vm4952 = vcmp.lt.s32.totalorder %v3532, 0
    %vm4953 = vcmp.lt.s32.totalorder %v3561, 0
    %vm4954 = vcmp.lt.s32.totalorder %v3590, 0
    %vm4955 = vcmp.lt.s32.totalorder %v3619, 0
    %vm4956 = vcmp.lt.s32.totalorder %v3648, 0
    %vm4957 = vcmp.lt.s32.totalorder %v3677, 0
    %vm4958 = vcmp.lt.s32.totalorder %v3706, 0
    %vm4959 = vcmp.lt.s32.totalorder %v3735, 0
    %vm4960 = vcmp.lt.s32.totalorder %v3764, 0
    %vm4961 = vcmp.lt.s32.totalorder %v3793, 0
    %vm4962 = vcmp.lt.s32.totalorder %v3822, 0
    %vm4963 = vcmp.lt.s32.totalorder %v3851, 0
    %vm4964 = vcmp.lt.s32.totalorder %v3880, 0
    %vm4965 = vcmp.lt.s32.totalorder %v3909, 0
    %vm4966 = vcmp.lt.s32.totalorder %v3938, 0
    %vm4967 = vcmp.lt.s32.totalorder %v3967, 0
    %vm4968 = vcmp.lt.s32.totalorder %v3996, 0
    %vm4969 = vcmp.lt.s32.totalorder %v4025, 0
    %vm4970 = vcmp.lt.s32.totalorder %v4054, 0
    %vm4971 = vcmp.lt.s32.totalorder %v4083, 0
    %vm4972 = vcmp.lt.s32.totalorder %v4112, 0
    %vm4973 = vcmp.lt.s32.totalorder %v4141, 0
    %vm4974 = vcmp.lt.s32.totalorder %v4170, 0
    %vm4975 = vcmp.lt.s32.totalorder %v4199, 0
    %vm4976 = vcmp.lt.s32.totalorder %v4228, 0
    %vm4977 = vcmp.lt.s32.totalorder %v4257, 0
    %vm4978 = vcmp.lt.s32.totalorder %v4286, 0
    %vm4979 = vcmp.lt.s32.totalorder %v4315, 0
    %vm4980 = vcmp.lt.s32.totalorder %v4344, 0
    %vm4981 = vcmp.lt.s32.totalorder %v4373, 0
    %vm4982 = vcmp.lt.s32.totalorder %v4402, 0
    %vm4983 = vcmp.lt.s32.totalorder %v4431, 0
    %vm4984 = vcmp.lt.s32.totalorder %v4460, 0
    %vm4985 = vcmp.lt.s32.totalorder %v4489, 0
    %vm4986 = vcmp.lt.s32.totalorder %v4518, 0
    %vm4987 = vcmp.lt.s32.totalorder %v4547, 0
    %vm4988 = vcmp.lt.s32.totalorder %v4576, 0
    %vm4989 = vcmp.lt.s32.totalorder %v4605, 0
    %vm4990 = vcmp.lt.s32.totalorder %v4634, 0
    %vm4991 = vcmp.lt.s32.totalorder %v4663, 0
    %vm4992 = vcmp.lt.s32.totalorder %v4692, 0
    %vm4993 = vmand %vm4843, %vm4693
    %vm4994 = vmand %vm4844, %vm4694
    %vm4995 = vmand %vm4845, %vm4695
    %vm4996 = vmand %vm4846, %vm4696
    %vm4997 = vmand %vm4847, %vm4697
    %vm4998 = vmand %vm4848, %vm4698
    %vm4999 = vmand %vm4849, %vm4699
    %vm5000 = vmand %vm4850, %vm4700
    %vm5001 = vmand %vm4851, %vm4701
    %vm5002 = vmand %vm4852, %vm4702
    %vm5003 = vmand %vm4853, %vm4703
    %vm5004 = vmand %vm4854, %vm4704
    %vm5005 = vmand %vm4855, %vm4705
    %vm5006 = vmand %vm4856, %vm4706
    %vm5007 = vmand %vm4857, %vm4707
    %vm5008 = vmand %vm4858, %vm4708
    %vm5009 = vmand %vm4859, %vm4709
    %vm5010 = vmand %vm4860, %vm4710
    %vm5011 = vmand %vm4861, %vm4711
    %vm5012 = vmand %vm4862, %vm4712
    %vm5013 = vmand %vm4863, %vm4713
    %vm5014 = vmand %vm4864, %vm4714
    %vm5015 = vmand %vm4865, %vm4715
    %vm5016 = vmand %vm4866, %vm4716
    %vm5017 = vmand %vm4867, %vm4717
    %vm5018 = vmand %vm4868, %vm4718
    %vm5019 = vmand %vm4869, %vm4719
    %vm5020 = vmand %vm4870, %vm4720
    %vm5021 = vmand %vm4871, %vm4721
    %vm5022 = vmand %vm4872, %vm4722
    %vm5023 = vmand %vm4873, %vm4723
    %vm5024 = vmand %vm4874, %vm4724
    %vm5025 = vmand %vm4875, %vm4725
    %vm5026 = vmand %vm4876, %vm4726
    %vm5027 = vmand %vm4877, %vm4727
    %vm5028 = vmand %vm4878, %vm4728
    %vm5029 = vmand %vm4879, %vm4729
    %vm5030 = vmand %vm4880, %vm4730
    %vm5031 = vmand %vm4881, %vm4731
    %vm5032 = vmand %vm4882, %vm4732
    %vm5033 = vmand %vm4883, %vm4733
    %vm5034 = vmand %vm4884, %vm4734
    %vm5035 = vmand %vm4885, %vm4735
    %vm5036 = vmand %vm4886, %vm4736
    %vm5037 = vmand %vm4887, %vm4737
    %vm5038 = vmand %vm4888, %vm4738
    %vm5039 = vmand %vm4889, %vm4739
    %vm5040 = vmand %vm4890, %vm4740
    %vm5041 = vmand %vm4891, %vm4741
    %vm5042 = vmand %vm4892, %vm4742
    %vm5043 = vmand %vm4893, %vm4743
    %vm5044 = vmand %vm4894, %vm4744
    %vm5045 = vmand %vm4895, %vm4745
    %vm5046 = vmand %vm4896, %vm4746
    %vm5047 = vmand %vm4897, %vm4747
    %vm5048 = vmand %vm4898, %vm4748
    %vm5049 = vmand %vm4899, %vm4749
    %vm5050 = vmand %vm4900, %vm4750
    %vm5051 = vmand %vm4901, %vm4751
    %vm5052 = vmand %vm4902, %vm4752
    %vm5053 = vmand %vm4903, %vm4753
    %vm5054 = vmand %vm4904, %vm4754
    %vm5055 = vmand %vm4905, %vm4755
    %vm5056 = vmand %vm4906, %vm4756
    %vm5057 = vmand %vm4907, %vm4757
    %vm5058 = vmand %vm4908, %vm4758
    %vm5059 = vmand %vm4909, %vm4759
    %vm5060 = vmand %vm4910, %vm4760
    %vm5061 = vmand %vm4911, %vm4761
    %vm5062 = vmand %vm4912, %vm4762
    %vm5063 = vmand %vm4913, %vm4763
    %vm5064 = vmand %vm4914, %vm4764
    %vm5065 = vmand %vm4915, %vm4765
    %vm5066 = vmand %vm4916, %vm4766
    %vm5067 = vmand %vm4917, %vm4767
    %vm5068 = vmand %vm4918, %vm4768
    %vm5069 = vmand %vm4919, %vm4769
    %vm5070 = vmand %vm4920, %vm4770
    %vm5071 = vmand %vm4921, %vm4771
    %vm5072 = vmand %vm4922, %vm4772
    %vm5073 = vmand %vm4923, %vm4773
    %vm5074 = vmand %vm4924, %vm4774
    %vm5075 = vmand %vm4925, %vm4775
    %vm5076 = vmand %vm4926, %vm4776
    %vm5077 = vmand %vm4927, %vm4777
    %vm5078 = vmand %vm4928, %vm4778
    %vm5079 = vmand %vm4929, %vm4779
    %vm5080 = vmand %vm4930, %vm4780
    %vm5081 = vmand %vm4931, %vm4781
    %vm5082 = vmand %vm4932, %vm4782
    %vm5083 = vmand %vm4933, %vm4783
    %vm5084 = vmand %vm4934, %vm4784
    %vm5085 = vmand %vm4935, %vm4785
    %vm5086 = vmand %vm4936, %vm4786
    %vm5087 = vmand %vm4937, %vm4787
    %vm5088 = vmand %vm4938, %vm4788
    %vm5089 = vmand %vm4939, %vm4789
    %vm5090 = vmand %vm4940, %vm4790
    %vm5091 = vmand %vm4941, %vm4791
    %vm5092 = vmand %vm4942, %vm4792
    %vm5093 = vmand %vm4943, %vm4793
    %vm5094 = vmand %vm4944, %vm4794
    %vm5095 = vmand %vm4945, %vm4795
    %vm5096 = vmand %vm4946, %vm4796
    %vm5097 = vmand %vm4947, %vm4797
    %vm5098 = vmand %vm4948, %vm4798
    %vm5099 = vmand %vm4949, %vm4799
    %vm5100 = vmand %vm4950, %vm4800
    %vm5101 = vmand %vm4951, %vm4801
    %vm5102 = vmand %vm4952, %vm4802
    %vm5103 = vmand %vm4953, %vm4803
    %vm5104 = vmand %vm4954, %vm4804
    %vm5105 = vmand %vm4955, %vm4805
    %vm5106 = vmand %vm4956, %vm4806
    %vm5107 = vmand %vm4957, %vm4807
    %vm5108 = vmand %vm4958, %vm4808
    %vm5109 = vmand %vm4959, %vm4809
    %vm5110 = vmand %vm4960, %vm4810
    %vm5111 = vmand %vm4961, %vm4811
    %vm5112 = vmand %vm4962, %vm4812
    %vm5113 = vmand %vm4963, %vm4813
    %vm5114 = vmand %vm4964, %vm4814
    %vm5115 = vmand %vm4965, %vm4815
    %vm5116 = vmand %vm4966, %vm4816
    %vm5117 = vmand %vm4967, %vm4817
    %vm5118 = vmand %vm4968, %vm4818
    %vm5119 = vmand %vm4969, %vm4819
    %vm5120 = vmand %vm4970, %vm4820
    %vm5121 = vmand %vm4971, %vm4821
    %vm5122 = vmand %vm4972, %vm4822
    %vm5123 = vmand %vm4973, %vm4823
    %vm5124 = vmand %vm4974, %vm4824
    %vm5125 = vmand %vm4975, %vm4825
    %vm5126 = vmand %vm4976, %vm4826
    %vm5127 = vmand %vm4977, %vm4827
    %vm5128 = vmand %vm4978, %vm4828
    %vm5129 = vmand %vm4979, %vm4829
    %vm5130 = vmand %vm4980, %vm4830
    %vm5131 = vmand %vm4981, %vm4831
    %vm5132 = vmand %vm4982, %vm4832
    %vm5133 = vmand %vm4983, %vm4833
    %vm5134 = vmand %vm4984, %vm4834
    %vm5135 = vmand %vm4985, %vm4835
    %vm5136 = vmand %vm4986, %vm4836
    %vm5137 = vmand %vm4987, %vm4837
    %vm5138 = vmand %vm4988, %vm4838
    %vm5139 = vmand %vm4989, %vm4839
    %vm5140 = vmand %vm4990, %vm4840
    %vm5141 = vmand %vm4991, %vm4841
    %vm5142 = vmand %vm4992, %vm4842
    %v5143 = vadd.s32 %v371, 150
    %v5144 = vadd.s32 %v400, 150
    %v5145 = vadd.s32 %v429, 150
    %v5146 = vadd.s32 %v458, 150
    %v5147 = vadd.s32 %v487, 150
    %v5148 = vadd.s32 %v516, 150
    %v5149 = vadd.s32 %v545, 150
    %v5150 = vadd.s32 %v574, 150
    %v5151 = vadd.s32 %v603, 150
    %v5152 = vadd.s32 %v632, 150
    %v5153 = vadd.s32 %v661, 150
    %v5154 = vadd.s32 %v690, 150
    %v5155 = vadd.s32 %v719, 150
    %v5156 = vadd.s32 %v748, 150
    %v5157 = vadd.s32 %v777, 150
    %v5158 = vadd.s32 %v806, 150
    %v5159 = vadd.s32 %v835, 150
    %v5160 = vadd.s32 %v864, 150
    %v5161 = vadd.s32 %v893, 150
    %v5162 = vadd.s32 %v922, 150
    %v5163 = vadd.s32 %v951, 150
    %v5164 = vadd.s32 %v980, 150
    %v5165 = vadd.s32 %v1009, 150
    %v5166 = vadd.s32 %v1038, 150
    %v5167 = vadd.s32 %v1067, 150
    %v5168 = vadd.s32 %v1096, 150
    %v5169 = vadd.s32 %v1125, 150
    %v5170 = vadd.s32 %v1154, 150
    %v5171 = vadd.s32 %v1183, 150
    %v5172 = vadd.s32 %v1212, 150
    %v5173 = vadd.s32 %v1241, 150
    %v5174 = vadd.s32 %v1270, 150
    %v5175 = vadd.s32 %v1299, 150
    %v5176 = vadd.s32 %v1328, 150
    %v5177 = vadd.s32 %v1357, 150
    %v5178 = vadd.s32 %v1386, 150
    %v5179 = vadd.s32 %v1415, 150
    %v5180 = vadd.s32 %v1444, 150
    %v5181 = vadd.s32 %v1473, 150
    %v5182 = vadd.s32 %v1502, 150
    %v5183 = vadd.s32 %v1531, 150
    %v5184 = vadd.s32 %v1560, 150
    %v5185 = vadd.s32 %v1589, 150
    %v5186 = vadd.s32 %v1618, 150
    %v5187 = vadd.s32 %v1647, 150
    %v5188 = vadd.s32 %v1676, 150
    %v5189 = vadd.s32 %v1705, 150
    %v5190 = vadd.s32 %v1734, 150
    %v5191 = vadd.s32 %v1763, 150
    %v5192 = vadd.s32 %v1792, 150
    %v5193 = vadd.s32 %v1821, 150
    %v5194 = vadd.s32 %v1850, 150
    %v5195 = vadd.s32 %v1879, 150
    %v5196 = vadd.s32 %v1908, 150
    %v5197 = vadd.s32 %v1937, 150
    %v5198 = vadd.s32 %v1966, 150
    %v5199 = vadd.s32 %v1995, 150
    %v5200 = vadd.s32 %v2024, 150
    %v5201 = vadd.s32 %v2053, 150
    %v5202 = vadd.s32 %v2082, 150
    %v5203 = vadd.s32 %v2111, 150
    %v5204 = vadd.s32 %v2140, 150
    %v5205 = vadd.s32 %v2169, 150
    %v5206 = vadd.s32 %v2198, 150
    %v5207 = vadd.s32 %v2227, 150
    %v5208 = vadd.s32 %v2256, 150
    %v5209 = vadd.s32 %v2285, 150
    %v5210 = vadd.s32 %v2314, 150
    %v5211 = vadd.s32 %v2343, 150
    %v5212 = vadd.s32 %v2372, 150
    %v5213 = vadd.s32 %v2401, 150
    %v5214 = vadd.s32 %v2430, 150
    %v5215 = vadd.s32 %v2459, 150
    %v5216 = vadd.s32 %v2488, 150
    %v5217 = vadd.s32 %v2517, 150
    %v5218 = vadd.s32 %v2546, 150
    %v5219 = vadd.s32 %v2575, 150
    %v5220 = vadd.s32 %v2604, 150
    %v5221 = vadd.s32 %v2633, 150
    %v5222 = vadd.s32 %v2662, 150
    %v5223 = vadd.s32 %v2691, 150
    %v5224 = vadd.s32 %v2720, 150
    %v5225 = vadd.s32 %v2749, 150
    %v5226 = vadd.s32 %v2778, 150
    %v5227 = vadd.s32 %v2807, 150
    %v5228 = vadd.s32 %v2836, 150
    %v5229 = vadd.s32 %v2865, 150
    %v5230 = vadd.s32 %v2894, 150
    %v5231 = vadd.s32 %v2923, 150
    %v5232 = vadd.s32 %v2952, 150
    %v5233 = vadd.s32 %v2981, 150
    %v5234 = vadd.s32 %v3010, 150
    %v5235 = vadd.s32 %v3039, 150
    %v5236 = vadd.s32 %v3068, 150
    %v5237 = vadd.s32 %v3097, 150
    %v5238 = vadd.s32 %v3126, 150
    %v5239 = vadd.s32 %v3155, 150
    %v5240 = vadd.s32 %v3184, 150
    %v5241 = vadd.s32 %v3213, 150
    %v5242 = vadd.s32 %v3242, 150
    %v5243 = vadd.s32 %v3271, 150
    %v5244 = vadd.s32 %v3300, 150
    %v5245 = vadd.s32 %v3329, 150
    %v5246 = vadd.s32 %v3358, 150
    %v5247 = vadd.s32 %v3387, 150
    %v5248 = vadd.s32 %v3416, 150
    %v5249 = vadd.s32 %v3445, 150
    %v5250 = vadd.s32 %v3474, 150
    %v5251 = vadd.s32 %v3503, 150
    %v5252 = vadd.s32 %v3532, 150
    %v5253 = vadd.s32 %v3561, 150
    %v5254 = vadd.s32 %v3590, 150
    %v5255 = vadd.s32 %v3619, 150
    %v5256 = vadd.s32 %v3648, 150
    %v5257 = vadd.s32 %v3677, 150
    %v5258 = vadd.s32 %v3706, 150
    %v5259 = vadd.s32 %v3735, 150
    %v5260 = vadd.s32 %v3764, 150
    %v5261 = vadd.s32 %v3793, 150
    %v5262 = vadd.s32 %v3822, 150
    %v5263 = vadd.s32 %v3851, 150
    %v5264 = vadd.s32 %v3880, 150
    %v5265 = vadd.s32 %v3909, 150
    %v5266 = vadd.s32 %v3938, 150
    %v5267 = vadd.s32 %v3967, 150
    %v5268 = vadd.s32 %v3996, 150
    %v5269 = vadd.s32 %v4025, 150
    %v5270 = vadd.s32 %v4054, 150
    %v5271 = vadd.s32 %v4083, 150
    %v5272 = vadd.s32 %v4112, 150
    %v5273 = vadd.s32 %v4141, 150
    %v5274 = vadd.s32 %v4170, 150
    %v5275 = vadd.s32 %v4199, 150
    %v5276 = vadd.s32 %v4228, 150
    %v5277 = vadd.s32 %v4257, 150
    %v5278 = vadd.s32 %v4286, 150
    %v5279 = vadd.s32 %v4315, 150
    %v5280 = vadd.s32 %v4344, 150
    %v5281 = vadd.s32 %v4373, 150
    %v5282 = vadd.s32 %v4402, 150
    %v5283 = vadd.s32 %v4431, 150
    %v5284 = vadd.s32 %v4460, 150
    %v5285 = vadd.s32 %v4489, 150
    %v5286 = vadd.s32 %v4518, 150
    %v5287 = vadd.s32 %v4547, 150
    %v5288 = vadd.s32 %v4576, 150
    %v5289 = vadd.s32 %v4605, 150
    %v5290 = vadd.s32 %v4634, 150
    %v5291 = vadd.s32 %v4663, 150
    %v5292 = vadd.s32 %v4692, 150
    %v5293 = vsel %vm4993, %v5143, %v371
    %v5294 = vsel %vm4994, %v5144, %v400
    %v5295 = vsel %vm4995, %v5145, %v429
    %v5296 = vsel %vm4996, %v5146, %v458
    %v5297 = vsel %vm4997, %v5147, %v487
    %v5298 = vsel %vm4998, %v5148, %v516
    %v5299 = vsel %vm4999, %v5149, %v545
    %v5300 = vsel %vm5000, %v5150, %v574
    %v5301 = vsel %vm5001, %v5151, %v603
    %v5302 = vsel %vm5002, %v5152, %v632
    %v5303 = vsel %vm5003, %v5153, %v661
    %v5304 = vsel %vm5004, %v5154, %v690
    %v5305 = vsel %vm5005, %v5155, %v719
    %v5306 = vsel %vm5006, %v5156, %v748
    %v5307 = vsel %vm5007, %v5157, %v777
    %v5308 = vsel %vm5008, %v5158, %v806
    %v5309 = vsel %vm5009, %v5159, %v835
    %v5310 = vsel %vm5010, %v5160, %v864
    %v5311 = vsel %vm5011, %v5161, %v893
    %v5312 = vsel %vm5012, %v5162, %v922
    %v5313 = vsel %vm5013, %v5163, %v951
    %v5314 = vsel %vm5014, %v5164, %v980
    %v5315 = vsel %vm5015, %v5165, %v1009
    %v5316 = vsel %vm5016, %v5166, %v1038
    %v5317 = vsel %vm5017, %v5167, %v1067
    %v5318 = vsel %vm5018, %v5168, %v1096
    %v5319 = vsel %vm5019, %v5169, %v1125
    %v5320 = vsel %vm5020, %v5170, %v1154
    %v5321 = vsel %vm5021, %v5171, %v1183
    %v5322 = vsel %vm5022, %v5172, %v1212
    %v5323 = vsel %vm5023, %v5173, %v1241
    %v5324 = vsel %vm5024, %v5174, %v1270
    %v5325 = vsel %vm5025, %v5175, %v1299
    %v5326 = vsel %vm5026, %v5176, %v1328
    %v5327 = vsel %vm5027, %v5177, %v1357
    %v5328 = vsel %vm5028, %v5178, %v1386
    %v5329 = vsel %vm5029, %v5179, %v1415
    %v5330 = vsel %vm5030, %v5180, %v1444
    %v5331 = vsel %vm5031, %v5181, %v1473
    %v5332 = vsel %vm5032, %v5182, %v1502
    %v5333 = vsel %vm5033, %v5183, %v1531
    %v5334 = vsel %vm5034, %v5184, %v1560
    %v5335 = vsel %vm5035, %v5185, %v1589
    %v5336 = vsel %vm5036, %v5186, %v1618
    %v5337 = vsel %vm5037, %v5187, %v1647
    %v5338 = vsel %vm5038, %v5188, %v1676
    %v5339 = vsel %vm5039, %v5189, %v1705
    %v5340 = vsel %vm5040, %v5190, %v1734
    %v5341 = vsel %vm5041, %v5191, %v1763
    %v5342 = vsel %vm5042, %v5192, %v1792
    %v5343 = vsel %vm5043, %v5193, %v1821
    %v5344 = vsel %vm5044, %v5194, %v1850
    %v5345 = vsel %vm5045, %v5195, %v1879
    %v5346 = vsel %vm5046, %v5196, %v1908
    %v5347 = vsel %vm5047, %v5197, %v1937
    %v5348 = vsel %vm5048, %v5198, %v1966
    %v5349 = vsel %vm5049, %v5199, %v1995
    %v5350 = vsel %vm5050, %v5200, %v2024
    %v5351 = vsel %vm5051, %v5201, %v2053
    %v5352 = vsel %vm5052, %v5202, %v2082
    %v5353 = vsel %vm5053, %v5203, %v2111
    %v5354 = vsel %vm5054, %v5204, %v2140
    %v5355 = vsel %vm5055, %v5205, %v2169
    %v5356 = vsel %vm5056, %v5206, %v2198
    %v5357 = vsel %vm5057, %v5207, %v2227
    %v5358 = vsel %vm5058, %v5208, %v2256
    %v5359 = vsel %vm5059, %v5209, %v2285
    %v5360 = vsel %vm5060, %v5210, %v2314
    %v5361 = vsel %vm5061, %v5211, %v2343
    %v5362 = vsel %vm5062, %v5212, %v2372
    %v5363 = vsel %vm5063, %v5213, %v2401
    %v5364 = vsel %vm5064, %v5214, %v2430
    %v5365 = vsel %vm5065, %v5215, %v2459
    %v5366 = vsel %vm5066, %v5216, %v2488
    %v5367 = vsel %vm5067, %v5217, %v2517
    %v5368 = vsel %vm5068, %v5218, %v2546
    %v5369 = vsel %vm5069, %v5219, %v2575
    %v5370 = vsel %vm5070, %v5220, %v2604
    %v5371 = vsel %vm5071, %v5221, %v2633
    %v5372 = vsel %vm5072, %v5222, %v2662
    %v5373 = vsel %vm5073, %v5223, %v2691
    %v5374 = vsel %vm5074, %v5224, %v2720
    %v5375 = vsel %vm5075, %v5225, %v2749
    %v5376 = vsel %vm5076, %v5226, %v2778
    %v5377 = vsel %vm5077, %v5227, %v2807
    %v5378 = vsel %vm5078, %v5228, %v2836
    %v5379 = vsel %vm5079, %v5229, %v2865
    %v5380 = vsel %vm5080, %v5230, %v2894
    %v5381 = vsel %vm5081, %v5231, %v2923
    %v5382 = vsel %vm5082, %v5232, %v2952
    %v5383 = vsel %vm5083, %v5233, %v2981
    %v5384 = vsel %vm5084, %v5234, %v3010
    %v5385 = vsel %vm5085, %v5235, %v3039
    %v5386 = vsel %vm5086, %v5236, %v3068
    %v5387 = vsel %vm5087, %v5237, %v3097
    %v5388 = vsel %vm5088, %v5238, %v3126
    %v5389 = vsel %vm5089, %v5239, %v3155
    %v5390 = vsel %vm5090, %v5240, %v3184
    %v5391 = vsel %vm5091, %v5241, %v3213
    %v5392 = vsel %vm5092, %v5242, %v3242
    %v5393 = vsel %vm5093, %v5243, %v3271
    %v5394 = vsel %vm5094, %v5244, %v3300
    %v5395 = vsel %vm5095, %v5245, %v3329
    %v5396 = vsel %vm5096, %v5246, %v3358
    %v5397 = vsel %vm5097, %v5247, %v3387
    %v5398 = vsel %vm5098, %v5248, %v3416
    %v5399 = vsel %vm5099, %v5249, %v3445
    %v5400 = vsel %vm5100, %v5250, %v3474
    %v5401 = vsel %vm5101, %v5251, %v3503
    %v5402 = vsel %vm5102, %v5252, %v3532
    %v5403 = vsel %vm5103, %v5253, %v3561
    %v5404 = vsel %vm5104, %v5254, %v3590
    %v5405 = vsel %vm5105, %v5255, %v3619
    %v5406 = vsel %vm5106, %v5256, %v3648
    %v5407 = vsel %vm5107, %v5257, %v3677
    %v5408 = vsel %vm5108, %v5258, %v3706
    %v5409 = vsel %vm5109, %v5259, %v3735
    %v5410 = vsel %vm5110, %v5260, %v3764
    %v5411 = vsel %vm5111, %v5261, %v3793
    %v5412 = vsel %vm5112, %v5262, %v3822
    %v5413 = vsel %vm5113, %v5263, %v3851
    %v5414 = vsel %vm5114, %v5264, %v3880
    %v5415 = vsel %vm5115, %v5265, %v3909
    %v5416 = vsel %vm5116, %v5266, %v3938
    %v5417 = vsel %vm5117, %v5267, %v3967
    %v5418 = vsel %vm5118, %v5268, %v3996
    %v5419 = vsel %vm5119, %v5269, %v4025
    %v5420 = vsel %vm5120, %v5270, %v4054
    %v5421 = vsel %vm5121, %v5271, %v4083
    %v5422 = vsel %vm5122, %v5272, %v4112
    %v5423 = vsel %vm5123, %v5273, %v4141
    %v5424 = vsel %vm5124, %v5274, %v4170
    %v5425 = vsel %vm5125, %v5275, %v4199
    %v5426 = vsel %vm5126, %v5276, %v4228
    %v5427 = vsel %vm5127, %v5277, %v4257
    %v5428 = vsel %vm5128, %v5278, %v4286
    %v5429 = vsel %vm5129, %v5279, %v4315
    %v5430 = vsel %vm5130, %v5280, %v4344
    %v5431 = vsel %vm5131, %v5281, %v4373
    %v5432 = vsel %vm5132, %v5282, %v4402
    %v5433 = vsel %vm5133, %v5283, %v4431
    %v5434 = vsel %vm5134, %v5284, %v4460
    %v5435 = vsel %vm5135, %v5285, %v4489
    %v5436 = vsel %vm5136, %v5286, %v4518
    %v5437 = vsel %vm5137, %v5287, %v4547
    %v5438 = vsel %vm5138, %v5288, %v4576
    %v5439 = vsel %vm5139, %v5289, %v4605
    %v5440 = vsel %vm5140, %v5290, %v4634
    %v5441 = vsel %vm5141, %v5291, %v4663
    %v5442 = vsel %vm5142, %v5292, %v4692
    %s5443 = sld [smem:[#allocation3]]
    %v5444 = vstv %s5443
    %vm5445 = vcmp.eq.s32.totalorder %v5293, %v5444
    %vm5446 = vcmp.eq.s32.totalorder %v5294, %v5444
    %vm5447 = vcmp.eq.s32.totalorder %v5295, %v5444
    %vm5448 = vcmp.eq.s32.totalorder %v5296, %v5444
    %vm5449 = vcmp.eq.s32.totalorder %v5297, %v5444
    %vm5450 = vcmp.eq.s32.totalorder %v5298, %v5444
    %vm5451 = vcmp.eq.s32.totalorder %v5299, %v5444
    %vm5452 = vcmp.eq.s32.totalorder %v5300, %v5444
    %vm5453 = vcmp.eq.s32.totalorder %v5301, %v5444
    %vm5454 = vcmp.eq.s32.totalorder %v5302, %v5444
    %vm5455 = vcmp.eq.s32.totalorder %v5303, %v5444
    %vm5456 = vcmp.eq.s32.totalorder %v5304, %v5444
    %vm5457 = vcmp.eq.s32.totalorder %v5305, %v5444
    %vm5458 = vcmp.eq.s32.totalorder %v5306, %v5444
    %vm5459 = vcmp.eq.s32.totalorder %v5307, %v5444
    %vm5460 = vcmp.eq.s32.totalorder %v5308, %v5444
    %vm5461 = vcmp.eq.s32.totalorder %v5309, %v5444
    %vm5462 = vcmp.eq.s32.totalorder %v5310, %v5444
    %vm5463 = vcmp.eq.s32.totalorder %v5311, %v5444
    %vm5464 = vcmp.eq.s32.totalorder %v5312, %v5444
    %vm5465 = vcmp.eq.s32.totalorder %v5313, %v5444
    %vm5466 = vcmp.eq.s32.totalorder %v5314, %v5444
    %vm5467 = vcmp.eq.s32.totalorder %v5315, %v5444
    %vm5468 = vcmp.eq.s32.totalorder %v5316, %v5444
    %vm5469 = vcmp.eq.s32.totalorder %v5317, %v5444
    %vm5470 = vcmp.eq.s32.totalorder %v5318, %v5444
    %vm5471 = vcmp.eq.s32.totalorder %v5319, %v5444
    %vm5472 = vcmp.eq.s32.totalorder %v5320, %v5444
    %vm5473 = vcmp.eq.s32.totalorder %v5321, %v5444
    %vm5474 = vcmp.eq.s32.totalorder %v5322, %v5444
    %vm5475 = vcmp.eq.s32.totalorder %v5323, %v5444
    %vm5476 = vcmp.eq.s32.totalorder %v5324, %v5444
    %vm5477 = vcmp.eq.s32.totalorder %v5325, %v5444
    %vm5478 = vcmp.eq.s32.totalorder %v5326, %v5444
    %vm5479 = vcmp.eq.s32.totalorder %v5327, %v5444
    %vm5480 = vcmp.eq.s32.totalorder %v5328, %v5444
    %vm5481 = vcmp.eq.s32.totalorder %v5329, %v5444
    %vm5482 = vcmp.eq.s32.totalorder %v5330, %v5444
    %vm5483 = vcmp.eq.s32.totalorder %v5331, %v5444
    %vm5484 = vcmp.eq.s32.totalorder %v5332, %v5444
    %vm5485 = vcmp.eq.s32.totalorder %v5333, %v5444
    %vm5486 = vcmp.eq.s32.totalorder %v5334, %v5444
    %vm5487 = vcmp.eq.s32.totalorder %v5335, %v5444
    %vm5488 = vcmp.eq.s32.totalorder %v5336, %v5444
    %vm5489 = vcmp.eq.s32.totalorder %v5337, %v5444
    %vm5490 = vcmp.eq.s32.totalorder %v5338, %v5444
    %vm5491 = vcmp.eq.s32.totalorder %v5339, %v5444
    %vm5492 = vcmp.eq.s32.totalorder %v5340, %v5444
    %vm5493 = vcmp.eq.s32.totalorder %v5341, %v5444
    %vm5494 = vcmp.eq.s32.totalorder %v5342, %v5444
    %vm5495 = vcmp.eq.s32.totalorder %v5343, %v5444
    %vm5496 = vcmp.eq.s32.totalorder %v5344, %v5444
    %vm5497 = vcmp.eq.s32.totalorder %v5345, %v5444
    %vm5498 = vcmp.eq.s32.totalorder %v5346, %v5444
    %vm5499 = vcmp.eq.s32.totalorder %v5347, %v5444
    %vm5500 = vcmp.eq.s32.totalorder %v5348, %v5444
    %vm5501 = vcmp.eq.s32.totalorder %v5349, %v5444
    %vm5502 = vcmp.eq.s32.totalorder %v5350, %v5444
    %vm5503 = vcmp.eq.s32.totalorder %v5351, %v5444
    %vm5504 = vcmp.eq.s32.totalorder %v5352, %v5444
    %vm5505 = vcmp.eq.s32.totalorder %v5353, %v5444
    %vm5506 = vcmp.eq.s32.totalorder %v5354, %v5444
    %vm5507 = vcmp.eq.s32.totalorder %v5355, %v5444
    %vm5508 = vcmp.eq.s32.totalorder %v5356, %v5444
    %vm5509 = vcmp.eq.s32.totalorder %v5357, %v5444
    %vm5510 = vcmp.eq.s32.totalorder %v5358, %v5444
    %vm5511 = vcmp.eq.s32.totalorder %v5359, %v5444
    %vm5512 = vcmp.eq.s32.totalorder %v5360, %v5444
    %vm5513 = vcmp.eq.s32.totalorder %v5361, %v5444
    %vm5514 = vcmp.eq.s32.totalorder %v5362, %v5444
    %vm5515 = vcmp.eq.s32.totalorder %v5363, %v5444
    %vm5516 = vcmp.eq.s32.totalorder %v5364, %v5444
    %vm5517 = vcmp.eq.s32.totalorder %v5365, %v5444
    %vm5518 = vcmp.eq.s32.totalorder %v5366, %v5444
    %vm5519 = vcmp.eq.s32.totalorder %v5367, %v5444
    %vm5520 = vcmp.eq.s32.totalorder %v5368, %v5444
    %vm5521 = vcmp.eq.s32.totalorder %v5369, %v5444
    %vm5522 = vcmp.eq.s32.totalorder %v5370, %v5444
    %vm5523 = vcmp.eq.s32.totalorder %v5371, %v5444
    %vm5524 = vcmp.eq.s32.totalorder %v5372, %v5444
    %vm5525 = vcmp.eq.s32.totalorder %v5373, %v5444
    %vm5526 = vcmp.eq.s32.totalorder %v5374, %v5444
    %vm5527 = vcmp.eq.s32.totalorder %v5375, %v5444
    %vm5528 = vcmp.eq.s32.totalorder %v5376, %v5444
    %vm5529 = vcmp.eq.s32.totalorder %v5377, %v5444
    %vm5530 = vcmp.eq.s32.totalorder %v5378, %v5444
    %vm5531 = vcmp.eq.s32.totalorder %v5379, %v5444
    %vm5532 = vcmp.eq.s32.totalorder %v5380, %v5444
    %vm5533 = vcmp.eq.s32.totalorder %v5381, %v5444
    %vm5534 = vcmp.eq.s32.totalorder %v5382, %v5444
    %vm5535 = vcmp.eq.s32.totalorder %v5383, %v5444
    %vm5536 = vcmp.eq.s32.totalorder %v5384, %v5444
    %vm5537 = vcmp.eq.s32.totalorder %v5385, %v5444
    %vm5538 = vcmp.eq.s32.totalorder %v5386, %v5444
    %vm5539 = vcmp.eq.s32.totalorder %v5387, %v5444
    %vm5540 = vcmp.eq.s32.totalorder %v5388, %v5444
    %vm5541 = vcmp.eq.s32.totalorder %v5389, %v5444
    %vm5542 = vcmp.eq.s32.totalorder %v5390, %v5444
    %vm5543 = vcmp.eq.s32.totalorder %v5391, %v5444
    %vm5544 = vcmp.eq.s32.totalorder %v5392, %v5444
    %vm5545 = vcmp.eq.s32.totalorder %v5393, %v5444
    %vm5546 = vcmp.eq.s32.totalorder %v5394, %v5444
    %vm5547 = vcmp.eq.s32.totalorder %v5395, %v5444
    %vm5548 = vcmp.eq.s32.totalorder %v5396, %v5444
    %vm5549 = vcmp.eq.s32.totalorder %v5397, %v5444
    %vm5550 = vcmp.eq.s32.totalorder %v5398, %v5444
    %vm5551 = vcmp.eq.s32.totalorder %v5399, %v5444
    %vm5552 = vcmp.eq.s32.totalorder %v5400, %v5444
    %vm5553 = vcmp.eq.s32.totalorder %v5401, %v5444
    %vm5554 = vcmp.eq.s32.totalorder %v5402, %v5444
    %vm5555 = vcmp.eq.s32.totalorder %v5403, %v5444
    %vm5556 = vcmp.eq.s32.totalorder %v5404, %v5444
    %vm5557 = vcmp.eq.s32.totalorder %v5405, %v5444
    %vm5558 = vcmp.eq.s32.totalorder %v5406, %v5444
    %vm5559 = vcmp.eq.s32.totalorder %v5407, %v5444
    %vm5560 = vcmp.eq.s32.totalorder %v5408, %v5444
    %vm5561 = vcmp.eq.s32.totalorder %v5409, %v5444
    %vm5562 = vcmp.eq.s32.totalorder %v5410, %v5444
    %vm5563 = vcmp.eq.s32.totalorder %v5411, %v5444
    %vm5564 = vcmp.eq.s32.totalorder %v5412, %v5444
    %vm5565 = vcmp.eq.s32.totalorder %v5413, %v5444
    %vm5566 = vcmp.eq.s32.totalorder %v5414, %v5444
    %vm5567 = vcmp.eq.s32.totalorder %v5415, %v5444
    %vm5568 = vcmp.eq.s32.totalorder %v5416, %v5444
    %vm5569 = vcmp.eq.s32.totalorder %v5417, %v5444
    %vm5570 = vcmp.eq.s32.totalorder %v5418, %v5444
    %vm5571 = vcmp.eq.s32.totalorder %v5419, %v5444
    %vm5572 = vcmp.eq.s32.totalorder %v5420, %v5444
    %vm5573 = vcmp.eq.s32.totalorder %v5421, %v5444
    %vm5574 = vcmp.eq.s32.totalorder %v5422, %v5444
    %vm5575 = vcmp.eq.s32.totalorder %v5423, %v5444
    %vm5576 = vcmp.eq.s32.totalorder %v5424, %v5444
    %vm5577 = vcmp.eq.s32.totalorder %v5425, %v5444
    %vm5578 = vcmp.eq.s32.totalorder %v5426, %v5444
    %vm5579 = vcmp.eq.s32.totalorder %v5427, %v5444
    %vm5580 = vcmp.eq.s32.totalorder %v5428, %v5444
    %vm5581 = vcmp.eq.s32.totalorder %v5429, %v5444
    %vm5582 = vcmp.eq.s32.totalorder %v5430, %v5444
    %vm5583 = vcmp.eq.s32.totalorder %v5431, %v5444
    %vm5584 = vcmp.eq.s32.totalorder %v5432, %v5444
    %vm5585 = vcmp.eq.s32.totalorder %v5433, %v5444
    %vm5586 = vcmp.eq.s32.totalorder %v5434, %v5444
    %vm5587 = vcmp.eq.s32.totalorder %v5435, %v5444
    %vm5588 = vcmp.eq.s32.totalorder %v5436, %v5444
    %vm5589 = vcmp.eq.s32.totalorder %v5437, %v5444
    %vm5590 = vcmp.eq.s32.totalorder %v5438, %v5444
    %vm5591 = vcmp.eq.s32.totalorder %v5439, %v5444
    %vm5592 = vcmp.eq.s32.totalorder %v5440, %v5444
    %vm5593 = vcmp.eq.s32.totalorder %v5441, %v5444
    %vm5594 = vcmp.eq.s32.totalorder %v5442, %v5444
    %s5595 = sld [smem:[#allocation3 + $0x1]]
    %v5596 = vstv %s5595
    %vm5597 = vcmp.eq.s32.totalorder %v5293, %v5596
    %vm5598 = vcmp.eq.s32.totalorder %v5294, %v5596
    %vm5599 = vcmp.eq.s32.totalorder %v5295, %v5596
    %vm5600 = vcmp.eq.s32.totalorder %v5296, %v5596
    %vm5601 = vcmp.eq.s32.totalorder %v5297, %v5596
    %vm5602 = vcmp.eq.s32.totalorder %v5298, %v5596
    %vm5603 = vcmp.eq.s32.totalorder %v5299, %v5596
    %vm5604 = vcmp.eq.s32.totalorder %v5300, %v5596
    %vm5605 = vcmp.eq.s32.totalorder %v5301, %v5596
    %vm5606 = vcmp.eq.s32.totalorder %v5302, %v5596
    %vm5607 = vcmp.eq.s32.totalorder %v5303, %v5596
    %vm5608 = vcmp.eq.s32.totalorder %v5304, %v5596
    %vm5609 = vcmp.eq.s32.totalorder %v5305, %v5596
    %vm5610 = vcmp.eq.s32.totalorder %v5306, %v5596
    %vm5611 = vcmp.eq.s32.totalorder %v5307, %v5596
    %vm5612 = vcmp.eq.s32.totalorder %v5308, %v5596
    %vm5613 = vcmp.eq.s32.totalorder %v5309, %v5596
    %vm5614 = vcmp.eq.s32.totalorder %v5310, %v5596
    %vm5615 = vcmp.eq.s32.totalorder %v5311, %v5596
    %vm5616 = vcmp.eq.s32.totalorder %v5312, %v5596
    %vm5617 = vcmp.eq.s32.totalorder %v5313, %v5596
    %vm5618 = vcmp.eq.s32.totalorder %v5314, %v5596
    %vm5619 = vcmp.eq.s32.totalorder %v5315, %v5596
    %vm5620 = vcmp.eq.s32.totalorder %v5316, %v5596
    %vm5621 = vcmp.eq.s32.totalorder %v5317, %v5596
    %vm5622 = vcmp.eq.s32.totalorder %v5318, %v5596
    %vm5623 = vcmp.eq.s32.totalorder %v5319, %v5596
    %vm5624 = vcmp.eq.s32.totalorder %v5320, %v5596
    %vm5625 = vcmp.eq.s32.totalorder %v5321, %v5596
    %vm5626 = vcmp.eq.s32.totalorder %v5322, %v5596
    %vm5627 = vcmp.eq.s32.totalorder %v5323, %v5596
    %vm5628 = vcmp.eq.s32.totalorder %v5324, %v5596
    %vm5629 = vcmp.eq.s32.totalorder %v5325, %v5596
    %vm5630 = vcmp.eq.s32.totalorder %v5326, %v5596
    %vm5631 = vcmp.eq.s32.totalorder %v5327, %v5596
    %vm5632 = vcmp.eq.s32.totalorder %v5328, %v5596
    %vm5633 = vcmp.eq.s32.totalorder %v5329, %v5596
    %vm5634 = vcmp.eq.s32.totalorder %v5330, %v5596
    %vm5635 = vcmp.eq.s32.totalorder %v5331, %v5596
    %vm5636 = vcmp.eq.s32.totalorder %v5332, %v5596
    %vm5637 = vcmp.eq.s32.totalorder %v5333, %v5596
    %vm5638 = vcmp.eq.s32.totalorder %v5334, %v5596
    %vm5639 = vcmp.eq.s32.totalorder %v5335, %v5596
    %vm5640 = vcmp.eq.s32.totalorder %v5336, %v5596
    %vm5641 = vcmp.eq.s32.totalorder %v5337, %v5596
    %vm5642 = vcmp.eq.s32.totalorder %v5338, %v5596
    %vm5643 = vcmp.eq.s32.totalorder %v5339, %v5596
    %vm5644 = vcmp.eq.s32.totalorder %v5340, %v5596
    %vm5645 = vcmp.eq.s32.totalorder %v5341, %v5596
    %vm5646 = vcmp.eq.s32.totalorder %v5342, %v5596
    %vm5647 = vcmp.eq.s32.totalorder %v5343, %v5596
    %vm5648 = vcmp.eq.s32.totalorder %v5344, %v5596
    %vm5649 = vcmp.eq.s32.totalorder %v5345, %v5596
    %vm5650 = vcmp.eq.s32.totalorder %v5346, %v5596
    %vm5651 = vcmp.eq.s32.totalorder %v5347, %v5596
    %vm5652 = vcmp.eq.s32.totalorder %v5348, %v5596
    %vm5653 = vcmp.eq.s32.totalorder %v5349, %v5596
    %vm5654 = vcmp.eq.s32.totalorder %v5350, %v5596
    %vm5655 = vcmp.eq.s32.totalorder %v5351, %v5596
    %vm5656 = vcmp.eq.s32.totalorder %v5352, %v5596
    %vm5657 = vcmp.eq.s32.totalorder %v5353, %v5596
    %vm5658 = vcmp.eq.s32.totalorder %v5354, %v5596
    %vm5659 = vcmp.eq.s32.totalorder %v5355, %v5596
    %vm5660 = vcmp.eq.s32.totalorder %v5356, %v5596
    %vm5661 = vcmp.eq.s32.totalorder %v5357, %v5596
    %vm5662 = vcmp.eq.s32.totalorder %v5358, %v5596
    %vm5663 = vcmp.eq.s32.totalorder %v5359, %v5596
    %vm5664 = vcmp.eq.s32.totalorder %v5360, %v5596
    %vm5665 = vcmp.eq.s32.totalorder %v5361, %v5596
    %vm5666 = vcmp.eq.s32.totalorder %v5362, %v5596
    %vm5667 = vcmp.eq.s32.totalorder %v5363, %v5596
    %vm5668 = vcmp.eq.s32.totalorder %v5364, %v5596
    %vm5669 = vcmp.eq.s32.totalorder %v5365, %v5596
    %vm5670 = vcmp.eq.s32.totalorder %v5366, %v5596
    %vm5671 = vcmp.eq.s32.totalorder %v5367, %v5596
    %vm5672 = vcmp.eq.s32.totalorder %v5368, %v5596
    %vm5673 = vcmp.eq.s32.totalorder %v5369, %v5596
    %vm5674 = vcmp.eq.s32.totalorder %v5370, %v5596
    %vm5675 = vcmp.eq.s32.totalorder %v5371, %v5596
    %vm5676 = vcmp.eq.s32.totalorder %v5372, %v5596
    %vm5677 = vcmp.eq.s32.totalorder %v5373, %v5596
    %vm5678 = vcmp.eq.s32.totalorder %v5374, %v5596
    %vm5679 = vcmp.eq.s32.totalorder %v5375, %v5596
    %vm5680 = vcmp.eq.s32.totalorder %v5376, %v5596
    %vm5681 = vcmp.eq.s32.totalorder %v5377, %v5596
    %vm5682 = vcmp.eq.s32.totalorder %v5378, %v5596
    %vm5683 = vcmp.eq.s32.totalorder %v5379, %v5596
    %vm5684 = vcmp.eq.s32.totalorder %v5380, %v5596
    %vm5685 = vcmp.eq.s32.totalorder %v5381, %v5596
    %vm5686 = vcmp.eq.s32.totalorder %v5382, %v5596
    %vm5687 = vcmp.eq.s32.totalorder %v5383, %v5596
    %vm5688 = vcmp.eq.s32.totalorder %v5384, %v5596
    %vm5689 = vcmp.eq.s32.totalorder %v5385, %v5596
    %vm5690 = vcmp.eq.s32.totalorder %v5386, %v5596
    %vm5691 = vcmp.eq.s32.totalorder %v5387, %v5596
    %vm5692 = vcmp.eq.s32.totalorder %v5388, %v5596
    %vm5693 = vcmp.eq.s32.totalorder %v5389, %v5596
    %vm5694 = vcmp.eq.s32.totalorder %v5390, %v5596
    %vm5695 = vcmp.eq.s32.totalorder %v5391, %v5596
    %vm5696 = vcmp.eq.s32.totalorder %v5392, %v5596
    %vm5697 = vcmp.eq.s32.totalorder %v5393, %v5596
    %vm5698 = vcmp.eq.s32.totalorder %v5394, %v5596
    %vm5699 = vcmp.eq.s32.totalorder %v5395, %v5596
    %vm5700 = vcmp.eq.s32.totalorder %v5396, %v5596
    %vm5701 = vcmp.eq.s32.totalorder %v5397, %v5596
    %vm5702 = vcmp.eq.s32.totalorder %v5398, %v5596
    %vm5703 = vcmp.eq.s32.totalorder %v5399, %v5596
    %vm5704 = vcmp.eq.s32.totalorder %v5400, %v5596
    %vm5705 = vcmp.eq.s32.totalorder %v5401, %v5596
    %vm5706 = vcmp.eq.s32.totalorder %v5402, %v5596
    %vm5707 = vcmp.eq.s32.totalorder %v5403, %v5596
    %vm5708 = vcmp.eq.s32.totalorder %v5404, %v5596
    %vm5709 = vcmp.eq.s32.totalorder %v5405, %v5596
    %vm5710 = vcmp.eq.s32.totalorder %v5406, %v5596
    %vm5711 = vcmp.eq.s32.totalorder %v5407, %v5596
    %vm5712 = vcmp.eq.s32.totalorder %v5408, %v5596
    %vm5713 = vcmp.eq.s32.totalorder %v5409, %v5596
    %vm5714 = vcmp.eq.s32.totalorder %v5410, %v5596
    %vm5715 = vcmp.eq.s32.totalorder %v5411, %v5596
    %vm5716 = vcmp.eq.s32.totalorder %v5412, %v5596
    %vm5717 = vcmp.eq.s32.totalorder %v5413, %v5596
    %vm5718 = vcmp.eq.s32.totalorder %v5414, %v5596
    %vm5719 = vcmp.eq.s32.totalorder %v5415, %v5596
    %vm5720 = vcmp.eq.s32.totalorder %v5416, %v5596
    %vm5721 = vcmp.eq.s32.totalorder %v5417, %v5596
    %vm5722 = vcmp.eq.s32.totalorder %v5418, %v5596
    %vm5723 = vcmp.eq.s32.totalorder %v5419, %v5596
    %vm5724 = vcmp.eq.s32.totalorder %v5420, %v5596
    %vm5725 = vcmp.eq.s32.totalorder %v5421, %v5596
    %vm5726 = vcmp.eq.s32.totalorder %v5422, %v5596
    %vm5727 = vcmp.eq.s32.totalorder %v5423, %v5596
    %vm5728 = vcmp.eq.s32.totalorder %v5424, %v5596
    %vm5729 = vcmp.eq.s32.totalorder %v5425, %v5596
    %vm5730 = vcmp.eq.s32.totalorder %v5426, %v5596
    %vm5731 = vcmp.eq.s32.totalorder %v5427, %v5596
    %vm5732 = vcmp.eq.s32.totalorder %v5428, %v5596
    %vm5733 = vcmp.eq.s32.totalorder %v5429, %v5596
    %vm5734 = vcmp.eq.s32.totalorder %v5430, %v5596
    %vm5735 = vcmp.eq.s32.totalorder %v5431, %v5596
    %vm5736 = vcmp.eq.s32.totalorder %v5432, %v5596
    %vm5737 = vcmp.eq.s32.totalorder %v5433, %v5596
    %vm5738 = vcmp.eq.s32.totalorder %v5434, %v5596
    %vm5739 = vcmp.eq.s32.totalorder %v5435, %v5596
    %vm5740 = vcmp.eq.s32.totalorder %v5436, %v5596
    %vm5741 = vcmp.eq.s32.totalorder %v5437, %v5596
    %vm5742 = vcmp.eq.s32.totalorder %v5438, %v5596
    %vm5743 = vcmp.eq.s32.totalorder %v5439, %v5596
    %vm5744 = vcmp.eq.s32.totalorder %v5440, %v5596
    %vm5745 = vcmp.eq.s32.totalorder %v5441, %v5596
    %vm5746 = vcmp.eq.s32.totalorder %v5442, %v5596
    %vm5747 = vmor %vm5445, %vm5597
    %vm5748 = vmor %vm5446, %vm5598
    %vm5749 = vmor %vm5447, %vm5599
    %vm5750 = vmor %vm5448, %vm5600
    %vm5751 = vmor %vm5449, %vm5601
    %vm5752 = vmor %vm5450, %vm5602
    %vm5753 = vmor %vm5451, %vm5603
    %vm5754 = vmor %vm5452, %vm5604
    %vm5755 = vmor %vm5453, %vm5605
    %vm5756 = vmor %vm5454, %vm5606
    %vm5757 = vmor %vm5455, %vm5607
    %vm5758 = vmor %vm5456, %vm5608
    %vm5759 = vmor %vm5457, %vm5609
    %vm5760 = vmor %vm5458, %vm5610
    %vm5761 = vmor %vm5459, %vm5611
    %vm5762 = vmor %vm5460, %vm5612
    %vm5763 = vmor %vm5461, %vm5613
    %vm5764 = vmor %vm5462, %vm5614
    %vm5765 = vmor %vm5463, %vm5615
    %vm5766 = vmor %vm5464, %vm5616
    %vm5767 = vmor %vm5465, %vm5617
    %vm5768 = vmor %vm5466, %vm5618
    %vm5769 = vmor %vm5467, %vm5619
    %vm5770 = vmor %vm5468, %vm5620
    %vm5771 = vmor %vm5469, %vm5621
    %vm5772 = vmor %vm5470, %vm5622
    %vm5773 = vmor %vm5471, %vm5623
    %vm5774 = vmor %vm5472, %vm5624
    %vm5775 = vmor %vm5473, %vm5625
    %vm5776 = vmor %vm5474, %vm5626
    %vm5777 = vmor %vm5475, %vm5627
    %vm5778 = vmor %vm5476, %vm5628
    %vm5779 = vmor %vm5477, %vm5629
    %vm5780 = vmor %vm5478, %vm5630
    %vm5781 = vmor %vm5479, %vm5631
    %vm5782 = vmor %vm5480, %vm5632
    %vm5783 = vmor %vm5481, %vm5633
    %vm5784 = vmor %vm5482, %vm5634
    %vm5785 = vmor %vm5483, %vm5635
    %vm5786 = vmor %vm5484, %vm5636
    %vm5787 = vmor %vm5485, %vm5637
    %vm5788 = vmor %vm5486, %vm5638
    %vm5789 = vmor %vm5487, %vm5639
    %vm5790 = vmor %vm5488, %vm5640
    %vm5791 = vmor %vm5489, %vm5641
    %vm5792 = vmor %vm5490, %vm5642
    %vm5793 = vmor %vm5491, %vm5643
    %vm5794 = vmor %vm5492, %vm5644
    %vm5795 = vmor %vm5493, %vm5645
    %vm5796 = vmor %vm5494, %vm5646
    %vm5797 = vmor %vm5495, %vm5647
    %vm5798 = vmor %vm5496, %vm5648
    %vm5799 = vmor %vm5497, %vm5649
    %vm5800 = vmor %vm5498, %vm5650
    %vm5801 = vmor %vm5499, %vm5651
    %vm5802 = vmor %vm5500, %vm5652
    %vm5803 = vmor %vm5501, %vm5653
    %vm5804 = vmor %vm5502, %vm5654
    %vm5805 = vmor %vm5503, %vm5655
    %vm5806 = vmor %vm5504, %vm5656
    %vm5807 = vmor %vm5505, %vm5657
    %vm5808 = vmor %vm5506, %vm5658
    %vm5809 = vmor %vm5507, %vm5659
    %vm5810 = vmor %vm5508, %vm5660
    %vm5811 = vmor %vm5509, %vm5661
    %vm5812 = vmor %vm5510, %vm5662
    %vm5813 = vmor %vm5511, %vm5663
    %vm5814 = vmor %vm5512, %vm5664
    %vm5815 = vmor %vm5513, %vm5665
    %vm5816 = vmor %vm5514, %vm5666
    %vm5817 = vmor %vm5515, %vm5667
    %vm5818 = vmor %vm5516, %vm5668
    %vm5819 = vmor %vm5517, %vm5669
    %vm5820 = vmor %vm5518, %vm5670
    %vm5821 = vmor %vm5519, %vm5671
    %vm5822 = vmor %vm5520, %vm5672
    %vm5823 = vmor %vm5521, %vm5673
    %vm5824 = vmor %vm5522, %vm5674
    %vm5825 = vmor %vm5523, %vm5675
    %vm5826 = vmor %vm5524, %vm5676
    %vm5827 = vmor %vm5525, %vm5677
    %vm5828 = vmor %vm5526, %vm5678
    %vm5829 = vmor %vm5527, %vm5679
    %vm5830 = vmor %vm5528, %vm5680
    %vm5831 = vmor %vm5529, %vm5681
    %vm5832 = vmor %vm5530, %vm5682
    %vm5833 = vmor %vm5531, %vm5683
    %vm5834 = vmor %vm5532, %vm5684
    %vm5835 = vmor %vm5533, %vm5685
    %vm5836 = vmor %vm5534, %vm5686
    %vm5837 = vmor %vm5535, %vm5687
    %vm5838 = vmor %vm5536, %vm5688
    %vm5839 = vmor %vm5537, %vm5689
    %vm5840 = vmor %vm5538, %vm5690
    %vm5841 = vmor %vm5539, %vm5691
    %vm5842 = vmor %vm5540, %vm5692
    %vm5843 = vmor %vm5541, %vm5693
    %vm5844 = vmor %vm5542, %vm5694
    %vm5845 = vmor %vm5543, %vm5695
    %vm5846 = vmor %vm5544, %vm5696
    %vm5847 = vmor %vm5545, %vm5697
    %vm5848 = vmor %vm5546, %vm5698
    %vm5849 = vmor %vm5547, %vm5699
    %vm5850 = vmor %vm5548, %vm5700
    %vm5851 = vmor %vm5549, %vm5701
    %vm5852 = vmor %vm5550, %vm5702
    %vm5853 = vmor %vm5551, %vm5703
    %vm5854 = vmor %vm5552, %vm5704
    %vm5855 = vmor %vm5553, %vm5705
    %vm5856 = vmor %vm5554, %vm5706
    %vm5857 = vmor %vm5555, %vm5707
    %vm5858 = vmor %vm5556, %vm5708
    %vm5859 = vmor %vm5557, %vm5709
    %vm5860 = vmor %vm5558, %vm5710
    %vm5861 = vmor %vm5559, %vm5711
    %vm5862 = vmor %vm5560, %vm5712
    %vm5863 = vmor %vm5561, %vm5713
    %vm5864 = vmor %vm5562, %vm5714
    %vm5865 = vmor %vm5563, %vm5715
    %vm5866 = vmor %vm5564, %vm5716
    %vm5867 = vmor %vm5565, %vm5717
    %vm5868 = vmor %vm5566, %vm5718
    %vm5869 = vmor %vm5567, %vm5719
    %vm5870 = vmor %vm5568, %vm5720
    %vm5871 = vmor %vm5569, %vm5721
    %vm5872 = vmor %vm5570, %vm5722
    %vm5873 = vmor %vm5571, %vm5723
    %vm5874 = vmor %vm5572, %vm5724
    %vm5875 = vmor %vm5573, %vm5725
    %vm5876 = vmor %vm5574, %vm5726
    %vm5877 = vmor %vm5575, %vm5727
    %vm5878 = vmor %vm5576, %vm5728
    %vm5879 = vmor %vm5577, %vm5729
    %vm5880 = vmor %vm5578, %vm5730
    %vm5881 = vmor %vm5579, %vm5731
    %vm5882 = vmor %vm5580, %vm5732
    %vm5883 = vmor %vm5581, %vm5733
    %vm5884 = vmor %vm5582, %vm5734
    %vm5885 = vmor %vm5583, %vm5735
    %vm5886 = vmor %vm5584, %vm5736
    %vm5887 = vmor %vm5585, %vm5737
    %vm5888 = vmor %vm5586, %vm5738
    %vm5889 = vmor %vm5587, %vm5739
    %vm5890 = vmor %vm5588, %vm5740
    %vm5891 = vmor %vm5589, %vm5741
    %vm5892 = vmor %vm5590, %vm5742
    %vm5893 = vmor %vm5591, %vm5743
    %vm5894 = vmor %vm5592, %vm5744
    %vm5895 = vmor %vm5593, %vm5745
    %vm5896 = vmor %vm5594, %vm5746
    %v5897 = vsel %vm5747, 0.0, %v42
    %v5898 = vsel %vm5748, 0.0, %v43
    %v5899 = vsel %vm5749, 0.0, %v44
    %v5900 = vsel %vm5750, 0.0, %v45
    %v5901 = vsel %vm5751, 0.0, %v46
    %v5902 = vsel %vm5752, 0.0, %v47
    %v5903 = vsel %vm5753, 0.0, %v48
    %v5904 = vsel %vm5754, 0.0, %v49
    %v5905 = vsel %vm5755, 0.0, %v50
    %v5906 = vsel %vm5756, 0.0, %v51
    %v5907 = vsel %vm5757, 0.0, %v52
    %v5908 = vsel %vm5758, 0.0, %v53
    %v5909 = vsel %vm5759, 0.0, %v54
    %v5910 = vsel %vm5760, 0.0, %v55
    %v5911 = vsel %vm5761, 0.0, %v56
    %v5912 = vsel %vm5762, 0.0, %v57
    %v5913 = vsel %vm5763, 0.0, %v58
    %v5914 = vsel %vm5764, 0.0, %v59
    %v5915 = vsel %vm5765, 0.0, %v60
    %v5916 = vsel %vm5766, 0.0, %v61
    %v5917 = vsel %vm5767, 0.0, %v62
    %v5918 = vsel %vm5768, 0.0, %v63
    %v5919 = vsel %vm5769, 0.0, %v64
    %v5920 = vsel %vm5770, 0.0, %v65
    %v5921 = vsel %vm5771, 0.0, %v66
    %v5922 = vsel %vm5772, 0.0, %v67
    %v5923 = vsel %vm5773, 0.0, %v68
    %v5924 = vsel %vm5774, 0.0, %v69
    %v5925 = vsel %vm5775, 0.0, %v70
    %v5926 = vsel %vm5776, 0.0, %v71
    %v5927 = vsel %vm5777, 0.0, %v72
    %v5928 = vsel %vm5778, 0.0, %v73
    %v5929 = vsel %vm5779, 0.0, %v74
    %v5930 = vsel %vm5780, 0.0, %v75
    %v5931 = vsel %vm5781, 0.0, %v76
    %v5932 = vsel %vm5782, 0.0, %v77
    %v5933 = vsel %vm5783, 0.0, %v78
    %v5934 = vsel %vm5784, 0.0, %v79
    %v5935 = vsel %vm5785, 0.0, %v80
    %v5936 = vsel %vm5786, 0.0, %v81
    %v5937 = vsel %vm5787, 0.0, %v82
    %v5938 = vsel %vm5788, 0.0, %v83
    %v5939 = vsel %vm5789, 0.0, %v84
    %v5940 = vsel %vm5790, 0.0, %v85
    %v5941 = vsel %vm5791, 0.0, %v86
    %v5942 = vsel %vm5792, 0.0, %v87
    %v5943 = vsel %vm5793, 0.0, %v88
    %v5944 = vsel %vm5794, 0.0, %v89
    %v5945 = vsel %vm5795, 0.0, %v90
    %v5946 = vsel %vm5796, 0.0, %v91
    %v5947 = vsel %vm5797, 0.0, %v92
    %v5948 = vsel %vm5798, 0.0, %v93
    %v5949 = vsel %vm5799, 0.0, %v94
    %v5950 = vsel %vm5800, 0.0, %v95
    %v5951 = vsel %vm5801, 0.0, %v96
    %v5952 = vsel %vm5802, 0.0, %v97
    %v5953 = vsel %vm5803, 0.0, %v98
    %v5954 = vsel %vm5804, 0.0, %v99
    %v5955 = vsel %vm5805, 0.0, %v100
    %v5956 = vsel %vm5806, 0.0, %v101
    %v5957 = vsel %vm5807, 0.0, %v102
    %v5958 = vsel %vm5808, 0.0, %v103
    %v5959 = vsel %vm5809, 0.0, %v104
    %v5960 = vsel %vm5810, 0.0, %v105
    %v5961 = vsel %vm5811, 0.0, %v106
    %v5962 = vsel %vm5812, 0.0, %v107
    %v5963 = vsel %vm5813, 0.0, %v108
    %v5964 = vsel %vm5814, 0.0, %v109
    %v5965 = vsel %vm5815, 0.0, %v110
    %v5966 = vsel %vm5816, 0.0, %v111
    %v5967 = vsel %vm5817, 0.0, %v112
    %v5968 = vsel %vm5818, 0.0, %v113
    %v5969 = vsel %vm5819, 0.0, %v114
    %v5970 = vsel %vm5820, 0.0, %v115
    %v5971 = vsel %vm5821, 0.0, %v116
    %v5972 = vsel %vm5822, 0.0, %v117
    %v5973 = vsel %vm5823, 0.0, %v118
    %v5974 = vsel %vm5824, 0.0, %v119
    %v5975 = vsel %vm5825, 0.0, %v120
    %v5976 = vsel %vm5826, 0.0, %v121
    %v5977 = vsel %vm5827, 0.0, %v122
    %v5978 = vsel %vm5828, 0.0, %v123
    %v5979 = vsel %vm5829, 0.0, %v124
    %v5980 = vsel %vm5830, 0.0, %v125
    %v5981 = vsel %vm5831, 0.0, %v126
    %v5982 = vsel %vm5832, 0.0, %v127
    %v5983 = vsel %vm5833, 0.0, %v128
    %v5984 = vsel %vm5834, 0.0, %v129
    %v5985 = vsel %vm5835, 0.0, %v130
    %v5986 = vsel %vm5836, 0.0, %v131
    %v5987 = vsel %vm5837, 0.0, %v132
    %v5988 = vsel %vm5838, 0.0, %v133
    %v5989 = vsel %vm5839, 0.0, %v134
    %v5990 = vsel %vm5840, 0.0, %v135
    %v5991 = vsel %vm5841, 0.0, %v136
    %v5992 = vsel %vm5842, 0.0, %v137
    %v5993 = vsel %vm5843, 0.0, %v138
    %v5994 = vsel %vm5844, 0.0, %v139
    %v5995 = vsel %vm5845, 0.0, %v140
    %v5996 = vsel %vm5846, 0.0, %v141
    %v5997 = vsel %vm5847, 0.0, %v142
    %v5998 = vsel %vm5848, 0.0, %v143
    %v5999 = vsel %vm5849, 0.0, %v144
    %v6000 = vsel %vm5850, 0.0, %v145
    %v6001 = vsel %vm5851, 0.0, %v146
    %v6002 = vsel %vm5852, 0.0, %v147
    %v6003 = vsel %vm5853, 0.0, %v148
    %v6004 = vsel %vm5854, 0.0, %v149
    %v6005 = vsel %vm5855, 0.0, %v150
    %v6006 = vsel %vm5856, 0.0, %v151
    %v6007 = vsel %vm5857, 0.0, %v152
    %v6008 = vsel %vm5858, 0.0, %v153
    %v6009 = vsel %vm5859, 0.0, %v154
    %v6010 = vsel %vm5860, 0.0, %v155
    %v6011 = vsel %vm5861, 0.0, %v156
    %v6012 = vsel %vm5862, 0.0, %v157
    %v6013 = vsel %vm5863, 0.0, %v158
    %v6014 = vsel %vm5864, 0.0, %v159
    %v6015 = vsel %vm5865, 0.0, %v160
    %v6016 = vsel %vm5866, 0.0, %v161
    %v6017 = vsel %vm5867, 0.0, %v162
    %v6018 = vsel %vm5868, 0.0, %v163
    %v6019 = vsel %vm5869, 0.0, %v164
    %v6020 = vsel %vm5870, 0.0, %v165
    %v6021 = vsel %vm5871, 0.0, %v166
    %v6022 = vsel %vm5872, 0.0, %v167
    %v6023 = vsel %vm5873, 0.0, %v168
    %v6024 = vsel %vm5874, 0.0, %v169
    %v6025 = vsel %vm5875, 0.0, %v170
    %v6026 = vsel %vm5876, 0.0, %v171
    %v6027 = vsel %vm5877, 0.0, %v172
    %v6028 = vsel %vm5878, 0.0, %v173
    %v6029 = vsel %vm5879, 0.0, %v174
    %v6030 = vsel %vm5880, 0.0, %v175
    %v6031 = vsel %vm5881, 0.0, %v176
    %v6032 = vsel %vm5882, 0.0, %v177
    %v6033 = vsel %vm5883, 0.0, %v178
    %v6034 = vsel %vm5884, 0.0, %v179
    %v6035 = vsel %vm5885, 0.0, %v180
    %v6036 = vsel %vm5886, 0.0, %v181
    %v6037 = vsel %vm5887, 0.0, %v182
    %v6038 = vsel %vm5888, 0.0, %v183
    %v6039 = vsel %vm5889, 0.0, %v184
    %v6040 = vsel %vm5890, 0.0, %v185
    %v6041 = vsel %vm5891, 0.0, %v186
    %v6042 = vsel %vm5892, 0.0, %v187
    %v6043 = vsel %vm5893, 0.0, %v188
    %v6044 = vsel %vm5894, 0.0, %v189
    %v6045 = vsel %vm5895, 0.0, %v190
    %v6046 = vsel %vm5896, 0.0, %v191
    %v6047 = vld [vmem:[%s4] sm:$0x7f]
    %v6048 = vld [vmem:[%s2] sm:$0xff]
    %v6049 = vld [vmem:[%s2 + $0x8] sm:$0xff]
    %v6050 = vld [vmem:[%s2 + $0x10] sm:$0xff]
    %v6051 = vld [vmem:[%s2 + $0x18] sm:$0xff]
    %v6052 = vld [vmem:[%s2 + $0x20] sm:$0xff]
    %v6053 = vld [vmem:[%s2 + $0x28] sm:$0xff]
    %v6054 = vld [vmem:[%s2 + $0x30] sm:$0xff]
    %v6055 = vld [vmem:[%s2 + $0x38] sm:$0xff]
    %v6056 = vld [vmem:[%s2 + $0x40] sm:$0xff]
    %v6057 = vld [vmem:[%s2 + $0x48] sm:$0xff]
    %v6058 = vld [vmem:[%s2 + $0x50] sm:$0xff]
    %v6059 = vld [vmem:[%s2 + $0x58] sm:$0xff]
    %v6060 = vld [vmem:[%s2 + $0x60] sm:$0xff]
    %v6061 = vld [vmem:[%s2 + $0x68] sm:$0xff]
    %v6062 = vld [vmem:[%s2 + $0x70] sm:$0xff]
    %v6063 = vld [vmem:[%s2 + $0x78] sm:$0xff]
    %v6064 = vld [vmem:[%s2 + $0x80] sm:$0xff]
    %v6065 = vld [vmem:[%s2 + $0x88] sm:$0xff]
    %v6066 = vld [vmem:[%s2 + $0x90] sm:$0xff]
    %v6067 = vld [vmem:[%s2 + $0x98] sm:$0xff]
    %v6068 = vld [vmem:[%s2 + $0xa0] sm:$0xff]
    %v6069 = vld [vmem:[%s2 + $0xa8] sm:$0xff]
    %v6070 = vld [vmem:[%s2 + $0xb0] sm:$0xff]
    %v6071 = vld [vmem:[%s2 + $0xb8] sm:$0xff]
    %v6072 = vld [vmem:[%s2 + $0xc0] sm:$0xff]
    %v6073 = vld [vmem:[%s2 + $0xc8] sm:$0xff]
    %v6074 = vld [vmem:[%s2 + $0xd0] sm:$0xff]
    %v6075 = vld [vmem:[%s2 + $0xd8] sm:$0xff]
    %v6076 = vld [vmem:[%s2 + $0xe0] sm:$0xff]
    %v6077 = vld [vmem:[%s2 + $0xe8] sm:$0xff]
    %v6078 = vld [vmem:[%s2 + $0xf0] sm:$0xff]
    %v6079 = vld [vmem:[%s2 + $0xf8] sm:$0xff]
    %v6080 = vld [vmem:[%s2 + $0x100] sm:$0xff]
    %v6081 = vld [vmem:[%s2 + $0x108] sm:$0xff]
    %v6082 = vld [vmem:[%s2 + $0x110] sm:$0xff]
    %v6083 = vld [vmem:[%s2 + $0x118] sm:$0xff]
    %v6084 = vld [vmem:[%s2 + $0x120] sm:$0xff]
    %v6085 = vld [vmem:[%s2 + $0x128] sm:$0xff]
    %v6086 = vld [vmem:[%s2 + $0x130] sm:$0xff]
    %v6087 = vld [vmem:[%s2 + $0x138] sm:$0xff]
    %v6088 = vld [vmem:[%s2 + $0x140] sm:$0xff]
    %v6089 = vld [vmem:[%s2 + $0x148] sm:$0xff]
    %v6090 = vld [vmem:[%s2 + $0x150] sm:$0xff]
    %v6091 = vld [vmem:[%s2 + $0x158] sm:$0xff]
    %v6092 = vld [vmem:[%s2 + $0x160] sm:$0xff]
    %v6093 = vld [vmem:[%s2 + $0x168] sm:$0xff]
    %v6094 = vld [vmem:[%s2 + $0x170] sm:$0xff]
    %v6095 = vld [vmem:[%s2 + $0x178] sm:$0xff]
    %v6096 = vld [vmem:[%s2 + $0x180] sm:$0xff]
    %v6097 = vld [vmem:[%s2 + $0x188] sm:$0xff]
    %v6098 = vld [vmem:[%s2 + $0x190] sm:$0xff]
    %v6099 = vld [vmem:[%s2 + $0x198] sm:$0xff]
    %v6100 = vld [vmem:[%s2 + $0x1a0] sm:$0xff]
    %v6101 = vld [vmem:[%s2 + $0x1a8] sm:$0xff]
    %v6102 = vld [vmem:[%s2 + $0x1b0] sm:$0xff]
    %v6103 = vld [vmem:[%s2 + $0x1b8] sm:$0xff]
    %v6104 = vld [vmem:[%s2 + $0x1c0] sm:$0xff]
    %v6105 = vld [vmem:[%s2 + $0x1c8] sm:$0xff]
    %v6106 = vld [vmem:[%s2 + $0x1d0] sm:$0xff]
    %v6107 = vld [vmem:[%s2 + $0x1d8] sm:$0xff]
    %v6108 = vld [vmem:[%s2 + $0x1e0] sm:$0xff]
    %v6109 = vld [vmem:[%s2 + $0x1e8] sm:$0xff]
    %v6110 = vld [vmem:[%s2 + $0x1f0] sm:$0xff]
    %v6111 = vld [vmem:[%s2 + $0x1f8] sm:$0xff]
    %v6112 = vld [vmem:[%s2 + $0x200] sm:$0xff]
    %v6113 = vld [vmem:[%s2 + $0x208] sm:$0xff]
    %v6114 = vld [vmem:[%s2 + $0x210] sm:$0xff]
    %v6115 = vld [vmem:[%s2 + $0x218] sm:$0xff]
    %v6116 = vld [vmem:[%s2 + $0x220] sm:$0xff]
    %v6117 = vld [vmem:[%s2 + $0x228] sm:$0xff]
    %v6118 = vld [vmem:[%s2 + $0x230] sm:$0xff]
    %v6119 = vld [vmem:[%s2 + $0x238] sm:$0xff]
    %v6120 = vld [vmem:[%s2 + $0x240] sm:$0xff]
    %v6121 = vld [vmem:[%s2 + $0x248] sm:$0xff]
    %v6122 = vld [vmem:[%s2 + $0x250] sm:$0xff]
    %v6123 = vld [vmem:[%s2 + $0x258] sm:$0xff]
    %v6124 = vld [vmem:[%s2 + $0x260] sm:$0xff]
    %v6125 = vld [vmem:[%s2 + $0x268] sm:$0xff]
    %v6126 = vld [vmem:[%s2 + $0x270] sm:$0xff]
    %v6127 = vld [vmem:[%s2 + $0x278] sm:$0xff]
    %v6128 = vld [vmem:[%s2 + $0x280] sm:$0xff]
    %v6129 = vld [vmem:[%s2 + $0x288] sm:$0xff]
    %v6130 = vld [vmem:[%s2 + $0x290] sm:$0xff]
    %v6131 = vld [vmem:[%s2 + $0x298] sm:$0xff]
    %v6132 = vld [vmem:[%s2 + $0x2a0] sm:$0xff]
    %v6133 = vld [vmem:[%s2 + $0x2a8] sm:$0xff]
    %v6134 = vld [vmem:[%s2 + $0x2b0] sm:$0xff]
    %v6135 = vld [vmem:[%s2 + $0x2b8] sm:$0xff]
    %v6136 = vld [vmem:[%s2 + $0x2c0] sm:$0xff]
    %v6137 = vld [vmem:[%s2 + $0x2c8] sm:$0xff]
    %v6138 = vld [vmem:[%s2 + $0x2d0] sm:$0xff]
    %v6139 = vld [vmem:[%s2 + $0x2d8] sm:$0xff]
    %v6140 = vld [vmem:[%s2 + $0x2e0] sm:$0xff]
    %v6141 = vld [vmem:[%s2 + $0x2e8] sm:$0xff]
    %v6142 = vld [vmem:[%s2 + $0x2f0] sm:$0xff]
    %v6143 = vld [vmem:[%s2 + $0x2f8] sm:$0xff]
    %v6144 = vld [vmem:[%s2 + $0x300] sm:$0xff]
    %v6145 = vld [vmem:[%s2 + $0x308] sm:$0xff]
    %v6146 = vld [vmem:[%s2 + $0x310] sm:$0xff]
    %v6147 = vld [vmem:[%s2 + $0x318] sm:$0xff]
    %v6148 = vld [vmem:[%s2 + $0x320] sm:$0xff]
    %v6149 = vld [vmem:[%s2 + $0x328] sm:$0xff]
    %v6150 = vld [vmem:[%s2 + $0x330] sm:$0xff]
    %v6151 = vld [vmem:[%s2 + $0x338] sm:$0xff]
    %v6152 = vld [vmem:[%s2 + $0x340] sm:$0xff]
    %v6153 = vld [vmem:[%s2 + $0x348] sm:$0xff]
    %v6154 = vld [vmem:[%s2 + $0x350] sm:$0xff]
    %v6155 = vld [vmem:[%s2 + $0x358] sm:$0xff]
    %v6156 = vld [vmem:[%s2 + $0x360] sm:$0xff]
    %v6157 = vld [vmem:[%s2 + $0x368] sm:$0xff]
    %v6158 = vld [vmem:[%s2 + $0x370] sm:$0xff]
    %v6159 = vld [vmem:[%s2 + $0x378] sm:$0xff]
    %v6160 = vld [vmem:[%s2 + $0x380] sm:$0xff]
    %v6161 = vld [vmem:[%s2 + $0x388] sm:$0xff]
    %v6162 = vld [vmem:[%s2 + $0x390] sm:$0xff]
    %v6163 = vld [vmem:[%s2 + $0x398] sm:$0xff]
    %v6164 = vld [vmem:[%s2 + $0x3a0] sm:$0xff]
    %v6165 = vld [vmem:[%s2 + $0x3a8] sm:$0xff]
    %v6166 = vld [vmem:[%s2 + $0x3b0] sm:$0xff]
    %v6167 = vld [vmem:[%s2 + $0x3b8] sm:$0xff]
    %v6168 = vld [vmem:[%s2 + $0x3c0] sm:$0xff]
    %v6169 = vld [vmem:[%s2 + $0x3c8] sm:$0xff]
    %v6170 = vld [vmem:[%s2 + $0x3d0] sm:$0xff]
    %v6171 = vld [vmem:[%s2 + $0x3d8] sm:$0xff]
    %v6172 = vld [vmem:[%s2 + $0x3e0] sm:$0xff]
    %v6173 = vld [vmem:[%s2 + $0x3e8] sm:$0xff]
    %v6174 = vld [vmem:[%s2 + $0x3f0] sm:$0xff]
    %v6175 = vld [vmem:[%s2 + $0x3f8] sm:$0xff]
    %v6176 = vld [vmem:[%s2 + $0x400] sm:$0xff]
    %v6177 = vld [vmem:[%s2 + $0x408] sm:$0xff]
    %v6178 = vld [vmem:[%s2 + $0x410] sm:$0xff]
    %v6179 = vld [vmem:[%s2 + $0x418] sm:$0xff]
    %v6180 = vld [vmem:[%s2 + $0x420] sm:$0xff]
    %v6181 = vld [vmem:[%s2 + $0x428] sm:$0xff]
    %v6182 = vld [vmem:[%s2 + $0x430] sm:$0xff]
    %v6183 = vld [vmem:[%s2 + $0x438] sm:$0xff]
    %v6184 = vld [vmem:[%s2 + $0x440] sm:$0xff]
    %v6185 = vld [vmem:[%s2 + $0x448] sm:$0xff]
    %v6186 = vld [vmem:[%s2 + $0x450] sm:$0xff]
    %v6187 = vld [vmem:[%s2 + $0x458] sm:$0xff]
    %v6188 = vld [vmem:[%s2 + $0x460] sm:$0xff]
    %v6189 = vld [vmem:[%s2 + $0x468] sm:$0xff]
    %v6190 = vld [vmem:[%s2 + $0x470] sm:$0xff]
    %v6191 = vld [vmem:[%s2 + $0x478] sm:$0xff]
    %v6192 = vld [vmem:[%s2 + $0x480] sm:$0xff]
    %v6193 = vld [vmem:[%s2 + $0x488] sm:$0xff]
    %v6194 = vld [vmem:[%s2 + $0x490] sm:$0xff]
    %v6195 = vld [vmem:[%s2 + $0x498] sm:$0xff]
    %v6196 = vld [vmem:[%s2 + $0x4a0] sm:$0xff]
    %v6197 = vld [vmem:[%s2 + $0x4a8] sm:$0xff]
    %v6198 = vld [vmem:[%s5] sm:$0xf]
    %vm6199 = vcmask 31744
    %v6201 = vsel %vm6199, %v6048, 0
    %v6204 = vsel %vm6199, %v6049, 0
    %v6207 = vsel %vm6199, %v6050, 0
    %v6210 = vsel %vm6199, %v6051, 0
    %v6213 = vsel %vm6199, %v6052, 0
    %v6216 = vsel %vm6199, %v6053, 0
    %v6219 = vsel %vm6199, %v6054, 0
    %v6222 = vsel %vm6199, %v6055, 0
    %v6225 = vsel %vm6199, %v6056, 0
    %v6228 = vsel %vm6199, %v6057, 0
    %v6231 = vsel %vm6199, %v6058, 0
    %v6234 = vsel %vm6199, %v6059, 0
    %v6237 = vsel %vm6199, %v6060, 0
    %v6240 = vsel %vm6199, %v6061, 0
    %v6243 = vsel %vm6199, %v6062, 0
    %v6246 = vsel %vm6199, %v6063, 0
    %v6249 = vsel %vm6199, %v6064, 0
    %v6252 = vsel %vm6199, %v6065, 0
    %v6255 = vsel %vm6199, %v6066, 0
    %v6258 = vsel %vm6199, %v6067, 0
    %v6261 = vsel %vm6199, %v6068, 0
    %v6264 = vsel %vm6199, %v6069, 0
    %v6267 = vsel %vm6199, %v6070, 0
    %v6270 = vsel %vm6199, %v6071, 0
    %v6273 = vsel %vm6199, %v6072, 0
    %v6276 = vsel %vm6199, %v6073, 0
    %v6279 = vsel %vm6199, %v6074, 0
    %v6282 = vsel %vm6199, %v6075, 0
    %v6285 = vsel %vm6199, %v6076, 0
    %v6288 = vsel %vm6199, %v6077, 0
    %v6291 = vsel %vm6199, %v6078, 0
    %v6294 = vsel %vm6199, %v6079, 0
    %v6297 = vsel %vm6199, %v6080, 0
    %v6300 = vsel %vm6199, %v6081, 0
    %v6303 = vsel %vm6199, %v6082, 0
    %v6306 = vsel %vm6199, %v6083, 0
    %v6309 = vsel %vm6199, %v6084, 0
    %v6312 = vsel %vm6199, %v6085, 0
    %v6315 = vsel %vm6199, %v6086, 0
    %v6318 = vsel %vm6199, %v6087, 0
    %v6321 = vsel %vm6199, %v6088, 0
    %v6324 = vsel %vm6199, %v6089, 0
    %v6327 = vsel %vm6199, %v6090, 0
    %v6330 = vsel %vm6199, %v6091, 0
    %v6333 = vsel %vm6199, %v6092, 0
    %v6336 = vsel %vm6199, %v6093, 0
    %v6339 = vsel %vm6199, %v6094, 0
    %v6342 = vsel %vm6199, %v6095, 0
    %v6345 = vsel %vm6199, %v6096, 0
    %v6348 = vsel %vm6199, %v6097, 0
    %v6351 = vsel %vm6199, %v6098, 0
    %v6354 = vsel %vm6199, %v6099, 0
    %v6357 = vsel %vm6199, %v6100, 0
    %v6360 = vsel %vm6199, %v6101, 0
    %v6363 = vsel %vm6199, %v6102, 0
    %v6366 = vsel %vm6199, %v6103, 0
    %v6369 = vsel %vm6199, %v6104, 0
    %v6372 = vsel %vm6199, %v6105, 0
    %v6375 = vsel %vm6199, %v6106, 0
    %v6378 = vsel %vm6199, %v6107, 0
    %v6381 = vsel %vm6199, %v6108, 0
    %v6384 = vsel %vm6199, %v6109, 0
    %v6387 = vsel %vm6199, %v6110, 0
    %v6390 = vsel %vm6199, %v6111, 0
    %v6393 = vsel %vm6199, %v6112, 0
    %v6396 = vsel %vm6199, %v6113, 0
    %v6399 = vsel %vm6199, %v6114, 0
    %v6402 = vsel %vm6199, %v6115, 0
    %v6405 = vsel %vm6199, %v6116, 0
    %v6408 = vsel %vm6199, %v6117, 0
    %v6411 = vsel %vm6199, %v6118, 0
    %v6414 = vsel %vm6199, %v6119, 0
    %v6417 = vsel %vm6199, %v6120, 0
    %v6420 = vsel %vm6199, %v6121, 0
    %v6423 = vsel %vm6199, %v6122, 0
    %v6426 = vsel %vm6199, %v6123, 0
    %v6429 = vsel %vm6199, %v6124, 0
    %v6432 = vsel %vm6199, %v6125, 0
    %v6435 = vsel %vm6199, %v6126, 0
    %v6438 = vsel %vm6199, %v6127, 0
    %v6441 = vsel %vm6199, %v6128, 0
    %v6444 = vsel %vm6199, %v6129, 0
    %v6447 = vsel %vm6199, %v6130, 0
    %v6450 = vsel %vm6199, %v6131, 0
    %v6453 = vsel %vm6199, %v6132, 0
    %v6456 = vsel %vm6199, %v6133, 0
    %v6459 = vsel %vm6199, %v6134, 0
    %v6462 = vsel %vm6199, %v6135, 0
    %v6465 = vsel %vm6199, %v6136, 0
    %v6468 = vsel %vm6199, %v6137, 0
    %v6471 = vsel %vm6199, %v6138, 0
    %v6474 = vsel %vm6199, %v6139, 0
    %v6477 = vsel %vm6199, %v6140, 0
    %v6480 = vsel %vm6199, %v6141, 0
    %v6483 = vsel %vm6199, %v6142, 0
    %v6486 = vsel %vm6199, %v6143, 0
    %v6489 = vsel %vm6199, %v6144, 0
    %v6492 = vsel %vm6199, %v6145, 0
    %v6495 = vsel %vm6199, %v6146, 0
    %v6498 = vsel %vm6199, %v6147, 0
    %v6501 = vsel %vm6199, %v6148, 0
    %v6504 = vsel %vm6199, %v6149, 0
    %v6507 = vsel %vm6199, %v6150, 0
    %v6510 = vsel %vm6199, %v6151, 0
    %v6513 = vsel %vm6199, %v6152, 0
    %v6516 = vsel %vm6199, %v6153, 0
    %v6519 = vsel %vm6199, %v6154, 0
    %v6522 = vsel %vm6199, %v6155, 0
    %v6525 = vsel %vm6199, %v6156, 0
    %v6528 = vsel %vm6199, %v6157, 0
    %v6531 = vsel %vm6199, %v6158, 0
    %v6534 = vsel %vm6199, %v6159, 0
    %v6537 = vsel %vm6199, %v6160, 0
    %v6540 = vsel %vm6199, %v6161, 0
    %v6543 = vsel %vm6199, %v6162, 0
    %v6546 = vsel %vm6199, %v6163, 0
    %v6549 = vsel %vm6199, %v6164, 0
    %v6552 = vsel %vm6199, %v6165, 0
    %v6555 = vsel %vm6199, %v6166, 0
    %v6558 = vsel %vm6199, %v6167, 0
    %v6561 = vsel %vm6199, %v6168, 0
    %v6564 = vsel %vm6199, %v6169, 0
    %v6567 = vsel %vm6199, %v6170, 0
    %v6570 = vsel %vm6199, %v6171, 0
    %v6573 = vsel %vm6199, %v6172, 0
    %v6576 = vsel %vm6199, %v6173, 0
    %v6579 = vsel %vm6199, %v6174, 0
    %v6582 = vsel %vm6199, %v6175, 0
    %v6585 = vsel %vm6199, %v6176, 0
    %v6588 = vsel %vm6199, %v6177, 0
    %v6591 = vsel %vm6199, %v6178, 0
    %v6594 = vsel %vm6199, %v6179, 0
    %v6597 = vsel %vm6199, %v6180, 0
    %v6600 = vsel %vm6199, %v6181, 0
    %v6603 = vsel %vm6199, %v6182, 0
    %v6606 = vsel %vm6199, %v6183, 0
    %v6609 = vsel %vm6199, %v6184, 0
    %v6612 = vsel %vm6199, %v6185, 0
    %v6615 = vsel %vm6199, %v6186, 0
    %v6618 = vsel %vm6199, %v6187, 0
    %v6621 = vsel %vm6199, %v6188, 0
    %v6624 = vsel %vm6199, %v6189, 0
    %v6627 = vsel %vm6199, %v6190, 0
    %v6630 = vsel %vm6199, %v6191, 0
    %v6633 = vsel %vm6199, %v6192, 0
    %v6636 = vsel %vm6199, %v6193, 0
    %v6639 = vsel %vm6199, %v6194, 0
    %v6642 = vsel %vm6199, %v6195, 0
    %v6645 = vsel %vm6199, %v6196, 0
    %v6648 = vsel %vm6199, %v6197, 0
    %vm6650 = vcmask 1043456
    %v6652 = vsel %vm6650, %v6198, 0
    %6654 = vmatpush.msra.mxu0 0.0
    %6655 = vmatpush.msra.mxu0 0.0
    %6656 = vmatpush.msra.mxu0 0.0
    %6657 = vmatpush.msra.mxu0 0.0
    %6658 = vmatpush.msra.mxu0 0.0
    %6659 = vmatpush.msra.mxu0 0.0
    %6660 = vmatpush.msra.mxu0 0.0
    %6661 = vmatpush.msra.mxu0 0.0
    %6662 = vmatpush.msra.mxu0 0.0
    %6663 = vmatpush.msra.mxu0 0.0
    %6664 = vmatpush.msra.mxu0 0.0
    %6665 = vmatpush.msra.mxu0 0.0
    %6666 = vmatpush.msra.mxu0 0.0
    %6667 = vmatpush.msra.mxu0 0.0
    %6668 = vmatpush.msra.mxu0 0.0
    %6669 = vmatpush.msra.mxu0 %v6652
    %6670 = vmatmul.f32.gmra.mxu0 %v6201
    %v6671 = vpop.f32.mrf.mxu0
    %v6672 = vadd.f32 0.0, %v6671
    %6673 = vmatmul.f32.gmra.mxu0 %v6204
    %v6674 = vpop.f32.mrf.mxu0
    %v6675 = vadd.f32 0.0, %v6674
    %6676 = vmatmul.f32.gmra.mxu0 %v6207
    %v6677 = vpop.f32.mrf.mxu0
    %v6678 = vadd.f32 0.0, %v6677
    %6679 = vmatmul.f32.gmra.mxu0 %v6210
    %v6680 = vpop.f32.mrf.mxu0
    %v6681 = vadd.f32 0.0, %v6680
    %6682 = vmatmul.f32.gmra.mxu0 %v6213
    %v6683 = vpop.f32.mrf.mxu0
    %v6684 = vadd.f32 0.0, %v6683
    %6685 = vmatmul.f32.gmra.mxu0 %v6216
    %v6686 = vpop.f32.mrf.mxu0
    %v6687 = vadd.f32 0.0, %v6686
    %6688 = vmatmul.f32.gmra.mxu0 %v6219
    %v6689 = vpop.f32.mrf.mxu0
    %v6690 = vadd.f32 0.0, %v6689
    %6691 = vmatmul.f32.gmra.mxu0 %v6222
    %v6692 = vpop.f32.mrf.mxu0
    %v6693 = vadd.f32 0.0, %v6692
    %6694 = vmatmul.f32.gmra.mxu0 %v6225
    %v6695 = vpop.f32.mrf.mxu0
    %v6696 = vadd.f32 0.0, %v6695
    %6697 = vmatmul.f32.gmra.mxu0 %v6228
    %v6698 = vpop.f32.mrf.mxu0
    %v6699 = vadd.f32 0.0, %v6698
    %6700 = vmatmul.f32.gmra.mxu0 %v6231
    %v6701 = vpop.f32.mrf.mxu0
    %v6702 = vadd.f32 0.0, %v6701
    %6703 = vmatmul.f32.gmra.mxu0 %v6234
    %v6704 = vpop.f32.mrf.mxu0
    %v6705 = vadd.f32 0.0, %v6704
    %6706 = vmatmul.f32.gmra.mxu0 %v6237
    %v6707 = vpop.f32.mrf.mxu0
    %v6708 = vadd.f32 0.0, %v6707
    %6709 = vmatmul.f32.gmra.mxu0 %v6240
    %v6710 = vpop.f32.mrf.mxu0
    %v6711 = vadd.f32 0.0, %v6710
    %6712 = vmatmul.f32.gmra.mxu0 %v6243
    %v6713 = vpop.f32.mrf.mxu0
    %v6714 = vadd.f32 0.0, %v6713
    %6715 = vmatmul.f32.gmra.mxu0 %v6246
    %v6716 = vpop.f32.mrf.mxu0
    %v6717 = vadd.f32 0.0, %v6716
    %6718 = vmatmul.f32.gmra.mxu0 %v6249
    %v6719 = vpop.f32.mrf.mxu0
    %v6720 = vadd.f32 0.0, %v6719
    %6721 = vmatmul.f32.gmra.mxu0 %v6252
    %v6722 = vpop.f32.mrf.mxu0
    %v6723 = vadd.f32 0.0, %v6722
    %6724 = vmatmul.f32.gmra.mxu0 %v6255
    %v6725 = vpop.f32.mrf.mxu0
    %v6726 = vadd.f32 0.0, %v6725
    %6727 = vmatmul.f32.gmra.mxu0 %v6258
    %v6728 = vpop.f32.mrf.mxu0
    %v6729 = vadd.f32 0.0, %v6728
    %6730 = vmatmul.f32.gmra.mxu0 %v6261
    %v6731 = vpop.f32.mrf.mxu0
    %v6732 = vadd.f32 0.0, %v6731
    %6733 = vmatmul.f32.gmra.mxu0 %v6264
    %v6734 = vpop.f32.mrf.mxu0
    %v6735 = vadd.f32 0.0, %v6734
    %6736 = vmatmul.f32.gmra.mxu0 %v6267
    %v6737 = vpop.f32.mrf.mxu0
    %v6738 = vadd.f32 0.0, %v6737
    %6739 = vmatmul.f32.gmra.mxu0 %v6270
    %v6740 = vpop.f32.mrf.mxu0
    %v6741 = vadd.f32 0.0, %v6740
    %6742 = vmatmul.f32.gmra.mxu0 %v6273
    %v6743 = vpop.f32.mrf.mxu0
    %v6744 = vadd.f32 0.0, %v6743
    %6745 = vmatmul.f32.gmra.mxu0 %v6276
    %v6746 = vpop.f32.mrf.mxu0
    %v6747 = vadd.f32 0.0, %v6746
    %6748 = vmatmul.f32.gmra.mxu0 %v6279
    %v6749 = vpop.f32.mrf.mxu0
    %v6750 = vadd.f32 0.0, %v6749
    %6751 = vmatmul.f32.gmra.mxu0 %v6282
    %v6752 = vpop.f32.mrf.mxu0
    %v6753 = vadd.f32 0.0, %v6752
    %6754 = vmatmul.f32.gmra.mxu0 %v6285
    %v6755 = vpop.f32.mrf.mxu0
    %v6756 = vadd.f32 0.0, %v6755
    %6757 = vmatmul.f32.gmra.mxu0 %v6288
    %v6758 = vpop.f32.mrf.mxu0
    %v6759 = vadd.f32 0.0, %v6758
    %6760 = vmatmul.f32.gmra.mxu0 %v6291
    %v6761 = vpop.f32.mrf.mxu0
    %v6762 = vadd.f32 0.0, %v6761
    %6763 = vmatmul.f32.gmra.mxu0 %v6294
    %v6764 = vpop.f32.mrf.mxu0
    %v6765 = vadd.f32 0.0, %v6764
    %6766 = vmatmul.f32.gmra.mxu0 %v6297
    %v6767 = vpop.f32.mrf.mxu0
    %v6768 = vadd.f32 0.0, %v6767
    %6769 = vmatmul.f32.gmra.mxu0 %v6300
    %v6770 = vpop.f32.mrf.mxu0
    %v6771 = vadd.f32 0.0, %v6770
    %6772 = vmatmul.f32.gmra.mxu0 %v6303
    %v6773 = vpop.f32.mrf.mxu0
    %v6774 = vadd.f32 0.0, %v6773
    %6775 = vmatmul.f32.gmra.mxu0 %v6306
    %v6776 = vpop.f32.mrf.mxu0
    %v6777 = vadd.f32 0.0, %v6776
    %6778 = vmatmul.f32.gmra.mxu0 %v6309
    %v6779 = vpop.f32.mrf.mxu0
    %v6780 = vadd.f32 0.0, %v6779
    %6781 = vmatmul.f32.gmra.mxu0 %v6312
    %v6782 = vpop.f32.mrf.mxu0
    %v6783 = vadd.f32 0.0, %v6782
    %6784 = vmatmul.f32.gmra.mxu0 %v6315
    %v6785 = vpop.f32.mrf.mxu0
    %v6786 = vadd.f32 0.0, %v6785
    %6787 = vmatmul.f32.gmra.mxu0 %v6318
    %v6788 = vpop.f32.mrf.mxu0
    %v6789 = vadd.f32 0.0, %v6788
    %6790 = vmatmul.f32.gmra.mxu0 %v6321
    %v6791 = vpop.f32.mrf.mxu0
    %v6792 = vadd.f32 0.0, %v6791
    %6793 = vmatmul.f32.gmra.mxu0 %v6324
    %v6794 = vpop.f32.mrf.mxu0
    %v6795 = vadd.f32 0.0, %v6794
    %6796 = vmatmul.f32.gmra.mxu0 %v6327
    %v6797 = vpop.f32.mrf.mxu0
    %v6798 = vadd.f32 0.0, %v6797
    %6799 = vmatmul.f32.gmra.mxu0 %v6330
    %v6800 = vpop.f32.mrf.mxu0
    %v6801 = vadd.f32 0.0, %v6800
    %6802 = vmatmul.f32.gmra.mxu0 %v6333
    %v6803 = vpop.f32.mrf.mxu0
    %v6804 = vadd.f32 0.0, %v6803
    %6805 = vmatmul.f32.gmra.mxu0 %v6336
    %v6806 = vpop.f32.mrf.mxu0
    %v6807 = vadd.f32 0.0, %v6806
    %6808 = vmatmul.f32.gmra.mxu0 %v6339
    %v6809 = vpop.f32.mrf.mxu0
    %v6810 = vadd.f32 0.0, %v6809
    %6811 = vmatmul.f32.gmra.mxu0 %v6342
    %v6812 = vpop.f32.mrf.mxu0
    %v6813 = vadd.f32 0.0, %v6812
    %6814 = vmatmul.f32.gmra.mxu0 %v6345
    %v6815 = vpop.f32.mrf.mxu0
    %v6816 = vadd.f32 0.0, %v6815
    %6817 = vmatmul.f32.gmra.mxu0 %v6348
    %v6818 = vpop.f32.mrf.mxu0
    %v6819 = vadd.f32 0.0, %v6818
    %6820 = vmatmul.f32.gmra.mxu0 %v6351
    %v6821 = vpop.f32.mrf.mxu0
    %v6822 = vadd.f32 0.0, %v6821
    %6823 = vmatmul.f32.gmra.mxu0 %v6354
    %v6824 = vpop.f32.mrf.mxu0
    %v6825 = vadd.f32 0.0, %v6824
    %6826 = vmatmul.f32.gmra.mxu0 %v6357
    %v6827 = vpop.f32.mrf.mxu0
    %v6828 = vadd.f32 0.0, %v6827
    %6829 = vmatmul.f32.gmra.mxu0 %v6360
    %v6830 = vpop.f32.mrf.mxu0
    %v6831 = vadd.f32 0.0, %v6830
    %6832 = vmatmul.f32.gmra.mxu0 %v6363
    %v6833 = vpop.f32.mrf.mxu0
    %v6834 = vadd.f32 0.0, %v6833
    %6835 = vmatmul.f32.gmra.mxu0 %v6366
    %v6836 = vpop.f32.mrf.mxu0
    %v6837 = vadd.f32 0.0, %v6836
    %6838 = vmatmul.f32.gmra.mxu0 %v6369
    %v6839 = vpop.f32.mrf.mxu0
    %v6840 = vadd.f32 0.0, %v6839
    %6841 = vmatmul.f32.gmra.mxu0 %v6372
    %v6842 = vpop.f32.mrf.mxu0
    %v6843 = vadd.f32 0.0, %v6842
    %6844 = vmatmul.f32.gmra.mxu0 %v6375
    %v6845 = vpop.f32.mrf.mxu0
    %v6846 = vadd.f32 0.0, %v6845
    %6847 = vmatmul.f32.gmra.mxu0 %v6378
    %v6848 = vpop.f32.mrf.mxu0
    %v6849 = vadd.f32 0.0, %v6848
    %6850 = vmatmul.f32.gmra.mxu0 %v6381
    %v6851 = vpop.f32.mrf.mxu0
    %v6852 = vadd.f32 0.0, %v6851
    %6853 = vmatmul.f32.gmra.mxu0 %v6384
    %v6854 = vpop.f32.mrf.mxu0
    %v6855 = vadd.f32 0.0, %v6854
    %6856 = vmatmul.f32.gmra.mxu0 %v6387
    %v6857 = vpop.f32.mrf.mxu0
    %v6858 = vadd.f32 0.0, %v6857
    %6859 = vmatmul.f32.gmra.mxu0 %v6390
    %v6860 = vpop.f32.mrf.mxu0
    %v6861 = vadd.f32 0.0, %v6860
    %6862 = vmatmul.f32.gmra.mxu0 %v6393
    %v6863 = vpop.f32.mrf.mxu0
    %v6864 = vadd.f32 0.0, %v6863
    %6865 = vmatmul.f32.gmra.mxu0 %v6396
    %v6866 = vpop.f32.mrf.mxu0
    %v6867 = vadd.f32 0.0, %v6866
    %6868 = vmatmul.f32.gmra.mxu0 %v6399
    %v6869 = vpop.f32.mrf.mxu0
    %v6870 = vadd.f32 0.0, %v6869
    %6871 = vmatmul.f32.gmra.mxu0 %v6402
    %v6872 = vpop.f32.mrf.mxu0
    %v6873 = vadd.f32 0.0, %v6872
    %6874 = vmatmul.f32.gmra.mxu0 %v6405
    %v6875 = vpop.f32.mrf.mxu0
    %v6876 = vadd.f32 0.0, %v6875
    %6877 = vmatmul.f32.gmra.mxu0 %v6408
    %v6878 = vpop.f32.mrf.mxu0
    %v6879 = vadd.f32 0.0, %v6878
    %6880 = vmatmul.f32.gmra.mxu0 %v6411
    %v6881 = vpop.f32.mrf.mxu0
    %v6882 = vadd.f32 0.0, %v6881
    %6883 = vmatmul.f32.gmra.mxu0 %v6414
    %v6884 = vpop.f32.mrf.mxu0
    %v6885 = vadd.f32 0.0, %v6884
    %6886 = vmatmul.f32.gmra.mxu0 %v6417
    %v6887 = vpop.f32.mrf.mxu0
    %v6888 = vadd.f32 0.0, %v6887
    %6889 = vmatmul.f32.gmra.mxu0 %v6420
    %v6890 = vpop.f32.mrf.mxu0
    %v6891 = vadd.f32 0.0, %v6890
    %6892 = vmatmul.f32.gmra.mxu0 %v6423
    %v6893 = vpop.f32.mrf.mxu0
    %v6894 = vadd.f32 0.0, %v6893
    %6895 = vmatmul.f32.gmra.mxu0 %v6426
    %v6896 = vpop.f32.mrf.mxu0
    %v6897 = vadd.f32 0.0, %v6896
    %6898 = vmatmul.f32.gmra.mxu0 %v6429
    %v6899 = vpop.f32.mrf.mxu0
    %v6900 = vadd.f32 0.0, %v6899
    %6901 = vmatmul.f32.gmra.mxu0 %v6432
    %v6902 = vpop.f32.mrf.mxu0
    %v6903 = vadd.f32 0.0, %v6902
    %6904 = vmatmul.f32.gmra.mxu0 %v6435
    %v6905 = vpop.f32.mrf.mxu0
    %v6906 = vadd.f32 0.0, %v6905
    %6907 = vmatmul.f32.gmra.mxu0 %v6438
    %v6908 = vpop.f32.mrf.mxu0
    %v6909 = vadd.f32 0.0, %v6908
    %6910 = vmatmul.f32.gmra.mxu0 %v6441
    %v6911 = vpop.f32.mrf.mxu0
    %v6912 = vadd.f32 0.0, %v6911
    %6913 = vmatmul.f32.gmra.mxu0 %v6444
    %v6914 = vpop.f32.mrf.mxu0
    %v6915 = vadd.f32 0.0, %v6914
    %6916 = vmatmul.f32.gmra.mxu0 %v6447
    %v6917 = vpop.f32.mrf.mxu0
    %v6918 = vadd.f32 0.0, %v6917
    %6919 = vmatmul.f32.gmra.mxu0 %v6450
    %v6920 = vpop.f32.mrf.mxu0
    %v6921 = vadd.f32 0.0, %v6920
    %6922 = vmatmul.f32.gmra.mxu0 %v6453
    %v6923 = vpop.f32.mrf.mxu0
    %v6924 = vadd.f32 0.0, %v6923
    %6925 = vmatmul.f32.gmra.mxu0 %v6456
    %v6926 = vpop.f32.mrf.mxu0
    %v6927 = vadd.f32 0.0, %v6926
    %6928 = vmatmul.f32.gmra.mxu0 %v6459
    %v6929 = vpop.f32.mrf.mxu0
    %v6930 = vadd.f32 0.0, %v6929
    %6931 = vmatmul.f32.gmra.mxu0 %v6462
    %v6932 = vpop.f32.mrf.mxu0
    %v6933 = vadd.f32 0.0, %v6932
    %6934 = vmatmul.f32.gmra.mxu0 %v6465
    %v6935 = vpop.f32.mrf.mxu0
    %v6936 = vadd.f32 0.0, %v6935
    %6937 = vmatmul.f32.gmra.mxu0 %v6468
    %v6938 = vpop.f32.mrf.mxu0
    %v6939 = vadd.f32 0.0, %v6938
    %6940 = vmatmul.f32.gmra.mxu0 %v6471
    %v6941 = vpop.f32.mrf.mxu0
    %v6942 = vadd.f32 0.0, %v6941
    %6943 = vmatmul.f32.gmra.mxu0 %v6474
    %v6944 = vpop.f32.mrf.mxu0
    %v6945 = vadd.f32 0.0, %v6944
    %6946 = vmatmul.f32.gmra.mxu0 %v6477
    %v6947 = vpop.f32.mrf.mxu0
    %v6948 = vadd.f32 0.0, %v6947
    %6949 = vmatmul.f32.gmra.mxu0 %v6480
    %v6950 = vpop.f32.mrf.mxu0
    %v6951 = vadd.f32 0.0, %v6950
    %6952 = vmatmul.f32.gmra.mxu0 %v6483
    %v6953 = vpop.f32.mrf.mxu0
    %v6954 = vadd.f32 0.0, %v6953
    %6955 = vmatmul.f32.gmra.mxu0 %v6486
    %v6956 = vpop.f32.mrf.mxu0
    %v6957 = vadd.f32 0.0, %v6956
    %6958 = vmatmul.f32.gmra.mxu0 %v6489
    %v6959 = vpop.f32.mrf.mxu0
    %v6960 = vadd.f32 0.0, %v6959
    %6961 = vmatmul.f32.gmra.mxu0 %v6492
    %v6962 = vpop.f32.mrf.mxu0
    %v6963 = vadd.f32 0.0, %v6962
    %6964 = vmatmul.f32.gmra.mxu0 %v6495
    %v6965 = vpop.f32.mrf.mxu0
    %v6966 = vadd.f32 0.0, %v6965
    %6967 = vmatmul.f32.gmra.mxu0 %v6498
    %v6968 = vpop.f32.mrf.mxu0
    %v6969 = vadd.f32 0.0, %v6968
    %6970 = vmatmul.f32.gmra.mxu0 %v6501
    %v6971 = vpop.f32.mrf.mxu0
    %v6972 = vadd.f32 0.0, %v6971
    %6973 = vmatmul.f32.gmra.mxu0 %v6504
    %v6974 = vpop.f32.mrf.mxu0
    %v6975 = vadd.f32 0.0, %v6974
    %6976 = vmatmul.f32.gmra.mxu0 %v6507
    %v6977 = vpop.f32.mrf.mxu0
    %v6978 = vadd.f32 0.0, %v6977
    %6979 = vmatmul.f32.gmra.mxu0 %v6510
    %v6980 = vpop.f32.mrf.mxu0
    %v6981 = vadd.f32 0.0, %v6980
    %6982 = vmatmul.f32.gmra.mxu0 %v6513
    %v6983 = vpop.f32.mrf.mxu0
    %v6984 = vadd.f32 0.0, %v6983
    %6985 = vmatmul.f32.gmra.mxu0 %v6516
    %v6986 = vpop.f32.mrf.mxu0
    %v6987 = vadd.f32 0.0, %v6986
    %6988 = vmatmul.f32.gmra.mxu0 %v6519
    %v6989 = vpop.f32.mrf.mxu0
    %v6990 = vadd.f32 0.0, %v6989
    %6991 = vmatmul.f32.gmra.mxu0 %v6522
    %v6992 = vpop.f32.mrf.mxu0
    %v6993 = vadd.f32 0.0, %v6992
    %6994 = vmatmul.f32.gmra.mxu0 %v6525
    %v6995 = vpop.f32.mrf.mxu0
    %v6996 = vadd.f32 0.0, %v6995
    %6997 = vmatmul.f32.gmra.mxu0 %v6528
    %v6998 = vpop.f32.mrf.mxu0
    %v6999 = vadd.f32 0.0, %v6998
    %7000 = vmatmul.f32.gmra.mxu0 %v6531
    %v7001 = vpop.f32.mrf.mxu0
    %v7002 = vadd.f32 0.0, %v7001
    %7003 = vmatmul.f32.gmra.mxu0 %v6534
    %v7004 = vpop.f32.mrf.mxu0
    %v7005 = vadd.f32 0.0, %v7004
    %7006 = vmatmul.f32.gmra.mxu0 %v6537
    %v7007 = vpop.f32.mrf.mxu0
    %v7008 = vadd.f32 0.0, %v7007
    %7009 = vmatmul.f32.gmra.mxu0 %v6540
    %v7010 = vpop.f32.mrf.mxu0
    %v7011 = vadd.f32 0.0, %v7010
    %7012 = vmatmul.f32.gmra.mxu0 %v6543
    %v7013 = vpop.f32.mrf.mxu0
    %v7014 = vadd.f32 0.0, %v7013
    %7015 = vmatmul.f32.gmra.mxu0 %v6546
    %v7016 = vpop.f32.mrf.mxu0
    %v7017 = vadd.f32 0.0, %v7016
    %7018 = vmatmul.f32.gmra.mxu0 %v6549
    %v7019 = vpop.f32.mrf.mxu0
    %v7020 = vadd.f32 0.0, %v7019
    %7021 = vmatmul.f32.gmra.mxu0 %v6552
    %v7022 = vpop.f32.mrf.mxu0
    %v7023 = vadd.f32 0.0, %v7022
    %7024 = vmatmul.f32.gmra.mxu0 %v6555
    %v7025 = vpop.f32.mrf.mxu0
    %v7026 = vadd.f32 0.0, %v7025
    %7027 = vmatmul.f32.gmra.mxu0 %v6558
    %v7028 = vpop.f32.mrf.mxu0
    %v7029 = vadd.f32 0.0, %v7028
    %7030 = vmatmul.f32.gmra.mxu0 %v6561
    %v7031 = vpop.f32.mrf.mxu0
    %v7032 = vadd.f32 0.0, %v7031
    %7033 = vmatmul.f32.gmra.mxu0 %v6564
    %v7034 = vpop.f32.mrf.mxu0
    %v7035 = vadd.f32 0.0, %v7034
    %7036 = vmatmul.f32.gmra.mxu0 %v6567
    %v7037 = vpop.f32.mrf.mxu0
    %v7038 = vadd.f32 0.0, %v7037
    %7039 = vmatmul.f32.gmra.mxu0 %v6570
    %v7040 = vpop.f32.mrf.mxu0
    %v7041 = vadd.f32 0.0, %v7040
    %7042 = vmatmul.f32.gmra.mxu0 %v6573
    %v7043 = vpop.f32.mrf.mxu0
    %v7044 = vadd.f32 0.0, %v7043
    %7045 = vmatmul.f32.gmra.mxu0 %v6576
    %v7046 = vpop.f32.mrf.mxu0
    %v7047 = vadd.f32 0.0, %v7046
    %7048 = vmatmul.f32.gmra.mxu0 %v6579
    %v7049 = vpop.f32.mrf.mxu0
    %v7050 = vadd.f32 0.0, %v7049
    %7051 = vmatmul.f32.gmra.mxu0 %v6582
    %v7052 = vpop.f32.mrf.mxu0
    %v7053 = vadd.f32 0.0, %v7052
    %7054 = vmatmul.f32.gmra.mxu0 %v6585
    %v7055 = vpop.f32.mrf.mxu0
    %v7056 = vadd.f32 0.0, %v7055
    %7057 = vmatmul.f32.gmra.mxu0 %v6588
    %v7058 = vpop.f32.mrf.mxu0
    %v7059 = vadd.f32 0.0, %v7058
    %7060 = vmatmul.f32.gmra.mxu0 %v6591
    %v7061 = vpop.f32.mrf.mxu0
    %v7062 = vadd.f32 0.0, %v7061
    %7063 = vmatmul.f32.gmra.mxu0 %v6594
    %v7064 = vpop.f32.mrf.mxu0
    %v7065 = vadd.f32 0.0, %v7064
    %7066 = vmatmul.f32.gmra.mxu0 %v6597
    %v7067 = vpop.f32.mrf.mxu0
    %v7068 = vadd.f32 0.0, %v7067
    %7069 = vmatmul.f32.gmra.mxu0 %v6600
    %v7070 = vpop.f32.mrf.mxu0
    %v7071 = vadd.f32 0.0, %v7070
    %7072 = vmatmul.f32.gmra.mxu0 %v6603
    %v7073 = vpop.f32.mrf.mxu0
    %v7074 = vadd.f32 0.0, %v7073
    %7075 = vmatmul.f32.gmra.mxu0 %v6606
    %v7076 = vpop.f32.mrf.mxu0
    %v7077 = vadd.f32 0.0, %v7076
    %7078 = vmatmul.f32.gmra.mxu0 %v6609
    %v7079 = vpop.f32.mrf.mxu0
    %v7080 = vadd.f32 0.0, %v7079
    %7081 = vmatmul.f32.gmra.mxu0 %v6612
    %v7082 = vpop.f32.mrf.mxu0
    %v7083 = vadd.f32 0.0, %v7082
    %7084 = vmatmul.f32.gmra.mxu0 %v6615
    %v7085 = vpop.f32.mrf.mxu0
    %v7086 = vadd.f32 0.0, %v7085
    %7087 = vmatmul.f32.gmra.mxu0 %v6618
    %v7088 = vpop.f32.mrf.mxu0
    %v7089 = vadd.f32 0.0, %v7088
    %7090 = vmatmul.f32.gmra.mxu0 %v6621
    %v7091 = vpop.f32.mrf.mxu0
    %v7092 = vadd.f32 0.0, %v7091
    %7093 = vmatmul.f32.gmra.mxu0 %v6624
    %v7094 = vpop.f32.mrf.mxu0
    %v7095 = vadd.f32 0.0, %v7094
    %7096 = vmatmul.f32.gmra.mxu0 %v6627
    %v7097 = vpop.f32.mrf.mxu0
    %v7098 = vadd.f32 0.0, %v7097
    %7099 = vmatmul.f32.gmra.mxu0 %v6630
    %v7100 = vpop.f32.mrf.mxu0
    %v7101 = vadd.f32 0.0, %v7100
    %7102 = vmatmul.f32.gmra.mxu0 %v6633
    %v7103 = vpop.f32.mrf.mxu0
    %v7104 = vadd.f32 0.0, %v7103
    %7105 = vmatmul.f32.gmra.mxu0 %v6636
    %v7106 = vpop.f32.mrf.mxu0
    %v7107 = vadd.f32 0.0, %v7106
    %7108 = vmatmul.f32.gmra.mxu0 %v6639
    %v7109 = vpop.f32.mrf.mxu0
    %v7110 = vadd.f32 0.0, %v7109
    %7111 = vmatmul.f32.gmra.mxu0 %v6642
    %v7112 = vpop.f32.mrf.mxu0
    %v7113 = vadd.f32 0.0, %v7112
    %7114 = vmatmul.f32.gmra.mxu0 %v6645
    %v7115 = vpop.f32.mrf.mxu0
    %v7116 = vadd.f32 0.0, %v7115
    %7117 = vmatmul.f32.gmra.mxu0 %v6648
    %v7118 = vpop.f32.mrf.mxu0
    %v7119 = vadd.f32 0.0, %v7118
    %7120 = vdwg.mxu0
    %vm7121 = vcmask 56320
    %v7123 = vsel %vm7121, %v5897, 0
    %v7126 = vsel %vm7121, %v5898, 0
    %v7129 = vsel %vm7121, %v5899, 0
    %v7132 = vsel %vm7121, %v5900, 0
    %v7135 = vsel %vm7121, %v5901, 0
    %v7138 = vsel %vm7121, %v5902, 0
    %v7141 = vsel %vm7121, %v5903, 0
    %v7144 = vsel %vm7121, %v5904, 0
    %v7147 = vsel %vm7121, %v5905, 0
    %v7150 = vsel %vm7121, %v5906, 0
    %v7153 = vsel %vm7121, %v5907, 0
    %v7156 = vsel %vm7121, %v5908, 0
    %v7159 = vsel %vm7121, %v5909, 0
    %v7162 = vsel %vm7121, %v5910, 0
    %v7165 = vsel %vm7121, %v5911, 0
    %v7168 = vsel %vm7121, %v5912, 0
    %v7171 = vsel %vm7121, %v5913, 0
    %v7174 = vsel %vm7121, %v5914, 0
    %v7177 = vsel %vm7121, %v5915, 0
    %v7180 = vsel %vm7121, %v5916, 0
    %v7183 = vsel %vm7121, %v5917, 0
    %v7186 = vsel %vm7121, %v5918, 0
    %v7189 = vsel %vm7121, %v5919, 0
    %v7192 = vsel %vm7121, %v5920, 0
    %v7195 = vsel %vm7121, %v5921, 0
    %v7198 = vsel %vm7121, %v5922, 0
    %v7201 = vsel %vm7121, %v5923, 0
    %v7204 = vsel %vm7121, %v5924, 0
    %v7207 = vsel %vm7121, %v5925, 0
    %v7210 = vsel %vm7121, %v5926, 0
    %v7213 = vsel %vm7121, %v5927, 0
    %v7216 = vsel %vm7121, %v5928, 0
    %v7219 = vsel %vm7121, %v5929, 0
    %v7222 = vsel %vm7121, %v5930, 0
    %v7225 = vsel %vm7121, %v5931, 0
    %v7228 = vsel %vm7121, %v5932, 0
    %v7231 = vsel %vm7121, %v5933, 0
    %v7234 = vsel %vm7121, %v5934, 0
    %v7237 = vsel %vm7121, %v5935, 0
    %v7240 = vsel %vm7121, %v5936, 0
    %v7243 = vsel %vm7121, %v5937, 0
    %v7246 = vsel %vm7121, %v5938, 0
    %v7249 = vsel %vm7121, %v5939, 0
    %v7252 = vsel %vm7121, %v5940, 0
    %v7255 = vsel %vm7121, %v5941, 0
    %v7258 = vsel %vm7121, %v5942, 0
    %v7261 = vsel %vm7121, %v5943, 0
    %v7264 = vsel %vm7121, %v5944, 0
    %v7267 = vsel %vm7121, %v5945, 0
    %v7270 = vsel %vm7121, %v5946, 0
    %v7273 = vsel %vm7121, %v5947, 0
    %v7276 = vsel %vm7121, %v5948, 0
    %v7279 = vsel %vm7121, %v5949, 0
    %v7282 = vsel %vm7121, %v5950, 0
    %v7285 = vsel %vm7121, %v5951, 0
    %v7288 = vsel %vm7121, %v5952, 0
    %v7291 = vsel %vm7121, %v5953, 0
    %v7294 = vsel %vm7121, %v5954, 0
    %v7297 = vsel %vm7121, %v5955, 0
    %v7300 = vsel %vm7121, %v5956, 0
    %v7303 = vsel %vm7121, %v5957, 0
    %v7306 = vsel %vm7121, %v5958, 0
    %v7309 = vsel %vm7121, %v5959, 0
    %v7312 = vsel %vm7121, %v5960, 0
    %v7315 = vsel %vm7121, %v5961, 0
    %v7318 = vsel %vm7121, %v5962, 0
    %v7321 = vsel %vm7121, %v5963, 0
    %v7324 = vsel %vm7121, %v5964, 0
    %v7327 = vsel %vm7121, %v5965, 0
    %v7330 = vsel %vm7121, %v5966, 0
    %v7333 = vsel %vm7121, %v5967, 0
    %v7336 = vsel %vm7121, %v5968, 0
    %v7339 = vsel %vm7121, %v5969, 0
    %v7342 = vsel %vm7121, %v5970, 0
    %v7345 = vsel %vm7121, %v5971, 0
    %v7348 = vsel %vm7121, %v5972, 0
    %v7351 = vsel %vm7121, %v5973, 0
    %v7354 = vsel %vm7121, %v5974, 0
    %v7357 = vsel %vm7121, %v5975, 0
    %v7360 = vsel %vm7121, %v5976, 0
    %v7363 = vsel %vm7121, %v5977, 0
    %v7366 = vsel %vm7121, %v5978, 0
    %v7369 = vsel %vm7121, %v5979, 0
    %v7372 = vsel %vm7121, %v5980, 0
    %v7375 = vsel %vm7121, %v5981, 0
    %v7378 = vsel %vm7121, %v5982, 0
    %v7381 = vsel %vm7121, %v5983, 0
    %v7384 = vsel %vm7121, %v5984, 0
    %v7387 = vsel %vm7121, %v5985, 0
    %v7390 = vsel %vm7121, %v5986, 0
    %v7393 = vsel %vm7121, %v5987, 0
    %v7396 = vsel %vm7121, %v5988, 0
    %v7399 = vsel %vm7121, %v5989, 0
    %v7402 = vsel %vm7121, %v5990, 0
    %v7405 = vsel %vm7121, %v5991, 0
    %v7408 = vsel %vm7121, %v5992, 0
    %v7411 = vsel %vm7121, %v5993, 0
    %v7414 = vsel %vm7121, %v5994, 0
    %v7417 = vsel %vm7121, %v5995, 0
    %v7420 = vsel %vm7121, %v5996, 0
    %v7423 = vsel %vm7121, %v5997, 0
    %v7426 = vsel %vm7121, %v5998, 0
    %v7429 = vsel %vm7121, %v5999, 0
    %v7432 = vsel %vm7121, %v6000, 0
    %v7435 = vsel %vm7121, %v6001, 0
    %v7438 = vsel %vm7121, %v6002, 0
    %v7441 = vsel %vm7121, %v6003, 0
    %v7444 = vsel %vm7121, %v6004, 0
    %v7447 = vsel %vm7121, %v6005, 0
    %v7450 = vsel %vm7121, %v6006, 0
    %v7453 = vsel %vm7121, %v6007, 0
    %v7456 = vsel %vm7121, %v6008, 0
    %v7459 = vsel %vm7121, %v6009, 0
    %v7462 = vsel %vm7121, %v6010, 0
    %v7465 = vsel %vm7121, %v6011, 0
    %v7468 = vsel %vm7121, %v6012, 0
    %v7471 = vsel %vm7121, %v6013, 0
    %v7474 = vsel %vm7121, %v6014, 0
    %v7477 = vsel %vm7121, %v6015, 0
    %v7480 = vsel %vm7121, %v6016, 0
    %v7483 = vsel %vm7121, %v6017, 0
    %v7486 = vsel %vm7121, %v6018, 0
    %v7489 = vsel %vm7121, %v6019, 0
    %v7492 = vsel %vm7121, %v6020, 0
    %v7495 = vsel %vm7121, %v6021, 0
    %v7498 = vsel %vm7121, %v6022, 0
    %v7501 = vsel %vm7121, %v6023, 0
    %v7504 = vsel %vm7121, %v6024, 0
    %v7507 = vsel %vm7121, %v6025, 0
    %v7510 = vsel %vm7121, %v6026, 0
    %v7513 = vsel %vm7121, %v6027, 0
    %v7516 = vsel %vm7121, %v6028, 0
    %v7519 = vsel %vm7121, %v6029, 0
    %v7522 = vsel %vm7121, %v6030, 0
    %v7525 = vsel %vm7121, %v6031, 0
    %v7528 = vsel %vm7121, %v6032, 0
    %v7531 = vsel %vm7121, %v6033, 0
    %v7534 = vsel %vm7121, %v6034, 0
    %v7537 = vsel %vm7121, %v6035, 0
    %v7540 = vsel %vm7121, %v6036, 0
    %v7543 = vsel %vm7121, %v6037, 0
    %v7546 = vsel %vm7121, %v6038, 0
    %v7549 = vsel %vm7121, %v6039, 0
    %v7552 = vsel %vm7121, %v6040, 0
    %v7555 = vsel %vm7121, %v6041, 0
    %v7558 = vsel %vm7121, %v6042, 0
    %v7561 = vsel %vm7121, %v6043, 0
    %v7564 = vsel %vm7121, %v6044, 0
    %v7567 = vsel %vm7121, %v6045, 0
    %v7570 = vsel %vm7121, %v6046, 0
    %vm7572 = vcmask 1046528
    %v7574 = vsel %vm7572, %v6047, 0
    %7576 = vmatpush.msra.mxu0 0.0
    %7577 = vmatpush.msra.mxu0 0.0
    %7578 = vmatpush.msra.mxu0 0.0
    %7579 = vmatpush.msra.mxu0 0.0
    %7580 = vmatpush.msra.mxu0 0.0
    %7581 = vmatpush.msra.mxu0 0.0
    %7582 = vmatpush.msra.mxu0 0.0
    %7583 = vmatpush.msra.mxu0 0.0
    %7584 = vmatpush.msra.mxu0 0.0
    %7585 = vmatpush.msra.mxu0 0.0
    %7586 = vmatpush.msra.mxu0 0.0
    %7587 = vmatpush.msra.mxu0 0.0
    %7588 = vmatpush.msra.mxu0 0.0
    %7589 = vmatpush.msra.mxu0 0.0
    %7590 = vmatpush.msra.mxu0 0.0
    %7591 = vmatpush.msra.mxu0 %v7574
    %7592 = vmatmul.f32.gmra.mxu0 %v7123
    %v7593 = vpop.f32.mrf.mxu0
    %v7594 = vadd.f32 %v6672, %v7593
    %7595 = vmatmul.f32.gmra.mxu0 %v7126
    %v7596 = vpop.f32.mrf.mxu0
    %v7597 = vadd.f32 %v6675, %v7596
    %7598 = vmatmul.f32.gmra.mxu0 %v7129
    %v7599 = vpop.f32.mrf.mxu0
    %v7600 = vadd.f32 %v6678, %v7599
    %7601 = vmatmul.f32.gmra.mxu0 %v7132
    %v7602 = vpop.f32.mrf.mxu0
    %v7603 = vadd.f32 %v6681, %v7602
    %7604 = vmatmul.f32.gmra.mxu0 %v7135
    %v7605 = vpop.f32.mrf.mxu0
    %v7606 = vadd.f32 %v6684, %v7605
    %7607 = vmatmul.f32.gmra.mxu0 %v7138
    %v7608 = vpop.f32.mrf.mxu0
    %v7609 = vadd.f32 %v6687, %v7608
    %7610 = vmatmul.f32.gmra.mxu0 %v7141
    %v7611 = vpop.f32.mrf.mxu0
    %v7612 = vadd.f32 %v6690, %v7611
    %7613 = vmatmul.f32.gmra.mxu0 %v7144
    %v7614 = vpop.f32.mrf.mxu0
    %v7615 = vadd.f32 %v6693, %v7614
    %7616 = vmatmul.f32.gmra.mxu0 %v7147
    %v7617 = vpop.f32.mrf.mxu0
    %v7618 = vadd.f32 %v6696, %v7617
    %7619 = vmatmul.f32.gmra.mxu0 %v7150
    %v7620 = vpop.f32.mrf.mxu0
    %v7621 = vadd.f32 %v6699, %v7620
    %7622 = vmatmul.f32.gmra.mxu0 %v7153
    %v7623 = vpop.f32.mrf.mxu0
    %v7624 = vadd.f32 %v6702, %v7623
    %7625 = vmatmul.f32.gmra.mxu0 %v7156
    %v7626 = vpop.f32.mrf.mxu0
    %v7627 = vadd.f32 %v6705, %v7626
    %7628 = vmatmul.f32.gmra.mxu0 %v7159
    %v7629 = vpop.f32.mrf.mxu0
    %v7630 = vadd.f32 %v6708, %v7629
    %7631 = vmatmul.f32.gmra.mxu0 %v7162
    %v7632 = vpop.f32.mrf.mxu0
    %v7633 = vadd.f32 %v6711, %v7632
    %7634 = vmatmul.f32.gmra.mxu0 %v7165
    %v7635 = vpop.f32.mrf.mxu0
    %v7636 = vadd.f32 %v6714, %v7635
    %7637 = vmatmul.f32.gmra.mxu0 %v7168
    %v7638 = vpop.f32.mrf.mxu0
    %v7639 = vadd.f32 %v6717, %v7638
    %7640 = vmatmul.f32.gmra.mxu0 %v7171
    %v7641 = vpop.f32.mrf.mxu0
    %v7642 = vadd.f32 %v6720, %v7641
    %7643 = vmatmul.f32.gmra.mxu0 %v7174
    %v7644 = vpop.f32.mrf.mxu0
    %v7645 = vadd.f32 %v6723, %v7644
    %7646 = vmatmul.f32.gmra.mxu0 %v7177
    %v7647 = vpop.f32.mrf.mxu0
    %v7648 = vadd.f32 %v6726, %v7647
    %7649 = vmatmul.f32.gmra.mxu0 %v7180
    %v7650 = vpop.f32.mrf.mxu0
    %v7651 = vadd.f32 %v6729, %v7650
    %7652 = vmatmul.f32.gmra.mxu0 %v7183
    %v7653 = vpop.f32.mrf.mxu0
    %v7654 = vadd.f32 %v6732, %v7653
    %7655 = vmatmul.f32.gmra.mxu0 %v7186
    %v7656 = vpop.f32.mrf.mxu0
    %v7657 = vadd.f32 %v6735, %v7656
    %7658 = vmatmul.f32.gmra.mxu0 %v7189
    %v7659 = vpop.f32.mrf.mxu0
    %v7660 = vadd.f32 %v6738, %v7659
    %7661 = vmatmul.f32.gmra.mxu0 %v7192
    %v7662 = vpop.f32.mrf.mxu0
    %v7663 = vadd.f32 %v6741, %v7662
    %7664 = vmatmul.f32.gmra.mxu0 %v7195
    %v7665 = vpop.f32.mrf.mxu0
    %v7666 = vadd.f32 %v6744, %v7665
    %7667 = vmatmul.f32.gmra.mxu0 %v7198
    %v7668 = vpop.f32.mrf.mxu0
    %v7669 = vadd.f32 %v6747, %v7668
    %7670 = vmatmul.f32.gmra.mxu0 %v7201
    %v7671 = vpop.f32.mrf.mxu0
    %v7672 = vadd.f32 %v6750, %v7671
    %7673 = vmatmul.f32.gmra.mxu0 %v7204
    %v7674 = vpop.f32.mrf.mxu0
    %v7675 = vadd.f32 %v6753, %v7674
    %7676 = vmatmul.f32.gmra.mxu0 %v7207
    %v7677 = vpop.f32.mrf.mxu0
    %v7678 = vadd.f32 %v6756, %v7677
    %7679 = vmatmul.f32.gmra.mxu0 %v7210
    %v7680 = vpop.f32.mrf.mxu0
    %v7681 = vadd.f32 %v6759, %v7680
    %7682 = vmatmul.f32.gmra.mxu0 %v7213
    %v7683 = vpop.f32.mrf.mxu0
    %v7684 = vadd.f32 %v6762, %v7683
    %7685 = vmatmul.f32.gmra.mxu0 %v7216
    %v7686 = vpop.f32.mrf.mxu0
    %v7687 = vadd.f32 %v6765, %v7686
    %7688 = vmatmul.f32.gmra.mxu0 %v7219
    %v7689 = vpop.f32.mrf.mxu0
    %v7690 = vadd.f32 %v6768, %v7689
    %7691 = vmatmul.f32.gmra.mxu0 %v7222
    %v7692 = vpop.f32.mrf.mxu0
    %v7693 = vadd.f32 %v6771, %v7692
    %7694 = vmatmul.f32.gmra.mxu0 %v7225
    %v7695 = vpop.f32.mrf.mxu0
    %v7696 = vadd.f32 %v6774, %v7695
    %7697 = vmatmul.f32.gmra.mxu0 %v7228
    %v7698 = vpop.f32.mrf.mxu0
    %v7699 = vadd.f32 %v6777, %v7698
    %7700 = vmatmul.f32.gmra.mxu0 %v7231
    %v7701 = vpop.f32.mrf.mxu0
    %v7702 = vadd.f32 %v6780, %v7701
    %7703 = vmatmul.f32.gmra.mxu0 %v7234
    %v7704 = vpop.f32.mrf.mxu0
    %v7705 = vadd.f32 %v6783, %v7704
    %7706 = vmatmul.f32.gmra.mxu0 %v7237
    %v7707 = vpop.f32.mrf.mxu0
    %v7708 = vadd.f32 %v6786, %v7707
    %7709 = vmatmul.f32.gmra.mxu0 %v7240
    %v7710 = vpop.f32.mrf.mxu0
    %v7711 = vadd.f32 %v6789, %v7710
    %7712 = vmatmul.f32.gmra.mxu0 %v7243
    %v7713 = vpop.f32.mrf.mxu0
    %v7714 = vadd.f32 %v6792, %v7713
    %7715 = vmatmul.f32.gmra.mxu0 %v7246
    %v7716 = vpop.f32.mrf.mxu0
    %v7717 = vadd.f32 %v6795, %v7716
    %7718 = vmatmul.f32.gmra.mxu0 %v7249
    %v7719 = vpop.f32.mrf.mxu0
    %v7720 = vadd.f32 %v6798, %v7719
    %7721 = vmatmul.f32.gmra.mxu0 %v7252
    %v7722 = vpop.f32.mrf.mxu0
    %v7723 = vadd.f32 %v6801, %v7722
    %7724 = vmatmul.f32.gmra.mxu0 %v7255
    %v7725 = vpop.f32.mrf.mxu0
    %v7726 = vadd.f32 %v6804, %v7725
    %7727 = vmatmul.f32.gmra.mxu0 %v7258
    %v7728 = vpop.f32.mrf.mxu0
    %v7729 = vadd.f32 %v6807, %v7728
    %7730 = vmatmul.f32.gmra.mxu0 %v7261
    %v7731 = vpop.f32.mrf.mxu0
    %v7732 = vadd.f32 %v6810, %v7731
    %7733 = vmatmul.f32.gmra.mxu0 %v7264
    %v7734 = vpop.f32.mrf.mxu0
    %v7735 = vadd.f32 %v6813, %v7734
    %7736 = vmatmul.f32.gmra.mxu0 %v7267
    %v7737 = vpop.f32.mrf.mxu0
    %v7738 = vadd.f32 %v6816, %v7737
    %7739 = vmatmul.f32.gmra.mxu0 %v7270
    %v7740 = vpop.f32.mrf.mxu0
    %v7741 = vadd.f32 %v6819, %v7740
    %7742 = vmatmul.f32.gmra.mxu0 %v7273
    %v7743 = vpop.f32.mrf.mxu0
    %v7744 = vadd.f32 %v6822, %v7743
    %7745 = vmatmul.f32.gmra.mxu0 %v7276
    %v7746 = vpop.f32.mrf.mxu0
    %v7747 = vadd.f32 %v6825, %v7746
    %7748 = vmatmul.f32.gmra.mxu0 %v7279
    %v7749 = vpop.f32.mrf.mxu0
    %v7750 = vadd.f32 %v6828, %v7749
    %7751 = vmatmul.f32.gmra.mxu0 %v7282
    %v7752 = vpop.f32.mrf.mxu0
    %v7753 = vadd.f32 %v6831, %v7752
    %7754 = vmatmul.f32.gmra.mxu0 %v7285
    %v7755 = vpop.f32.mrf.mxu0
    %v7756 = vadd.f32 %v6834, %v7755
    %7757 = vmatmul.f32.gmra.mxu0 %v7288
    %v7758 = vpop.f32.mrf.mxu0
    %v7759 = vadd.f32 %v6837, %v7758
    %7760 = vmatmul.f32.gmra.mxu0 %v7291
    %v7761 = vpop.f32.mrf.mxu0
    %v7762 = vadd.f32 %v6840, %v7761
    %7763 = vmatmul.f32.gmra.mxu0 %v7294
    %v7764 = vpop.f32.mrf.mxu0
    %v7765 = vadd.f32 %v6843, %v7764
    %7766 = vmatmul.f32.gmra.mxu0 %v7297
    %v7767 = vpop.f32.mrf.mxu0
    %v7768 = vadd.f32 %v6846, %v7767
    %7769 = vmatmul.f32.gmra.mxu0 %v7300
    %v7770 = vpop.f32.mrf.mxu0
    %v7771 = vadd.f32 %v6849, %v7770
    %7772 = vmatmul.f32.gmra.mxu0 %v7303
    %v7773 = vpop.f32.mrf.mxu0
    %v7774 = vadd.f32 %v6852, %v7773
    %7775 = vmatmul.f32.gmra.mxu0 %v7306
    %v7776 = vpop.f32.mrf.mxu0
    %v7777 = vadd.f32 %v6855, %v7776
    %7778 = vmatmul.f32.gmra.mxu0 %v7309
    %v7779 = vpop.f32.mrf.mxu0
    %v7780 = vadd.f32 %v6858, %v7779
    %7781 = vmatmul.f32.gmra.mxu0 %v7312
    %v7782 = vpop.f32.mrf.mxu0
    %v7783 = vadd.f32 %v6861, %v7782
    %7784 = vmatmul.f32.gmra.mxu0 %v7315
    %v7785 = vpop.f32.mrf.mxu0
    %v7786 = vadd.f32 %v6864, %v7785
    %7787 = vmatmul.f32.gmra.mxu0 %v7318
    %v7788 = vpop.f32.mrf.mxu0
    %v7789 = vadd.f32 %v6867, %v7788
    %7790 = vmatmul.f32.gmra.mxu0 %v7321
    %v7791 = vpop.f32.mrf.mxu0
    %v7792 = vadd.f32 %v6870, %v7791
    %7793 = vmatmul.f32.gmra.mxu0 %v7324
    %v7794 = vpop.f32.mrf.mxu0
    %v7795 = vadd.f32 %v6873, %v7794
    %7796 = vmatmul.f32.gmra.mxu0 %v7327
    %v7797 = vpop.f32.mrf.mxu0
    %v7798 = vadd.f32 %v6876, %v7797
    %7799 = vmatmul.f32.gmra.mxu0 %v7330
    %v7800 = vpop.f32.mrf.mxu0
    %v7801 = vadd.f32 %v6879, %v7800
    %7802 = vmatmul.f32.gmra.mxu0 %v7333
    %v7803 = vpop.f32.mrf.mxu0
    %v7804 = vadd.f32 %v6882, %v7803
    %7805 = vmatmul.f32.gmra.mxu0 %v7336
    %v7806 = vpop.f32.mrf.mxu0
    %v7807 = vadd.f32 %v6885, %v7806
    %7808 = vmatmul.f32.gmra.mxu0 %v7339
    %v7809 = vpop.f32.mrf.mxu0
    %v7810 = vadd.f32 %v6888, %v7809
    %7811 = vmatmul.f32.gmra.mxu0 %v7342
    %v7812 = vpop.f32.mrf.mxu0
    %v7813 = vadd.f32 %v6891, %v7812
    %7814 = vmatmul.f32.gmra.mxu0 %v7345
    %v7815 = vpop.f32.mrf.mxu0
    %v7816 = vadd.f32 %v6894, %v7815
    %7817 = vmatmul.f32.gmra.mxu0 %v7348
    %v7818 = vpop.f32.mrf.mxu0
    %v7819 = vadd.f32 %v6897, %v7818
    %7820 = vmatmul.f32.gmra.mxu0 %v7351
    %v7821 = vpop.f32.mrf.mxu0
    %v7822 = vadd.f32 %v6900, %v7821
    %7823 = vmatmul.f32.gmra.mxu0 %v7354
    %v7824 = vpop.f32.mrf.mxu0
    %v7825 = vadd.f32 %v6903, %v7824
    %7826 = vmatmul.f32.gmra.mxu0 %v7357
    %v7827 = vpop.f32.mrf.mxu0
    %v7828 = vadd.f32 %v6906, %v7827
    %7829 = vmatmul.f32.gmra.mxu0 %v7360
    %v7830 = vpop.f32.mrf.mxu0
    %v7831 = vadd.f32 %v6909, %v7830
    %7832 = vmatmul.f32.gmra.mxu0 %v7363
    %v7833 = vpop.f32.mrf.mxu0
    %v7834 = vadd.f32 %v6912, %v7833
    %7835 = vmatmul.f32.gmra.mxu0 %v7366
    %v7836 = vpop.f32.mrf.mxu0
    %v7837 = vadd.f32 %v6915, %v7836
    %7838 = vmatmul.f32.gmra.mxu0 %v7369
    %v7839 = vpop.f32.mrf.mxu0
    %v7840 = vadd.f32 %v6918, %v7839
    %7841 = vmatmul.f32.gmra.mxu0 %v7372
    %v7842 = vpop.f32.mrf.mxu0
    %v7843 = vadd.f32 %v6921, %v7842
    %7844 = vmatmul.f32.gmra.mxu0 %v7375
    %v7845 = vpop.f32.mrf.mxu0
    %v7846 = vadd.f32 %v6924, %v7845
    %7847 = vmatmul.f32.gmra.mxu0 %v7378
    %v7848 = vpop.f32.mrf.mxu0
    %v7849 = vadd.f32 %v6927, %v7848
    %7850 = vmatmul.f32.gmra.mxu0 %v7381
    %v7851 = vpop.f32.mrf.mxu0
    %v7852 = vadd.f32 %v6930, %v7851
    %7853 = vmatmul.f32.gmra.mxu0 %v7384
    %v7854 = vpop.f32.mrf.mxu0
    %v7855 = vadd.f32 %v6933, %v7854
    %7856 = vmatmul.f32.gmra.mxu0 %v7387
    %v7857 = vpop.f32.mrf.mxu0
    %v7858 = vadd.f32 %v6936, %v7857
    %7859 = vmatmul.f32.gmra.mxu0 %v7390
    %v7860 = vpop.f32.mrf.mxu0
    %v7861 = vadd.f32 %v6939, %v7860
    %7862 = vmatmul.f32.gmra.mxu0 %v7393
    %v7863 = vpop.f32.mrf.mxu0
    %v7864 = vadd.f32 %v6942, %v7863
    %7865 = vmatmul.f32.gmra.mxu0 %v7396
    %v7866 = vpop.f32.mrf.mxu0
    %v7867 = vadd.f32 %v6945, %v7866
    %7868 = vmatmul.f32.gmra.mxu0 %v7399
    %v7869 = vpop.f32.mrf.mxu0
    %v7870 = vadd.f32 %v6948, %v7869
    %7871 = vmatmul.f32.gmra.mxu0 %v7402
    %v7872 = vpop.f32.mrf.mxu0
    %v7873 = vadd.f32 %v6951, %v7872
    %7874 = vmatmul.f32.gmra.mxu0 %v7405
    %v7875 = vpop.f32.mrf.mxu0
    %v7876 = vadd.f32 %v6954, %v7875
    %7877 = vmatmul.f32.gmra.mxu0 %v7408
    %v7878 = vpop.f32.mrf.mxu0
    %v7879 = vadd.f32 %v6957, %v7878
    %7880 = vmatmul.f32.gmra.mxu0 %v7411
    %v7881 = vpop.f32.mrf.mxu0
    %v7882 = vadd.f32 %v6960, %v7881
    %7883 = vmatmul.f32.gmra.mxu0 %v7414
    %v7884 = vpop.f32.mrf.mxu0
    %v7885 = vadd.f32 %v6963, %v7884
    %7886 = vmatmul.f32.gmra.mxu0 %v7417
    %v7887 = vpop.f32.mrf.mxu0
    %v7888 = vadd.f32 %v6966, %v7887
    %7889 = vmatmul.f32.gmra.mxu0 %v7420
    %v7890 = vpop.f32.mrf.mxu0
    %v7891 = vadd.f32 %v6969, %v7890
    %7892 = vmatmul.f32.gmra.mxu0 %v7423
    %v7893 = vpop.f32.mrf.mxu0
    %v7894 = vadd.f32 %v6972, %v7893
    %7895 = vmatmul.f32.gmra.mxu0 %v7426
    %v7896 = vpop.f32.mrf.mxu0
    %v7897 = vadd.f32 %v6975, %v7896
    %7898 = vmatmul.f32.gmra.mxu0 %v7429
    %v7899 = vpop.f32.mrf.mxu0
    %v7900 = vadd.f32 %v6978, %v7899
    %7901 = vmatmul.f32.gmra.mxu0 %v7432
    %v7902 = vpop.f32.mrf.mxu0
    %v7903 = vadd.f32 %v6981, %v7902
    %7904 = vmatmul.f32.gmra.mxu0 %v7435
    %v7905 = vpop.f32.mrf.mxu0
    %v7906 = vadd.f32 %v6984, %v7905
    %7907 = vmatmul.f32.gmra.mxu0 %v7438
    %v7908 = vpop.f32.mrf.mxu0
    %v7909 = vadd.f32 %v6987, %v7908
    %7910 = vmatmul.f32.gmra.mxu0 %v7441
    %v7911 = vpop.f32.mrf.mxu0
    %v7912 = vadd.f32 %v6990, %v7911
    %7913 = vmatmul.f32.gmra.mxu0 %v7444
    %v7914 = vpop.f32.mrf.mxu0
    %v7915 = vadd.f32 %v6993, %v7914
    %7916 = vmatmul.f32.gmra.mxu0 %v7447
    %v7917 = vpop.f32.mrf.mxu0
    %v7918 = vadd.f32 %v6996, %v7917
    %7919 = vmatmul.f32.gmra.mxu0 %v7450
    %v7920 = vpop.f32.mrf.mxu0
    %v7921 = vadd.f32 %v6999, %v7920
    %7922 = vmatmul.f32.gmra.mxu0 %v7453
    %v7923 = vpop.f32.mrf.mxu0
    %v7924 = vadd.f32 %v7002, %v7923
    %7925 = vmatmul.f32.gmra.mxu0 %v7456
    %v7926 = vpop.f32.mrf.mxu0
    %v7927 = vadd.f32 %v7005, %v7926
    %7928 = vmatmul.f32.gmra.mxu0 %v7459
    %v7929 = vpop.f32.mrf.mxu0
    %v7930 = vadd.f32 %v7008, %v7929
    %7931 = vmatmul.f32.gmra.mxu0 %v7462
    %v7932 = vpop.f32.mrf.mxu0
    %v7933 = vadd.f32 %v7011, %v7932
    %7934 = vmatmul.f32.gmra.mxu0 %v7465
    %v7935 = vpop.f32.mrf.mxu0
    %v7936 = vadd.f32 %v7014, %v7935
    %7937 = vmatmul.f32.gmra.mxu0 %v7468
    %v7938 = vpop.f32.mrf.mxu0
    %v7939 = vadd.f32 %v7017, %v7938
    %7940 = vmatmul.f32.gmra.mxu0 %v7471
    %v7941 = vpop.f32.mrf.mxu0
    %v7942 = vadd.f32 %v7020, %v7941
    %7943 = vmatmul.f32.gmra.mxu0 %v7474
    %v7944 = vpop.f32.mrf.mxu0
    %v7945 = vadd.f32 %v7023, %v7944
    %7946 = vmatmul.f32.gmra.mxu0 %v7477
    %v7947 = vpop.f32.mrf.mxu0
    %v7948 = vadd.f32 %v7026, %v7947
    %7949 = vmatmul.f32.gmra.mxu0 %v7480
    %v7950 = vpop.f32.mrf.mxu0
    %v7951 = vadd.f32 %v7029, %v7950
    %7952 = vmatmul.f32.gmra.mxu0 %v7483
    %v7953 = vpop.f32.mrf.mxu0
    %v7954 = vadd.f32 %v7032, %v7953
    %7955 = vmatmul.f32.gmra.mxu0 %v7486
    %v7956 = vpop.f32.mrf.mxu0
    %v7957 = vadd.f32 %v7035, %v7956
    %7958 = vmatmul.f32.gmra.mxu0 %v7489
    %v7959 = vpop.f32.mrf.mxu0
    %v7960 = vadd.f32 %v7038, %v7959
    %7961 = vmatmul.f32.gmra.mxu0 %v7492
    %v7962 = vpop.f32.mrf.mxu0
    %v7963 = vadd.f32 %v7041, %v7962
    %7964 = vmatmul.f32.gmra.mxu0 %v7495
    %v7965 = vpop.f32.mrf.mxu0
    %v7966 = vadd.f32 %v7044, %v7965
    %7967 = vmatmul.f32.gmra.mxu0 %v7498
    %v7968 = vpop.f32.mrf.mxu0
    %v7969 = vadd.f32 %v7047, %v7968
    %7970 = vmatmul.f32.gmra.mxu0 %v7501
    %v7971 = vpop.f32.mrf.mxu0
    %v7972 = vadd.f32 %v7050, %v7971
    %7973 = vmatmul.f32.gmra.mxu0 %v7504
    %v7974 = vpop.f32.mrf.mxu0
    %v7975 = vadd.f32 %v7053, %v7974
    %7976 = vmatmul.f32.gmra.mxu0 %v7507
    %v7977 = vpop.f32.mrf.mxu0
    %v7978 = vadd.f32 %v7056, %v7977
    %7979 = vmatmul.f32.gmra.mxu0 %v7510
    %v7980 = vpop.f32.mrf.mxu0
    %v7981 = vadd.f32 %v7059, %v7980
    %7982 = vmatmul.f32.gmra.mxu0 %v7513
    %v7983 = vpop.f32.mrf.mxu0
    %v7984 = vadd.f32 %v7062, %v7983
    %7985 = vmatmul.f32.gmra.mxu0 %v7516
    %v7986 = vpop.f32.mrf.mxu0
    %v7987 = vadd.f32 %v7065, %v7986
    %7988 = vmatmul.f32.gmra.mxu0 %v7519
    %v7989 = vpop.f32.mrf.mxu0
    %v7990 = vadd.f32 %v7068, %v7989
    %7991 = vmatmul.f32.gmra.mxu0 %v7522
    %v7992 = vpop.f32.mrf.mxu0
    %v7993 = vadd.f32 %v7071, %v7992
    %7994 = vmatmul.f32.gmra.mxu0 %v7525
    %v7995 = vpop.f32.mrf.mxu0
    %v7996 = vadd.f32 %v7074, %v7995
    %7997 = vmatmul.f32.gmra.mxu0 %v7528
    %v7998 = vpop.f32.mrf.mxu0
    %v7999 = vadd.f32 %v7077, %v7998
    %8000 = vmatmul.f32.gmra.mxu0 %v7531
    %v8001 = vpop.f32.mrf.mxu0
    %v8002 = vadd.f32 %v7080, %v8001
    %8003 = vmatmul.f32.gmra.mxu0 %v7534
    %v8004 = vpop.f32.mrf.mxu0
    %v8005 = vadd.f32 %v7083, %v8004
    %8006 = vmatmul.f32.gmra.mxu0 %v7537
    %v8007 = vpop.f32.mrf.mxu0
    %v8008 = vadd.f32 %v7086, %v8007
    %8009 = vmatmul.f32.gmra.mxu0 %v7540
    %v8010 = vpop.f32.mrf.mxu0
    %v8011 = vadd.f32 %v7089, %v8010
    %8012 = vmatmul.f32.gmra.mxu0 %v7543
    %v8013 = vpop.f32.mrf.mxu0
    %v8014 = vadd.f32 %v7092, %v8013
    %8015 = vmatmul.f32.gmra.mxu0 %v7546
    %v8016 = vpop.f32.mrf.mxu0
    %v8017 = vadd.f32 %v7095, %v8016
    %8018 = vmatmul.f32.gmra.mxu0 %v7549
    %v8019 = vpop.f32.mrf.mxu0
    %v8020 = vadd.f32 %v7098, %v8019
    %8021 = vmatmul.f32.gmra.mxu0 %v7552
    %v8022 = vpop.f32.mrf.mxu0
    %v8023 = vadd.f32 %v7101, %v8022
    %8024 = vmatmul.f32.gmra.mxu0 %v7555
    %v8025 = vpop.f32.mrf.mxu0
    %v8026 = vadd.f32 %v7104, %v8025
    %8027 = vmatmul.f32.gmra.mxu0 %v7558
    %v8028 = vpop.f32.mrf.mxu0
    %v8029 = vadd.f32 %v7107, %v8028
    %8030 = vmatmul.f32.gmra.mxu0 %v7561
    %v8031 = vpop.f32.mrf.mxu0
    %v8032 = vadd.f32 %v7110, %v8031
    %8033 = vmatmul.f32.gmra.mxu0 %v7564
    %v8034 = vpop.f32.mrf.mxu0
    %v8035 = vadd.f32 %v7113, %v8034
    %8036 = vmatmul.f32.gmra.mxu0 %v7567
    %v8037 = vpop.f32.mrf.mxu0
    %v8038 = vadd.f32 %v7116, %v8037
    %8039 = vmatmul.f32.gmra.mxu0 %v7570
    %v8040 = vpop.f32.mrf.mxu0
    %v8041 = vadd.f32 %v7119, %v8040
    %8042 = vdwg.mxu0
    %v8043 = vld [vmem:[%s3] sm:$0xff]
    %v8044 = vld [vmem:[%s3 + $0x8] sm:$0xff]
    %v8045 = vld [vmem:[%s3 + $0x10] sm:$0xff]
    %v8046 = vld [vmem:[%s3 + $0x18] sm:$0xff]
    %v8047 = vld [vmem:[%s3 + $0x20] sm:$0xff]
    %v8048 = vld [vmem:[%s3 + $0x28] sm:$0xff]
    %v8049 = vld [vmem:[%s3 + $0x30] sm:$0xff]
    %v8050 = vld [vmem:[%s3 + $0x38] sm:$0xff]
    %v8051 = vld [vmem:[%s3 + $0x40] sm:$0xff]
    %v8052 = vld [vmem:[%s3 + $0x48] sm:$0xff]
    %v8053 = vld [vmem:[%s3 + $0x50] sm:$0xff]
    %v8054 = vld [vmem:[%s3 + $0x58] sm:$0xff]
    %v8055 = vld [vmem:[%s3 + $0x60] sm:$0xff]
    %v8056 = vld [vmem:[%s3 + $0x68] sm:$0xff]
    %v8057 = vld [vmem:[%s3 + $0x70] sm:$0xff]
    %v8058 = vld [vmem:[%s3 + $0x78] sm:$0xff]
    %v8059 = vld [vmem:[%s3 + $0x80] sm:$0xff]
    %v8060 = vld [vmem:[%s3 + $0x88] sm:$0xff]
    %v8061 = vld [vmem:[%s3 + $0x90] sm:$0xff]
    %v8062 = vld [vmem:[%s3 + $0x98] sm:$0xff]
    %v8063 = vld [vmem:[%s3 + $0xa0] sm:$0xff]
    %v8064 = vld [vmem:[%s3 + $0xa8] sm:$0xff]
    %v8065 = vld [vmem:[%s3 + $0xb0] sm:$0xff]
    %v8066 = vld [vmem:[%s3 + $0xb8] sm:$0xff]
    %v8067 = vld [vmem:[%s3 + $0xc0] sm:$0xff]
    %v8068 = vld [vmem:[%s3 + $0xc8] sm:$0xff]
    %v8069 = vld [vmem:[%s3 + $0xd0] sm:$0xff]
    %v8070 = vld [vmem:[%s3 + $0xd8] sm:$0xff]
    %v8071 = vld [vmem:[%s3 + $0xe0] sm:$0xff]
    %v8072 = vld [vmem:[%s3 + $0xe8] sm:$0xff]
    %v8073 = vld [vmem:[%s3 + $0xf0] sm:$0xff]
    %v8074 = vld [vmem:[%s3 + $0xf8] sm:$0xff]
    %v8075 = vld [vmem:[%s3 + $0x100] sm:$0xff]
    %v8076 = vld [vmem:[%s3 + $0x108] sm:$0xff]
    %v8077 = vld [vmem:[%s3 + $0x110] sm:$0xff]
    %v8078 = vld [vmem:[%s3 + $0x118] sm:$0xff]
    %v8079 = vld [vmem:[%s3 + $0x120] sm:$0xff]
    %v8080 = vld [vmem:[%s3 + $0x128] sm:$0xff]
    %v8081 = vld [vmem:[%s3 + $0x130] sm:$0xff]
    %v8082 = vld [vmem:[%s3 + $0x138] sm:$0xff]
    %v8083 = vld [vmem:[%s3 + $0x140] sm:$0xff]
    %v8084 = vld [vmem:[%s3 + $0x148] sm:$0xff]
    %v8085 = vld [vmem:[%s3 + $0x150] sm:$0xff]
    %v8086 = vld [vmem:[%s3 + $0x158] sm:$0xff]
    %v8087 = vld [vmem:[%s3 + $0x160] sm:$0xff]
    %v8088 = vld [vmem:[%s3 + $0x168] sm:$0xff]
    %v8089 = vld [vmem:[%s3 + $0x170] sm:$0xff]
    %v8090 = vld [vmem:[%s3 + $0x178] sm:$0xff]
    %v8091 = vld [vmem:[%s3 + $0x180] sm:$0xff]
    %v8092 = vld [vmem:[%s3 + $0x188] sm:$0xff]
    %v8093 = vld [vmem:[%s3 + $0x190] sm:$0xff]
    %v8094 = vld [vmem:[%s3 + $0x198] sm:$0xff]
    %v8095 = vld [vmem:[%s3 + $0x1a0] sm:$0xff]
    %v8096 = vld [vmem:[%s3 + $0x1a8] sm:$0xff]
    %v8097 = vld [vmem:[%s3 + $0x1b0] sm:$0xff]
    %v8098 = vld [vmem:[%s3 + $0x1b8] sm:$0xff]
    %v8099 = vld [vmem:[%s3 + $0x1c0] sm:$0xff]
    %v8100 = vld [vmem:[%s3 + $0x1c8] sm:$0xff]
    %v8101 = vld [vmem:[%s3 + $0x1d0] sm:$0xff]
    %v8102 = vld [vmem:[%s3 + $0x1d8] sm:$0xff]
    %v8103 = vld [vmem:[%s3 + $0x1e0] sm:$0xff]
    %v8104 = vld [vmem:[%s3 + $0x1e8] sm:$0xff]
    %v8105 = vld [vmem:[%s3 + $0x1f0] sm:$0xff]
    %v8106 = vld [vmem:[%s3 + $0x1f8] sm:$0xff]
    %v8107 = vld [vmem:[%s3 + $0x200] sm:$0xff]
    %v8108 = vld [vmem:[%s3 + $0x208] sm:$0xff]
    %v8109 = vld [vmem:[%s3 + $0x210] sm:$0xff]
    %v8110 = vld [vmem:[%s3 + $0x218] sm:$0xff]
    %v8111 = vld [vmem:[%s3 + $0x220] sm:$0xff]
    %v8112 = vld [vmem:[%s3 + $0x228] sm:$0xff]
    %v8113 = vld [vmem:[%s3 + $0x230] sm:$0xff]
    %v8114 = vld [vmem:[%s3 + $0x238] sm:$0xff]
    %v8115 = vld [vmem:[%s3 + $0x240] sm:$0xff]
    %v8116 = vld [vmem:[%s3 + $0x248] sm:$0xff]
    %v8117 = vld [vmem:[%s3 + $0x250] sm:$0xff]
    %v8118 = vld [vmem:[%s3 + $0x258] sm:$0xff]
    %v8119 = vld [vmem:[%s3 + $0x260] sm:$0xff]
    %v8120 = vld [vmem:[%s3 + $0x268] sm:$0xff]
    %v8121 = vld [vmem:[%s3 + $0x270] sm:$0xff]
    %v8122 = vld [vmem:[%s3 + $0x278] sm:$0xff]
    %v8123 = vld [vmem:[%s3 + $0x280] sm:$0xff]
    %v8124 = vld [vmem:[%s3 + $0x288] sm:$0xff]
    %v8125 = vld [vmem:[%s3 + $0x290] sm:$0xff]
    %v8126 = vld [vmem:[%s3 + $0x298] sm:$0xff]
    %v8127 = vld [vmem:[%s3 + $0x2a0] sm:$0xff]
    %v8128 = vld [vmem:[%s3 + $0x2a8] sm:$0xff]
    %v8129 = vld [vmem:[%s3 + $0x2b0] sm:$0xff]
    %v8130 = vld [vmem:[%s3 + $0x2b8] sm:$0xff]
    %v8131 = vld [vmem:[%s3 + $0x2c0] sm:$0xff]
    %v8132 = vld [vmem:[%s3 + $0x2c8] sm:$0xff]
    %v8133 = vld [vmem:[%s3 + $0x2d0] sm:$0xff]
    %v8134 = vld [vmem:[%s3 + $0x2d8] sm:$0xff]
    %v8135 = vld [vmem:[%s3 + $0x2e0] sm:$0xff]
    %v8136 = vld [vmem:[%s3 + $0x2e8] sm:$0xff]
    %v8137 = vld [vmem:[%s3 + $0x2f0] sm:$0xff]
    %v8138 = vld [vmem:[%s3 + $0x2f8] sm:$0xff]
    %v8139 = vld [vmem:[%s3 + $0x300] sm:$0xff]
    %v8140 = vld [vmem:[%s3 + $0x308] sm:$0xff]
    %v8141 = vld [vmem:[%s3 + $0x310] sm:$0xff]
    %v8142 = vld [vmem:[%s3 + $0x318] sm:$0xff]
    %v8143 = vld [vmem:[%s3 + $0x320] sm:$0xff]
    %v8144 = vld [vmem:[%s3 + $0x328] sm:$0xff]
    %v8145 = vld [vmem:[%s3 + $0x330] sm:$0xff]
    %v8146 = vld [vmem:[%s3 + $0x338] sm:$0xff]
    %v8147 = vld [vmem:[%s3 + $0x340] sm:$0xff]
    %v8148 = vld [vmem:[%s3 + $0x348] sm:$0xff]
    %v8149 = vld [vmem:[%s3 + $0x350] sm:$0xff]
    %v8150 = vld [vmem:[%s3 + $0x358] sm:$0xff]
    %v8151 = vld [vmem:[%s3 + $0x360] sm:$0xff]
    %v8152 = vld [vmem:[%s3 + $0x368] sm:$0xff]
    %v8153 = vld [vmem:[%s3 + $0x370] sm:$0xff]
    %v8154 = vld [vmem:[%s3 + $0x378] sm:$0xff]
    %v8155 = vld [vmem:[%s3 + $0x380] sm:$0xff]
    %v8156 = vld [vmem:[%s3 + $0x388] sm:$0xff]
    %v8157 = vld [vmem:[%s3 + $0x390] sm:$0xff]
    %v8158 = vld [vmem:[%s3 + $0x398] sm:$0xff]
    %v8159 = vld [vmem:[%s3 + $0x3a0] sm:$0xff]
    %v8160 = vld [vmem:[%s3 + $0x3a8] sm:$0xff]
    %v8161 = vld [vmem:[%s3 + $0x3b0] sm:$0xff]
    %v8162 = vld [vmem:[%s3 + $0x3b8] sm:$0xff]
    %v8163 = vld [vmem:[%s3 + $0x3c0] sm:$0xff]
    %v8164 = vld [vmem:[%s3 + $0x3c8] sm:$0xff]
    %v8165 = vld [vmem:[%s3 + $0x3d0] sm:$0xff]
    %v8166 = vld [vmem:[%s3 + $0x3d8] sm:$0xff]
    %v8167 = vld [vmem:[%s3 + $0x3e0] sm:$0xff]
    %v8168 = vld [vmem:[%s3 + $0x3e8] sm:$0xff]
    %v8169 = vld [vmem:[%s3 + $0x3f0] sm:$0xff]
    %v8170 = vld [vmem:[%s3 + $0x3f8] sm:$0xff]
    %v8171 = vld [vmem:[%s3 + $0x400] sm:$0xff]
    %v8172 = vld [vmem:[%s3 + $0x408] sm:$0xff]
    %v8173 = vld [vmem:[%s3 + $0x410] sm:$0xff]
    %v8174 = vld [vmem:[%s3 + $0x418] sm:$0xff]
    %v8175 = vld [vmem:[%s3 + $0x420] sm:$0xff]
    %v8176 = vld [vmem:[%s3 + $0x428] sm:$0xff]
    %v8177 = vld [vmem:[%s3 + $0x430] sm:$0xff]
    %v8178 = vld [vmem:[%s3 + $0x438] sm:$0xff]
    %v8179 = vld [vmem:[%s3 + $0x440] sm:$0xff]
    %v8180 = vld [vmem:[%s3 + $0x448] sm:$0xff]
    %v8181 = vld [vmem:[%s3 + $0x450] sm:$0xff]
    %v8182 = vld [vmem:[%s3 + $0x458] sm:$0xff]
    %v8183 = vld [vmem:[%s3 + $0x460] sm:$0xff]
    %v8184 = vld [vmem:[%s3 + $0x468] sm:$0xff]
    %v8185 = vld [vmem:[%s3 + $0x470] sm:$0xff]
    %v8186 = vld [vmem:[%s3 + $0x478] sm:$0xff]
    %v8187 = vld [vmem:[%s3 + $0x480] sm:$0xff]
    %v8188 = vld [vmem:[%s3 + $0x488] sm:$0xff]
    %v8189 = vld [vmem:[%s3 + $0x490] sm:$0xff]
    %v8190 = vld [vmem:[%s3 + $0x498] sm:$0xff]
    %v8191 = vld [vmem:[%s3 + $0x4a0] sm:$0xff]
    %v8192 = vld [vmem:[%s3 + $0x4a8] sm:$0xff]
    %v8193 = vld [vmem:[%s6] sm:$0x7]
    %vm8194 = vcmask 23552
    %v8196 = vsel %vm8194, %v8043, 0
    %v8199 = vsel %vm8194, %v8044, 0
    %v8202 = vsel %vm8194, %v8045, 0
    %v8205 = vsel %vm8194, %v8046, 0
    %v8208 = vsel %vm8194, %v8047, 0
    %v8211 = vsel %vm8194, %v8048, 0
    %v8214 = vsel %vm8194, %v8049, 0
    %v8217 = vsel %vm8194, %v8050, 0
    %v8220 = vsel %vm8194, %v8051, 0
    %v8223 = vsel %vm8194, %v8052, 0
    %v8226 = vsel %vm8194, %v8053, 0
    %v8229 = vsel %vm8194, %v8054, 0
    %v8232 = vsel %vm8194, %v8055, 0
    %v8235 = vsel %vm8194, %v8056, 0
    %v8238 = vsel %vm8194, %v8057, 0
    %v8241 = vsel %vm8194, %v8058, 0
    %v8244 = vsel %vm8194, %v8059, 0
    %v8247 = vsel %vm8194, %v8060, 0
    %v8250 = vsel %vm8194, %v8061, 0
    %v8253 = vsel %vm8194, %v8062, 0
    %v8256 = vsel %vm8194, %v8063, 0
    %v8259 = vsel %vm8194, %v8064, 0
    %v8262 = vsel %vm8194, %v8065, 0
    %v8265 = vsel %vm8194, %v8066, 0
    %v8268 = vsel %vm8194, %v8067, 0
    %v8271 = vsel %vm8194, %v8068, 0
    %v8274 = vsel %vm8194, %v8069, 0
    %v8277 = vsel %vm8194, %v8070, 0
    %v8280 = vsel %vm8194, %v8071, 0
    %v8283 = vsel %vm8194, %v8072, 0
    %v8286 = vsel %vm8194, %v8073, 0
    %v8289 = vsel %vm8194, %v8074, 0
    %v8292 = vsel %vm8194, %v8075, 0
    %v8295 = vsel %vm8194, %v8076, 0
    %v8298 = vsel %vm8194, %v8077, 0
    %v8301 = vsel %vm8194, %v8078, 0
    %v8304 = vsel %vm8194, %v8079, 0
    %v8307 = vsel %vm8194, %v8080, 0
    %v8310 = vsel %vm8194, %v8081, 0
    %v8313 = vsel %vm8194, %v8082, 0
    %v8316 = vsel %vm8194, %v8083, 0
    %v8319 = vsel %vm8194, %v8084, 0
    %v8322 = vsel %vm8194, %v8085, 0
    %v8325 = vsel %vm8194, %v8086, 0
    %v8328 = vsel %vm8194, %v8087, 0
    %v8331 = vsel %vm8194, %v8088, 0
    %v8334 = vsel %vm8194, %v8089, 0
    %v8337 = vsel %vm8194, %v8090, 0
    %v8340 = vsel %vm8194, %v8091, 0
    %v8343 = vsel %vm8194, %v8092, 0
    %v8346 = vsel %vm8194, %v8093, 0
    %v8349 = vsel %vm8194, %v8094, 0
    %v8352 = vsel %vm8194, %v8095, 0
    %v8355 = vsel %vm8194, %v8096, 0
    %v8358 = vsel %vm8194, %v8097, 0
    %v8361 = vsel %vm8194, %v8098, 0
    %v8364 = vsel %vm8194, %v8099, 0
    %v8367 = vsel %vm8194, %v8100, 0
    %v8370 = vsel %vm8194, %v8101, 0
    %v8373 = vsel %vm8194, %v8102, 0
    %v8376 = vsel %vm8194, %v8103, 0
    %v8379 = vsel %vm8194, %v8104, 0
    %v8382 = vsel %vm8194, %v8105, 0
    %v8385 = vsel %vm8194, %v8106, 0
    %v8388 = vsel %vm8194, %v8107, 0
    %v8391 = vsel %vm8194, %v8108, 0
    %v8394 = vsel %vm8194, %v8109, 0
    %v8397 = vsel %vm8194, %v8110, 0
    %v8400 = vsel %vm8194, %v8111, 0
    %v8403 = vsel %vm8194, %v8112, 0
    %v8406 = vsel %vm8194, %v8113, 0
    %v8409 = vsel %vm8194, %v8114, 0
    %v8412 = vsel %vm8194, %v8115, 0
    %v8415 = vsel %vm8194, %v8116, 0
    %v8418 = vsel %vm8194, %v8117, 0
    %v8421 = vsel %vm8194, %v8118, 0
    %v8424 = vsel %vm8194, %v8119, 0
    %v8427 = vsel %vm8194, %v8120, 0
    %v8430 = vsel %vm8194, %v8121, 0
    %v8433 = vsel %vm8194, %v8122, 0
    %v8436 = vsel %vm8194, %v8123, 0
    %v8439 = vsel %vm8194, %v8124, 0
    %v8442 = vsel %vm8194, %v8125, 0
    %v8445 = vsel %vm8194, %v8126, 0
    %v8448 = vsel %vm8194, %v8127, 0
    %v8451 = vsel %vm8194, %v8128, 0
    %v8454 = vsel %vm8194, %v8129, 0
    %v8457 = vsel %vm8194, %v8130, 0
    %v8460 = vsel %vm8194, %v8131, 0
    %v8463 = vsel %vm8194, %v8132, 0
    %v8466 = vsel %vm8194, %v8133, 0
    %v8469 = vsel %vm8194, %v8134, 0
    %v8472 = vsel %vm8194, %v8135, 0
    %v8475 = vsel %vm8194, %v8136, 0
    %v8478 = vsel %vm8194, %v8137, 0
    %v8481 = vsel %vm8194, %v8138, 0
    %v8484 = vsel %vm8194, %v8139, 0
    %v8487 = vsel %vm8194, %v8140, 0
    %v8490 = vsel %vm8194, %v8141, 0
    %v8493 = vsel %vm8194, %v8142, 0
    %v8496 = vsel %vm8194, %v8143, 0
    %v8499 = vsel %vm8194, %v8144, 0
    %v8502 = vsel %vm8194, %v8145, 0
    %v8505 = vsel %vm8194, %v8146, 0
    %v8508 = vsel %vm8194, %v8147, 0
    %v8511 = vsel %vm8194, %v8148, 0
    %v8514 = vsel %vm8194, %v8149, 0
    %v8517 = vsel %vm8194, %v8150, 0
    %v8520 = vsel %vm8194, %v8151, 0
    %v8523 = vsel %vm8194, %v8152, 0
    %v8526 = vsel %vm8194, %v8153, 0
    %v8529 = vsel %vm8194, %v8154, 0
    %v8532 = vsel %vm8194, %v8155, 0
    %v8535 = vsel %vm8194, %v8156, 0
    %v8538 = vsel %vm8194, %v8157, 0
    %v8541 = vsel %vm8194, %v8158, 0
    %v8544 = vsel %vm8194, %v8159, 0
    %v8547 = vsel %vm8194, %v8160, 0
    %v8550 = vsel %vm8194, %v8161, 0
    %v8553 = vsel %vm8194, %v8162, 0
    %v8556 = vsel %vm8194, %v8163, 0
    %v8559 = vsel %vm8194, %v8164, 0
    %v8562 = vsel %vm8194, %v8165, 0
    %v8565 = vsel %vm8194, %v8166, 0
    %v8568 = vsel %vm8194, %v8167, 0
    %v8571 = vsel %vm8194, %v8168, 0
    %v8574 = vsel %vm8194, %v8169, 0
    %v8577 = vsel %vm8194, %v8170, 0
    %v8580 = vsel %vm8194, %v8171, 0
    %v8583 = vsel %vm8194, %v8172, 0
    %v8586 = vsel %vm8194, %v8173, 0
    %v8589 = vsel %vm8194, %v8174, 0
    %v8592 = vsel %vm8194, %v8175, 0
    %v8595 = vsel %vm8194, %v8176, 0
    %v8598 = vsel %vm8194, %v8177, 0
    %v8601 = vsel %vm8194, %v8178, 0
    %v8604 = vsel %vm8194, %v8179, 0
    %v8607 = vsel %vm8194, %v8180, 0
    %v8610 = vsel %vm8194, %v8181, 0
    %v8613 = vsel %vm8194, %v8182, 0
    %v8616 = vsel %vm8194, %v8183, 0
    %v8619 = vsel %vm8194, %v8184, 0
    %v8622 = vsel %vm8194, %v8185, 0
    %v8625 = vsel %vm8194, %v8186, 0
    %v8628 = vsel %vm8194, %v8187, 0
    %v8631 = vsel %vm8194, %v8188, 0
    %v8634 = vsel %vm8194, %v8189, 0
    %v8637 = vsel %vm8194, %v8190, 0
    %v8640 = vsel %vm8194, %v8191, 0
    %v8643 = vsel %vm8194, %v8192, 0
    %vm8645 = vcmask 1042432
    %v8647 = vsel %vm8645, %v8193, 0
    %8649 = vmatpush.msra.mxu0 0.0
    %8650 = vmatpush.msra.mxu0 0.0
    %8651 = vmatpush.msra.mxu0 0.0
    %8652 = vmatpush.msra.mxu0 0.0
    %8653 = vmatpush.msra.mxu0 0.0
    %8654 = vmatpush.msra.mxu0 0.0
    %8655 = vmatpush.msra.mxu0 0.0
    %8656 = vmatpush.msra.mxu0 0.0
    %8657 = vmatpush.msra.mxu0 0.0
    %8658 = vmatpush.msra.mxu0 0.0
    %8659 = vmatpush.msra.mxu0 0.0
    %8660 = vmatpush.msra.mxu0 0.0
    %8661 = vmatpush.msra.mxu0 0.0
    %8662 = vmatpush.msra.mxu0 0.0
    %8663 = vmatpush.msra.mxu0 0.0
    %8664 = vmatpush.msra.mxu0 %v8647
    %8665 = vmatmul.f32.gmra.mxu0 %v8196
    %v8666 = vpop.f32.mrf.mxu0
    %v8667 = vadd.f32 0.0, %v8666
    %8668 = vmatmul.f32.gmra.mxu0 %v8199
    %v8669 = vpop.f32.mrf.mxu0
    %v8670 = vadd.f32 0.0, %v8669
    %8671 = vmatmul.f32.gmra.mxu0 %v8202
    %v8672 = vpop.f32.mrf.mxu0
    %v8673 = vadd.f32 0.0, %v8672
    %8674 = vmatmul.f32.gmra.mxu0 %v8205
    %v8675 = vpop.f32.mrf.mxu0
    %v8676 = vadd.f32 0.0, %v8675
    %8677 = vmatmul.f32.gmra.mxu0 %v8208
    %v8678 = vpop.f32.mrf.mxu0
    %v8679 = vadd.f32 0.0, %v8678
    %8680 = vmatmul.f32.gmra.mxu0 %v8211
    %v8681 = vpop.f32.mrf.mxu0
    %v8682 = vadd.f32 0.0, %v8681
    %8683 = vmatmul.f32.gmra.mxu0 %v8214
    %v8684 = vpop.f32.mrf.mxu0
    %v8685 = vadd.f32 0.0, %v8684
    %8686 = vmatmul.f32.gmra.mxu0 %v8217
    %v8687 = vpop.f32.mrf.mxu0
    %v8688 = vadd.f32 0.0, %v8687
    %8689 = vmatmul.f32.gmra.mxu0 %v8220
    %v8690 = vpop.f32.mrf.mxu0
    %v8691 = vadd.f32 0.0, %v8690
    %8692 = vmatmul.f32.gmra.mxu0 %v8223
    %v8693 = vpop.f32.mrf.mxu0
    %v8694 = vadd.f32 0.0, %v8693
    %8695 = vmatmul.f32.gmra.mxu0 %v8226
    %v8696 = vpop.f32.mrf.mxu0
    %v8697 = vadd.f32 0.0, %v8696
    %8698 = vmatmul.f32.gmra.mxu0 %v8229
    %v8699 = vpop.f32.mrf.mxu0
    %v8700 = vadd.f32 0.0, %v8699
    %8701 = vmatmul.f32.gmra.mxu0 %v8232
    %v8702 = vpop.f32.mrf.mxu0
    %v8703 = vadd.f32 0.0, %v8702
    %8704 = vmatmul.f32.gmra.mxu0 %v8235
    %v8705 = vpop.f32.mrf.mxu0
    %v8706 = vadd.f32 0.0, %v8705
    %8707 = vmatmul.f32.gmra.mxu0 %v8238
    %v8708 = vpop.f32.mrf.mxu0
    %v8709 = vadd.f32 0.0, %v8708
    %8710 = vmatmul.f32.gmra.mxu0 %v8241
    %v8711 = vpop.f32.mrf.mxu0
    %v8712 = vadd.f32 0.0, %v8711
    %8713 = vmatmul.f32.gmra.mxu0 %v8244
    %v8714 = vpop.f32.mrf.mxu0
    %v8715 = vadd.f32 0.0, %v8714
    %8716 = vmatmul.f32.gmra.mxu0 %v8247
    %v8717 = vpop.f32.mrf.mxu0
    %v8718 = vadd.f32 0.0, %v8717
    %8719 = vmatmul.f32.gmra.mxu0 %v8250
    %v8720 = vpop.f32.mrf.mxu0
    %v8721 = vadd.f32 0.0, %v8720
    %8722 = vmatmul.f32.gmra.mxu0 %v8253
    %v8723 = vpop.f32.mrf.mxu0
    %v8724 = vadd.f32 0.0, %v8723
    %8725 = vmatmul.f32.gmra.mxu0 %v8256
    %v8726 = vpop.f32.mrf.mxu0
    %v8727 = vadd.f32 0.0, %v8726
    %8728 = vmatmul.f32.gmra.mxu0 %v8259
    %v8729 = vpop.f32.mrf.mxu0
    %v8730 = vadd.f32 0.0, %v8729
    %8731 = vmatmul.f32.gmra.mxu0 %v8262
    %v8732 = vpop.f32.mrf.mxu0
    %v8733 = vadd.f32 0.0, %v8732
    %8734 = vmatmul.f32.gmra.mxu0 %v8265
    %v8735 = vpop.f32.mrf.mxu0
    %v8736 = vadd.f32 0.0, %v8735
    %8737 = vmatmul.f32.gmra.mxu0 %v8268
    %v8738 = vpop.f32.mrf.mxu0
    %v8739 = vadd.f32 0.0, %v8738
    %8740 = vmatmul.f32.gmra.mxu0 %v8271
    %v8741 = vpop.f32.mrf.mxu0
    %v8742 = vadd.f32 0.0, %v8741
    %8743 = vmatmul.f32.gmra.mxu0 %v8274
    %v8744 = vpop.f32.mrf.mxu0
    %v8745 = vadd.f32 0.0, %v8744
    %8746 = vmatmul.f32.gmra.mxu0 %v8277
    %v8747 = vpop.f32.mrf.mxu0
    %v8748 = vadd.f32 0.0, %v8747
    %8749 = vmatmul.f32.gmra.mxu0 %v8280
    %v8750 = vpop.f32.mrf.mxu0
    %v8751 = vadd.f32 0.0, %v8750
    %8752 = vmatmul.f32.gmra.mxu0 %v8283
    %v8753 = vpop.f32.mrf.mxu0
    %v8754 = vadd.f32 0.0, %v8753
    %8755 = vmatmul.f32.gmra.mxu0 %v8286
    %v8756 = vpop.f32.mrf.mxu0
    %v8757 = vadd.f32 0.0, %v8756
    %8758 = vmatmul.f32.gmra.mxu0 %v8289
    %v8759 = vpop.f32.mrf.mxu0
    %v8760 = vadd.f32 0.0, %v8759
    %8761 = vmatmul.f32.gmra.mxu0 %v8292
    %v8762 = vpop.f32.mrf.mxu0
    %v8763 = vadd.f32 0.0, %v8762
    %8764 = vmatmul.f32.gmra.mxu0 %v8295
    %v8765 = vpop.f32.mrf.mxu0
    %v8766 = vadd.f32 0.0, %v8765
    %8767 = vmatmul.f32.gmra.mxu0 %v8298
    %v8768 = vpop.f32.mrf.mxu0
    %v8769 = vadd.f32 0.0, %v8768
    %8770 = vmatmul.f32.gmra.mxu0 %v8301
    %v8771 = vpop.f32.mrf.mxu0
    %v8772 = vadd.f32 0.0, %v8771
    %8773 = vmatmul.f32.gmra.mxu0 %v8304
    %v8774 = vpop.f32.mrf.mxu0
    %v8775 = vadd.f32 0.0, %v8774
    %8776 = vmatmul.f32.gmra.mxu0 %v8307
    %v8777 = vpop.f32.mrf.mxu0
    %v8778 = vadd.f32 0.0, %v8777
    %8779 = vmatmul.f32.gmra.mxu0 %v8310
    %v8780 = vpop.f32.mrf.mxu0
    %v8781 = vadd.f32 0.0, %v8780
    %8782 = vmatmul.f32.gmra.mxu0 %v8313
    %v8783 = vpop.f32.mrf.mxu0
    %v8784 = vadd.f32 0.0, %v8783
    %8785 = vmatmul.f32.gmra.mxu0 %v8316
    %v8786 = vpop.f32.mrf.mxu0
    %v8787 = vadd.f32 0.0, %v8786
    %8788 = vmatmul.f32.gmra.mxu0 %v8319
    %v8789 = vpop.f32.mrf.mxu0
    %v8790 = vadd.f32 0.0, %v8789
    %8791 = vmatmul.f32.gmra.mxu0 %v8322
    %v8792 = vpop.f32.mrf.mxu0
    %v8793 = vadd.f32 0.0, %v8792
    %8794 = vmatmul.f32.gmra.mxu0 %v8325
    %v8795 = vpop.f32.mrf.mxu0
    %v8796 = vadd.f32 0.0, %v8795
    %8797 = vmatmul.f32.gmra.mxu0 %v8328
    %v8798 = vpop.f32.mrf.mxu0
    %v8799 = vadd.f32 0.0, %v8798
    %8800 = vmatmul.f32.gmra.mxu0 %v8331
    %v8801 = vpop.f32.mrf.mxu0
    %v8802 = vadd.f32 0.0, %v8801
    %8803 = vmatmul.f32.gmra.mxu0 %v8334
    %v8804 = vpop.f32.mrf.mxu0
    %v8805 = vadd.f32 0.0, %v8804
    %8806 = vmatmul.f32.gmra.mxu0 %v8337
    %v8807 = vpop.f32.mrf.mxu0
    %v8808 = vadd.f32 0.0, %v8807
    %8809 = vmatmul.f32.gmra.mxu0 %v8340
    %v8810 = vpop.f32.mrf.mxu0
    %v8811 = vadd.f32 0.0, %v8810
    %8812 = vmatmul.f32.gmra.mxu0 %v8343
    %v8813 = vpop.f32.mrf.mxu0
    %v8814 = vadd.f32 0.0, %v8813
    %8815 = vmatmul.f32.gmra.mxu0 %v8346
    %v8816 = vpop.f32.mrf.mxu0
    %v8817 = vadd.f32 0.0, %v8816
    %8818 = vmatmul.f32.gmra.mxu0 %v8349
    %v8819 = vpop.f32.mrf.mxu0
    %v8820 = vadd.f32 0.0, %v8819
    %8821 = vmatmul.f32.gmra.mxu0 %v8352
    %v8822 = vpop.f32.mrf.mxu0
    %v8823 = vadd.f32 0.0, %v8822
    %8824 = vmatmul.f32.gmra.mxu0 %v8355
    %v8825 = vpop.f32.mrf.mxu0
    %v8826 = vadd.f32 0.0, %v8825
    %8827 = vmatmul.f32.gmra.mxu0 %v8358
    %v8828 = vpop.f32.mrf.mxu0
    %v8829 = vadd.f32 0.0, %v8828
    %8830 = vmatmul.f32.gmra.mxu0 %v8361
    %v8831 = vpop.f32.mrf.mxu0
    %v8832 = vadd.f32 0.0, %v8831
    %8833 = vmatmul.f32.gmra.mxu0 %v8364
    %v8834 = vpop.f32.mrf.mxu0
    %v8835 = vadd.f32 0.0, %v8834
    %8836 = vmatmul.f32.gmra.mxu0 %v8367
    %v8837 = vpop.f32.mrf.mxu0
    %v8838 = vadd.f32 0.0, %v8837
    %8839 = vmatmul.f32.gmra.mxu0 %v8370
    %v8840 = vpop.f32.mrf.mxu0
    %v8841 = vadd.f32 0.0, %v8840
    %8842 = vmatmul.f32.gmra.mxu0 %v8373
    %v8843 = vpop.f32.mrf.mxu0
    %v8844 = vadd.f32 0.0, %v8843
    %8845 = vmatmul.f32.gmra.mxu0 %v8376
    %v8846 = vpop.f32.mrf.mxu0
    %v8847 = vadd.f32 0.0, %v8846
    %8848 = vmatmul.f32.gmra.mxu0 %v8379
    %v8849 = vpop.f32.mrf.mxu0
    %v8850 = vadd.f32 0.0, %v8849
    %8851 = vmatmul.f32.gmra.mxu0 %v8382
    %v8852 = vpop.f32.mrf.mxu0
    %v8853 = vadd.f32 0.0, %v8852
    %8854 = vmatmul.f32.gmra.mxu0 %v8385
    %v8855 = vpop.f32.mrf.mxu0
    %v8856 = vadd.f32 0.0, %v8855
    %8857 = vmatmul.f32.gmra.mxu0 %v8388
    %v8858 = vpop.f32.mrf.mxu0
    %v8859 = vadd.f32 0.0, %v8858
    %8860 = vmatmul.f32.gmra.mxu0 %v8391
    %v8861 = vpop.f32.mrf.mxu0
    %v8862 = vadd.f32 0.0, %v8861
    %8863 = vmatmul.f32.gmra.mxu0 %v8394
    %v8864 = vpop.f32.mrf.mxu0
    %v8865 = vadd.f32 0.0, %v8864
    %8866 = vmatmul.f32.gmra.mxu0 %v8397
    %v8867 = vpop.f32.mrf.mxu0
    %v8868 = vadd.f32 0.0, %v8867
    %8869 = vmatmul.f32.gmra.mxu0 %v8400
    %v8870 = vpop.f32.mrf.mxu0
    %v8871 = vadd.f32 0.0, %v8870
    %8872 = vmatmul.f32.gmra.mxu0 %v8403
    %v8873 = vpop.f32.mrf.mxu0
    %v8874 = vadd.f32 0.0, %v8873
    %8875 = vmatmul.f32.gmra.mxu0 %v8406
    %v8876 = vpop.f32.mrf.mxu0
    %v8877 = vadd.f32 0.0, %v8876
    %8878 = vmatmul.f32.gmra.mxu0 %v8409
    %v8879 = vpop.f32.mrf.mxu0
    %v8880 = vadd.f32 0.0, %v8879
    %8881 = vmatmul.f32.gmra.mxu0 %v8412
    %v8882 = vpop.f32.mrf.mxu0
    %v8883 = vadd.f32 0.0, %v8882
    %8884 = vmatmul.f32.gmra.mxu0 %v8415
    %v8885 = vpop.f32.mrf.mxu0
    %v8886 = vadd.f32 0.0, %v8885
    %8887 = vmatmul.f32.gmra.mxu0 %v8418
    %v8888 = vpop.f32.mrf.mxu0
    %v8889 = vadd.f32 0.0, %v8888
    %8890 = vmatmul.f32.gmra.mxu0 %v8421
    %v8891 = vpop.f32.mrf.mxu0
    %v8892 = vadd.f32 0.0, %v8891
    %8893 = vmatmul.f32.gmra.mxu0 %v8424
    %v8894 = vpop.f32.mrf.mxu0
    %v8895 = vadd.f32 0.0, %v8894
    %8896 = vmatmul.f32.gmra.mxu0 %v8427
    %v8897 = vpop.f32.mrf.mxu0
    %v8898 = vadd.f32 0.0, %v8897
    %8899 = vmatmul.f32.gmra.mxu0 %v8430
    %v8900 = vpop.f32.mrf.mxu0
    %v8901 = vadd.f32 0.0, %v8900
    %8902 = vmatmul.f32.gmra.mxu0 %v8433
    %v8903 = vpop.f32.mrf.mxu0
    %v8904 = vadd.f32 0.0, %v8903
    %8905 = vmatmul.f32.gmra.mxu0 %v8436
    %v8906 = vpop.f32.mrf.mxu0
    %v8907 = vadd.f32 0.0, %v8906
    %8908 = vmatmul.f32.gmra.mxu0 %v8439
    %v8909 = vpop.f32.mrf.mxu0
    %v8910 = vadd.f32 0.0, %v8909
    %8911 = vmatmul.f32.gmra.mxu0 %v8442
    %v8912 = vpop.f32.mrf.mxu0
    %v8913 = vadd.f32 0.0, %v8912
    %8914 = vmatmul.f32.gmra.mxu0 %v8445
    %v8915 = vpop.f32.mrf.mxu0
    %v8916 = vadd.f32 0.0, %v8915
    %8917 = vmatmul.f32.gmra.mxu0 %v8448
    %v8918 = vpop.f32.mrf.mxu0
    %v8919 = vadd.f32 0.0, %v8918
    %8920 = vmatmul.f32.gmra.mxu0 %v8451
    %v8921 = vpop.f32.mrf.mxu0
    %v8922 = vadd.f32 0.0, %v8921
    %8923 = vmatmul.f32.gmra.mxu0 %v8454
    %v8924 = vpop.f32.mrf.mxu0
    %v8925 = vadd.f32 0.0, %v8924
    %8926 = vmatmul.f32.gmra.mxu0 %v8457
    %v8927 = vpop.f32.mrf.mxu0
    %v8928 = vadd.f32 0.0, %v8927
    %8929 = vmatmul.f32.gmra.mxu0 %v8460
    %v8930 = vpop.f32.mrf.mxu0
    %v8931 = vadd.f32 0.0, %v8930
    %8932 = vmatmul.f32.gmra.mxu0 %v8463
    %v8933 = vpop.f32.mrf.mxu0
    %v8934 = vadd.f32 0.0, %v8933
    %8935 = vmatmul.f32.gmra.mxu0 %v8466
    %v8936 = vpop.f32.mrf.mxu0
    %v8937 = vadd.f32 0.0, %v8936
    %8938 = vmatmul.f32.gmra.mxu0 %v8469
    %v8939 = vpop.f32.mrf.mxu0
    %v8940 = vadd.f32 0.0, %v8939
    %8941 = vmatmul.f32.gmra.mxu0 %v8472
    %v8942 = vpop.f32.mrf.mxu0
    %v8943 = vadd.f32 0.0, %v8942
    %8944 = vmatmul.f32.gmra.mxu0 %v8475
    %v8945 = vpop.f32.mrf.mxu0
    %v8946 = vadd.f32 0.0, %v8945
    %8947 = vmatmul.f32.gmra.mxu0 %v8478
    %v8948 = vpop.f32.mrf.mxu0
    %v8949 = vadd.f32 0.0, %v8948
    %8950 = vmatmul.f32.gmra.mxu0 %v8481
    %v8951 = vpop.f32.mrf.mxu0
    %v8952 = vadd.f32 0.0, %v8951
    %8953 = vmatmul.f32.gmra.mxu0 %v8484
    %v8954 = vpop.f32.mrf.mxu0
    %v8955 = vadd.f32 0.0, %v8954
    %8956 = vmatmul.f32.gmra.mxu0 %v8487
    %v8957 = vpop.f32.mrf.mxu0
    %v8958 = vadd.f32 0.0, %v8957
    %8959 = vmatmul.f32.gmra.mxu0 %v8490
    %v8960 = vpop.f32.mrf.mxu0
    %v8961 = vadd.f32 0.0, %v8960
    %8962 = vmatmul.f32.gmra.mxu0 %v8493
    %v8963 = vpop.f32.mrf.mxu0
    %v8964 = vadd.f32 0.0, %v8963
    %8965 = vmatmul.f32.gmra.mxu0 %v8496
    %v8966 = vpop.f32.mrf.mxu0
    %v8967 = vadd.f32 0.0, %v8966
    %8968 = vmatmul.f32.gmra.mxu0 %v8499
    %v8969 = vpop.f32.mrf.mxu0
    %v8970 = vadd.f32 0.0, %v8969
    %8971 = vmatmul.f32.gmra.mxu0 %v8502
    %v8972 = vpop.f32.mrf.mxu0
    %v8973 = vadd.f32 0.0, %v8972
    %8974 = vmatmul.f32.gmra.mxu0 %v8505
    %v8975 = vpop.f32.mrf.mxu0
    %v8976 = vadd.f32 0.0, %v8975
    %8977 = vmatmul.f32.gmra.mxu0 %v8508
    %v8978 = vpop.f32.mrf.mxu0
    %v8979 = vadd.f32 0.0, %v8978
    %8980 = vmatmul.f32.gmra.mxu0 %v8511
    %v8981 = vpop.f32.mrf.mxu0
    %v8982 = vadd.f32 0.0, %v8981
    %8983 = vmatmul.f32.gmra.mxu0 %v8514
    %v8984 = vpop.f32.mrf.mxu0
    %v8985 = vadd.f32 0.0, %v8984
    %8986 = vmatmul.f32.gmra.mxu0 %v8517
    %v8987 = vpop.f32.mrf.mxu0
    %v8988 = vadd.f32 0.0, %v8987
    %8989 = vmatmul.f32.gmra.mxu0 %v8520
    %v8990 = vpop.f32.mrf.mxu0
    %v8991 = vadd.f32 0.0, %v8990
    %8992 = vmatmul.f32.gmra.mxu0 %v8523
    %v8993 = vpop.f32.mrf.mxu0
    %v8994 = vadd.f32 0.0, %v8993
    %8995 = vmatmul.f32.gmra.mxu0 %v8526
    %v8996 = vpop.f32.mrf.mxu0
    %v8997 = vadd.f32 0.0, %v8996
    %8998 = vmatmul.f32.gmra.mxu0 %v8529
    %v8999 = vpop.f32.mrf.mxu0
    %v9000 = vadd.f32 0.0, %v8999
    %9001 = vmatmul.f32.gmra.mxu0 %v8532
    %v9002 = vpop.f32.mrf.mxu0
    %v9003 = vadd.f32 0.0, %v9002
    %9004 = vmatmul.f32.gmra.mxu0 %v8535
    %v9005 = vpop.f32.mrf.mxu0
    %v9006 = vadd.f32 0.0, %v9005
    %9007 = vmatmul.f32.gmra.mxu0 %v8538
    %v9008 = vpop.f32.mrf.mxu0
    %v9009 = vadd.f32 0.0, %v9008
    %9010 = vmatmul.f32.gmra.mxu0 %v8541
    %v9011 = vpop.f32.mrf.mxu0
    %v9012 = vadd.f32 0.0, %v9011
    %9013 = vmatmul.f32.gmra.mxu0 %v8544
    %v9014 = vpop.f32.mrf.mxu0
    %v9015 = vadd.f32 0.0, %v9014
    %9016 = vmatmul.f32.gmra.mxu0 %v8547
    %v9017 = vpop.f32.mrf.mxu0
    %v9018 = vadd.f32 0.0, %v9017
    %9019 = vmatmul.f32.gmra.mxu0 %v8550
    %v9020 = vpop.f32.mrf.mxu0
    %v9021 = vadd.f32 0.0, %v9020
    %9022 = vmatmul.f32.gmra.mxu0 %v8553
    %v9023 = vpop.f32.mrf.mxu0
    %v9024 = vadd.f32 0.0, %v9023
    %9025 = vmatmul.f32.gmra.mxu0 %v8556
    %v9026 = vpop.f32.mrf.mxu0
    %v9027 = vadd.f32 0.0, %v9026
    %9028 = vmatmul.f32.gmra.mxu0 %v8559
    %v9029 = vpop.f32.mrf.mxu0
    %v9030 = vadd.f32 0.0, %v9029
    %9031 = vmatmul.f32.gmra.mxu0 %v8562
    %v9032 = vpop.f32.mrf.mxu0
    %v9033 = vadd.f32 0.0, %v9032
    %9034 = vmatmul.f32.gmra.mxu0 %v8565
    %v9035 = vpop.f32.mrf.mxu0
    %v9036 = vadd.f32 0.0, %v9035
    %9037 = vmatmul.f32.gmra.mxu0 %v8568
    %v9038 = vpop.f32.mrf.mxu0
    %v9039 = vadd.f32 0.0, %v9038
    %9040 = vmatmul.f32.gmra.mxu0 %v8571
    %v9041 = vpop.f32.mrf.mxu0
    %v9042 = vadd.f32 0.0, %v9041
    %9043 = vmatmul.f32.gmra.mxu0 %v8574
    %v9044 = vpop.f32.mrf.mxu0
    %v9045 = vadd.f32 0.0, %v9044
    %9046 = vmatmul.f32.gmra.mxu0 %v8577
    %v9047 = vpop.f32.mrf.mxu0
    %v9048 = vadd.f32 0.0, %v9047
    %9049 = vmatmul.f32.gmra.mxu0 %v8580
    %v9050 = vpop.f32.mrf.mxu0
    %v9051 = vadd.f32 0.0, %v9050
    %9052 = vmatmul.f32.gmra.mxu0 %v8583
    %v9053 = vpop.f32.mrf.mxu0
    %v9054 = vadd.f32 0.0, %v9053
    %9055 = vmatmul.f32.gmra.mxu0 %v8586
    %v9056 = vpop.f32.mrf.mxu0
    %v9057 = vadd.f32 0.0, %v9056
    %9058 = vmatmul.f32.gmra.mxu0 %v8589
    %v9059 = vpop.f32.mrf.mxu0
    %v9060 = vadd.f32 0.0, %v9059
    %9061 = vmatmul.f32.gmra.mxu0 %v8592
    %v9062 = vpop.f32.mrf.mxu0
    %v9063 = vadd.f32 0.0, %v9062
    %9064 = vmatmul.f32.gmra.mxu0 %v8595
    %v9065 = vpop.f32.mrf.mxu0
    %v9066 = vadd.f32 0.0, %v9065
    %9067 = vmatmul.f32.gmra.mxu0 %v8598
    %v9068 = vpop.f32.mrf.mxu0
    %v9069 = vadd.f32 0.0, %v9068
    %9070 = vmatmul.f32.gmra.mxu0 %v8601
    %v9071 = vpop.f32.mrf.mxu0
    %v9072 = vadd.f32 0.0, %v9071
    %9073 = vmatmul.f32.gmra.mxu0 %v8604
    %v9074 = vpop.f32.mrf.mxu0
    %v9075 = vadd.f32 0.0, %v9074
    %9076 = vmatmul.f32.gmra.mxu0 %v8607
    %v9077 = vpop.f32.mrf.mxu0
    %v9078 = vadd.f32 0.0, %v9077
    %9079 = vmatmul.f32.gmra.mxu0 %v8610
    %v9080 = vpop.f32.mrf.mxu0
    %v9081 = vadd.f32 0.0, %v9080
    %9082 = vmatmul.f32.gmra.mxu0 %v8613
    %v9083 = vpop.f32.mrf.mxu0
    %v9084 = vadd.f32 0.0, %v9083
    %9085 = vmatmul.f32.gmra.mxu0 %v8616
    %v9086 = vpop.f32.mrf.mxu0
    %v9087 = vadd.f32 0.0, %v9086
    %9088 = vmatmul.f32.gmra.mxu0 %v8619
    %v9089 = vpop.f32.mrf.mxu0
    %v9090 = vadd.f32 0.0, %v9089
    %9091 = vmatmul.f32.gmra.mxu0 %v8622
    %v9092 = vpop.f32.mrf.mxu0
    %v9093 = vadd.f32 0.0, %v9092
    %9094 = vmatmul.f32.gmra.mxu0 %v8625
    %v9095 = vpop.f32.mrf.mxu0
    %v9096 = vadd.f32 0.0, %v9095
    %9097 = vmatmul.f32.gmra.mxu0 %v8628
    %v9098 = vpop.f32.mrf.mxu0
    %v9099 = vadd.f32 0.0, %v9098
    %9100 = vmatmul.f32.gmra.mxu0 %v8631
    %v9101 = vpop.f32.mrf.mxu0
    %v9102 = vadd.f32 0.0, %v9101
    %9103 = vmatmul.f32.gmra.mxu0 %v8634
    %v9104 = vpop.f32.mrf.mxu0
    %v9105 = vadd.f32 0.0, %v9104
    %9106 = vmatmul.f32.gmra.mxu0 %v8637
    %v9107 = vpop.f32.mrf.mxu0
    %v9108 = vadd.f32 0.0, %v9107
    %9109 = vmatmul.f32.gmra.mxu0 %v8640
    %v9110 = vpop.f32.mrf.mxu0
    %v9111 = vadd.f32 0.0, %v9110
    %9112 = vmatmul.f32.gmra.mxu0 %v8643
    %v9113 = vpop.f32.mrf.mxu0
    %v9114 = vadd.f32 0.0, %v9113
    %9115 = vdwg.mxu0
    %v9116 = vadd.f32 %v7594, %v8667
    %v9117 = vadd.f32 %v7597, %v8670
    %v9118 = vadd.f32 %v7600, %v8673
    %v9119 = vadd.f32 %v7603, %v8676
    %v9120 = vadd.f32 %v7606, %v8679
    %v9121 = vadd.f32 %v7609, %v8682
    %v9122 = vadd.f32 %v7612, %v8685
    %v9123 = vadd.f32 %v7615, %v8688
    %v9124 = vadd.f32 %v7618, %v8691
    %v9125 = vadd.f32 %v7621, %v8694
    %v9126 = vadd.f32 %v7624, %v8697
    %v9127 = vadd.f32 %v7627, %v8700
    %v9128 = vadd.f32 %v7630, %v8703
    %v9129 = vadd.f32 %v7633, %v8706
    %v9130 = vadd.f32 %v7636, %v8709
    %v9131 = vadd.f32 %v7639, %v8712
    %v9132 = vadd.f32 %v7642, %v8715
    %v9133 = vadd.f32 %v7645, %v8718
    %v9134 = vadd.f32 %v7648, %v8721
    %v9135 = vadd.f32 %v7651, %v8724
    %v9136 = vadd.f32 %v7654, %v8727
    %v9137 = vadd.f32 %v7657, %v8730
    %v9138 = vadd.f32 %v7660, %v8733
    %v9139 = vadd.f32 %v7663, %v8736
    %v9140 = vadd.f32 %v7666, %v8739
    %v9141 = vadd.f32 %v7669, %v8742
    %v9142 = vadd.f32 %v7672, %v8745
    %v9143 = vadd.f32 %v7675, %v8748
    %v9144 = vadd.f32 %v7678, %v8751
    %v9145 = vadd.f32 %v7681, %v8754
    %v9146 = vadd.f32 %v7684, %v8757
    %v9147 = vadd.f32 %v7687, %v8760
    %v9148 = vadd.f32 %v7690, %v8763
    %v9149 = vadd.f32 %v7693, %v8766
    %v9150 = vadd.f32 %v7696, %v8769
    %v9151 = vadd.f32 %v7699, %v8772
    %v9152 = vadd.f32 %v7702, %v8775
    %v9153 = vadd.f32 %v7705, %v8778
    %v9154 = vadd.f32 %v7708, %v8781
    %v9155 = vadd.f32 %v7711, %v8784
    %v9156 = vadd.f32 %v7714, %v8787
    %v9157 = vadd.f32 %v7717, %v8790
    %v9158 = vadd.f32 %v7720, %v8793
    %v9159 = vadd.f32 %v7723, %v8796
    %v9160 = vadd.f32 %v7726, %v8799
    %v9161 = vadd.f32 %v7729, %v8802
    %v9162 = vadd.f32 %v7732, %v8805
    %v9163 = vadd.f32 %v7735, %v8808
    %v9164 = vadd.f32 %v7738, %v8811
    %v9165 = vadd.f32 %v7741, %v8814
    %v9166 = vadd.f32 %v7744, %v8817
    %v9167 = vadd.f32 %v7747, %v8820
    %v9168 = vadd.f32 %v7750, %v8823
    %v9169 = vadd.f32 %v7753, %v8826
    %v9170 = vadd.f32 %v7756, %v8829
    %v9171 = vadd.f32 %v7759, %v8832
    %v9172 = vadd.f32 %v7762, %v8835
    %v9173 = vadd.f32 %v7765, %v8838
    %v9174 = vadd.f32 %v7768, %v8841
    %v9175 = vadd.f32 %v7771, %v8844
    %v9176 = vadd.f32 %v7774, %v8847
    %v9177 = vadd.f32 %v7777, %v8850
    %v9178 = vadd.f32 %v7780, %v8853
    %v9179 = vadd.f32 %v7783, %v8856
    %v9180 = vadd.f32 %v7786, %v8859
    %v9181 = vadd.f32 %v7789, %v8862
    %v9182 = vadd.f32 %v7792, %v8865
    %v9183 = vadd.f32 %v7795, %v8868
    %v9184 = vadd.f32 %v7798, %v8871
    %v9185 = vadd.f32 %v7801, %v8874
    %v9186 = vadd.f32 %v7804, %v8877
    %v9187 = vadd.f32 %v7807, %v8880
    %v9188 = vadd.f32 %v7810, %v8883
    %v9189 = vadd.f32 %v7813, %v8886
    %v9190 = vadd.f32 %v7816, %v8889
    %v9191 = vadd.f32 %v7819, %v8892
    %v9192 = vadd.f32 %v7822, %v8895
    %v9193 = vadd.f32 %v7825, %v8898
    %v9194 = vadd.f32 %v7828, %v8901
    %v9195 = vadd.f32 %v7831, %v8904
    %v9196 = vadd.f32 %v7834, %v8907
    %v9197 = vadd.f32 %v7837, %v8910
    %v9198 = vadd.f32 %v7840, %v8913
    %v9199 = vadd.f32 %v7843, %v8916
    %v9200 = vadd.f32 %v7846, %v8919
    %v9201 = vadd.f32 %v7849, %v8922
    %v9202 = vadd.f32 %v7852, %v8925
    %v9203 = vadd.f32 %v7855, %v8928
    %v9204 = vadd.f32 %v7858, %v8931
    %v9205 = vadd.f32 %v7861, %v8934
    %v9206 = vadd.f32 %v7864, %v8937
    %v9207 = vadd.f32 %v7867, %v8940
    %v9208 = vadd.f32 %v7870, %v8943
    %v9209 = vadd.f32 %v7873, %v8946
    %v9210 = vadd.f32 %v7876, %v8949
    %v9211 = vadd.f32 %v7879, %v8952
    %v9212 = vadd.f32 %v7882, %v8955
    %v9213 = vadd.f32 %v7885, %v8958
    %v9214 = vadd.f32 %v7888, %v8961
    %v9215 = vadd.f32 %v7891, %v8964
    %v9216 = vadd.f32 %v7894, %v8967
    %v9217 = vadd.f32 %v7897, %v8970
    %v9218 = vadd.f32 %v7900, %v8973
    %v9219 = vadd.f32 %v7903, %v8976
    %v9220 = vadd.f32 %v7906, %v8979
    %v9221 = vadd.f32 %v7909, %v8982
    %v9222 = vadd.f32 %v7912, %v8985
    %v9223 = vadd.f32 %v7915, %v8988
    %v9224 = vadd.f32 %v7918, %v8991
    %v9225 = vadd.f32 %v7921, %v8994
    %v9226 = vadd.f32 %v7924, %v8997
    %v9227 = vadd.f32 %v7927, %v9000
    %v9228 = vadd.f32 %v7930, %v9003
    %v9229 = vadd.f32 %v7933, %v9006
    %v9230 = vadd.f32 %v7936, %v9009
    %v9231 = vadd.f32 %v7939, %v9012
    %v9232 = vadd.f32 %v7942, %v9015
    %v9233 = vadd.f32 %v7945, %v9018
    %v9234 = vadd.f32 %v7948, %v9021
    %v9235 = vadd.f32 %v7951, %v9024
    %v9236 = vadd.f32 %v7954, %v9027
    %v9237 = vadd.f32 %v7957, %v9030
    %v9238 = vadd.f32 %v7960, %v9033
    %v9239 = vadd.f32 %v7963, %v9036
    %v9240 = vadd.f32 %v7966, %v9039
    %v9241 = vadd.f32 %v7969, %v9042
    %v9242 = vadd.f32 %v7972, %v9045
    %v9243 = vadd.f32 %v7975, %v9048
    %v9244 = vadd.f32 %v7978, %v9051
    %v9245 = vadd.f32 %v7981, %v9054
    %v9246 = vadd.f32 %v7984, %v9057
    %v9247 = vadd.f32 %v7987, %v9060
    %v9248 = vadd.f32 %v7990, %v9063
    %v9249 = vadd.f32 %v7993, %v9066
    %v9250 = vadd.f32 %v7996, %v9069
    %v9251 = vadd.f32 %v7999, %v9072
    %v9252 = vadd.f32 %v8002, %v9075
    %v9253 = vadd.f32 %v8005, %v9078
    %v9254 = vadd.f32 %v8008, %v9081
    %v9255 = vadd.f32 %v8011, %v9084
    %v9256 = vadd.f32 %v8014, %v9087
    %v9257 = vadd.f32 %v8017, %v9090
    %v9258 = vadd.f32 %v8020, %v9093
    %v9259 = vadd.f32 %v8023, %v9096
    %v9260 = vadd.f32 %v8026, %v9099
    %v9261 = vadd.f32 %v8029, %v9102
    %v9262 = vadd.f32 %v8032, %v9105
    %v9263 = vadd.f32 %v8035, %v9108
    %v9264 = vadd.f32 %v8038, %v9111
    %v9265 = vadd.f32 %v8041, %v9114
    %v9266 = vld [vmem:[%s7] sm:$0x1]
    %v9268 = vperm.slane %v9266, 0
    %v9270 = vadd.f32 %v9116, %v9268
    %v9271 = vadd.f32 %v9117, %v9268
    %v9272 = vadd.f32 %v9118, %v9268
    %v9273 = vadd.f32 %v9119, %v9268
    %v9274 = vadd.f32 %v9120, %v9268
    %v9275 = vadd.f32 %v9121, %v9268
    %v9276 = vadd.f32 %v9122, %v9268
    %v9277 = vadd.f32 %v9123, %v9268
    %v9278 = vadd.f32 %v9124, %v9268
    %v9279 = vadd.f32 %v9125, %v9268
    %v9280 = vadd.f32 %v9126, %v9268
    %v9281 = vadd.f32 %v9127, %v9268
    %v9282 = vadd.f32 %v9128, %v9268
    %v9283 = vadd.f32 %v9129, %v9268
    %v9284 = vadd.f32 %v9130, %v9268
    %v9285 = vadd.f32 %v9131, %v9268
    %v9286 = vadd.f32 %v9132, %v9268
    %v9287 = vadd.f32 %v9133, %v9268
    %v9288 = vadd.f32 %v9134, %v9268
    %v9289 = vadd.f32 %v9135, %v9268
    %v9290 = vadd.f32 %v9136, %v9268
    %v9291 = vadd.f32 %v9137, %v9268
    %v9292 = vadd.f32 %v9138, %v9268
    %v9293 = vadd.f32 %v9139, %v9268
    %v9294 = vadd.f32 %v9140, %v9268
    %v9295 = vadd.f32 %v9141, %v9268
    %v9296 = vadd.f32 %v9142, %v9268
    %v9297 = vadd.f32 %v9143, %v9268
    %v9298 = vadd.f32 %v9144, %v9268
    %v9299 = vadd.f32 %v9145, %v9268
    %v9300 = vadd.f32 %v9146, %v9268
    %v9301 = vadd.f32 %v9147, %v9268
    %v9302 = vadd.f32 %v9148, %v9268
    %v9303 = vadd.f32 %v9149, %v9268
    %v9304 = vadd.f32 %v9150, %v9268
    %v9305 = vadd.f32 %v9151, %v9268
    %v9306 = vadd.f32 %v9152, %v9268
    %v9307 = vadd.f32 %v9153, %v9268
    %v9308 = vadd.f32 %v9154, %v9268
    %v9309 = vadd.f32 %v9155, %v9268
    %v9310 = vadd.f32 %v9156, %v9268
    %v9311 = vadd.f32 %v9157, %v9268
    %v9312 = vadd.f32 %v9158, %v9268
    %v9313 = vadd.f32 %v9159, %v9268
    %v9314 = vadd.f32 %v9160, %v9268
    %v9315 = vadd.f32 %v9161, %v9268
    %v9316 = vadd.f32 %v9162, %v9268
    %v9317 = vadd.f32 %v9163, %v9268
    %v9318 = vadd.f32 %v9164, %v9268
    %v9319 = vadd.f32 %v9165, %v9268
    %v9320 = vadd.f32 %v9166, %v9268
    %v9321 = vadd.f32 %v9167, %v9268
    %v9322 = vadd.f32 %v9168, %v9268
    %v9323 = vadd.f32 %v9169, %v9268
    %v9324 = vadd.f32 %v9170, %v9268
    %v9325 = vadd.f32 %v9171, %v9268
    %v9326 = vadd.f32 %v9172, %v9268
    %v9327 = vadd.f32 %v9173, %v9268
    %v9328 = vadd.f32 %v9174, %v9268
    %v9329 = vadd.f32 %v9175, %v9268
    %v9330 = vadd.f32 %v9176, %v9268
    %v9331 = vadd.f32 %v9177, %v9268
    %v9332 = vadd.f32 %v9178, %v9268
    %v9333 = vadd.f32 %v9179, %v9268
    %v9334 = vadd.f32 %v9180, %v9268
    %v9335 = vadd.f32 %v9181, %v9268
    %v9336 = vadd.f32 %v9182, %v9268
    %v9337 = vadd.f32 %v9183, %v9268
    %v9338 = vadd.f32 %v9184, %v9268
    %v9339 = vadd.f32 %v9185, %v9268
    %v9340 = vadd.f32 %v9186, %v9268
    %v9341 = vadd.f32 %v9187, %v9268
    %v9342 = vadd.f32 %v9188, %v9268
    %v9343 = vadd.f32 %v9189, %v9268
    %v9344 = vadd.f32 %v9190, %v9268
    %v9345 = vadd.f32 %v9191, %v9268
    %v9346 = vadd.f32 %v9192, %v9268
    %v9347 = vadd.f32 %v9193, %v9268
    %v9348 = vadd.f32 %v9194, %v9268
    %v9349 = vadd.f32 %v9195, %v9268
    %v9350 = vadd.f32 %v9196, %v9268
    %v9351 = vadd.f32 %v9197, %v9268
    %v9352 = vadd.f32 %v9198, %v9268
    %v9353 = vadd.f32 %v9199, %v9268
    %v9354 = vadd.f32 %v9200, %v9268
    %v9355 = vadd.f32 %v9201, %v9268
    %v9356 = vadd.f32 %v9202, %v9268
    %v9357 = vadd.f32 %v9203, %v9268
    %v9358 = vadd.f32 %v9204, %v9268
    %v9359 = vadd.f32 %v9205, %v9268
    %v9360 = vadd.f32 %v9206, %v9268
    %v9361 = vadd.f32 %v9207, %v9268
    %v9362 = vadd.f32 %v9208, %v9268
    %v9363 = vadd.f32 %v9209, %v9268
    %v9364 = vadd.f32 %v9210, %v9268
    %v9365 = vadd.f32 %v9211, %v9268
    %v9366 = vadd.f32 %v9212, %v9268
    %v9367 = vadd.f32 %v9213, %v9268
    %v9368 = vadd.f32 %v9214, %v9268
    %v9369 = vadd.f32 %v9215, %v9268
    %v9370 = vadd.f32 %v9216, %v9268
    %v9371 = vadd.f32 %v9217, %v9268
    %v9372 = vadd.f32 %v9218, %v9268
    %v9373 = vadd.f32 %v9219, %v9268
    %v9374 = vadd.f32 %v9220, %v9268
    %v9375 = vadd.f32 %v9221, %v9268
    %v9376 = vadd.f32 %v9222, %v9268
    %v9377 = vadd.f32 %v9223, %v9268
    %v9378 = vadd.f32 %v9224, %v9268
    %v9379 = vadd.f32 %v9225, %v9268
    %v9380 = vadd.f32 %v9226, %v9268
    %v9381 = vadd.f32 %v9227, %v9268
    %v9382 = vadd.f32 %v9228, %v9268
    %v9383 = vadd.f32 %v9229, %v9268
    %v9384 = vadd.f32 %v9230, %v9268
    %v9385 = vadd.f32 %v9231, %v9268
    %v9386 = vadd.f32 %v9232, %v9268
    %v9387 = vadd.f32 %v9233, %v9268
    %v9388 = vadd.f32 %v9234, %v9268
    %v9389 = vadd.f32 %v9235, %v9268
    %v9390 = vadd.f32 %v9236, %v9268
    %v9391 = vadd.f32 %v9237, %v9268
    %v9392 = vadd.f32 %v9238, %v9268
    %v9393 = vadd.f32 %v9239, %v9268
    %v9394 = vadd.f32 %v9240, %v9268
    %v9395 = vadd.f32 %v9241, %v9268
    %v9396 = vadd.f32 %v9242, %v9268
    %v9397 = vadd.f32 %v9243, %v9268
    %v9398 = vadd.f32 %v9244, %v9268
    %v9399 = vadd.f32 %v9245, %v9268
    %v9400 = vadd.f32 %v9246, %v9268
    %v9401 = vadd.f32 %v9247, %v9268
    %v9402 = vadd.f32 %v9248, %v9268
    %v9403 = vadd.f32 %v9249, %v9268
    %v9404 = vadd.f32 %v9250, %v9268
    %v9405 = vadd.f32 %v9251, %v9268
    %v9406 = vadd.f32 %v9252, %v9268
    %v9407 = vadd.f32 %v9253, %v9268
    %v9408 = vadd.f32 %v9254, %v9268
    %v9409 = vadd.f32 %v9255, %v9268
    %v9410 = vadd.f32 %v9256, %v9268
    %v9411 = vadd.f32 %v9257, %v9268
    %v9412 = vadd.f32 %v9258, %v9268
    %v9413 = vadd.f32 %v9259, %v9268
    %v9414 = vadd.f32 %v9260, %v9268
    %v9415 = vadd.f32 %v9261, %v9268
    %v9416 = vadd.f32 %v9262, %v9268
    %v9417 = vadd.f32 %v9263, %v9268
    %v9418 = vadd.f32 %v9264, %v9268
    %v9419 = vadd.f32 %v9265, %v9268
    %v9420 = vtanh.pop %v9270
    %v9421 = vtanh.pop %v9271
    %v9422 = vtanh.pop %v9272
    %v9423 = vtanh.pop %v9273
    %v9424 = vtanh.pop %v9274
    %v9425 = vtanh.pop %v9275
    %v9426 = vtanh.pop %v9276
    %v9427 = vtanh.pop %v9277
    %v9428 = vtanh.pop %v9278
    %v9429 = vtanh.pop %v9279
    %v9430 = vtanh.pop %v9280
    %v9431 = vtanh.pop %v9281
    %v9432 = vtanh.pop %v9282
    %v9433 = vtanh.pop %v9283
    %v9434 = vtanh.pop %v9284
    %v9435 = vtanh.pop %v9285
    %v9436 = vtanh.pop %v9286
    %v9437 = vtanh.pop %v9287
    %v9438 = vtanh.pop %v9288
    %v9439 = vtanh.pop %v9289
    %v9440 = vtanh.pop %v9290
    %v9441 = vtanh.pop %v9291
    %v9442 = vtanh.pop %v9292
    %v9443 = vtanh.pop %v9293
    %v9444 = vtanh.pop %v9294
    %v9445 = vtanh.pop %v9295
    %v9446 = vtanh.pop %v9296
    %v9447 = vtanh.pop %v9297
    %v9448 = vtanh.pop %v9298
    %v9449 = vtanh.pop %v9299
    %v9450 = vtanh.pop %v9300
    %v9451 = vtanh.pop %v9301
    %v9452 = vtanh.pop %v9302
    %v9453 = vtanh.pop %v9303
    %v9454 = vtanh.pop %v9304
    %v9455 = vtanh.pop %v9305
    %v9456 = vtanh.pop %v9306
    %v9457 = vtanh.pop %v9307
    %v9458 = vtanh.pop %v9308
    %v9459 = vtanh.pop %v9309
    %v9460 = vtanh.pop %v9310
    %v9461 = vtanh.pop %v9311
    %v9462 = vtanh.pop %v9312
    %v9463 = vtanh.pop %v9313
    %v9464 = vtanh.pop %v9314
    %v9465 = vtanh.pop %v9315
    %v9466 = vtanh.pop %v9316
    %v9467 = vtanh.pop %v9317
    %v9468 = vtanh.pop %v9318
    %v9469 = vtanh.pop %v9319
    %v9470 = vtanh.pop %v9320
    %v9471 = vtanh.pop %v9321
    %v9472 = vtanh.pop %v9322
    %v9473 = vtanh.pop %v9323
    %v9474 = vtanh.pop %v9324
    %v9475 = vtanh.pop %v9325
    %v9476 = vtanh.pop %v9326
    %v9477 = vtanh.pop %v9327
    %v9478 = vtanh.pop %v9328
    %v9479 = vtanh.pop %v9329
    %v9480 = vtanh.pop %v9330
    %v9481 = vtanh.pop %v9331
    %v9482 = vtanh.pop %v9332
    %v9483 = vtanh.pop %v9333
    %v9484 = vtanh.pop %v9334
    %v9485 = vtanh.pop %v9335
    %v9486 = vtanh.pop %v9336
    %v9487 = vtanh.pop %v9337
    %v9488 = vtanh.pop %v9338
    %v9489 = vtanh.pop %v9339
    %v9490 = vtanh.pop %v9340
    %v9491 = vtanh.pop %v9341
    %v9492 = vtanh.pop %v9342
    %v9493 = vtanh.pop %v9343
    %v9494 = vtanh.pop %v9344
    %v9495 = vtanh.pop %v9345
    %v9496 = vtanh.pop %v9346
    %v9497 = vtanh.pop %v9347
    %v9498 = vtanh.pop %v9348
    %v9499 = vtanh.pop %v9349
    %v9500 = vtanh.pop %v9350
    %v9501 = vtanh.pop %v9351
    %v9502 = vtanh.pop %v9352
    %v9503 = vtanh.pop %v9353
    %v9504 = vtanh.pop %v9354
    %v9505 = vtanh.pop %v9355
    %v9506 = vtanh.pop %v9356
    %v9507 = vtanh.pop %v9357
    %v9508 = vtanh.pop %v9358
    %v9509 = vtanh.pop %v9359
    %v9510 = vtanh.pop %v9360
    %v9511 = vtanh.pop %v9361
    %v9512 = vtanh.pop %v9362
    %v9513 = vtanh.pop %v9363
    %v9514 = vtanh.pop %v9364
    %v9515 = vtanh.pop %v9365
    %v9516 = vtanh.pop %v9366
    %v9517 = vtanh.pop %v9367
    %v9518 = vtanh.pop %v9368
    %v9519 = vtanh.pop %v9369
    %v9520 = vtanh.pop %v9370
    %v9521 = vtanh.pop %v9371
    %v9522 = vtanh.pop %v9372
    %v9523 = vtanh.pop %v9373
    %v9524 = vtanh.pop %v9374
    %v9525 = vtanh.pop %v9375
    %v9526 = vtanh.pop %v9376
    %v9527 = vtanh.pop %v9377
    %v9528 = vtanh.pop %v9378
    %v9529 = vtanh.pop %v9379
    %v9530 = vtanh.pop %v9380
    %v9531 = vtanh.pop %v9381
    %v9532 = vtanh.pop %v9382
    %v9533 = vtanh.pop %v9383
    %v9534 = vtanh.pop %v9384
    %v9535 = vtanh.pop %v9385
    %v9536 = vtanh.pop %v9386
    %v9537 = vtanh.pop %v9387
    %v9538 = vtanh.pop %v9388
    %v9539 = vtanh.pop %v9389
    %v9540 = vtanh.pop %v9390
    %v9541 = vtanh.pop %v9391
    %v9542 = vtanh.pop %v9392
    %v9543 = vtanh.pop %v9393
    %v9544 = vtanh.pop %v9394
    %v9545 = vtanh.pop %v9395
    %v9546 = vtanh.pop %v9396
    %v9547 = vtanh.pop %v9397
    %v9548 = vtanh.pop %v9398
    %v9549 = vtanh.pop %v9399
    %v9550 = vtanh.pop %v9400
    %v9551 = vtanh.pop %v9401
    %v9552 = vtanh.pop %v9402
    %v9553 = vtanh.pop %v9403
    %v9554 = vtanh.pop %v9404
    %v9555 = vtanh.pop %v9405
    %v9556 = vtanh.pop %v9406
    %v9557 = vtanh.pop %v9407
    %v9558 = vtanh.pop %v9408
    %v9559 = vtanh.pop %v9409
    %v9560 = vtanh.pop %v9410
    %v9561 = vtanh.pop %v9411
    %v9562 = vtanh.pop %v9412
    %v9563 = vtanh.pop %v9413
    %v9564 = vtanh.pop %v9414
    %v9565 = vtanh.pop %v9415
    %v9566 = vtanh.pop %v9416
    %v9567 = vtanh.pop %v9417
    %v9568 = vtanh.pop %v9418
    %v9569 = vtanh.pop %v9419
    %v9570 = vld [vmem:[%s8] sm:$0xff]
    %v9571 = vld [vmem:[%s8 + $0x8] sm:$0xff]
    %v9572 = vld [vmem:[%s8 + $0x10] sm:$0xff]
    %v9573 = vld [vmem:[%s8 + $0x18] sm:$0xff]
    %v9574 = vld [vmem:[%s9] sm:$0x1]
    %v9576 = vperm.slane %v9574, 0
    %vm9578 = vcmask 261120
    %v9580 = vsel %vm9578, %v9420, 0
    %v9583 = vsel %vm9578, %v9421, 0
    %v9586 = vsel %vm9578, %v9422, 0
    %v9589 = vsel %vm9578, %v9423, 0
    %v9592 = vsel %vm9578, %v9424, 0
    %v9595 = vsel %vm9578, %v9425, 0
    %v9598 = vsel %vm9578, %v9426, 0
    %v9601 = vsel %vm9578, %v9427, 0
    %v9604 = vsel %vm9578, %v9428, 0
    %v9607 = vsel %vm9578, %v9429, 0
    %v9610 = vsel %vm9578, %v9430, 0
    %v9613 = vsel %vm9578, %v9431, 0
    %v9616 = vsel %vm9578, %v9432, 0
    %v9619 = vsel %vm9578, %v9433, 0
    %v9622 = vsel %vm9578, %v9434, 0
    %v9625 = vsel %vm9578, %v9435, 0
    %v9628 = vsel %vm9578, %v9436, 0
    %v9631 = vsel %vm9578, %v9437, 0
    %v9634 = vsel %vm9578, %v9438, 0
    %v9637 = vsel %vm9578, %v9439, 0
    %v9640 = vsel %vm9578, %v9440, 0
    %v9643 = vsel %vm9578, %v9441, 0
    %v9646 = vsel %vm9578, %v9442, 0
    %v9649 = vsel %vm9578, %v9443, 0
    %v9652 = vsel %vm9578, %v9444, 0
    %v9655 = vsel %vm9578, %v9445, 0
    %v9658 = vsel %vm9578, %v9446, 0
    %v9661 = vsel %vm9578, %v9447, 0
    %v9664 = vsel %vm9578, %v9448, 0
    %v9667 = vsel %vm9578, %v9449, 0
    %v9670 = vsel %vm9578, %v9450, 0
    %v9673 = vsel %vm9578, %v9451, 0
    %v9676 = vsel %vm9578, %v9452, 0
    %v9679 = vsel %vm9578, %v9453, 0
    %v9682 = vsel %vm9578, %v9454, 0
    %v9685 = vsel %vm9578, %v9455, 0
    %v9688 = vsel %vm9578, %v9456, 0
    %v9691 = vsel %vm9578, %v9457, 0
    %v9694 = vsel %vm9578, %v9458, 0
    %v9697 = vsel %vm9578, %v9459, 0
    %v9700 = vsel %vm9578, %v9460, 0
    %v9703 = vsel %vm9578, %v9461, 0
    %v9706 = vsel %vm9578, %v9462, 0
    %v9709 = vsel %vm9578, %v9463, 0
    %v9712 = vsel %vm9578, %v9464, 0
    %v9715 = vsel %vm9578, %v9465, 0
    %v9718 = vsel %vm9578, %v9466, 0
    %v9721 = vsel %vm9578, %v9467, 0
    %v9724 = vsel %vm9578, %v9468, 0
    %v9727 = vsel %vm9578, %v9469, 0
    %v9730 = vsel %vm9578, %v9470, 0
    %v9733 = vsel %vm9578, %v9471, 0
    %v9736 = vsel %vm9578, %v9472, 0
    %v9739 = vsel %vm9578, %v9473, 0
    %v9742 = vsel %vm9578, %v9474, 0
    %v9745 = vsel %vm9578, %v9475, 0
    %v9748 = vsel %vm9578, %v9476, 0
    %v9751 = vsel %vm9578, %v9477, 0
    %v9754 = vsel %vm9578, %v9478, 0
    %v9757 = vsel %vm9578, %v9479, 0
    %v9760 = vsel %vm9578, %v9480, 0
    %v9763 = vsel %vm9578, %v9481, 0
    %v9766 = vsel %vm9578, %v9482, 0
    %v9769 = vsel %vm9578, %v9483, 0
    %v9772 = vsel %vm9578, %v9484, 0
    %v9775 = vsel %vm9578, %v9485, 0
    %v9778 = vsel %vm9578, %v9486, 0
    %v9781 = vsel %vm9578, %v9487, 0
    %v9784 = vsel %vm9578, %v9488, 0
    %v9787 = vsel %vm9578, %v9489, 0
    %v9790 = vsel %vm9578, %v9490, 0
    %v9793 = vsel %vm9578, %v9491, 0
    %v9796 = vsel %vm9578, %v9492, 0
    %v9799 = vsel %vm9578, %v9493, 0
    %v9802 = vsel %vm9578, %v9494, 0
    %v9805 = vsel %vm9578, %v9495, 0
    %v9808 = vsel %vm9578, %v9496, 0
    %v9811 = vsel %vm9578, %v9497, 0
    %v9814 = vsel %vm9578, %v9498, 0
    %v9817 = vsel %vm9578, %v9499, 0
    %v9820 = vsel %vm9578, %v9500, 0
    %v9823 = vsel %vm9578, %v9501, 0
    %v9826 = vsel %vm9578, %v9502, 0
    %v9829 = vsel %vm9578, %v9503, 0
    %v9832 = vsel %vm9578, %v9504, 0
    %v9835 = vsel %vm9578, %v9505, 0
    %v9838 = vsel %vm9578, %v9506, 0
    %v9841 = vsel %vm9578, %v9507, 0
    %v9844 = vsel %vm9578, %v9508, 0
    %v9847 = vsel %vm9578, %v9509, 0
    %v9850 = vsel %vm9578, %v9510, 0
    %v9853 = vsel %vm9578, %v9511, 0
    %v9856 = vsel %vm9578, %v9512, 0
    %v9859 = vsel %vm9578, %v9513, 0
    %v9862 = vsel %vm9578, %v9514, 0
    %v9865 = vsel %vm9578, %v9515, 0
    %v9868 = vsel %vm9578, %v9516, 0
    %v9871 = vsel %vm9578, %v9517, 0
    %v9874 = vsel %vm9578, %v9518, 0
    %v9877 = vsel %vm9578, %v9519, 0
    %v9880 = vsel %vm9578, %v9520, 0
    %v9883 = vsel %vm9578, %v9521, 0
    %v9886 = vsel %vm9578, %v9522, 0
    %v9889 = vsel %vm9578, %v9523, 0
    %v9892 = vsel %vm9578, %v9524, 0
    %v9895 = vsel %vm9578, %v9525, 0
    %v9898 = vsel %vm9578, %v9526, 0
    %v9901 = vsel %vm9578, %v9527, 0
    %v9904 = vsel %vm9578, %v9528, 0
    %v9907 = vsel %vm9578, %v9529, 0
    %v9910 = vsel %vm9578, %v9530, 0
    %v9913 = vsel %vm9578, %v9531, 0
    %v9916 = vsel %vm9578, %v9532, 0
    %v9919 = vsel %vm9578, %v9533, 0
    %v9922 = vsel %vm9578, %v9534, 0
    %v9925 = vsel %vm9578, %v9535, 0
    %v9928 = vsel %vm9578, %v9536, 0
    %v9931 = vsel %vm9578, %v9537, 0
    %v9934 = vsel %vm9578, %v9538, 0
    %v9937 = vsel %vm9578, %v9539, 0
    %v9940 = vsel %vm9578, %v9540, 0
    %v9943 = vsel %vm9578, %v9541, 0
    %v9946 = vsel %vm9578, %v9542, 0
    %v9949 = vsel %vm9578, %v9543, 0
    %v9952 = vsel %vm9578, %v9544, 0
    %v9955 = vsel %vm9578, %v9545, 0
    %v9958 = vsel %vm9578, %v9546, 0
    %v9961 = vsel %vm9578, %v9547, 0
    %v9964 = vsel %vm9578, %v9548, 0
    %v9967 = vsel %vm9578, %v9549, 0
    %v9970 = vsel %vm9578, %v9550, 0
    %v9973 = vsel %vm9578, %v9551, 0
    %v9976 = vsel %vm9578, %v9552, 0
    %v9979 = vsel %vm9578, %v9553, 0
    %v9982 = vsel %vm9578, %v9554, 0
    %v9985 = vsel %vm9578, %v9555, 0
    %v9988 = vsel %vm9578, %v9556, 0
    %v9991 = vsel %vm9578, %v9557, 0
    %v9994 = vsel %vm9578, %v9558, 0
    %v9997 = vsel %vm9578, %v9559, 0
    %v10000 = vsel %vm9578, %v9560, 0
    %v10003 = vsel %vm9578, %v9561, 0
    %v10006 = vsel %vm9578, %v9562, 0
    %v10009 = vsel %vm9578, %v9563, 0
    %v10012 = vsel %vm9578, %v9564, 0
    %v10015 = vsel %vm9578, %v9565, 0
    %v10018 = vsel %vm9578, %v9566, 0
    %v10021 = vsel %vm9578, %v9567, 0
    %v10024 = vsel %vm9578, %v9568, 0
    %v10027 = vsel %vm9578, %v9569, 0
    %10029 = vmatpush.msra.mxu0 0.0
    %10030 = vmatpush.msra.mxu0 0.0
    %10031 = vmatpush.msra.mxu0 0.0
    %10032 = vmatpush.msra.mxu0 0.0
    %10033 = vmatpush.msra.mxu0 0.0
    %10034 = vmatpush.msra.mxu0 0.0
    %10035 = vmatpush.msra.mxu0 0.0
    %10036 = vmatpush.msra.mxu0 0.0
    %10037 = vmatpush.msra.mxu0 0.0
    %10038 = vmatpush.msra.mxu0 0.0
    %10039 = vmatpush.msra.mxu0 0.0
    %10040 = vmatpush.msra.mxu0 0.0
    %10041 = vmatpush.msra.mxu0 %v9573
    %10042 = vmatpush.msra.mxu0 %v9572
    %10043 = vmatpush.msra.mxu0 %v9571
    %10044 = vmatpush.msra.mxu0 %v9570
    %10045 = vmatmul.f32.gmra.mxu0 %v9580
    %v10046 = vpop.f32.mrf.mxu0
    %v10047 = vadd.f32 %v9576, %v10046
    %10048 = vmatmul.f32.gmra.mxu0 %v9583
    %v10049 = vpop.f32.mrf.mxu0
    %v10050 = vadd.f32 %v9576, %v10049
    %10051 = vmatmul.f32.gmra.mxu0 %v9586
    %v10052 = vpop.f32.mrf.mxu0
    %v10053 = vadd.f32 %v9576, %v10052
    %10054 = vmatmul.f32.gmra.mxu0 %v9589
    %v10055 = vpop.f32.mrf.mxu0
    %v10056 = vadd.f32 %v9576, %v10055
    %10057 = vmatmul.f32.gmra.mxu0 %v9592
    %v10058 = vpop.f32.mrf.mxu0
    %v10059 = vadd.f32 %v9576, %v10058
    %10060 = vmatmul.f32.gmra.mxu0 %v9595
    %v10061 = vpop.f32.mrf.mxu0
    %v10062 = vadd.f32 %v9576, %v10061
    %10063 = vmatmul.f32.gmra.mxu0 %v9598
    %v10064 = vpop.f32.mrf.mxu0
    %v10065 = vadd.f32 %v9576, %v10064
    %10066 = vmatmul.f32.gmra.mxu0 %v9601
    %v10067 = vpop.f32.mrf.mxu0
    %v10068 = vadd.f32 %v9576, %v10067
    %10069 = vmatmul.f32.gmra.mxu0 %v9604
    %v10070 = vpop.f32.mrf.mxu0
    %v10071 = vadd.f32 %v9576, %v10070
    %10072 = vmatmul.f32.gmra.mxu0 %v9607
    %v10073 = vpop.f32.mrf.mxu0
    %v10074 = vadd.f32 %v9576, %v10073
    %10075 = vmatmul.f32.gmra.mxu0 %v9610
    %v10076 = vpop.f32.mrf.mxu0
    %v10077 = vadd.f32 %v9576, %v10076
    %10078 = vmatmul.f32.gmra.mxu0 %v9613
    %v10079 = vpop.f32.mrf.mxu0
    %v10080 = vadd.f32 %v9576, %v10079
    %10081 = vmatmul.f32.gmra.mxu0 %v9616
    %v10082 = vpop.f32.mrf.mxu0
    %v10083 = vadd.f32 %v9576, %v10082
    %10084 = vmatmul.f32.gmra.mxu0 %v9619
    %v10085 = vpop.f32.mrf.mxu0
    %v10086 = vadd.f32 %v9576, %v10085
    %10087 = vmatmul.f32.gmra.mxu0 %v9622
    %v10088 = vpop.f32.mrf.mxu0
    %v10089 = vadd.f32 %v9576, %v10088
    %10090 = vmatmul.f32.gmra.mxu0 %v9625
    %v10091 = vpop.f32.mrf.mxu0
    %v10092 = vadd.f32 %v9576, %v10091
    %10093 = vmatmul.f32.gmra.mxu0 %v9628
    %v10094 = vpop.f32.mrf.mxu0
    %v10095 = vadd.f32 %v9576, %v10094
    %10096 = vmatmul.f32.gmra.mxu0 %v9631
    %v10097 = vpop.f32.mrf.mxu0
    %v10098 = vadd.f32 %v9576, %v10097
    %10099 = vmatmul.f32.gmra.mxu0 %v9634
    %v10100 = vpop.f32.mrf.mxu0
    %v10101 = vadd.f32 %v9576, %v10100
    %10102 = vmatmul.f32.gmra.mxu0 %v9637
    %v10103 = vpop.f32.mrf.mxu0
    %v10104 = vadd.f32 %v9576, %v10103
    %10105 = vmatmul.f32.gmra.mxu0 %v9640
    %v10106 = vpop.f32.mrf.mxu0
    %v10107 = vadd.f32 %v9576, %v10106
    %10108 = vmatmul.f32.gmra.mxu0 %v9643
    %v10109 = vpop.f32.mrf.mxu0
    %v10110 = vadd.f32 %v9576, %v10109
    %10111 = vmatmul.f32.gmra.mxu0 %v9646
    %v10112 = vpop.f32.mrf.mxu0
    %v10113 = vadd.f32 %v9576, %v10112
    %10114 = vmatmul.f32.gmra.mxu0 %v9649
    %v10115 = vpop.f32.mrf.mxu0
    %v10116 = vadd.f32 %v9576, %v10115
    %10117 = vmatmul.f32.gmra.mxu0 %v9652
    %v10118 = vpop.f32.mrf.mxu0
    %v10119 = vadd.f32 %v9576, %v10118
    %10120 = vmatmul.f32.gmra.mxu0 %v9655
    %v10121 = vpop.f32.mrf.mxu0
    %v10122 = vadd.f32 %v9576, %v10121
    %10123 = vmatmul.f32.gmra.mxu0 %v9658
    %v10124 = vpop.f32.mrf.mxu0
    %v10125 = vadd.f32 %v9576, %v10124
    %10126 = vmatmul.f32.gmra.mxu0 %v9661
    %v10127 = vpop.f32.mrf.mxu0
    %v10128 = vadd.f32 %v9576, %v10127
    %10129 = vmatmul.f32.gmra.mxu0 %v9664
    %v10130 = vpop.f32.mrf.mxu0
    %v10131 = vadd.f32 %v9576, %v10130
    %10132 = vmatmul.f32.gmra.mxu0 %v9667
    %v10133 = vpop.f32.mrf.mxu0
    %v10134 = vadd.f32 %v9576, %v10133
    %10135 = vmatmul.f32.gmra.mxu0 %v9670
    %v10136 = vpop.f32.mrf.mxu0
    %v10137 = vadd.f32 %v9576, %v10136
    %10138 = vmatmul.f32.gmra.mxu0 %v9673
    %v10139 = vpop.f32.mrf.mxu0
    %v10140 = vadd.f32 %v9576, %v10139
    %10141 = vmatmul.f32.gmra.mxu0 %v9676
    %v10142 = vpop.f32.mrf.mxu0
    %v10143 = vadd.f32 %v9576, %v10142
    %10144 = vmatmul.f32.gmra.mxu0 %v9679
    %v10145 = vpop.f32.mrf.mxu0
    %v10146 = vadd.f32 %v9576, %v10145
    %10147 = vmatmul.f32.gmra.mxu0 %v9682
    %v10148 = vpop.f32.mrf.mxu0
    %v10149 = vadd.f32 %v9576, %v10148
    %10150 = vmatmul.f32.gmra.mxu0 %v9685
    %v10151 = vpop.f32.mrf.mxu0
    %v10152 = vadd.f32 %v9576, %v10151
    %10153 = vmatmul.f32.gmra.mxu0 %v9688
    %v10154 = vpop.f32.mrf.mxu0
    %v10155 = vadd.f32 %v9576, %v10154
    %10156 = vmatmul.f32.gmra.mxu0 %v9691
    %v10157 = vpop.f32.mrf.mxu0
    %v10158 = vadd.f32 %v9576, %v10157
    %10159 = vmatmul.f32.gmra.mxu0 %v9694
    %v10160 = vpop.f32.mrf.mxu0
    %v10161 = vadd.f32 %v9576, %v10160
    %10162 = vmatmul.f32.gmra.mxu0 %v9697
    %v10163 = vpop.f32.mrf.mxu0
    %v10164 = vadd.f32 %v9576, %v10163
    %10165 = vmatmul.f32.gmra.mxu0 %v9700
    %v10166 = vpop.f32.mrf.mxu0
    %v10167 = vadd.f32 %v9576, %v10166
    %10168 = vmatmul.f32.gmra.mxu0 %v9703
    %v10169 = vpop.f32.mrf.mxu0
    %v10170 = vadd.f32 %v9576, %v10169
    %10171 = vmatmul.f32.gmra.mxu0 %v9706
    %v10172 = vpop.f32.mrf.mxu0
    %v10173 = vadd.f32 %v9576, %v10172
    %10174 = vmatmul.f32.gmra.mxu0 %v9709
    %v10175 = vpop.f32.mrf.mxu0
    %v10176 = vadd.f32 %v9576, %v10175
    %10177 = vmatmul.f32.gmra.mxu0 %v9712
    %v10178 = vpop.f32.mrf.mxu0
    %v10179 = vadd.f32 %v9576, %v10178
    %10180 = vmatmul.f32.gmra.mxu0 %v9715
    %v10181 = vpop.f32.mrf.mxu0
    %v10182 = vadd.f32 %v9576, %v10181
    %10183 = vmatmul.f32.gmra.mxu0 %v9718
    %v10184 = vpop.f32.mrf.mxu0
    %v10185 = vadd.f32 %v9576, %v10184
    %10186 = vmatmul.f32.gmra.mxu0 %v9721
    %v10187 = vpop.f32.mrf.mxu0
    %v10188 = vadd.f32 %v9576, %v10187
    %10189 = vmatmul.f32.gmra.mxu0 %v9724
    %v10190 = vpop.f32.mrf.mxu0
    %v10191 = vadd.f32 %v9576, %v10190
    %10192 = vmatmul.f32.gmra.mxu0 %v9727
    %v10193 = vpop.f32.mrf.mxu0
    %v10194 = vadd.f32 %v9576, %v10193
    %10195 = vmatmul.f32.gmra.mxu0 %v9730
    %v10196 = vpop.f32.mrf.mxu0
    %v10197 = vadd.f32 %v9576, %v10196
    %10198 = vmatmul.f32.gmra.mxu0 %v9733
    %v10199 = vpop.f32.mrf.mxu0
    %v10200 = vadd.f32 %v9576, %v10199
    %10201 = vmatmul.f32.gmra.mxu0 %v9736
    %v10202 = vpop.f32.mrf.mxu0
    %v10203 = vadd.f32 %v9576, %v10202
    %10204 = vmatmul.f32.gmra.mxu0 %v9739
    %v10205 = vpop.f32.mrf.mxu0
    %v10206 = vadd.f32 %v9576, %v10205
    %10207 = vmatmul.f32.gmra.mxu0 %v9742
    %v10208 = vpop.f32.mrf.mxu0
    %v10209 = vadd.f32 %v9576, %v10208
    %10210 = vmatmul.f32.gmra.mxu0 %v9745
    %v10211 = vpop.f32.mrf.mxu0
    %v10212 = vadd.f32 %v9576, %v10211
    %10213 = vmatmul.f32.gmra.mxu0 %v9748
    %v10214 = vpop.f32.mrf.mxu0
    %v10215 = vadd.f32 %v9576, %v10214
    %10216 = vmatmul.f32.gmra.mxu0 %v9751
    %v10217 = vpop.f32.mrf.mxu0
    %v10218 = vadd.f32 %v9576, %v10217
    %10219 = vmatmul.f32.gmra.mxu0 %v9754
    %v10220 = vpop.f32.mrf.mxu0
    %v10221 = vadd.f32 %v9576, %v10220
    %10222 = vmatmul.f32.gmra.mxu0 %v9757
    %v10223 = vpop.f32.mrf.mxu0
    %v10224 = vadd.f32 %v9576, %v10223
    %10225 = vmatmul.f32.gmra.mxu0 %v9760
    %v10226 = vpop.f32.mrf.mxu0
    %v10227 = vadd.f32 %v9576, %v10226
    %10228 = vmatmul.f32.gmra.mxu0 %v9763
    %v10229 = vpop.f32.mrf.mxu0
    %v10230 = vadd.f32 %v9576, %v10229
    %10231 = vmatmul.f32.gmra.mxu0 %v9766
    %v10232 = vpop.f32.mrf.mxu0
    %v10233 = vadd.f32 %v9576, %v10232
    %10234 = vmatmul.f32.gmra.mxu0 %v9769
    %v10235 = vpop.f32.mrf.mxu0
    %v10236 = vadd.f32 %v9576, %v10235
    %10237 = vmatmul.f32.gmra.mxu0 %v9772
    %v10238 = vpop.f32.mrf.mxu0
    %v10239 = vadd.f32 %v9576, %v10238
    %10240 = vmatmul.f32.gmra.mxu0 %v9775
    %v10241 = vpop.f32.mrf.mxu0
    %v10242 = vadd.f32 %v9576, %v10241
    %10243 = vmatmul.f32.gmra.mxu0 %v9778
    %v10244 = vpop.f32.mrf.mxu0
    %v10245 = vadd.f32 %v9576, %v10244
    %10246 = vmatmul.f32.gmra.mxu0 %v9781
    %v10247 = vpop.f32.mrf.mxu0
    %v10248 = vadd.f32 %v9576, %v10247
    %10249 = vmatmul.f32.gmra.mxu0 %v9784
    %v10250 = vpop.f32.mrf.mxu0
    %v10251 = vadd.f32 %v9576, %v10250
    %10252 = vmatmul.f32.gmra.mxu0 %v9787
    %v10253 = vpop.f32.mrf.mxu0
    %v10254 = vadd.f32 %v9576, %v10253
    %10255 = vmatmul.f32.gmra.mxu0 %v9790
    %v10256 = vpop.f32.mrf.mxu0
    %v10257 = vadd.f32 %v9576, %v10256
    %10258 = vmatmul.f32.gmra.mxu0 %v9793
    %v10259 = vpop.f32.mrf.mxu0
    %v10260 = vadd.f32 %v9576, %v10259
    %10261 = vmatmul.f32.gmra.mxu0 %v9796
    %v10262 = vpop.f32.mrf.mxu0
    %v10263 = vadd.f32 %v9576, %v10262
    %10264 = vmatmul.f32.gmra.mxu0 %v9799
    %v10265 = vpop.f32.mrf.mxu0
    %v10266 = vadd.f32 %v9576, %v10265
    %10267 = vmatmul.f32.gmra.mxu0 %v9802
    %v10268 = vpop.f32.mrf.mxu0
    %v10269 = vadd.f32 %v9576, %v10268
    %10270 = vmatmul.f32.gmra.mxu0 %v9805
    %v10271 = vpop.f32.mrf.mxu0
    %v10272 = vadd.f32 %v9576, %v10271
    %10273 = vmatmul.f32.gmra.mxu0 %v9808
    %v10274 = vpop.f32.mrf.mxu0
    %v10275 = vadd.f32 %v9576, %v10274
    %10276 = vmatmul.f32.gmra.mxu0 %v9811
    %v10277 = vpop.f32.mrf.mxu0
    %v10278 = vadd.f32 %v9576, %v10277
    %10279 = vmatmul.f32.gmra.mxu0 %v9814
    %v10280 = vpop.f32.mrf.mxu0
    %v10281 = vadd.f32 %v9576, %v10280
    %10282 = vmatmul.f32.gmra.mxu0 %v9817
    %v10283 = vpop.f32.mrf.mxu0
    %v10284 = vadd.f32 %v9576, %v10283
    %10285 = vmatmul.f32.gmra.mxu0 %v9820
    %v10286 = vpop.f32.mrf.mxu0
    %v10287 = vadd.f32 %v9576, %v10286
    %10288 = vmatmul.f32.gmra.mxu0 %v9823
    %v10289 = vpop.f32.mrf.mxu0
    %v10290 = vadd.f32 %v9576, %v10289
    %10291 = vmatmul.f32.gmra.mxu0 %v9826
    %v10292 = vpop.f32.mrf.mxu0
    %v10293 = vadd.f32 %v9576, %v10292
    %10294 = vmatmul.f32.gmra.mxu0 %v9829
    %v10295 = vpop.f32.mrf.mxu0
    %v10296 = vadd.f32 %v9576, %v10295
    %10297 = vmatmul.f32.gmra.mxu0 %v9832
    %v10298 = vpop.f32.mrf.mxu0
    %v10299 = vadd.f32 %v9576, %v10298
    %10300 = vmatmul.f32.gmra.mxu0 %v9835
    %v10301 = vpop.f32.mrf.mxu0
    %v10302 = vadd.f32 %v9576, %v10301
    %10303 = vmatmul.f32.gmra.mxu0 %v9838
    %v10304 = vpop.f32.mrf.mxu0
    %v10305 = vadd.f32 %v9576, %v10304
    %10306 = vmatmul.f32.gmra.mxu0 %v9841
    %v10307 = vpop.f32.mrf.mxu0
    %v10308 = vadd.f32 %v9576, %v10307
    %10309 = vmatmul.f32.gmra.mxu0 %v9844
    %v10310 = vpop.f32.mrf.mxu0
    %v10311 = vadd.f32 %v9576, %v10310
    %10312 = vmatmul.f32.gmra.mxu0 %v9847
    %v10313 = vpop.f32.mrf.mxu0
    %v10314 = vadd.f32 %v9576, %v10313
    %10315 = vmatmul.f32.gmra.mxu0 %v9850
    %v10316 = vpop.f32.mrf.mxu0
    %v10317 = vadd.f32 %v9576, %v10316
    %10318 = vmatmul.f32.gmra.mxu0 %v9853
    %v10319 = vpop.f32.mrf.mxu0
    %v10320 = vadd.f32 %v9576, %v10319
    %10321 = vmatmul.f32.gmra.mxu0 %v9856
    %v10322 = vpop.f32.mrf.mxu0
    %v10323 = vadd.f32 %v9576, %v10322
    %10324 = vmatmul.f32.gmra.mxu0 %v9859
    %v10325 = vpop.f32.mrf.mxu0
    %v10326 = vadd.f32 %v9576, %v10325
    %10327 = vmatmul.f32.gmra.mxu0 %v9862
    %v10328 = vpop.f32.mrf.mxu0
    %v10329 = vadd.f32 %v9576, %v10328
    %10330 = vmatmul.f32.gmra.mxu0 %v9865
    %v10331 = vpop.f32.mrf.mxu0
    %v10332 = vadd.f32 %v9576, %v10331
    %10333 = vmatmul.f32.gmra.mxu0 %v9868
    %v10334 = vpop.f32.mrf.mxu0
    %v10335 = vadd.f32 %v9576, %v10334
    %10336 = vmatmul.f32.gmra.mxu0 %v9871
    %v10337 = vpop.f32.mrf.mxu0
    %v10338 = vadd.f32 %v9576, %v10337
    %10339 = vmatmul.f32.gmra.mxu0 %v9874
    %v10340 = vpop.f32.mrf.mxu0
    %v10341 = vadd.f32 %v9576, %v10340
    %10342 = vmatmul.f32.gmra.mxu0 %v9877
    %v10343 = vpop.f32.mrf.mxu0
    %v10344 = vadd.f32 %v9576, %v10343
    %10345 = vmatmul.f32.gmra.mxu0 %v9880
    %v10346 = vpop.f32.mrf.mxu0
    %v10347 = vadd.f32 %v9576, %v10346
    %10348 = vmatmul.f32.gmra.mxu0 %v9883
    %v10349 = vpop.f32.mrf.mxu0
    %v10350 = vadd.f32 %v9576, %v10349
    %10351 = vmatmul.f32.gmra.mxu0 %v9886
    %v10352 = vpop.f32.mrf.mxu0
    %v10353 = vadd.f32 %v9576, %v10352
    %10354 = vmatmul.f32.gmra.mxu0 %v9889
    %v10355 = vpop.f32.mrf.mxu0
    %v10356 = vadd.f32 %v9576, %v10355
    %10357 = vmatmul.f32.gmra.mxu0 %v9892
    %v10358 = vpop.f32.mrf.mxu0
    %v10359 = vadd.f32 %v9576, %v10358
    %10360 = vmatmul.f32.gmra.mxu0 %v9895
    %v10361 = vpop.f32.mrf.mxu0
    %v10362 = vadd.f32 %v9576, %v10361
    %10363 = vmatmul.f32.gmra.mxu0 %v9898
    %v10364 = vpop.f32.mrf.mxu0
    %v10365 = vadd.f32 %v9576, %v10364
    %10366 = vmatmul.f32.gmra.mxu0 %v9901
    %v10367 = vpop.f32.mrf.mxu0
    %v10368 = vadd.f32 %v9576, %v10367
    %10369 = vmatmul.f32.gmra.mxu0 %v9904
    %v10370 = vpop.f32.mrf.mxu0
    %v10371 = vadd.f32 %v9576, %v10370
    %10372 = vmatmul.f32.gmra.mxu0 %v9907
    %v10373 = vpop.f32.mrf.mxu0
    %v10374 = vadd.f32 %v9576, %v10373
    %10375 = vmatmul.f32.gmra.mxu0 %v9910
    %v10376 = vpop.f32.mrf.mxu0
    %v10377 = vadd.f32 %v9576, %v10376
    %10378 = vmatmul.f32.gmra.mxu0 %v9913
    %v10379 = vpop.f32.mrf.mxu0
    %v10380 = vadd.f32 %v9576, %v10379
    %10381 = vmatmul.f32.gmra.mxu0 %v9916
    %v10382 = vpop.f32.mrf.mxu0
    %v10383 = vadd.f32 %v9576, %v10382
    %10384 = vmatmul.f32.gmra.mxu0 %v9919
    %v10385 = vpop.f32.mrf.mxu0
    %v10386 = vadd.f32 %v9576, %v10385
    %10387 = vmatmul.f32.gmra.mxu0 %v9922
    %v10388 = vpop.f32.mrf.mxu0
    %v10389 = vadd.f32 %v9576, %v10388
    %10390 = vmatmul.f32.gmra.mxu0 %v9925
    %v10391 = vpop.f32.mrf.mxu0
    %v10392 = vadd.f32 %v9576, %v10391
    %10393 = vmatmul.f32.gmra.mxu0 %v9928
    %v10394 = vpop.f32.mrf.mxu0
    %v10395 = vadd.f32 %v9576, %v10394
    %10396 = vmatmul.f32.gmra.mxu0 %v9931
    %v10397 = vpop.f32.mrf.mxu0
    %v10398 = vadd.f32 %v9576, %v10397
    %10399 = vmatmul.f32.gmra.mxu0 %v9934
    %v10400 = vpop.f32.mrf.mxu0
    %v10401 = vadd.f32 %v9576, %v10400
    %10402 = vmatmul.f32.gmra.mxu0 %v9937
    %v10403 = vpop.f32.mrf.mxu0
    %v10404 = vadd.f32 %v9576, %v10403
    %10405 = vmatmul.f32.gmra.mxu0 %v9940
    %v10406 = vpop.f32.mrf.mxu0
    %v10407 = vadd.f32 %v9576, %v10406
    %10408 = vmatmul.f32.gmra.mxu0 %v9943
    %v10409 = vpop.f32.mrf.mxu0
    %v10410 = vadd.f32 %v9576, %v10409
    %10411 = vmatmul.f32.gmra.mxu0 %v9946
    %v10412 = vpop.f32.mrf.mxu0
    %v10413 = vadd.f32 %v9576, %v10412
    %10414 = vmatmul.f32.gmra.mxu0 %v9949
    %v10415 = vpop.f32.mrf.mxu0
    %v10416 = vadd.f32 %v9576, %v10415
    %10417 = vmatmul.f32.gmra.mxu0 %v9952
    %v10418 = vpop.f32.mrf.mxu0
    %v10419 = vadd.f32 %v9576, %v10418
    %10420 = vmatmul.f32.gmra.mxu0 %v9955
    %v10421 = vpop.f32.mrf.mxu0
    %v10422 = vadd.f32 %v9576, %v10421
    %10423 = vmatmul.f32.gmra.mxu0 %v9958
    %v10424 = vpop.f32.mrf.mxu0
    %v10425 = vadd.f32 %v9576, %v10424
    %10426 = vmatmul.f32.gmra.mxu0 %v9961
    %v10427 = vpop.f32.mrf.mxu0
    %v10428 = vadd.f32 %v9576, %v10427
    %10429 = vmatmul.f32.gmra.mxu0 %v9964
    %v10430 = vpop.f32.mrf.mxu0
    %v10431 = vadd.f32 %v9576, %v10430
    %10432 = vmatmul.f32.gmra.mxu0 %v9967
    %v10433 = vpop.f32.mrf.mxu0
    %v10434 = vadd.f32 %v9576, %v10433
    %10435 = vmatmul.f32.gmra.mxu0 %v9970
    %v10436 = vpop.f32.mrf.mxu0
    %v10437 = vadd.f32 %v9576, %v10436
    %10438 = vmatmul.f32.gmra.mxu0 %v9973
    %v10439 = vpop.f32.mrf.mxu0
    %v10440 = vadd.f32 %v9576, %v10439
    %10441 = vmatmul.f32.gmra.mxu0 %v9976
    %v10442 = vpop.f32.mrf.mxu0
    %v10443 = vadd.f32 %v9576, %v10442
    %10444 = vmatmul.f32.gmra.mxu0 %v9979
    %v10445 = vpop.f32.mrf.mxu0
    %v10446 = vadd.f32 %v9576, %v10445
    %10447 = vmatmul.f32.gmra.mxu0 %v9982
    %v10448 = vpop.f32.mrf.mxu0
    %v10449 = vadd.f32 %v9576, %v10448
    %10450 = vmatmul.f32.gmra.mxu0 %v9985
    %v10451 = vpop.f32.mrf.mxu0
    %v10452 = vadd.f32 %v9576, %v10451
    %10453 = vmatmul.f32.gmra.mxu0 %v9988
    %v10454 = vpop.f32.mrf.mxu0
    %v10455 = vadd.f32 %v9576, %v10454
    %10456 = vmatmul.f32.gmra.mxu0 %v9991
    %v10457 = vpop.f32.mrf.mxu0
    %v10458 = vadd.f32 %v9576, %v10457
    %10459 = vmatmul.f32.gmra.mxu0 %v9994
    %v10460 = vpop.f32.mrf.mxu0
    %v10461 = vadd.f32 %v9576, %v10460
    %10462 = vmatmul.f32.gmra.mxu0 %v9997
    %v10463 = vpop.f32.mrf.mxu0
    %v10464 = vadd.f32 %v9576, %v10463
    %10465 = vmatmul.f32.gmra.mxu0 %v10000
    %v10466 = vpop.f32.mrf.mxu0
    %v10467 = vadd.f32 %v9576, %v10466
    %10468 = vmatmul.f32.gmra.mxu0 %v10003
    %v10469 = vpop.f32.mrf.mxu0
    %v10470 = vadd.f32 %v9576, %v10469
    %10471 = vmatmul.f32.gmra.mxu0 %v10006
    %v10472 = vpop.f32.mrf.mxu0
    %v10473 = vadd.f32 %v9576, %v10472
    %10474 = vmatmul.f32.gmra.mxu0 %v10009
    %v10475 = vpop.f32.mrf.mxu0
    %v10476 = vadd.f32 %v9576, %v10475
    %10477 = vmatmul.f32.gmra.mxu0 %v10012
    %v10478 = vpop.f32.mrf.mxu0
    %v10479 = vadd.f32 %v9576, %v10478
    %10480 = vmatmul.f32.gmra.mxu0 %v10015
    %v10481 = vpop.f32.mrf.mxu0
    %v10482 = vadd.f32 %v9576, %v10481
    %10483 = vmatmul.f32.gmra.mxu0 %v10018
    %v10484 = vpop.f32.mrf.mxu0
    %v10485 = vadd.f32 %v9576, %v10484
    %10486 = vmatmul.f32.gmra.mxu0 %v10021
    %v10487 = vpop.f32.mrf.mxu0
    %v10488 = vadd.f32 %v9576, %v10487
    %10489 = vmatmul.f32.gmra.mxu0 %v10024
    %v10490 = vpop.f32.mrf.mxu0
    %v10491 = vadd.f32 %v9576, %v10490
    %10492 = vmatmul.f32.gmra.mxu0 %v10027
    %v10493 = vpop.f32.mrf.mxu0
    %v10494 = vadd.f32 %v9576, %v10493
    %10495 = vdwg.mxu0
    %v10496 = vsub.f32 %v10047, %v42
    %v10497 = vsub.f32 %v10050, %v43
    %v10498 = vsub.f32 %v10053, %v44
    %v10499 = vsub.f32 %v10056, %v45
    %v10500 = vsub.f32 %v10059, %v46
    %v10501 = vsub.f32 %v10062, %v47
    %v10502 = vsub.f32 %v10065, %v48
    %v10503 = vsub.f32 %v10068, %v49
    %v10504 = vsub.f32 %v10071, %v50
    %v10505 = vsub.f32 %v10074, %v51
    %v10506 = vsub.f32 %v10077, %v52
    %v10507 = vsub.f32 %v10080, %v53
    %v10508 = vsub.f32 %v10083, %v54
    %v10509 = vsub.f32 %v10086, %v55
    %v10510 = vsub.f32 %v10089, %v56
    %v10511 = vsub.f32 %v10092, %v57
    %v10512 = vsub.f32 %v10095, %v58
    %v10513 = vsub.f32 %v10098, %v59
    %v10514 = vsub.f32 %v10101, %v60
    %v10515 = vsub.f32 %v10104, %v61
    %v10516 = vsub.f32 %v10107, %v62
    %v10517 = vsub.f32 %v10110, %v63
    %v10518 = vsub.f32 %v10113, %v64
    %v10519 = vsub.f32 %v10116, %v65
    %v10520 = vsub.f32 %v10119, %v66
    %v10521 = vsub.f32 %v10122, %v67
    %v10522 = vsub.f32 %v10125, %v68
    %v10523 = vsub.f32 %v10128, %v69
    %v10524 = vsub.f32 %v10131, %v70
    %v10525 = vsub.f32 %v10134, %v71
    %v10526 = vsub.f32 %v10137, %v72
    %v10527 = vsub.f32 %v10140, %v73
    %v10528 = vsub.f32 %v10143, %v74
    %v10529 = vsub.f32 %v10146, %v75
    %v10530 = vsub.f32 %v10149, %v76
    %v10531 = vsub.f32 %v10152, %v77
    %v10532 = vsub.f32 %v10155, %v78
    %v10533 = vsub.f32 %v10158, %v79
    %v10534 = vsub.f32 %v10161, %v80
    %v10535 = vsub.f32 %v10164, %v81
    %v10536 = vsub.f32 %v10167, %v82
    %v10537 = vsub.f32 %v10170, %v83
    %v10538 = vsub.f32 %v10173, %v84
    %v10539 = vsub.f32 %v10176, %v85
    %v10540 = vsub.f32 %v10179, %v86
    %v10541 = vsub.f32 %v10182, %v87
    %v10542 = vsub.f32 %v10185, %v88
    %v10543 = vsub.f32 %v10188, %v89
    %v10544 = vsub.f32 %v10191, %v90
    %v10545 = vsub.f32 %v10194, %v91
    %v10546 = vsub.f32 %v10197, %v92
    %v10547 = vsub.f32 %v10200, %v93
    %v10548 = vsub.f32 %v10203, %v94
    %v10549 = vsub.f32 %v10206, %v95
    %v10550 = vsub.f32 %v10209, %v96
    %v10551 = vsub.f32 %v10212, %v97
    %v10552 = vsub.f32 %v10215, %v98
    %v10553 = vsub.f32 %v10218, %v99
    %v10554 = vsub.f32 %v10221, %v100
    %v10555 = vsub.f32 %v10224, %v101
    %v10556 = vsub.f32 %v10227, %v102
    %v10557 = vsub.f32 %v10230, %v103
    %v10558 = vsub.f32 %v10233, %v104
    %v10559 = vsub.f32 %v10236, %v105
    %v10560 = vsub.f32 %v10239, %v106
    %v10561 = vsub.f32 %v10242, %v107
    %v10562 = vsub.f32 %v10245, %v108
    %v10563 = vsub.f32 %v10248, %v109
    %v10564 = vsub.f32 %v10251, %v110
    %v10565 = vsub.f32 %v10254, %v111
    %v10566 = vsub.f32 %v10257, %v112
    %v10567 = vsub.f32 %v10260, %v113
    %v10568 = vsub.f32 %v10263, %v114
    %v10569 = vsub.f32 %v10266, %v115
    %v10570 = vsub.f32 %v10269, %v116
    %v10571 = vsub.f32 %v10272, %v117
    %v10572 = vsub.f32 %v10275, %v118
    %v10573 = vsub.f32 %v10278, %v119
    %v10574 = vsub.f32 %v10281, %v120
    %v10575 = vsub.f32 %v10284, %v121
    %v10576 = vsub.f32 %v10287, %v122
    %v10577 = vsub.f32 %v10290, %v123
    %v10578 = vsub.f32 %v10293, %v124
    %v10579 = vsub.f32 %v10296, %v125
    %v10580 = vsub.f32 %v10299, %v126
    %v10581 = vsub.f32 %v10302, %v127
    %v10582 = vsub.f32 %v10305, %v128
    %v10583 = vsub.f32 %v10308, %v129
    %v10584 = vsub.f32 %v10311, %v130
    %v10585 = vsub.f32 %v10314, %v131
    %v10586 = vsub.f32 %v10317, %v132
    %v10587 = vsub.f32 %v10320, %v133
    %v10588 = vsub.f32 %v10323, %v134
    %v10589 = vsub.f32 %v10326, %v135
    %v10590 = vsub.f32 %v10329, %v136
    %v10591 = vsub.f32 %v10332, %v137
    %v10592 = vsub.f32 %v10335, %v138
    %v10593 = vsub.f32 %v10338, %v139
    %v10594 = vsub.f32 %v10341, %v140
    %v10595 = vsub.f32 %v10344, %v141
    %v10596 = vsub.f32 %v10347, %v142
    %v10597 = vsub.f32 %v10350, %v143
    %v10598 = vsub.f32 %v10353, %v144
    %v10599 = vsub.f32 %v10356, %v145
    %v10600 = vsub.f32 %v10359, %v146
    %v10601 = vsub.f32 %v10362, %v147
    %v10602 = vsub.f32 %v10365, %v148
    %v10603 = vsub.f32 %v10368, %v149
    %v10604 = vsub.f32 %v10371, %v150
    %v10605 = vsub.f32 %v10374, %v151
    %v10606 = vsub.f32 %v10377, %v152
    %v10607 = vsub.f32 %v10380, %v153
    %v10608 = vsub.f32 %v10383, %v154
    %v10609 = vsub.f32 %v10386, %v155
    %v10610 = vsub.f32 %v10389, %v156
    %v10611 = vsub.f32 %v10392, %v157
    %v10612 = vsub.f32 %v10395, %v158
    %v10613 = vsub.f32 %v10398, %v159
    %v10614 = vsub.f32 %v10401, %v160
    %v10615 = vsub.f32 %v10404, %v161
    %v10616 = vsub.f32 %v10407, %v162
    %v10617 = vsub.f32 %v10410, %v163
    %v10618 = vsub.f32 %v10413, %v164
    %v10619 = vsub.f32 %v10416, %v165
    %v10620 = vsub.f32 %v10419, %v166
    %v10621 = vsub.f32 %v10422, %v167
    %v10622 = vsub.f32 %v10425, %v168
    %v10623 = vsub.f32 %v10428, %v169
    %v10624 = vsub.f32 %v10431, %v170
    %v10625 = vsub.f32 %v10434, %v171
    %v10626 = vsub.f32 %v10437, %v172
    %v10627 = vsub.f32 %v10440, %v173
    %v10628 = vsub.f32 %v10443, %v174
    %v10629 = vsub.f32 %v10446, %v175
    %v10630 = vsub.f32 %v10449, %v176
    %v10631 = vsub.f32 %v10452, %v177
    %v10632 = vsub.f32 %v10455, %v178
    %v10633 = vsub.f32 %v10458, %v179
    %v10634 = vsub.f32 %v10461, %v180
    %v10635 = vsub.f32 %v10464, %v181
    %v10636 = vsub.f32 %v10467, %v182
    %v10637 = vsub.f32 %v10470, %v183
    %v10638 = vsub.f32 %v10473, %v184
    %v10639 = vsub.f32 %v10476, %v185
    %v10640 = vsub.f32 %v10479, %v186
    %v10641 = vsub.f32 %v10482, %v187
    %v10642 = vsub.f32 %v10485, %v188
    %v10643 = vsub.f32 %v10488, %v189
    %v10644 = vsub.f32 %v10491, %v190
    %v10645 = vsub.f32 %v10494, %v191
    %v10646 = vmul.f32 %v10496, %v10496
    %v10647 = vmul.f32 %v10497, %v10497
    %v10648 = vmul.f32 %v10498, %v10498
    %v10649 = vmul.f32 %v10499, %v10499
    %v10650 = vmul.f32 %v10500, %v10500
    %v10651 = vmul.f32 %v10501, %v10501
    %v10652 = vmul.f32 %v10502, %v10502
    %v10653 = vmul.f32 %v10503, %v10503
    %v10654 = vmul.f32 %v10504, %v10504
    %v10655 = vmul.f32 %v10505, %v10505
    %v10656 = vmul.f32 %v10506, %v10506
    %v10657 = vmul.f32 %v10507, %v10507
    %v10658 = vmul.f32 %v10508, %v10508
    %v10659 = vmul.f32 %v10509, %v10509
    %v10660 = vmul.f32 %v10510, %v10510
    %v10661 = vmul.f32 %v10511, %v10511
    %v10662 = vmul.f32 %v10512, %v10512
    %v10663 = vmul.f32 %v10513, %v10513
    %v10664 = vmul.f32 %v10514, %v10514
    %v10665 = vmul.f32 %v10515, %v10515
    %v10666 = vmul.f32 %v10516, %v10516
    %v10667 = vmul.f32 %v10517, %v10517
    %v10668 = vmul.f32 %v10518, %v10518
    %v10669 = vmul.f32 %v10519, %v10519
    %v10670 = vmul.f32 %v10520, %v10520
    %v10671 = vmul.f32 %v10521, %v10521
    %v10672 = vmul.f32 %v10522, %v10522
    %v10673 = vmul.f32 %v10523, %v10523
    %v10674 = vmul.f32 %v10524, %v10524
    %v10675 = vmul.f32 %v10525, %v10525
    %v10676 = vmul.f32 %v10526, %v10526
    %v10677 = vmul.f32 %v10527, %v10527
    %v10678 = vmul.f32 %v10528, %v10528
    %v10679 = vmul.f32 %v10529, %v10529
    %v10680 = vmul.f32 %v10530, %v10530
    %v10681 = vmul.f32 %v10531, %v10531
    %v10682 = vmul.f32 %v10532, %v10532
    %v10683 = vmul.f32 %v10533, %v10533
    %v10684 = vmul.f32 %v10534, %v10534
    %v10685 = vmul.f32 %v10535, %v10535
    %v10686 = vmul.f32 %v10536, %v10536
    %v10687 = vmul.f32 %v10537, %v10537
    %v10688 = vmul.f32 %v10538, %v10538
    %v10689 = vmul.f32 %v10539, %v10539
    %v10690 = vmul.f32 %v10540, %v10540
    %v10691 = vmul.f32 %v10541, %v10541
    %v10692 = vmul.f32 %v10542, %v10542
    %v10693 = vmul.f32 %v10543, %v10543
    %v10694 = vmul.f32 %v10544, %v10544
    %v10695 = vmul.f32 %v10545, %v10545
    %v10696 = vmul.f32 %v10546, %v10546
    %v10697 = vmul.f32 %v10547, %v10547
    %v10698 = vmul.f32 %v10548, %v10548
    %v10699 = vmul.f32 %v10549, %v10549
    %v10700 = vmul.f32 %v10550, %v10550
    %v10701 = vmul.f32 %v10551, %v10551
    %v10702 = vmul.f32 %v10552, %v10552
    %v10703 = vmul.f32 %v10553, %v10553
    %v10704 = vmul.f32 %v10554, %v10554
    %v10705 = vmul.f32 %v10555, %v10555
    %v10706 = vmul.f32 %v10556, %v10556
    %v10707 = vmul.f32 %v10557, %v10557
    %v10708 = vmul.f32 %v10558, %v10558
    %v10709 = vmul.f32 %v10559, %v10559
    %v10710 = vmul.f32 %v10560, %v10560
    %v10711 = vmul.f32 %v10561, %v10561
    %v10712 = vmul.f32 %v10562, %v10562
    %v10713 = vmul.f32 %v10563, %v10563
    %v10714 = vmul.f32 %v10564, %v10564
    %v10715 = vmul.f32 %v10565, %v10565
    %v10716 = vmul.f32 %v10566, %v10566
    %v10717 = vmul.f32 %v10567, %v10567
    %v10718 = vmul.f32 %v10568, %v10568
    %v10719 = vmul.f32 %v10569, %v10569
    %v10720 = vmul.f32 %v10570, %v10570
    %v10721 = vmul.f32 %v10571, %v10571
    %v10722 = vmul.f32 %v10572, %v10572
    %v10723 = vmul.f32 %v10573, %v10573
    %v10724 = vmul.f32 %v10574, %v10574
    %v10725 = vmul.f32 %v10575, %v10575
    %v10726 = vmul.f32 %v10576, %v10576
    %v10727 = vmul.f32 %v10577, %v10577
    %v10728 = vmul.f32 %v10578, %v10578
    %v10729 = vmul.f32 %v10579, %v10579
    %v10730 = vmul.f32 %v10580, %v10580
    %v10731 = vmul.f32 %v10581, %v10581
    %v10732 = vmul.f32 %v10582, %v10582
    %v10733 = vmul.f32 %v10583, %v10583
    %v10734 = vmul.f32 %v10584, %v10584
    %v10735 = vmul.f32 %v10585, %v10585
    %v10736 = vmul.f32 %v10586, %v10586
    %v10737 = vmul.f32 %v10587, %v10587
    %v10738 = vmul.f32 %v10588, %v10588
    %v10739 = vmul.f32 %v10589, %v10589
    %v10740 = vmul.f32 %v10590, %v10590
    %v10741 = vmul.f32 %v10591, %v10591
    %v10742 = vmul.f32 %v10592, %v10592
    %v10743 = vmul.f32 %v10593, %v10593
    %v10744 = vmul.f32 %v10594, %v10594
    %v10745 = vmul.f32 %v10595, %v10595
    %v10746 = vmul.f32 %v10596, %v10596
    %v10747 = vmul.f32 %v10597, %v10597
    %v10748 = vmul.f32 %v10598, %v10598
    %v10749 = vmul.f32 %v10599, %v10599
    %v10750 = vmul.f32 %v10600, %v10600
    %v10751 = vmul.f32 %v10601, %v10601
    %v10752 = vmul.f32 %v10602, %v10602
    %v10753 = vmul.f32 %v10603, %v10603
    %v10754 = vmul.f32 %v10604, %v10604
    %v10755 = vmul.f32 %v10605, %v10605
    %v10756 = vmul.f32 %v10606, %v10606
    %v10757 = vmul.f32 %v10607, %v10607
    %v10758 = vmul.f32 %v10608, %v10608
    %v10759 = vmul.f32 %v10609, %v10609
    %v10760 = vmul.f32 %v10610, %v10610
    %v10761 = vmul.f32 %v10611, %v10611
    %v10762 = vmul.f32 %v10612, %v10612
    %v10763 = vmul.f32 %v10613, %v10613
    %v10764 = vmul.f32 %v10614, %v10614
    %v10765 = vmul.f32 %v10615, %v10615
    %v10766 = vmul.f32 %v10616, %v10616
    %v10767 = vmul.f32 %v10617, %v10617
    %v10768 = vmul.f32 %v10618, %v10618
    %v10769 = vmul.f32 %v10619, %v10619
    %v10770 = vmul.f32 %v10620, %v10620
    %v10771 = vmul.f32 %v10621, %v10621
    %v10772 = vmul.f32 %v10622, %v10622
    %v10773 = vmul.f32 %v10623, %v10623
    %v10774 = vmul.f32 %v10624, %v10624
    %v10775 = vmul.f32 %v10625, %v10625
    %v10776 = vmul.f32 %v10626, %v10626
    %v10777 = vmul.f32 %v10627, %v10627
    %v10778 = vmul.f32 %v10628, %v10628
    %v10779 = vmul.f32 %v10629, %v10629
    %v10780 = vmul.f32 %v10630, %v10630
    %v10781 = vmul.f32 %v10631, %v10631
    %v10782 = vmul.f32 %v10632, %v10632
    %v10783 = vmul.f32 %v10633, %v10633
    %v10784 = vmul.f32 %v10634, %v10634
    %v10785 = vmul.f32 %v10635, %v10635
    %v10786 = vmul.f32 %v10636, %v10636
    %v10787 = vmul.f32 %v10637, %v10637
    %v10788 = vmul.f32 %v10638, %v10638
    %v10789 = vmul.f32 %v10639, %v10639
    %v10790 = vmul.f32 %v10640, %v10640
    %v10791 = vmul.f32 %v10641, %v10641
    %v10792 = vmul.f32 %v10642, %v10642
    %v10793 = vmul.f32 %v10643, %v10643
    %v10794 = vmul.f32 %v10644, %v10644
    %v10795 = vmul.f32 %v10645, %v10645
    %v10796 = vsel %vm5747, %v10646, 0.0
    %v10797 = vsel %vm5748, %v10647, 0.0
    %v10798 = vsel %vm5749, %v10648, 0.0
    %v10799 = vsel %vm5750, %v10649, 0.0
    %v10800 = vsel %vm5751, %v10650, 0.0
    %v10801 = vsel %vm5752, %v10651, 0.0
    %v10802 = vsel %vm5753, %v10652, 0.0
    %v10803 = vsel %vm5754, %v10653, 0.0
    %v10804 = vsel %vm5755, %v10654, 0.0
    %v10805 = vsel %vm5756, %v10655, 0.0
    %v10806 = vsel %vm5757, %v10656, 0.0
    %v10807 = vsel %vm5758, %v10657, 0.0
    %v10808 = vsel %vm5759, %v10658, 0.0
    %v10809 = vsel %vm5760, %v10659, 0.0
    %v10810 = vsel %vm5761, %v10660, 0.0
    %v10811 = vsel %vm5762, %v10661, 0.0
    %v10812 = vsel %vm5763, %v10662, 0.0
    %v10813 = vsel %vm5764, %v10663, 0.0
    %v10814 = vsel %vm5765, %v10664, 0.0
    %v10815 = vsel %vm5766, %v10665, 0.0
    %v10816 = vsel %vm5767, %v10666, 0.0
    %v10817 = vsel %vm5768, %v10667, 0.0
    %v10818 = vsel %vm5769, %v10668, 0.0
    %v10819 = vsel %vm5770, %v10669, 0.0
    %v10820 = vsel %vm5771, %v10670, 0.0
    %v10821 = vsel %vm5772, %v10671, 0.0
    %v10822 = vsel %vm5773, %v10672, 0.0
    %v10823 = vsel %vm5774, %v10673, 0.0
    %v10824 = vsel %vm5775, %v10674, 0.0
    %v10825 = vsel %vm5776, %v10675, 0.0
    %v10826 = vsel %vm5777, %v10676, 0.0
    %v10827 = vsel %vm5778, %v10677, 0.0
    %v10828 = vsel %vm5779, %v10678, 0.0
    %v10829 = vsel %vm5780, %v10679, 0.0
    %v10830 = vsel %vm5781, %v10680, 0.0
    %v10831 = vsel %vm5782, %v10681, 0.0
    %v10832 = vsel %vm5783, %v10682, 0.0
    %v10833 = vsel %vm5784, %v10683, 0.0
    %v10834 = vsel %vm5785, %v10684, 0.0
    %v10835 = vsel %vm5786, %v10685, 0.0
    %v10836 = vsel %vm5787, %v10686, 0.0
    %v10837 = vsel %vm5788, %v10687, 0.0
    %v10838 = vsel %vm5789, %v10688, 0.0
    %v10839 = vsel %vm5790, %v10689, 0.0
    %v10840 = vsel %vm5791, %v10690, 0.0
    %v10841 = vsel %vm5792, %v10691, 0.0
    %v10842 = vsel %vm5793, %v10692, 0.0
    %v10843 = vsel %vm5794, %v10693, 0.0
    %v10844 = vsel %vm5795, %v10694, 0.0
    %v10845 = vsel %vm5796, %v10695, 0.0
    %v10846 = vsel %vm5797, %v10696, 0.0
    %v10847 = vsel %vm5798, %v10697, 0.0
    %v10848 = vsel %vm5799, %v10698, 0.0
    %v10849 = vsel %vm5800, %v10699, 0.0
    %v10850 = vsel %vm5801, %v10700, 0.0
    %v10851 = vsel %vm5802, %v10701, 0.0
    %v10852 = vsel %vm5803, %v10702, 0.0
    %v10853 = vsel %vm5804, %v10703, 0.0
    %v10854 = vsel %vm5805, %v10704, 0.0
    %v10855 = vsel %vm5806, %v10705, 0.0
    %v10856 = vsel %vm5807, %v10706, 0.0
    %v10857 = vsel %vm5808, %v10707, 0.0
    %v10858 = vsel %vm5809, %v10708, 0.0
    %v10859 = vsel %vm5810, %v10709, 0.0
    %v10860 = vsel %vm5811, %v10710, 0.0
    %v10861 = vsel %vm5812, %v10711, 0.0
    %v10862 = vsel %vm5813, %v10712, 0.0
    %v10863 = vsel %vm5814, %v10713, 0.0
    %v10864 = vsel %vm5815, %v10714, 0.0
    %v10865 = vsel %vm5816, %v10715, 0.0
    %v10866 = vsel %vm5817, %v10716, 0.0
    %v10867 = vsel %vm5818, %v10717, 0.0
    %v10868 = vsel %vm5819, %v10718, 0.0
    %v10869 = vsel %vm5820, %v10719, 0.0
    %v10870 = vsel %vm5821, %v10720, 0.0
    %v10871 = vsel %vm5822, %v10721, 0.0
    %v10872 = vsel %vm5823, %v10722, 0.0
    %v10873 = vsel %vm5824, %v10723, 0.0
    %v10874 = vsel %vm5825, %v10724, 0.0
    %v10875 = vsel %vm5826, %v10725, 0.0
    %v10876 = vsel %vm5827, %v10726, 0.0
    %v10877 = vsel %vm5828, %v10727, 0.0
    %v10878 = vsel %vm5829, %v10728, 0.0
    %v10879 = vsel %vm5830, %v10729, 0.0
    %v10880 = vsel %vm5831, %v10730, 0.0
    %v10881 = vsel %vm5832, %v10731, 0.0
    %v10882 = vsel %vm5833, %v10732, 0.0
    %v10883 = vsel %vm5834, %v10733, 0.0
    %v10884 = vsel %vm5835, %v10734, 0.0
    %v10885 = vsel %vm5836, %v10735, 0.0
    %v10886 = vsel %vm5837, %v10736, 0.0
    %v10887 = vsel %vm5838, %v10737, 0.0
    %v10888 = vsel %vm5839, %v10738, 0.0
    %v10889 = vsel %vm5840, %v10739, 0.0
    %v10890 = vsel %vm5841, %v10740, 0.0
    %v10891 = vsel %vm5842, %v10741, 0.0
    %v10892 = vsel %vm5843, %v10742, 0.0
    %v10893 = vsel %vm5844, %v10743, 0.0
    %v10894 = vsel %vm5845, %v10744, 0.0
    %v10895 = vsel %vm5846, %v10745, 0.0
    %v10896 = vsel %vm5847, %v10746, 0.0
    %v10897 = vsel %vm5848, %v10747, 0.0
    %v10898 = vsel %vm5849, %v10748, 0.0
    %v10899 = vsel %vm5850, %v10749, 0.0
    %v10900 = vsel %vm5851, %v10750, 0.0
    %v10901 = vsel %vm5852, %v10751, 0.0
    %v10902 = vsel %vm5853, %v10752, 0.0
    %v10903 = vsel %vm5854, %v10753, 0.0
    %v10904 = vsel %vm5855, %v10754, 0.0
    %v10905 = vsel %vm5856, %v10755, 0.0
    %v10906 = vsel %vm5857, %v10756, 0.0
    %v10907 = vsel %vm5858, %v10757, 0.0
    %v10908 = vsel %vm5859, %v10758, 0.0
    %v10909 = vsel %vm5860, %v10759, 0.0
    %v10910 = vsel %vm5861, %v10760, 0.0
    %v10911 = vsel %vm5862, %v10761, 0.0
    %v10912 = vsel %vm5863, %v10762, 0.0
    %v10913 = vsel %vm5864, %v10763, 0.0
    %v10914 = vsel %vm5865, %v10764, 0.0
    %v10915 = vsel %vm5866, %v10765, 0.0
    %v10916 = vsel %vm5867, %v10766, 0.0
    %v10917 = vsel %vm5868, %v10767, 0.0
    %v10918 = vsel %vm5869, %v10768, 0.0
    %v10919 = vsel %vm5870, %v10769, 0.0
    %v10920 = vsel %vm5871, %v10770, 0.0
    %v10921 = vsel %vm5872, %v10771, 0.0
    %v10922 = vsel %vm5873, %v10772, 0.0
    %v10923 = vsel %vm5874, %v10773, 0.0
    %v10924 = vsel %vm5875, %v10774, 0.0
    %v10925 = vsel %vm5876, %v10775, 0.0
    %v10926 = vsel %vm5877, %v10776, 0.0
    %v10927 = vsel %vm5878, %v10777, 0.0
    %v10928 = vsel %vm5879, %v10778, 0.0
    %v10929 = vsel %vm5880, %v10779, 0.0
    %v10930 = vsel %vm5881, %v10780, 0.0
    %v10931 = vsel %vm5882, %v10781, 0.0
    %v10932 = vsel %vm5883, %v10782, 0.0
    %v10933 = vsel %vm5884, %v10783, 0.0
    %v10934 = vsel %vm5885, %v10784, 0.0
    %v10935 = vsel %vm5886, %v10785, 0.0
    %v10936 = vsel %vm5887, %v10786, 0.0
    %v10937 = vsel %vm5888, %v10787, 0.0
    %v10938 = vsel %vm5889, %v10788, 0.0
    %v10939 = vsel %vm5890, %v10789, 0.0
    %v10940 = vsel %vm5891, %v10790, 0.0
    %v10941 = vsel %vm5892, %v10791, 0.0
    %v10942 = vsel %vm5893, %v10792, 0.0
    %v10943 = vsel %vm5894, %v10793, 0.0
    %v10944 = vsel %vm5895, %v10794, 0.0
    %v10945 = vsel %vm5896, %v10795, 0.0
    %v10946 = vsel %vm7121, %v10796, 0.0
    %v10947 = vsel %vm7121, %v10797, 0.0
    %v10948 = vadd.f32 %v10946, %v10947
    %v10949 = vsel %vm7121, %v10798, 0.0
    %v10950 = vadd.f32 %v10948, %v10949
    %v10951 = vsel %vm7121, %v10799, 0.0
    %v10952 = vadd.f32 %v10950, %v10951
    %v10953 = vsel %vm7121, %v10800, 0.0
    %v10954 = vadd.f32 %v10952, %v10953
    %v10955 = vsel %vm7121, %v10801, 0.0
    %v10956 = vadd.f32 %v10954, %v10955
    %v10957 = vsel %vm7121, %v10802, 0.0
    %v10958 = vadd.f32 %v10956, %v10957
    %v10959 = vsel %vm7121, %v10803, 0.0
    %v10960 = vadd.f32 %v10958, %v10959
    %v10961 = vsel %vm7121, %v10804, 0.0
    %v10962 = vadd.f32 %v10960, %v10961
    %v10963 = vsel %vm7121, %v10805, 0.0
    %v10964 = vadd.f32 %v10962, %v10963
    %v10965 = vsel %vm7121, %v10806, 0.0
    %v10966 = vadd.f32 %v10964, %v10965
    %v10967 = vsel %vm7121, %v10807, 0.0
    %v10968 = vadd.f32 %v10966, %v10967
    %v10969 = vsel %vm7121, %v10808, 0.0
    %v10970 = vadd.f32 %v10968, %v10969
    %v10971 = vsel %vm7121, %v10809, 0.0
    %v10972 = vadd.f32 %v10970, %v10971
    %v10973 = vsel %vm7121, %v10810, 0.0
    %v10974 = vadd.f32 %v10972, %v10973
    %v10975 = vsel %vm7121, %v10811, 0.0
    %v10976 = vadd.f32 %v10974, %v10975
    %v10977 = vsel %vm7121, %v10812, 0.0
    %v10978 = vadd.f32 %v10976, %v10977
    %v10979 = vsel %vm7121, %v10813, 0.0
    %v10980 = vadd.f32 %v10978, %v10979
    %v10981 = vsel %vm7121, %v10814, 0.0
    %v10982 = vadd.f32 %v10980, %v10981
    %v10983 = vsel %vm7121, %v10815, 0.0
    %v10984 = vadd.f32 %v10982, %v10983
    %v10985 = vsel %vm7121, %v10816, 0.0
    %v10986 = vadd.f32 %v10984, %v10985
    %v10987 = vsel %vm7121, %v10817, 0.0
    %v10988 = vadd.f32 %v10986, %v10987
    %v10989 = vsel %vm7121, %v10818, 0.0
    %v10990 = vadd.f32 %v10988, %v10989
    %v10991 = vsel %vm7121, %v10819, 0.0
    %v10992 = vadd.f32 %v10990, %v10991
    %v10993 = vsel %vm7121, %v10820, 0.0
    %v10994 = vadd.f32 %v10992, %v10993
    %v10995 = vsel %vm7121, %v10821, 0.0
    %v10996 = vadd.f32 %v10994, %v10995
    %v10997 = vsel %vm7121, %v10822, 0.0
    %v10998 = vadd.f32 %v10996, %v10997
    %v10999 = vsel %vm7121, %v10823, 0.0
    %v11000 = vadd.f32 %v10998, %v10999
    %v11001 = vsel %vm7121, %v10824, 0.0
    %v11002 = vadd.f32 %v11000, %v11001
    %v11003 = vsel %vm7121, %v10825, 0.0
    %v11004 = vadd.f32 %v11002, %v11003
    %v11005 = vsel %vm7121, %v10826, 0.0
    %v11006 = vadd.f32 %v11004, %v11005
    %v11007 = vsel %vm7121, %v10827, 0.0
    %v11008 = vadd.f32 %v11006, %v11007
    %v11009 = vsel %vm7121, %v10828, 0.0
    %v11010 = vadd.f32 %v11008, %v11009
    %v11011 = vsel %vm7121, %v10829, 0.0
    %v11012 = vadd.f32 %v11010, %v11011
    %v11013 = vsel %vm7121, %v10830, 0.0
    %v11014 = vadd.f32 %v11012, %v11013
    %v11015 = vsel %vm7121, %v10831, 0.0
    %v11016 = vadd.f32 %v11014, %v11015
    %v11017 = vsel %vm7121, %v10832, 0.0
    %v11018 = vadd.f32 %v11016, %v11017
    %v11019 = vsel %vm7121, %v10833, 0.0
    %v11020 = vadd.f32 %v11018, %v11019
    %v11021 = vsel %vm7121, %v10834, 0.0
    %v11022 = vadd.f32 %v11020, %v11021
    %v11023 = vsel %vm7121, %v10835, 0.0
    %v11024 = vadd.f32 %v11022, %v11023
    %v11025 = vsel %vm7121, %v10836, 0.0
    %v11026 = vadd.f32 %v11024, %v11025
    %v11027 = vsel %vm7121, %v10837, 0.0
    %v11028 = vadd.f32 %v11026, %v11027
    %v11029 = vsel %vm7121, %v10838, 0.0
    %v11030 = vadd.f32 %v11028, %v11029
    %v11031 = vsel %vm7121, %v10839, 0.0
    %v11032 = vadd.f32 %v11030, %v11031
    %v11033 = vsel %vm7121, %v10840, 0.0
    %v11034 = vadd.f32 %v11032, %v11033
    %v11035 = vsel %vm7121, %v10841, 0.0
    %v11036 = vadd.f32 %v11034, %v11035
    %v11037 = vsel %vm7121, %v10842, 0.0
    %v11038 = vadd.f32 %v11036, %v11037
    %v11039 = vsel %vm7121, %v10843, 0.0
    %v11040 = vadd.f32 %v11038, %v11039
    %v11041 = vsel %vm7121, %v10844, 0.0
    %v11042 = vadd.f32 %v11040, %v11041
    %v11043 = vsel %vm7121, %v10845, 0.0
    %v11044 = vadd.f32 %v11042, %v11043
    %v11045 = vsel %vm7121, %v10846, 0.0
    %v11046 = vadd.f32 %v11044, %v11045
    %v11047 = vsel %vm7121, %v10847, 0.0
    %v11048 = vadd.f32 %v11046, %v11047
    %v11049 = vsel %vm7121, %v10848, 0.0
    %v11050 = vadd.f32 %v11048, %v11049
    %v11051 = vsel %vm7121, %v10849, 0.0
    %v11052 = vadd.f32 %v11050, %v11051
    %v11053 = vsel %vm7121, %v10850, 0.0
    %v11054 = vadd.f32 %v11052, %v11053
    %v11055 = vsel %vm7121, %v10851, 0.0
    %v11056 = vadd.f32 %v11054, %v11055
    %v11057 = vsel %vm7121, %v10852, 0.0
    %v11058 = vadd.f32 %v11056, %v11057
    %v11059 = vsel %vm7121, %v10853, 0.0
    %v11060 = vadd.f32 %v11058, %v11059
    %v11061 = vsel %vm7121, %v10854, 0.0
    %v11062 = vadd.f32 %v11060, %v11061
    %v11063 = vsel %vm7121, %v10855, 0.0
    %v11064 = vadd.f32 %v11062, %v11063
    %v11065 = vsel %vm7121, %v10856, 0.0
    %v11066 = vadd.f32 %v11064, %v11065
    %v11067 = vsel %vm7121, %v10857, 0.0
    %v11068 = vadd.f32 %v11066, %v11067
    %v11069 = vsel %vm7121, %v10858, 0.0
    %v11070 = vadd.f32 %v11068, %v11069
    %v11071 = vsel %vm7121, %v10859, 0.0
    %v11072 = vadd.f32 %v11070, %v11071
    %v11073 = vsel %vm7121, %v10860, 0.0
    %v11074 = vadd.f32 %v11072, %v11073
    %v11075 = vsel %vm7121, %v10861, 0.0
    %v11076 = vadd.f32 %v11074, %v11075
    %v11077 = vsel %vm7121, %v10862, 0.0
    %v11078 = vadd.f32 %v11076, %v11077
    %v11079 = vsel %vm7121, %v10863, 0.0
    %v11080 = vadd.f32 %v11078, %v11079
    %v11081 = vsel %vm7121, %v10864, 0.0
    %v11082 = vadd.f32 %v11080, %v11081
    %v11083 = vsel %vm7121, %v10865, 0.0
    %v11084 = vadd.f32 %v11082, %v11083
    %v11085 = vsel %vm7121, %v10866, 0.0
    %v11086 = vadd.f32 %v11084, %v11085
    %v11087 = vsel %vm7121, %v10867, 0.0
    %v11088 = vadd.f32 %v11086, %v11087
    %v11089 = vsel %vm7121, %v10868, 0.0
    %v11090 = vadd.f32 %v11088, %v11089
    %v11091 = vsel %vm7121, %v10869, 0.0
    %v11092 = vadd.f32 %v11090, %v11091
    %v11093 = vsel %vm7121, %v10870, 0.0
    %v11094 = vadd.f32 %v11092, %v11093
    %v11095 = vsel %vm7121, %v10871, 0.0
    %v11096 = vadd.f32 %v11094, %v11095
    %v11097 = vsel %vm7121, %v10872, 0.0
    %v11098 = vadd.f32 %v11096, %v11097
    %v11099 = vsel %vm7121, %v10873, 0.0
    %v11100 = vadd.f32 %v11098, %v11099
    %v11101 = vsel %vm7121, %v10874, 0.0
    %v11102 = vadd.f32 %v11100, %v11101
    %v11103 = vsel %vm7121, %v10875, 0.0
    %v11104 = vadd.f32 %v11102, %v11103
    %v11105 = vsel %vm7121, %v10876, 0.0
    %v11106 = vadd.f32 %v11104, %v11105
    %v11107 = vsel %vm7121, %v10877, 0.0
    %v11108 = vadd.f32 %v11106, %v11107
    %v11109 = vsel %vm7121, %v10878, 0.0
    %v11110 = vadd.f32 %v11108, %v11109
    %v11111 = vsel %vm7121, %v10879, 0.0
    %v11112 = vadd.f32 %v11110, %v11111
    %v11113 = vsel %vm7121, %v10880, 0.0
    %v11114 = vadd.f32 %v11112, %v11113
    %v11115 = vsel %vm7121, %v10881, 0.0
    %v11116 = vadd.f32 %v11114, %v11115
    %v11117 = vsel %vm7121, %v10882, 0.0
    %v11118 = vadd.f32 %v11116, %v11117
    %v11119 = vsel %vm7121, %v10883, 0.0
    %v11120 = vadd.f32 %v11118, %v11119
    %v11121 = vsel %vm7121, %v10884, 0.0
    %v11122 = vadd.f32 %v11120, %v11121
    %v11123 = vsel %vm7121, %v10885, 0.0
    %v11124 = vadd.f32 %v11122, %v11123
    %v11125 = vsel %vm7121, %v10886, 0.0
    %v11126 = vadd.f32 %v11124, %v11125
    %v11127 = vsel %vm7121, %v10887, 0.0
    %v11128 = vadd.f32 %v11126, %v11127
    %v11129 = vsel %vm7121, %v10888, 0.0
    %v11130 = vadd.f32 %v11128, %v11129
    %v11131 = vsel %vm7121, %v10889, 0.0
    %v11132 = vadd.f32 %v11130, %v11131
    %v11133 = vsel %vm7121, %v10890, 0.0
    %v11134 = vadd.f32 %v11132, %v11133
    %v11135 = vsel %vm7121, %v10891, 0.0
    %v11136 = vadd.f32 %v11134, %v11135
    %v11137 = vsel %vm7121, %v10892, 0.0
    %v11138 = vadd.f32 %v11136, %v11137
    %v11139 = vsel %vm7121, %v10893, 0.0
    %v11140 = vadd.f32 %v11138, %v11139
    %v11141 = vsel %vm7121, %v10894, 0.0
    %v11142 = vadd.f32 %v11140, %v11141
    %v11143 = vsel %vm7121, %v10895, 0.0
    %v11144 = vadd.f32 %v11142, %v11143
    %v11145 = vsel %vm7121, %v10896, 0.0
    %v11146 = vadd.f32 %v11144, %v11145
    %v11147 = vsel %vm7121, %v10897, 0.0
    %v11148 = vadd.f32 %v11146, %v11147
    %v11149 = vsel %vm7121, %v10898, 0.0
    %v11150 = vadd.f32 %v11148, %v11149
    %v11151 = vsel %vm7121, %v10899, 0.0
    %v11152 = vadd.f32 %v11150, %v11151
    %v11153 = vsel %vm7121, %v10900, 0.0
    %v11154 = vadd.f32 %v11152, %v11153
    %v11155 = vsel %vm7121, %v10901, 0.0
    %v11156 = vadd.f32 %v11154, %v11155
    %v11157 = vsel %vm7121, %v10902, 0.0
    %v11158 = vadd.f32 %v11156, %v11157
    %v11159 = vsel %vm7121, %v10903, 0.0
    %v11160 = vadd.f32 %v11158, %v11159
    %v11161 = vsel %vm7121, %v10904, 0.0
    %v11162 = vadd.f32 %v11160, %v11161
    %v11163 = vsel %vm7121, %v10905, 0.0
    %v11164 = vadd.f32 %v11162, %v11163
    %v11165 = vsel %vm7121, %v10906, 0.0
    %v11166 = vadd.f32 %v11164, %v11165
    %v11167 = vsel %vm7121, %v10907, 0.0
    %v11168 = vadd.f32 %v11166, %v11167
    %v11169 = vsel %vm7121, %v10908, 0.0
    %v11170 = vadd.f32 %v11168, %v11169
    %v11171 = vsel %vm7121, %v10909, 0.0
    %v11172 = vadd.f32 %v11170, %v11171
    %v11173 = vsel %vm7121, %v10910, 0.0
    %v11174 = vadd.f32 %v11172, %v11173
    %v11175 = vsel %vm7121, %v10911, 0.0
    %v11176 = vadd.f32 %v11174, %v11175
    %v11177 = vsel %vm7121, %v10912, 0.0
    %v11178 = vadd.f32 %v11176, %v11177
    %v11179 = vsel %vm7121, %v10913, 0.0
    %v11180 = vadd.f32 %v11178, %v11179
    %v11181 = vsel %vm7121, %v10914, 0.0
    %v11182 = vadd.f32 %v11180, %v11181
    %v11183 = vsel %vm7121, %v10915, 0.0
    %v11184 = vadd.f32 %v11182, %v11183
    %v11185 = vsel %vm7121, %v10916, 0.0
    %v11186 = vadd.f32 %v11184, %v11185
    %v11187 = vsel %vm7121, %v10917, 0.0
    %v11188 = vadd.f32 %v11186, %v11187
    %v11189 = vsel %vm7121, %v10918, 0.0
    %v11190 = vadd.f32 %v11188, %v11189
    %v11191 = vsel %vm7121, %v10919, 0.0
    %v11192 = vadd.f32 %v11190, %v11191
    %v11193 = vsel %vm7121, %v10920, 0.0
    %v11194 = vadd.f32 %v11192, %v11193
    %v11195 = vsel %vm7121, %v10921, 0.0
    %v11196 = vadd.f32 %v11194, %v11195
    %v11197 = vsel %vm7121, %v10922, 0.0
    %v11198 = vadd.f32 %v11196, %v11197
    %v11199 = vsel %vm7121, %v10923, 0.0
    %v11200 = vadd.f32 %v11198, %v11199
    %v11201 = vsel %vm7121, %v10924, 0.0
    %v11202 = vadd.f32 %v11200, %v11201
    %v11203 = vsel %vm7121, %v10925, 0.0
    %v11204 = vadd.f32 %v11202, %v11203
    %v11205 = vsel %vm7121, %v10926, 0.0
    %v11206 = vadd.f32 %v11204, %v11205
    %v11207 = vsel %vm7121, %v10927, 0.0
    %v11208 = vadd.f32 %v11206, %v11207
    %v11209 = vsel %vm7121, %v10928, 0.0
    %v11210 = vadd.f32 %v11208, %v11209
    %v11211 = vsel %vm7121, %v10929, 0.0
    %v11212 = vadd.f32 %v11210, %v11211
    %v11213 = vsel %vm7121, %v10930, 0.0
    %v11214 = vadd.f32 %v11212, %v11213
    %v11215 = vsel %vm7121, %v10931, 0.0
    %v11216 = vadd.f32 %v11214, %v11215
    %v11217 = vsel %vm7121, %v10932, 0.0
    %v11218 = vadd.f32 %v11216, %v11217
    %v11219 = vsel %vm7121, %v10933, 0.0
    %v11220 = vadd.f32 %v11218, %v11219
    %v11221 = vsel %vm7121, %v10934, 0.0
    %v11222 = vadd.f32 %v11220, %v11221
    %v11223 = vsel %vm7121, %v10935, 0.0
    %v11224 = vadd.f32 %v11222, %v11223
    %v11225 = vsel %vm7121, %v10936, 0.0
    %v11226 = vadd.f32 %v11224, %v11225
    %v11227 = vsel %vm7121, %v10937, 0.0
    %v11228 = vadd.f32 %v11226, %v11227
    %v11229 = vsel %vm7121, %v10938, 0.0
    %v11230 = vadd.f32 %v11228, %v11229
    %v11231 = vsel %vm7121, %v10939, 0.0
    %v11232 = vadd.f32 %v11230, %v11231
    %v11233 = vsel %vm7121, %v10940, 0.0
    %v11234 = vadd.f32 %v11232, %v11233
    %v11235 = vsel %vm7121, %v10941, 0.0
    %v11236 = vadd.f32 %v11234, %v11235
    %v11237 = vsel %vm7121, %v10942, 0.0
    %v11238 = vadd.f32 %v11236, %v11237
    %v11239 = vsel %vm7121, %v10943, 0.0
    %v11240 = vadd.f32 %v11238, %v11239
    %v11241 = vsel %vm7121, %v10944, 0.0
    %v11242 = vadd.f32 %v11240, %v11241
    %v11243 = vsel %vm7121, %v10945, 0.0
    %v11244 = vadd.f32 %v11242, %v11243
    %11245 = vadd.xlane.f32.xlu0 %v11244
    %v11246 = vpop.xlane.xlu0 %11245
    %v11247 = vrot.slane %v11246, 4
    %v11248 = vadd.f32 %v11246, %v11247
    %v11249 = vrot.slane %v11248, 2
    %v11250 = vadd.f32 %v11248, %v11249
    %v11251 = vrot.slane %v11250, 1
    %v11252 = vadd.f32 %v11250, %v11251
    %s11253 = vtos %v11252
    %v11254 = vstv %s11253
    %v11255 = vmul.f32 %v11254, 0.017857144
    %vm11256 = vcmask 0
    %11257 = vst.msk [vmem:[#allocation4] sm:$0x1] %vm11256, %v11255
    // Predicated region
    $region38: #{tpu_custom_call.1} parent=1 // pred_check
      _
    $region39: #{tpu_custom_call.1} parent=1 // pred_check_branch
      %11259 = sbr.rel (0) target = $region41
    $region40: #{tpu_custom_call.1} parent=1 // pred_region
      %11261 = vsyncadd [#allocation5], 0
      %s11263 = sshll.u32 [#allocation4], 4
      %s11264 = int_to_ptr.vmem [resolvable:$true] %s11263
      %s11265 = sshll.u32 %s10, 4
      %s11266 = int_to_ptr.hbm [resolvable:$true] %s11265
      %11268 = dma.vmem_to_hbm [thread:$0]  %s11264, 16, %s11266, [#allocation5]
    $region41: #{tpu_custom_call.1} parent=1 // pred_fallthru
      _
    // Predicated region
    $region42: #{tpu_custom_call.1} parent=1 // pred_check
      _
    $region43: #{tpu_custom_call.1} parent=1 // pred_check_branch
      %11270 = sbr.rel (0) target = $region45
    $region44: #{tpu_custom_call.1} parent=1 // pred_region
      %11272 = dma.done [#allocation5], 16
    $region45: #{tpu_custom_call.1} parent=1 // pred_fallthru
      _
    %11273 = vsyncpa [#allocation5], 1

</llo_original>
